<compile_context>
chip_gen: v6e
topology: v6e:2x2x1
jax: 0.10.0
libtpu: 0.0.40
codegen_flags: <defaults>
</compile_context>

<pallas_src>
import functools
import math

import jax
import jax.numpy as jnp
import numpy as np
from jax.experimental import pallas as pl
from jax.experimental.pallas import tpu as pltpu


def liv_kernel(x_ref, wqkv_ref, bqkv_ref, bo_ref, o_ref, *,
               num_heads, head_dim, block_b, seq_len, out_width):
    """One block of `block_b` batch elements per grid step.

    x_ref    : (Bb, S, H)        input block, bf16
    wqkv_ref : (H, 3H)           packed [Wq*scale | Wk | Wv@Wo], (in,out), bf16
    bqkv_ref : (1, 3H)           packed [bq*scale | bk | bv@Wo], f32
    bo_ref   : (1, out_width)    grouped-conv bias, zero-padded to 128 lanes, f32
    o_ref    : (Bb, S, out_width) output block (lane-dense), f32
    """
    H = num_heads * head_dim
    Bb, S = block_b, seq_len

    # --- Fused featurizer (+ folded output projection on the V columns) -----
    # One MXU matmul over Bb*S rows; leading-dim reshape is layout-free.
    x2 = x_ref[...].reshape(Bb * S, H)                                  # bf16
    qkv = jnp.dot(x2, wqkv_ref[...],
                  preferred_element_type=jnp.float32) + bqkv_ref[0]     # (M,3H) f32
    qkv = qkv.astype(jnp.bfloat16).reshape(Bb, S, 3 * H)

    # --- Stack all (head, batch) attention problems along the batch axis ----
    q_parts, k_parts, v_parts = [], [], []
    for h in range(num_heads):
        lo = h * head_dim
        q_parts.append(qkv[:, :, lo:lo + head_dim])                # (Bb,S,d)
        k_parts.append(qkv[:, :, H + lo:H + lo + head_dim])
        v_parts.append(qkv[:, :, 2 * H + lo:2 * H + lo + head_dim])
    q_all = jnp.concatenate(q_parts, axis=0)                       # (nh*Bb,S,d)
    k_all = jnp.concatenate(k_parts, axis=0)
    v_all = jnp.concatenate(v_parts, axis=0)

    # scores = q @ k^T (scale pre-folded into Wq/bq), one batched dot.
    s = jnp.einsum('bqd,bkd->bqk', q_all, k_all,
                   preferred_element_type=jnp.float32)             # (nh*Bb,S,S)
    # Single softmax pass over every head & batch element (f32 on VPU/EUP).
    s = s - jnp.max(s, axis=-1, keepdims=True)
    p = jnp.exp(s)
    p = p * pl.reciprocal(jnp.sum(p, axis=-1, keepdims=True), approx=True)

    # PV directly produces the final per-head output (Wo already folded in V).
    o_all = jnp.einsum('bqk,bkd->bqd', p.astype(jnp.bfloat16), v_all,
                       preferred_element_type=jnp.float32)         # (nh*Bb,S,d)

    # --- Reassemble heads on the channel axis, pad to lane-dense width ------
    pieces = [o_all[h * Bb:(h + 1) * Bb] for h in range(num_heads)]
    if out_width > H:
        pieces.append(jnp.zeros((Bb, S, out_width - H), jnp.float32))
    y = jnp.concatenate(pieces, axis=-1) + bo_ref[0]               # (Bb,S,out_w)
    o_ref[...] = y.astype(o_ref.dtype)                             # unmasked vst


def liv_operator(x, packed, *, num_heads, block_b=8):
    B, S, H = x.shape
    head_dim = H // num_heads
    block_b = min(block_b, B)
    assert B % block_b == 0, "batch must be divisible by block_b"
    out_w = packed["bo"].shape[1]          # H rounded up to a 128-lane multiple

    kernel = functools.partial(
        liv_kernel, num_heads=num_heads, head_dim=head_dim,
        block_b=block_b, seq_len=S, out_width=out_w)

    def invariant(shape):
        return pl.BlockSpec(shape, lambda b: (0,) * len(shape))

    x_bf = x.astype(jnp.bfloat16)          # matmul operand only -> halve the DMA

    out = pl.pallas_call(
        kernel,
        out_shape=jax.ShapeDtypeStruct((B, S, out_w), jnp.float32),
        grid_spec=pltpu.PrefetchScalarGridSpec(
            num_scalar_prefetch=0,
            grid=(B // block_b,),
            in_specs=[
                pl.BlockSpec((block_b, S, H), lambda b: (b, 0, 0)),   # x (bf16)
                invariant((H, 3 * H)),                                # Wqkv
                invariant((1, 3 * H)),                                # bqkv
                invariant((1, out_w)),                                # bo (padded)
            ],
            out_specs=pl.BlockSpec((block_b, S, out_w), lambda b: (b, 0, 0)),
        ),
        compiler_params=pltpu.CompilerParams(
            dimension_semantics=("parallel",)),
    )(x_bf, packed["wqkv"], packed["bqkv"], packed["bo"])

    return out[:, :, :H].astype(x.dtype)


def make_params(key, hidden_dim, num_heads):
    """Deterministic parameter init mimicking nn.Linear / nn.Conv1d defaults."""
    head_dim = hidden_dim // num_heads
    ks = jax.random.split(key, 8)
    lin_bound = 1.0 / math.sqrt(hidden_dim)

    def u(k, shape, bound):
        return jax.random.uniform(k, shape, jnp.float32, -bound, bound)

    params = {
        # stored as (in, out) so kernel computes x @ W  (== x @ W_pt^T)
        "wq": u(ks[0], (hidden_dim, hidden_dim), lin_bound),
        "bq": u(ks[1], (1, hidden_dim), lin_bound),
        "wk": u(ks[2], (hidden_dim, hidden_dim), lin_bound),
        "bk": u(ks[3], (1, hidden_dim), lin_bound),
        "wv": u(ks[4], (hidden_dim, hidden_dim), lin_bound),
        "bv": u(ks[5], (1, hidden_dim), lin_bound),
    }
    # grouped Conv1d(H, H, k=1, groups=num_heads): per-head (d, d) matrices,
    # stored (in, out) so out_head = in_head @ W_h
    conv_bound = 1.0 / math.sqrt(head_dim)  # fan_in = head_dim * kernel_size(=1)
    params["wo"] = u(ks[6], (num_heads, head_dim, head_dim), conv_bound)
    params["bo"] = u(ks[7], (1, hidden_dim), conv_bound)
    return params


def pack_params(params, *, num_heads):
    """Wrapper-side packing:
      * softmax scale folded into Wq / bq,
      * grouped 1x1-conv (Wo) folded into Wv / bv per head (exact, in f32),
      * single fused (H, 3H) QKV weight (bf16) + (1, 3H) bias (f32),
      * bo zero-padded to a 128-lane multiple for the lane-dense output store."""
    H = params["wq"].shape[0]
    d = H // num_heads
    scale = 1.0 / math.sqrt(d)

    # Fold Wo into Wv / bv:  v'_h = x @ (Wv_h @ Wo_h) + (bv_h @ Wo_h)
    wv3 = params["wv"].reshape(H, num_heads, d)
    bv3 = params["bv"].reshape(1, num_heads, d)
    wv_fold = jnp.einsum("ihd,hde->ihe", wv3, params["wo"]).reshape(H, H)
    bv_fold = jnp.einsum("ohd,hde->ohe", bv3, params["wo"]).reshape(1, H)

    wqkv = jnp.concatenate(
        [params["wq"] * scale, params["wk"], wv_fold], axis=1)       # (H, 3H)
    bqkv = jnp.concatenate(
        [params["bq"] * scale, params["bk"], bv_fold], axis=1)       # (1, 3H)

    out_w = ((H + 127) // 128) * 128                                 # >= 128
    bo_pad = jnp.zeros((1, out_w), jnp.float32).at[:, :H].set(params["bo"])

    return {
        "wqkv": wqkv.astype(jnp.bfloat16),
        "bqkv": bqkv.astype(jnp.float32),
        "bo":   bo_pad,
    }


def liv_reference(x, params, *, num_heads):
    """Pure-JAX f32 reference matching the PyTorch forward (eval mode)."""
    B, S, H = x.shape
    d = H // num_heads
    scale = 1.0 / math.sqrt(d)
    q = x @ params["wq"] + params["bq"][0]
    k = x @ params["wk"] + params["bk"][0]
    v = x @ params["wv"] + params["bv"][0]

    def split_heads(t):  # (B,S,H) -> (B,nh,S,d)
        return t.reshape(B, S, num_heads, d).transpose(0, 2, 1, 3)

    q, k, v = split_heads(q), split_heads(k), split_heads(v)
    attn = jnp.einsum("bhqd,bhkd->bhqk", q, k) * scale
    attn = jax.nn.softmax(attn, axis=-1)
    out = jnp.einsum("bhqk,bhkd->bhqd", attn, v)          # (B,nh,S,d)
    # grouped 1x1 conv == per-head matmul
    out = jnp.einsum("bhsd,hde->bhse", out, params["wo"])
    out = out.transpose(0, 2, 1, 3).reshape(B, S, H) + params["bo"][0]
    return out


if __name__ == "__main__":
    # B chosen so grid = B/block_b = 4 -> 2 steps per TensorCore on v7x and a
    # featurizer M-dim of block_b*S = 128 rows (v5e MXU fill).
    B, S, H, NH = 32, 16, 64, 8
    BLOCK_B = 8

    key = jax.random.PRNGKey(0)
    k_x, k_p = jax.random.split(key)
    x = jax.random.normal(k_x, (B, S, H), dtype=jnp.float32)
    params = make_params(k_p, H, NH)
    packed = pack_params(params, num_heads=NH)

    out = liv_operator(x, packed, num_heads=NH, block_b=BLOCK_B)
    out = jax.block_until_ready(out)

    ref = liv_reference(x, params, num_heads=NH)
    # kernel uses bf16 matmul operands + approx reciprocal -> modest tolerance
    np.testing.assert_allclose(np.asarray(out), np.asarray(ref),
                               rtol=2e-2, atol=2e-2)

    print("KERNEL_OK")
</pallas_src>

<mosaic_0001>
module attributes {stable_mosaic.version = 11 : i64} {
  func.func @liv_kernel(%arg0: i32, %arg1: memref<8x16x64xbf16, #tpu.memory_space<vmem>>, %arg2: memref<64x192xbf16, #tpu.memory_space<vmem>>, %arg3: memref<1x192xf32, #tpu.memory_space<vmem>>, %arg4: memref<1x128xf32, #tpu.memory_space<vmem>>, %arg5: memref<8x16x128xf32, #tpu.memory_space<vmem>>) attributes {dimension_semantics = [#tpu.dimension_semantics<parallel>], iteration_bounds = array<i64: 4>, scalar_prefetch = 0 : i64, scratch_operands = 0 : i64, tpu.core_type = #tpu.core_type<tc>, window_params = [{transform_indices = @transform_0, window_bounds = array<i64: 8, 16, 64>}, {pipeline_mode = #tpu.pipeline_mode<synchronous>, transform_indices = @transform_1, window_bounds = array<i64: 64, 192>}, {pipeline_mode = #tpu.pipeline_mode<synchronous>, transform_indices = @transform_2, window_bounds = array<i64: 1, 192>}, {pipeline_mode = #tpu.pipeline_mode<synchronous>, transform_indices = @transform_3, window_bounds = array<i64: 1, 128>}, {transform_indices = @transform_4, window_bounds = array<i64: 8, 16, 128>}]} {
    %c0 = arith.constant 0 : index
    %c0_0 = arith.constant 0 : index
    %c0_1 = arith.constant 0 : index
    %0 = vector.load %arg1[%c0, %c0_0, %c0_1] : memref<8x16x64xbf16, #tpu.memory_space<vmem>>, vector<8x16x64xbf16>
    %1 = vector.shape_cast %0 : vector<8x16x64xbf16> to vector<128x64xbf16>
    %c0_2 = arith.constant 0 : index
    %c0_3 = arith.constant 0 : index
    %2 = vector.load %arg2[%c0_2, %c0_3] : memref<64x192xbf16, #tpu.memory_space<vmem>>, vector<64x192xbf16>
    %cst = arith.constant dense<0.000000e+00> : vector<128x192xf32>
    %3 = tpu.matmul %1, %2, %cst {dimension_numbers = #tpu.dot_dimension_numbers<[1], [0], [0], [1], [0, 0, 1, 1], [], []>} : vector<128x64xbf16>, vector<64x192xbf16>, vector<128x192xf32> -> vector<128x192xf32>
    %c0_4 = arith.constant 0 : index
    %c0_5 = arith.constant 0 : index
    %4 = vector.load %arg3[%c0_4, %c0_5] : memref<1x192xf32, #tpu.memory_space<vmem>>, vector<1x192xf32>
    %5 = vector.shape_cast %4 : vector<1x192xf32> to vector<192xf32>
    %6 = vector.shape_cast %5 : vector<192xf32> to vector<1x192xf32>
    %7 = vector.broadcast %6 : vector<1x192xf32> to vector<128x192xf32>
    %8 = arith.addf %3, %7 : vector<128x192xf32>
    %9 = arith.truncf %8 : vector<128x192xf32> to vector<128x192xbf16>
    %10 = vector.shape_cast %9 : vector<128x192xbf16> to vector<8x16x192xbf16>
    %11 = vector.extract_strided_slice %10 {offsets = [0, 0, 0], sizes = [8, 16, 8], strides = [1, 1, 1]} : vector<8x16x192xbf16> to vector<8x16x8xbf16>
    %12 = vector.extract_strided_slice %10 {offsets = [0, 0, 64], sizes = [8, 16, 8], strides = [1, 1, 1]} : vector<8x16x192xbf16> to vector<8x16x8xbf16>
    %13 = vector.extract_strided_slice %10 {offsets = [0, 0, 128], sizes = [8, 16, 8], strides = [1, 1, 1]} : vector<8x16x192xbf16> to vector<8x16x8xbf16>
    %14 = vector.extract_strided_slice %10 {offsets = [0, 0, 8], sizes = [8, 16, 8], strides = [1, 1, 1]} : vector<8x16x192xbf16> to vector<8x16x8xbf16>
    %15 = vector.extract_strided_slice %10 {offsets = [0, 0, 72], sizes = [8, 16, 8], strides = [1, 1, 1]} : vector<8x16x192xbf16> to vector<8x16x8xbf16>
    %16 = vector.extract_strided_slice %10 {offsets = [0, 0, 136], sizes = [8, 16, 8], strides = [1, 1, 1]} : vector<8x16x192xbf16> to vector<8x16x8xbf16>
    %17 = vector.extract_strided_slice %10 {offsets = [0, 0, 16], sizes = [8, 16, 8], strides = [1, 1, 1]} : vector<8x16x192xbf16> to vector<8x16x8xbf16>
    %18 = vector.extract_strided_slice %10 {offsets = [0, 0, 80], sizes = [8, 16, 8], strides = [1, 1, 1]} : vector<8x16x192xbf16> to vector<8x16x8xbf16>
    %19 = vector.extract_strided_slice %10 {offsets = [0, 0, 144], sizes = [8, 16, 8], strides = [1, 1, 1]} : vector<8x16x192xbf16> to vector<8x16x8xbf16>
    %20 = vector.extract_strided_slice %10 {offsets = [0, 0, 24], sizes = [8, 16, 8], strides = [1, 1, 1]} : vector<8x16x192xbf16> to vector<8x16x8xbf16>
    %21 = vector.extract_strided_slice %10 {offsets = [0, 0, 88], sizes = [8, 16, 8], strides = [1, 1, 1]} : vector<8x16x192xbf16> to vector<8x16x8xbf16>
    %22 = vector.extract_strided_slice %10 {offsets = [0, 0, 152], sizes = [8, 16, 8], strides = [1, 1, 1]} : vector<8x16x192xbf16> to vector<8x16x8xbf16>
    %23 = vector.extract_strided_slice %10 {offsets = [0, 0, 32], sizes = [8, 16, 8], strides = [1, 1, 1]} : vector<8x16x192xbf16> to vector<8x16x8xbf16>
    %24 = vector.extract_strided_slice %10 {offsets = [0, 0, 96], sizes = [8, 16, 8], strides = [1, 1, 1]} : vector<8x16x192xbf16> to vector<8x16x8xbf16>
    %25 = vector.extract_strided_slice %10 {offsets = [0, 0, 160], sizes = [8, 16, 8], strides = [1, 1, 1]} : vector<8x16x192xbf16> to vector<8x16x8xbf16>
    %26 = vector.extract_strided_slice %10 {offsets = [0, 0, 40], sizes = [8, 16, 8], strides = [1, 1, 1]} : vector<8x16x192xbf16> to vector<8x16x8xbf16>
    %27 = vector.extract_strided_slice %10 {offsets = [0, 0, 104], sizes = [8, 16, 8], strides = [1, 1, 1]} : vector<8x16x192xbf16> to vector<8x16x8xbf16>
    %28 = vector.extract_strided_slice %10 {offsets = [0, 0, 168], sizes = [8, 16, 8], strides = [1, 1, 1]} : vector<8x16x192xbf16> to vector<8x16x8xbf16>
    %29 = vector.extract_strided_slice %10 {offsets = [0, 0, 48], sizes = [8, 16, 8], strides = [1, 1, 1]} : vector<8x16x192xbf16> to vector<8x16x8xbf16>
    %30 = vector.extract_strided_slice %10 {offsets = [0, 0, 112], sizes = [8, 16, 8], strides = [1, 1, 1]} : vector<8x16x192xbf16> to vector<8x16x8xbf16>
    %31 = vector.extract_strided_slice %10 {offsets = [0, 0, 176], sizes = [8, 16, 8], strides = [1, 1, 1]} : vector<8x16x192xbf16> to vector<8x16x8xbf16>
    %32 = vector.extract_strided_slice %10 {offsets = [0, 0, 56], sizes = [8, 16, 8], strides = [1, 1, 1]} : vector<8x16x192xbf16> to vector<8x16x8xbf16>
    %33 = vector.extract_strided_slice %10 {offsets = [0, 0, 120], sizes = [8, 16, 8], strides = [1, 1, 1]} : vector<8x16x192xbf16> to vector<8x16x8xbf16>
    %34 = vector.extract_strided_slice %10 {offsets = [0, 0, 184], sizes = [8, 16, 8], strides = [1, 1, 1]} : vector<8x16x192xbf16> to vector<8x16x8xbf16>
    %35 = tpu.concatenate %11, %14, %17, %20, %23, %26, %29, %32 in 0 : vector<8x16x8xbf16>, vector<8x16x8xbf16>, vector<8x16x8xbf16>, vector<8x16x8xbf16>, vector<8x16x8xbf16>, vector<8x16x8xbf16>, vector<8x16x8xbf16>, vector<8x16x8xbf16> -> vector<64x16x8xbf16>
    %36 = tpu.concatenate %12, %15, %18, %21, %24, %27, %30, %33 in 0 : vector<8x16x8xbf16>, vector<8x16x8xbf16>, vector<8x16x8xbf16>, vector<8x16x8xbf16>, vector<8x16x8xbf16>, vector<8x16x8xbf16>, vector<8x16x8xbf16>, vector<8x16x8xbf16> -> vector<64x16x8xbf16>
    %37 = tpu.concatenate %13, %16, %19, %22, %25, %28, %31, %34 in 0 : vector<8x16x8xbf16>, vector<8x16x8xbf16>, vector<8x16x8xbf16>, vector<8x16x8xbf16>, vector<8x16x8xbf16>, vector<8x16x8xbf16>, vector<8x16x8xbf16>, vector<8x16x8xbf16> -> vector<64x16x8xbf16>
    "tpu.trace_start"() <{level = 10 : i32, message = "bqd,bkd->bqk"}> : () -> ()
    %cst_6 = arith.constant dense<0.000000e+00> : vector<64x16x16xf32>
    %38 = tpu.matmul %35, %36, %cst_6 {dimension_numbers = #tpu.dot_dimension_numbers<[2], [2], [1], [1], [0, 0, 0, 1, 1, 1], [0], [0]>} : vector<64x16x8xbf16>, vector<64x16x8xbf16>, vector<64x16x16xf32> -> vector<64x16x16xf32>
    "tpu.trace_stop"() : () -> ()
    %cst_7 = arith.constant dense<0xFF800000> : vector<64x16xf32>
    %39 = vector.multi_reduction <maximumf>, %38, %cst_7 [2] : vector<64x16x16xf32> to vector<64x16xf32>
    %40 = vector.shape_cast %39 : vector<64x16xf32> to vector<64x16x1xf32>
    %41 = vector.broadcast %40 : vector<64x16x1xf32> to vector<64x16x16xf32>
    %42 = arith.subf %38, %41 : vector<64x16x16xf32>
    %43 = math.exp %42 : vector<64x16x16xf32>
    %cst_8 = arith.constant dense<0.000000e+00> : vector<64x16xf32>
    %44 = vector.multi_reduction <add>, %43, %cst_8 [2] : vector<64x16x16xf32> to vector<64x16xf32>
    %45 = vector.shape_cast %44 : vector<64x16xf32> to vector<64x16x1xf32>
    %46 = tpu.reciprocal %45 {approx = true} : vector<64x16x1xf32> -> vector<64x16x1xf32>
    %47 = vector.broadcast %46 : vector<64x16x1xf32> to vector<64x16x16xf32>
    %48 = arith.mulf %43, %47 : vector<64x16x16xf32>
    %49 = arith.truncf %48 : vector<64x16x16xf32> to vector<64x16x16xbf16>
    "tpu.trace_start"() <{level = 10 : i32, message = "bqk,bkd->bqd"}> : () -> ()
    %cst_9 = arith.constant dense<0.000000e+00> : vector<64x16x8xf32>
    %50 = tpu.matmul %49, %37, %cst_9 {dimension_numbers = #tpu.dot_dimension_numbers<[2], [1], [1], [2], [0, 0, 0, 1, 1, 2], [0], [0]>} : vector<64x16x16xbf16>, vector<64x16x8xbf16>, vector<64x16x8xf32> -> vector<64x16x8xf32>
    "tpu.trace_stop"() : () -> ()
    %51 = vector.extract_strided_slice %50 {offsets = [0, 0, 0], sizes = [8, 16, 8], strides = [1, 1, 1]} : vector<64x16x8xf32> to vector<8x16x8xf32>
    %52 = vector.extract_strided_slice %50 {offsets = [8, 0, 0], sizes = [8, 16, 8], strides = [1, 1, 1]} : vector<64x16x8xf32> to vector<8x16x8xf32>
    %53 = vector.extract_strided_slice %50 {offsets = [16, 0, 0], sizes = [8, 16, 8], strides = [1, 1, 1]} : vector<64x16x8xf32> to vector<8x16x8xf32>
    %54 = vector.extract_strided_slice %50 {offsets = [24, 0, 0], sizes = [8, 16, 8], strides = [1, 1, 1]} : vector<64x16x8xf32> to vector<8x16x8xf32>
    %55 = vector.extract_strided_slice %50 {offsets = [32, 0, 0], sizes = [8, 16, 8], strides = [1, 1, 1]} : vector<64x16x8xf32> to vector<8x16x8xf32>
    %56 = vector.extract_strided_slice %50 {offsets = [40, 0, 0], sizes = [8, 16, 8], strides = [1, 1, 1]} : vector<64x16x8xf32> to vector<8x16x8xf32>
    %57 = vector.extract_strided_slice %50 {offsets = [48, 0, 0], sizes = [8, 16, 8], strides = [1, 1, 1]} : vector<64x16x8xf32> to vector<8x16x8xf32>
    %58 = vector.extract_strided_slice %50 {offsets = [56, 0, 0], sizes = [8, 16, 8], strides = [1, 1, 1]} : vector<64x16x8xf32> to vector<8x16x8xf32>
    %cst_10 = arith.constant 0.000000e+00 : f32
    %59 = vector.broadcast %cst_10 : f32 to vector<8x16x64xf32>
    %60 = tpu.concatenate %51, %52, %53, %54, %55, %56, %57, %58, %59 in 2 : vector<8x16x8xf32>, vector<8x16x8xf32>, vector<8x16x8xf32>, vector<8x16x8xf32>, vector<8x16x8xf32>, vector<8x16x8xf32>, vector<8x16x8xf32>, vector<8x16x8xf32>, vector<8x16x64xf32> -> vector<8x16x128xf32>
    %c0_11 = arith.constant 0 : index
    %c0_12 = arith.constant 0 : index
    %61 = vector.load %arg4[%c0_11, %c0_12] : memref<1x128xf32, #tpu.memory_space<vmem>>, vector<1x128xf32>
    %62 = vector.shape_cast %61 : vector<1x128xf32> to vector<128xf32>
    %63 = vector.shape_cast %62 : vector<128xf32> to vector<1x1x128xf32>
    %64 = vector.broadcast %63 : vector<1x1x128xf32> to vector<8x16x128xf32>
    %65 = arith.addf %60, %64 : vector<8x16x128xf32>
    %c0_13 = arith.constant 0 : index
    %c0_14 = arith.constant 0 : index
    %c0_15 = arith.constant 0 : index
    %66 = vector.load %arg5[%c0_13, %c0_14, %c0_15] : memref<8x16x128xf32, #tpu.memory_space<vmem>>, vector<8x16x128xf32>
    tpu.vector_store %arg5[%c0_13, %c0_14, %c0_15], %65 {strides = array<i32>} : memref<8x16x128xf32, #tpu.memory_space<vmem>>, vector<8x16x128xf32>,
    return
  }
  func.func @transform_0(%arg0: i32) -> (i32, i32, i32) {
    %c0_i32 = arith.constant 0 : i32
    %c0_i32_0 = arith.constant 0 : i32
    %c0_i32_1 = arith.constant 0 : i32
    return %arg0, %c0_i32, %c0_i32_0 : i32, i32, i32
  }
  func.func @transform_1(%arg0: i32) -> (i32, i32) {
    %c0_i32 = arith.constant 0 : i32
    %c0_i32_0 = arith.constant 0 : i32
    %c0_i32_1 = arith.constant 0 : i32
    return %c0_i32, %c0_i32_0 : i32, i32
  }
  func.func @transform_2(%arg0: i32) -> (i32, i32) {
    %c0_i32 = arith.constant 0 : i32
    %c0_i32_0 = arith.constant 0 : i32
    %c0_i32_1 = arith.constant 0 : i32
    return %c0_i32, %c0_i32_0 : i32, i32
  }
  func.func @transform_3(%arg0: i32) -> (i32, i32) {
    %c0_i32 = arith.constant 0 : i32
    %c0_i32_0 = arith.constant 0 : i32
    %c0_i32_1 = arith.constant 0 : i32
    return %c0_i32, %c0_i32_0 : i32, i32
  }
  func.func @transform_4(%arg0: i32) -> (i32, i32, i32) {
    %c0_i32 = arith.constant 0 : i32
    %c0_i32_0 = arith.constant 0 : i32
    %c0_i32_1 = arith.constant 0 : i32
    return %arg0, %c0_i32, %c0_i32_0 : i32, i32, i32
  }
}

</mosaic_0001>

<llo_original>
// kernel: tpu_custom_call.1
$region0: #{tpu_custom_call.1}
  #allocation0 [shape = 'u32[]', space=smem, size = 0x4, offset = 0x4, fixed_abs, tag = 'smem constant byte address 0x4 - core index']
  #allocation1 [shape = 'u32[144,128]{1,0:T(1,128)}', space=vmem, size = 0x12000, scoped, tag = 'internal scratch']
  %s0 = inlined_call_operand.hbm [shape: bf16[32,16,64], index: 0, kind: input, shape index: {}]
  %s1 = inlined_call_operand.hbm [shape: bf16[64,192], index: 1, kind: input, shape index: {}]
  %s2 = inlined_call_operand.vmem [shape: f32[1,192], index: 2, kind: input, shape index: {}]
  %s3 = inlined_call_operand.vmem [shape: f32[1,128], index: 3, kind: input, shape index: {}]
  %s4 = inlined_call_operand.hbm [shape: f32[32,16,128], index: 4, kind: output, shape index: {}]
  %s5 = sld [smem:[#allocation0]]
  $region57: #{tpu_custom_call.1} parent=0
    _
  %s7 = ssub.s32 1, %s5
  %s8 = scalar_select 0, %s7, %s5
  $region1: #{tpu_custom_call.1} parent=0
    #allocation2 [shape = 'u8[65536]{0}', space=vmem, size = 0x10000, scoped, tag = 'input window, operand 0']
    #allocation3 [shape = 's32[2]{0}', space=sflag, size = 0x8, scoped, tag = 'scoped memory for tpu_custom_call.1']
    #allocation4 [shape = 's32[2]{0}', space=sflag, size = 0x8, scoped, tag = 'scoped memory for tpu_custom_call.1']
    #allocation5 [shape = 'u8[32768]{0}', space=vmem, size = 0x8000, scoped, tag = 'input window, operand 1, single buffered']
    #allocation6 [shape = 's32[1]{0}', space=sflag, size = 0x4, scoped, tag = 'scoped memory for tpu_custom_call.1']
    #allocation7 [shape = 'u8[131072]{0}', space=vmem, size = 0x20000, scoped, tag = 'output window, operand 0']
    %9 = vsyncpa [#allocation3], 0
    %s10 = scalar_lea.sflag [#allocation3], 1
    %11 = vsyncpa %s10, 0
    %12 = vsyncpa [#allocation6], 0
    %13 = vsyncpa [#allocation4], 0
    %s14 = scalar_lea.sflag [#allocation4], 1
    %15 = vsyncpa %s14, 0
    loop: start=0, step=1, limit=6
    $region2: #{tpu_custom_call.1} parent=1 // loop_pre_header
      _
    $region3: #{tpu_custom_call.1} parent=1 // loop_header
      %s17 = sphi 0, %s21
      %p18 = scmp.ge.s32.totalorder %s17, 6
      %s27 = sphi 0, %s29
      %s30 = sphi 0, %s27
      %s31 = sphi 0, %s30
      %s47 = sphi 0, %s31
      %s51 = sphi 0, %s51
      %s53 = sphi 0, %s51
      %s54 = sphi 0, %s53
      %s68 = sphi 0, %s54
      %s72 = sphi 0, %s72
      %s74 = sphi 0, %s72
      %s75 = sphi 0, %s74
      %s89 = sphi 0, %s75
      %s93 = sphi 0, %s93
      %s95 = sphi 0, %s93
      %s96 = sphi 0, %s95
      %s110 = sphi 0, %s96
      %s116 = sphi 0, %s118
      %s119 = sphi 0, %s116
      %s120 = sphi 0, %s119
      %s136 = sphi 0, %s120
    $region4: #{tpu_custom_call.1} parent=1 // loop_header_branch
      %20 = sbr.rel (%p18) target = $region8
    $region5: #{tpu_custom_call.1} parent=1 // loop_body
      %s22 = ssub.s32 %s17, 1
      %s23 = ssub.s32 %s17, 2
      %s24 = sadd.s32 %s17, 1
      %s25 = ssub.s32 %s17, %s24
      %p26 = scmp.eq.s32.totalorder %s25, 0
      %s28 = sadd.s32 %s27, 1
      %s29 = scalar_select %p26, %s27, %s28
      %p32 = pneg %p26
      %p33 = scmp.eq.s32.totalorder %s17, 3
      %p34 = por %p32, %p33
      %p35 = scmp.ne.s32.totalorder %s27, %s30
      %p36 = scmp.eq.s32.totalorder %s17, 0
      %p37 = por %p35, %p36
      %p38 = scmp.ne.s32.totalorder %s27, %s30
      %p39 = scmp.eq.s32.totalorder %s22, 3
      %p40 = por %p38, %p39
      %p41 = scmp.ne.s32.totalorder %s30, %s31
      %p42 = scmp.eq.s32.totalorder %s22, 0
      %p43 = por %p41, %p42
      %p44 = scmp.ne.s32.totalorder %s30, %s31
      %p45 = scmp.eq.s32.totalorder %s23, 3
      %p46 = por %p44, %p45
      %p48 = scmp.ne.s32.totalorder %s31, %s47
      %p49 = scmp.eq.s32.totalorder %s23, 0
      %p50 = por %p48, %p49
      %s52 = sadd.s32 %s51, 1
      %p55 = scmp.eq.s32.totalorder %s17, 3
      %p56 = scmp.ne.s32.totalorder %s51, %s53
      %p57 = scmp.eq.s32.totalorder %s17, 0
      %p58 = por %p56, %p57
      %p59 = scmp.ne.s32.totalorder %s51, %s53
      %p60 = scmp.eq.s32.totalorder %s22, 3
      %p61 = por %p59, %p60
      %p62 = scmp.ne.s32.totalorder %s53, %s54
      %p63 = scmp.eq.s32.totalorder %s22, 0
      %p64 = por %p62, %p63
      %p65 = scmp.ne.s32.totalorder %s53, %s54
      %p66 = scmp.eq.s32.totalorder %s23, 3
      %p67 = por %p65, %p66
      %p69 = scmp.ne.s32.totalorder %s54, %s68
      %p70 = scmp.eq.s32.totalorder %s23, 0
      %p71 = por %p69, %p70
      %s73 = sadd.s32 %s72, 1
      %p76 = scmp.eq.s32.totalorder %s17, 3
      %p77 = scmp.ne.s32.totalorder %s72, %s74
      %p78 = scmp.eq.s32.totalorder %s17, 0
      %p79 = por %p77, %p78
      %p80 = scmp.ne.s32.totalorder %s72, %s74
      %p81 = scmp.eq.s32.totalorder %s22, 3
      %p82 = por %p80, %p81
      %p83 = scmp.ne.s32.totalorder %s74, %s75
      %p84 = scmp.eq.s32.totalorder %s22, 0
      %p85 = por %p83, %p84
      %p86 = scmp.ne.s32.totalorder %s74, %s75
      %p87 = scmp.eq.s32.totalorder %s23, 3
      %p88 = por %p86, %p87
      %p90 = scmp.ne.s32.totalorder %s75, %s89
      %p91 = scmp.eq.s32.totalorder %s23, 0
      %p92 = por %p90, %p91
      %s94 = sadd.s32 %s93, 1
      %p97 = scmp.eq.s32.totalorder %s17, 3
      %p98 = scmp.ne.s32.totalorder %s93, %s95
      %p99 = scmp.eq.s32.totalorder %s17, 0
      %p100 = por %p98, %p99
      %p101 = scmp.ne.s32.totalorder %s93, %s95
      %p102 = scmp.eq.s32.totalorder %s22, 3
      %p103 = por %p101, %p102
      %p104 = scmp.ne.s32.totalorder %s95, %s96
      %p105 = scmp.eq.s32.totalorder %s22, 0
      %p106 = por %p104, %p105
      %p107 = scmp.ne.s32.totalorder %s95, %s96
      %p108 = scmp.eq.s32.totalorder %s23, 3
      %p109 = por %p107, %p108
      %p111 = scmp.ne.s32.totalorder %s96, %s110
      %p112 = scmp.eq.s32.totalorder %s23, 0
      %p113 = por %p111, %p112
      %s114 = ssub.s32 %s17, %s24
      %p115 = scmp.eq.s32.totalorder %s114, 0
      %s117 = sadd.s32 %s116, 1
      %s118 = scalar_select %p115, %s116, %s117
      %p121 = pneg %p115
      %p122 = scmp.eq.s32.totalorder %s17, 3
      %p123 = por %p121, %p122
      %p124 = scmp.ne.s32.totalorder %s116, %s119
      %p125 = scmp.eq.s32.totalorder %s17, 0
      %p126 = por %p124, %p125
      %p127 = scmp.ne.s32.totalorder %s116, %s119
      %p128 = scmp.eq.s32.totalorder %s22, 3
      %p129 = por %p127, %p128
      %p130 = scmp.ne.s32.totalorder %s119, %s120
      %p131 = scmp.eq.s32.totalorder %s22, 0
      %p132 = por %p130, %p131
      %p133 = scmp.ne.s32.totalorder %s119, %s120
      %p134 = scmp.eq.s32.totalorder %s23, 3
      %p135 = por %p133, %p134
      %p137 = scmp.ne.s32.totalorder %s120, %s136
      %p138 = scmp.eq.s32.totalorder %s23, 0
      %p139 = por %p137, %p138
      %p140 = scmp.le.s32.totalorder 1, %s17
      %p141 = scmp.lt.s32.totalorder %s17, 5
      %p142 = pnand %p140, %p141
      %p143 = pneg %p142
      // Predicated region
      $region9: #{tpu_custom_call.1} parent=5 // pred_check
        _
      $region10: #{tpu_custom_call.1} parent=5 // pred_check_branch
        %145 = sbr.rel (%p142) target = $region12
      $region11: #{tpu_custom_call.1} parent=5 // pred_region
        %s146 = ssub.s32 %s17, 1
        // Predicated region
        $region13: #{tpu_custom_call.1} parent=11 // pred_check
          %p147 = pneg %p64
        $region14: #{tpu_custom_call.1} parent=11 // pred_check_branch
          %149 = sbr.rel (%p147) target = $region16
        $region15: #{tpu_custom_call.1} parent=11 // pred_region
          %s151 = ssub.s32 1024, 1024
          %152 = vsyncadd [#allocation6], %s151
          %s153 = sshll.u32 [#allocation5], 4
          %s154 = int_to_ptr.vmem [resolvable:$true] %s153
          %159 = dma.hbm_to_vmem [thread:$0]  %s1, 1024, %s154, [#allocation6], 128, 128, 8
        $region16: #{tpu_custom_call.1} parent=11 // pred_fallthru
          _
        // Predicated region
        $region17: #{tpu_custom_call.1} parent=11 // pred_check
          %p160 = pneg %p85
        $region18: #{tpu_custom_call.1} parent=11 // pred_check_branch
          %162 = sbr.rel (%p160) target = $region20
        $region19: #{tpu_custom_call.1} parent=11 // pred_region
          _
        $region20: #{tpu_custom_call.1} parent=11 // pred_fallthru
          _
        // Predicated region
        $region21: #{tpu_custom_call.1} parent=11 // pred_check
          %p163 = pneg %p106
        $region22: #{tpu_custom_call.1} parent=11 // pred_check_branch
          %165 = sbr.rel (%p163) target = $region24
        $region23: #{tpu_custom_call.1} parent=11 // pred_region
          _
        $region24: #{tpu_custom_call.1} parent=11 // pred_fallthru
          _
      $region12: #{tpu_custom_call.1} parent=5 // pred_fallthru
        _
      %p166 = scmp.lt.s32.totalorder %s17, 4
      // Predicated region
      $region25: #{tpu_custom_call.1} parent=5 // pred_check
        %p167 = pneg %p166
      $region26: #{tpu_custom_call.1} parent=5 // pred_check_branch
        %169 = sbr.rel (%p167) target = $region28
      $region27: #{tpu_custom_call.1} parent=5 // pred_region
        // Predicated region
        $region29: #{tpu_custom_call.1} parent=27 // pred_check
          %p170 = pneg %p37
        $region30: #{tpu_custom_call.1} parent=27 // pred_check_branch
          %172 = sbr.rel (%p170) target = $region32
        $region31: #{tpu_custom_call.1} parent=27 // pred_region
          %s173 = sand.u32 %s27, 1
          %s174 = scalar_lea.sflag [#allocation3], %s173
          %s175 = sand.u32 %s27, 1
          %s176 = smul.addr %s175, 64
          %s177 = scalar_lea.vmem [#allocation2], %s176
          %s178 = smul.u32 8, %s17
          %s180 = ssub.s32 1024, 1024
          %181 = vsyncadd %s174, %s180
          %s182 = smul.addr %s178, 2
          %s183 = smul.addr %s182, 64
          %s184 = scalar_lea.hbm %s0, %s183
          %s185 = sshll.u32 %s177, 4
          %s186 = int_to_ptr.vmem [resolvable:$true] %s185
          %191 = dma.hbm_to_vmem [thread:$0]  %s184, 1024, %s186, %s174, 64, 64, 4
        $region32: #{tpu_custom_call.1} parent=27 // pred_fallthru
          _
      $region28: #{tpu_custom_call.1} parent=5 // pred_fallthru
        _
      %p192 = scmp.le.s32.totalorder 1, %s17
      %p193 = scmp.lt.s32.totalorder %s17, 5
      %p194 = pnand %p192, %p193
      %p195 = pneg %p194
      // Predicated region
      $region33: #{tpu_custom_call.1} parent=5 // pred_check
        _
      $region34: #{tpu_custom_call.1} parent=5 // pred_check_branch
        %197 = sbr.rel (%p194) target = $region36
      $region35: #{tpu_custom_call.1} parent=5 // pred_region
        %s198 = ssub.s32 %s17, 1
        %s199 = sand.u32 %s30, 1
        %s200 = scalar_lea.sflag [#allocation3], %s199
        %s201 = sand.u32 %s30, 1
        %s202 = smul.addr %s201, 64
        %s203 = scalar_lea.vmem [#allocation2], %s202
        // Predicated region
        $region37: #{tpu_custom_call.1} parent=35 // pred_check
          %p204 = pneg %p43
        $region38: #{tpu_custom_call.1} parent=35 // pred_check_branch
          %206 = sbr.rel (%p204) target = $region40
        $region39: #{tpu_custom_call.1} parent=35 // pred_region
          %207 = dma.done %s200, 1024
        $region40: #{tpu_custom_call.1} parent=35 // pred_fallthru
          _
        // Predicated region
        $region41: #{tpu_custom_call.1} parent=35 // pred_check
          %p208 = pneg %p64
        $region42: #{tpu_custom_call.1} parent=35 // pred_check_branch
          %210 = sbr.rel (%p208) target = $region44
        $region43: #{tpu_custom_call.1} parent=35 // pred_region
          %211 = dma.done [#allocation6], 1024
        $region44: #{tpu_custom_call.1} parent=35 // pred_fallthru
          _
        %s212 = sand.u32 %s30, 1
        %s213 = scalar_lea.sflag [#allocation3], %s212
        %s214 = sand.u32 %s30, 1
        %s215 = smul.addr %s214, 64
        %s216 = scalar_lea.vmem [#allocation2], %s215
        %p217 = pneg %p43
        %p218 = pneg %p40
        %p219 = pneg %p64
        %p220 = pneg %p61
        %p221 = pneg %p85
        %p222 = pneg %p82
        %p223 = pneg %p106
        %p224 = pneg %p103
        %p225 = pneg %p132
        %p226 = pneg %p129
        %s227 = sand.u32 %s119, 1
        %s228 = scalar_lea.sflag [#allocation4], %s227
        %s229 = sand.u32 %s119, 1
        %s230 = smul.addr %s229, 128
        %s231 = scalar_lea.vmem [#allocation7], %s230
        %s232 = smul.u32 8, %s22
        %s233 = smul.u32 8, %s22
        %v235 = vld [vmem:[%s203] sm:$0xf]
        %v236 = vld [vmem:[%s203 + $0x4] sm:$0xf]
        %v237 = vld [vmem:[%s203 + $0x8] sm:$0xf]
        %v238 = vld [vmem:[%s203 + $0xc] sm:$0xf]
        %v239 = vld [vmem:[%s203 + $0x10] sm:$0xf]
        %v240 = vld [vmem:[%s203 + $0x14] sm:$0xf]
        %v241 = vld [vmem:[%s203 + $0x18] sm:$0xf]
        %v242 = vld [vmem:[%s203 + $0x1c] sm:$0xf]
        %v243 = vld [vmem:[%s203 + $0x20] sm:$0xf]
        %v244 = vld [vmem:[%s203 + $0x24] sm:$0xf]
        %v245 = vld [vmem:[%s203 + $0x28] sm:$0xf]
        %v246 = vld [vmem:[%s203 + $0x2c] sm:$0xf]
        %v247 = vld [vmem:[%s203 + $0x30] sm:$0xf]
        %v248 = vld [vmem:[%s203 + $0x34] sm:$0xf]
        %v249 = vld [vmem:[%s203 + $0x38] sm:$0xf]
        %v250 = vld [vmem:[%s203 + $0x3c] sm:$0xf]
        %v251 = vld [vmem:[#allocation5] sm:$0xff]
        %v252 = vld [vmem:[#allocation5 + $0x8] sm:$0xff]
        %v253 = vld [vmem:[#allocation5 + $0x10] sm:$0xff]
        %v254 = vld [vmem:[#allocation5 + $0x18] sm:$0xff]
        %v255 = vld [vmem:[#allocation5 + $0x20] sm:$0xff]
        %v256 = vld [vmem:[#allocation5 + $0x28] sm:$0xff]
        %v257 = vld [vmem:[#allocation5 + $0x30] sm:$0xff]
        %v258 = vld [vmem:[#allocation5 + $0x38] sm:$0xff]
        %v259 = vld [vmem:[%s2] sm:$0x3]
        %v261 = vlaneseq
        %v262 = vshrl.u32 %v261, 7
        %v263 = vsub.s32 0, %v262
        %v264 = vrot.slane %v259, %v263
        %v265 = vlaneseq
        %v266 = vshrl.u32 %v265, 7
        %v267 = vsub.s32 1, %v266
        %v268 = vrot.slane %v259, %v267
        %v287 = vunpack.c.l.b16 %v235
        %v288 = vunpack.c.l.b16 %v236
        %v289 = vunpack.c.l.b16 %v237
        %v290 = vunpack.c.l.b16 %v238
        %v291 = vunpack.c.l.b16 %v239
        %v292 = vunpack.c.l.b16 %v240
        %v293 = vunpack.c.l.b16 %v241
        %v294 = vunpack.c.l.b16 %v242
        %v295 = vunpack.c.l.b16 %v243
        %v296 = vunpack.c.l.b16 %v244
        %v297 = vunpack.c.l.b16 %v245
        %v298 = vunpack.c.l.b16 %v246
        %v299 = vunpack.c.l.b16 %v247
        %v300 = vunpack.c.l.b16 %v248
        %v301 = vunpack.c.l.b16 %v249
        %v302 = vunpack.c.l.b16 %v250
        %v303 = vpack.c.b16 %v288, %v287
        %v304 = vpack.c.b16 %v290, %v289
        %v305 = vpack.c.b16 %v292, %v291
        %v306 = vpack.c.b16 %v294, %v293
        %v307 = vpack.c.b16 %v296, %v295
        %v308 = vpack.c.b16 %v298, %v297
        %v309 = vpack.c.b16 %v300, %v299
        %v310 = vpack.c.b16 %v302, %v301
        %v319 = vunpack.c.l.b16 %v251
        %v320 = vunpack.c.h.b16 %v251
        %v321 = vunpack.c.l.b16 %v252
        %v322 = vunpack.c.h.b16 %v252
        %v323 = vunpack.c.l.b16 %v253
        %v324 = vunpack.c.h.b16 %v253
        %v325 = vunpack.c.l.b16 %v254
        %v326 = vunpack.c.h.b16 %v254
        %v327 = vunpack.c.l.b16 %v255
        %v328 = vunpack.c.h.b16 %v255
        %v329 = vunpack.c.l.b16 %v256
        %v330 = vunpack.c.h.b16 %v256
        %v331 = vunpack.c.l.b16 %v257
        %v332 = vunpack.c.h.b16 %v257
        %v333 = vunpack.c.l.b16 %v258
        %v334 = vunpack.c.h.b16 %v258
        %v335 = vpack.c.b16 %v321, %v319
        %v336 = vpack.c.b16 %v322, %v320
        %v337 = vpack.c.b16 %v325, %v323
        %v338 = vpack.c.b16 %v326, %v324
        %v339 = vpack.c.b16 %v329, %v327
        %v340 = vpack.c.b16 %v330, %v328
        %v341 = vpack.c.b16 %v333, %v331
        %v342 = vpack.c.b16 %v334, %v332
        %vm351 = vcmask 523264
        %v353 = vsel %vm351, %v303, 0
        %v356 = vsel %vm351, %v304, 0
        %v359 = vsel %vm351, %v305, 0
        %v362 = vsel %vm351, %v306, 0
        %v365 = vsel %vm351, %v307, 0
        %v368 = vsel %vm351, %v308, 0
        %v371 = vsel %vm351, %v309, 0
        %v374 = vsel %vm351, %v310, 0
        %376 = vmatprep.subr.bf16.mxu0 0
        %377 = vmatpush1.bf16.msra.mxu0 0
        %378 = vmatprep.subr.bf16.mxu0 0
        %379 = vmatpush1.bf16.msra.mxu0 0
        %380 = vmatprep.subr.bf16.mxu0 0
        %381 = vmatpush1.bf16.msra.mxu0 0
        %382 = vmatprep.subr.bf16.mxu0 0
        %383 = vmatpush1.bf16.msra.mxu0 0
        %384 = vmatprep.subr.bf16.mxu0 %v342
        %385 = vmatpush1.bf16.msra.mxu0 %v341
        %386 = vmatprep.subr.bf16.mxu0 %v340
        %387 = vmatpush1.bf16.msra.mxu0 %v339
        %388 = vmatprep.subr.bf16.mxu0 %v338
        %389 = vmatpush1.bf16.msra.mxu0 %v337
        %390 = vmatprep.subr.bf16.mxu0 %v336
        %391 = vmatpush1.bf16.msra.mxu0 %v335
        %392 = vmatprep.subr.bf16.mxu0 0
        %393 = vmatpush2.bf16.msra.mxu0 0
        %394 = vmatprep.subr.bf16.mxu0 0
        %395 = vmatpush2.bf16.msra.mxu0 0
        %396 = vmatprep.subr.bf16.mxu0 0
        %397 = vmatpush2.bf16.msra.mxu0 0
        %398 = vmatprep.subr.bf16.mxu0 0
        %399 = vmatpush2.bf16.msra.mxu0 0
        %400 = vmatprep.subr.bf16.mxu0 0
        %401 = vmatpush2.bf16.msra.mxu0 0
        %402 = vmatprep.subr.bf16.mxu0 0
        %403 = vmatpush2.bf16.msra.mxu0 0
        %404 = vmatprep.subr.bf16.mxu0 0
        %405 = vmatpush2.bf16.msra.mxu0 0
        %406 = vmatprep.subr.bf16.mxu0 0
        %407 = vmatpush2.bf16.msra.mxu0 0
        %408 = vmatprep.mubr.bf16.mxu0 0
        %409 = vmatmul.mubr.bf16.gmra.mxu0 %v353
        %v410 = vpop.f32.mrf.mxu0
        %v411 = vadd.f32 %v264, %v410
        %v412 = vpop.f32.mrf.mxu0
        %v413 = vadd.f32 %v268, %v412
        %v414 = vpop.f32.mrf.mxu0
        %v415 = vadd.f32 %v264, %v414
        %v416 = vpop.f32.mrf.mxu0
        %v417 = vadd.f32 %v268, %v416
        %418 = vmatprep.mubr.bf16.mxu0 0
        %419 = vmatmul.mubr.bf16.gmra.mxu0 %v356
        %v420 = vpop.f32.mrf.mxu0
        %v421 = vadd.f32 %v264, %v420
        %v422 = vpop.f32.mrf.mxu0
        %v423 = vadd.f32 %v268, %v422
        %v424 = vpop.f32.mrf.mxu0
        %v425 = vadd.f32 %v264, %v424
        %v426 = vpop.f32.mrf.mxu0
        %v427 = vadd.f32 %v268, %v426
        %428 = vmatprep.mubr.bf16.mxu0 0
        %429 = vmatmul.mubr.bf16.gmra.mxu0 %v359
        %v430 = vpop.f32.mrf.mxu0
        %v431 = vadd.f32 %v264, %v430
        %v432 = vpop.f32.mrf.mxu0
        %v433 = vadd.f32 %v268, %v432
        %v434 = vpop.f32.mrf.mxu0
        %v435 = vadd.f32 %v264, %v434
        %v436 = vpop.f32.mrf.mxu0
        %v437 = vadd.f32 %v268, %v436
        %438 = vmatprep.mubr.bf16.mxu0 0
        %439 = vmatmul.mubr.bf16.gmra.mxu0 %v362
        %v440 = vpop.f32.mrf.mxu0
        %v441 = vadd.f32 %v264, %v440
        %v442 = vpop.f32.mrf.mxu0
        %v443 = vadd.f32 %v268, %v442
        %v444 = vpop.f32.mrf.mxu0
        %v445 = vadd.f32 %v264, %v444
        %v446 = vpop.f32.mrf.mxu0
        %v447 = vadd.f32 %v268, %v446
        %448 = vmatprep.mubr.bf16.mxu0 0
        %449 = vmatmul.mubr.bf16.gmra.mxu0 %v365
        %v450 = vpop.f32.mrf.mxu0
        %v451 = vadd.f32 %v264, %v450
        %v452 = vpop.f32.mrf.mxu0
        %v453 = vadd.f32 %v268, %v452
        %v454 = vpop.f32.mrf.mxu0
        %v455 = vadd.f32 %v264, %v454
        %v456 = vpop.f32.mrf.mxu0
        %v457 = vadd.f32 %v268, %v456
        %458 = vmatprep.mubr.bf16.mxu0 0
        %459 = vmatmul.mubr.bf16.gmra.mxu0 %v368
        %v460 = vpop.f32.mrf.mxu0
        %v461 = vadd.f32 %v264, %v460
        %v462 = vpop.f32.mrf.mxu0
        %v463 = vadd.f32 %v268, %v462
        %v464 = vpop.f32.mrf.mxu0
        %v465 = vadd.f32 %v264, %v464
        %v466 = vpop.f32.mrf.mxu0
        %v467 = vadd.f32 %v268, %v466
        %468 = vmatprep.mubr.bf16.mxu0 0
        %469 = vmatmul.mubr.bf16.gmra.mxu0 %v371
        %v470 = vpop.f32.mrf.mxu0
        %v471 = vadd.f32 %v264, %v470
        %v472 = vpop.f32.mrf.mxu0
        %v473 = vadd.f32 %v268, %v472
        %v474 = vpop.f32.mrf.mxu0
        %v475 = vadd.f32 %v264, %v474
        %v476 = vpop.f32.mrf.mxu0
        %v477 = vadd.f32 %v268, %v476
        %478 = vmatprep.mubr.bf16.mxu0 0
        %479 = vmatmul.mubr.bf16.gmra.mxu0 %v374
        %v480 = vpop.f32.mrf.mxu0
        %v481 = vadd.f32 %v264, %v480
        %v482 = vpop.f32.mrf.mxu0
        %v483 = vadd.f32 %v268, %v482
        %v484 = vpop.f32.mrf.mxu0
        %v485 = vadd.f32 %v264, %v484
        %v486 = vpop.f32.mrf.mxu0
        %v487 = vadd.f32 %v268, %v486
        %488 = vdwg.mxu0
        %v489 = vpack.c.bf16 %v415, %v411
        %v490 = vpack.c.bf16 %v417, %v413
        %v491 = vpack.c.bf16 %v425, %v421
        %v492 = vpack.c.bf16 %v427, %v423
        %v493 = vpack.c.bf16 %v435, %v431
        %v494 = vpack.c.bf16 %v437, %v433
        %v495 = vpack.c.bf16 %v445, %v441
        %v496 = vpack.c.bf16 %v447, %v443
        %v497 = vpack.c.bf16 %v455, %v451
        %v498 = vpack.c.bf16 %v457, %v453
        %v499 = vpack.c.bf16 %v465, %v461
        %v500 = vpack.c.bf16 %v467, %v463
        %v501 = vpack.c.bf16 %v475, %v471
        %v502 = vpack.c.bf16 %v477, %v473
        %v503 = vpack.c.bf16 %v485, %v481
        %v504 = vpack.c.bf16 %v487, %v483
        %513 = vrot.lane.b32.xlu0 %v489, 120
        %v514 = vpop.permute.xlu0 %513
        %515 = vrot.lane.b32.xlu0 %v491, 120
        %v516 = vpop.permute.xlu0 %515
        %517 = vrot.lane.b32.xlu0 %v493, 120
        %v518 = vpop.permute.xlu0 %517
        %519 = vrot.lane.b32.xlu0 %v495, 120
        %v520 = vpop.permute.xlu0 %519
        %521 = vrot.lane.b32.xlu0 %v497, 120
        %v522 = vpop.permute.xlu0 %521
        %523 = vrot.lane.b32.xlu0 %v499, 120
        %v524 = vpop.permute.xlu0 %523
        %525 = vrot.lane.b32.xlu0 %v501, 120
        %v526 = vpop.permute.xlu0 %525
        %527 = vrot.lane.b32.xlu0 %v503, 120
        %v528 = vpop.permute.xlu0 %527
        %529 = vrot.lane.b32.xlu0 %v489, 112
        %v530 = vpop.permute.xlu0 %529
        %531 = vrot.lane.b32.xlu0 %v491, 112
        %v532 = vpop.permute.xlu0 %531
        %533 = vrot.lane.b32.xlu0 %v493, 112
        %v534 = vpop.permute.xlu0 %533
        %535 = vrot.lane.b32.xlu0 %v495, 112
        %v536 = vpop.permute.xlu0 %535
        %537 = vrot.lane.b32.xlu0 %v497, 112
        %v538 = vpop.permute.xlu0 %537
        %539 = vrot.lane.b32.xlu0 %v499, 112
        %v540 = vpop.permute.xlu0 %539
        %541 = vrot.lane.b32.xlu0 %v501, 112
        %v542 = vpop.permute.xlu0 %541
        %543 = vrot.lane.b32.xlu0 %v503, 112
        %v544 = vpop.permute.xlu0 %543
        %545 = vrot.lane.b32.xlu0 %v489, 104
        %v546 = vpop.permute.xlu0 %545
        %547 = vrot.lane.b32.xlu0 %v491, 104
        %v548 = vpop.permute.xlu0 %547
        %549 = vrot.lane.b32.xlu0 %v493, 104
        %v550 = vpop.permute.xlu0 %549
        %551 = vrot.lane.b32.xlu0 %v495, 104
        %v552 = vpop.permute.xlu0 %551
        %553 = vrot.lane.b32.xlu0 %v497, 104
        %v554 = vpop.permute.xlu0 %553
        %555 = vrot.lane.b32.xlu0 %v499, 104
        %v556 = vpop.permute.xlu0 %555
        %557 = vrot.lane.b32.xlu0 %v501, 104
        %v558 = vpop.permute.xlu0 %557
        %559 = vrot.lane.b32.xlu0 %v503, 104
        %v560 = vpop.permute.xlu0 %559
        %561 = vrot.lane.b32.xlu0 %v489, 96
        %v562 = vpop.permute.xlu0 %561
        %563 = vrot.lane.b32.xlu0 %v491, 96
        %v564 = vpop.permute.xlu0 %563
        %565 = vrot.lane.b32.xlu0 %v493, 96
        %v566 = vpop.permute.xlu0 %565
        %567 = vrot.lane.b32.xlu0 %v495, 96
        %v568 = vpop.permute.xlu0 %567
        %569 = vrot.lane.b32.xlu0 %v497, 96
        %v570 = vpop.permute.xlu0 %569
        %571 = vrot.lane.b32.xlu0 %v499, 96
        %v572 = vpop.permute.xlu0 %571
        %573 = vrot.lane.b32.xlu0 %v501, 96
        %v574 = vpop.permute.xlu0 %573
        %575 = vrot.lane.b32.xlu0 %v503, 96
        %v576 = vpop.permute.xlu0 %575
        %577 = vrot.lane.b32.xlu0 %v489, 88
        %v578 = vpop.permute.xlu0 %577
        %579 = vrot.lane.b32.xlu0 %v491, 88
        %v580 = vpop.permute.xlu0 %579
        %581 = vrot.lane.b32.xlu0 %v493, 88
        %v582 = vpop.permute.xlu0 %581
        %583 = vrot.lane.b32.xlu0 %v495, 88
        %v584 = vpop.permute.xlu0 %583
        %585 = vrot.lane.b32.xlu0 %v497, 88
        %v586 = vpop.permute.xlu0 %585
        %587 = vrot.lane.b32.xlu0 %v499, 88
        %v588 = vpop.permute.xlu0 %587
        %589 = vrot.lane.b32.xlu0 %v501, 88
        %v590 = vpop.permute.xlu0 %589
        %591 = vrot.lane.b32.xlu0 %v503, 88
        %v592 = vpop.permute.xlu0 %591
        %593 = vrot.lane.b32.xlu0 %v489, 80
        %v594 = vpop.permute.xlu0 %593
        %595 = vrot.lane.b32.xlu0 %v491, 80
        %v596 = vpop.permute.xlu0 %595
        %597 = vrot.lane.b32.xlu0 %v493, 80
        %v598 = vpop.permute.xlu0 %597
        %599 = vrot.lane.b32.xlu0 %v495, 80
        %v600 = vpop.permute.xlu0 %599
        %601 = vrot.lane.b32.xlu0 %v497, 80
        %v602 = vpop.permute.xlu0 %601
        %603 = vrot.lane.b32.xlu0 %v499, 80
        %v604 = vpop.permute.xlu0 %603
        %605 = vrot.lane.b32.xlu0 %v501, 80
        %v606 = vpop.permute.xlu0 %605
        %607 = vrot.lane.b32.xlu0 %v503, 80
        %v608 = vpop.permute.xlu0 %607
        %609 = vrot.lane.b32.xlu0 %v489, 72
        %v610 = vpop.permute.xlu0 %609
        %611 = vrot.lane.b32.xlu0 %v491, 72
        %v612 = vpop.permute.xlu0 %611
        %613 = vrot.lane.b32.xlu0 %v493, 72
        %v614 = vpop.permute.xlu0 %613
        %615 = vrot.lane.b32.xlu0 %v495, 72
        %v616 = vpop.permute.xlu0 %615
        %617 = vrot.lane.b32.xlu0 %v497, 72
        %v618 = vpop.permute.xlu0 %617
        %619 = vrot.lane.b32.xlu0 %v499, 72
        %v620 = vpop.permute.xlu0 %619
        %621 = vrot.lane.b32.xlu0 %v501, 72
        %v622 = vpop.permute.xlu0 %621
        %623 = vrot.lane.b32.xlu0 %v503, 72
        %v624 = vpop.permute.xlu0 %623
        %633 = vrot.lane.b32.xlu0 %v490, 120
        %v634 = vpop.permute.xlu0 %633
        %635 = vrot.lane.b32.xlu0 %v492, 120
        %v636 = vpop.permute.xlu0 %635
        %637 = vrot.lane.b32.xlu0 %v494, 120
        %v638 = vpop.permute.xlu0 %637
        %639 = vrot.lane.b32.xlu0 %v496, 120
        %v640 = vpop.permute.xlu0 %639
        %641 = vrot.lane.b32.xlu0 %v498, 120
        %v642 = vpop.permute.xlu0 %641
        %643 = vrot.lane.b32.xlu0 %v500, 120
        %v644 = vpop.permute.xlu0 %643
        %645 = vrot.lane.b32.xlu0 %v502, 120
        %v646 = vpop.permute.xlu0 %645
        %647 = vrot.lane.b32.xlu0 %v504, 120
        %v648 = vpop.permute.xlu0 %647
        %657 = vrot.lane.b32.xlu0 %v490, 112
        %v658 = vpop.permute.xlu0 %657
        %659 = vrot.lane.b32.xlu0 %v492, 112
        %v660 = vpop.permute.xlu0 %659
        %661 = vrot.lane.b32.xlu0 %v494, 112
        %v662 = vpop.permute.xlu0 %661
        %663 = vrot.lane.b32.xlu0 %v496, 112
        %v664 = vpop.permute.xlu0 %663
        %665 = vrot.lane.b32.xlu0 %v498, 112
        %v666 = vpop.permute.xlu0 %665
        %667 = vrot.lane.b32.xlu0 %v500, 112
        %v668 = vpop.permute.xlu0 %667
        %669 = vrot.lane.b32.xlu0 %v502, 112
        %v670 = vpop.permute.xlu0 %669
        %671 = vrot.lane.b32.xlu0 %v504, 112
        %v672 = vpop.permute.xlu0 %671
        %681 = vrot.lane.b32.xlu0 %v490, 104
        %v682 = vpop.permute.xlu0 %681
        %683 = vrot.lane.b32.xlu0 %v492, 104
        %v684 = vpop.permute.xlu0 %683
        %685 = vrot.lane.b32.xlu0 %v494, 104
        %v686 = vpop.permute.xlu0 %685
        %687 = vrot.lane.b32.xlu0 %v496, 104
        %v688 = vpop.permute.xlu0 %687
        %689 = vrot.lane.b32.xlu0 %v498, 104
        %v690 = vpop.permute.xlu0 %689
        %691 = vrot.lane.b32.xlu0 %v500, 104
        %v692 = vpop.permute.xlu0 %691
        %693 = vrot.lane.b32.xlu0 %v502, 104
        %v694 = vpop.permute.xlu0 %693
        %695 = vrot.lane.b32.xlu0 %v504, 104
        %v696 = vpop.permute.xlu0 %695
        %705 = vrot.lane.b32.xlu0 %v490, 96
        %v706 = vpop.permute.xlu0 %705
        %707 = vrot.lane.b32.xlu0 %v492, 96
        %v708 = vpop.permute.xlu0 %707
        %709 = vrot.lane.b32.xlu0 %v494, 96
        %v710 = vpop.permute.xlu0 %709
        %711 = vrot.lane.b32.xlu0 %v496, 96
        %v712 = vpop.permute.xlu0 %711
        %713 = vrot.lane.b32.xlu0 %v498, 96
        %v714 = vpop.permute.xlu0 %713
        %715 = vrot.lane.b32.xlu0 %v500, 96
        %v716 = vpop.permute.xlu0 %715
        %717 = vrot.lane.b32.xlu0 %v502, 96
        %v718 = vpop.permute.xlu0 %717
        %719 = vrot.lane.b32.xlu0 %v504, 96
        %v720 = vpop.permute.xlu0 %719
        %729 = vrot.lane.b32.xlu0 %v490, 88
        %v730 = vpop.permute.xlu0 %729
        %731 = vrot.lane.b32.xlu0 %v492, 88
        %v732 = vpop.permute.xlu0 %731
        %733 = vrot.lane.b32.xlu0 %v494, 88
        %v734 = vpop.permute.xlu0 %733
        %735 = vrot.lane.b32.xlu0 %v496, 88
        %v736 = vpop.permute.xlu0 %735
        %737 = vrot.lane.b32.xlu0 %v498, 88
        %v738 = vpop.permute.xlu0 %737
        %739 = vrot.lane.b32.xlu0 %v500, 88
        %v740 = vpop.permute.xlu0 %739
        %741 = vrot.lane.b32.xlu0 %v502, 88
        %v742 = vpop.permute.xlu0 %741
        %743 = vrot.lane.b32.xlu0 %v504, 88
        %v744 = vpop.permute.xlu0 %743
        %753 = vrot.lane.b32.xlu0 %v490, 80
        %v754 = vpop.permute.xlu0 %753
        %755 = vrot.lane.b32.xlu0 %v492, 80
        %v756 = vpop.permute.xlu0 %755
        %757 = vrot.lane.b32.xlu0 %v494, 80
        %v758 = vpop.permute.xlu0 %757
        %759 = vrot.lane.b32.xlu0 %v496, 80
        %v760 = vpop.permute.xlu0 %759
        %761 = vrot.lane.b32.xlu0 %v498, 80
        %v762 = vpop.permute.xlu0 %761
        %763 = vrot.lane.b32.xlu0 %v500, 80
        %v764 = vpop.permute.xlu0 %763
        %765 = vrot.lane.b32.xlu0 %v502, 80
        %v766 = vpop.permute.xlu0 %765
        %767 = vrot.lane.b32.xlu0 %v504, 80
        %v768 = vpop.permute.xlu0 %767
        %777 = vrot.lane.b32.xlu0 %v490, 72
        %v778 = vpop.permute.xlu0 %777
        %779 = vrot.lane.b32.xlu0 %v492, 72
        %v780 = vpop.permute.xlu0 %779
        %781 = vrot.lane.b32.xlu0 %v494, 72
        %v782 = vpop.permute.xlu0 %781
        %783 = vrot.lane.b32.xlu0 %v496, 72
        %v784 = vpop.permute.xlu0 %783
        %785 = vrot.lane.b32.xlu0 %v498, 72
        %v786 = vpop.permute.xlu0 %785
        %787 = vrot.lane.b32.xlu0 %v500, 72
        %v788 = vpop.permute.xlu0 %787
        %789 = vrot.lane.b32.xlu0 %v502, 72
        %v790 = vpop.permute.xlu0 %789
        %791 = vrot.lane.b32.xlu0 %v504, 72
        %v792 = vpop.permute.xlu0 %791
        %801 = vrot.lane.b32.xlu0 %v489, 64
        %v802 = vpop.permute.xlu0 %801
        %vm803 = vcmask 64512
        %v805 = vsel %vm803, %v489, 0
        %v808 = vsel %vm803, %v802, 0
        %810 = vmatprep.subr.bf16.mxu0 0
        %811 = vmatpush1.bf16.xpose.msra.mxu0 0
        %812 = vmatprep.subr.bf16.mxu0 0
        %813 = vmatpush1.bf16.xpose.msra.mxu0 0
        %814 = vmatprep.subr.bf16.mxu0 0
        %815 = vmatpush1.bf16.xpose.msra.mxu0 0
        %816 = vmatprep.subr.bf16.mxu0 0
        %817 = vmatpush1.bf16.xpose.msra.mxu0 0
        %818 = vmatprep.subr.bf16.mxu0 0
        %819 = vmatpush1.bf16.xpose.msra.mxu0 0
        %820 = vmatprep.subr.bf16.mxu0 0
        %821 = vmatpush1.bf16.xpose.msra.mxu0 0
        %822 = vmatprep.subr.bf16.mxu0 0
        %823 = vmatpush1.bf16.xpose.msra.mxu0 0
        %824 = vmatprep.subr.bf16.mxu0 0
        %825 = vmatpush1.bf16.xpose.msra.mxu0 %v808
        %826 = vmatprep.subr.bf16.mxu0 0
        %827 = vmatpush2.bf16.xpose.msra.mxu0 0
        %828 = vmatprep.subr.bf16.mxu0 0
        %829 = vmatpush2.bf16.xpose.msra.mxu0 0
        %830 = vmatprep.subr.bf16.mxu0 0
        %831 = vmatpush2.bf16.xpose.msra.mxu0 0
        %832 = vmatprep.subr.bf16.mxu0 0
        %833 = vmatpush2.bf16.xpose.msra.mxu0 0
        %834 = vmatprep.subr.bf16.mxu0 0
        %835 = vmatpush2.bf16.xpose.msra.mxu0 0
        %836 = vmatprep.subr.bf16.mxu0 0
        %837 = vmatpush2.bf16.xpose.msra.mxu0 0
        %838 = vmatprep.subr.bf16.mxu0 0
        %839 = vmatpush2.bf16.xpose.msra.mxu0 0
        %840 = vmatprep.subr.bf16.mxu0 0
        %841 = vmatpush2.bf16.xpose.msra.mxu0 0
        %842 = vmatprep.mubr.bf16.mxu0 0
        %843 = vmatmul.mubr.bf16.gmra.mxu0 %v805
        %v844 = vpop.f32.mrf.mxu0
        %v845 = vadd.f32 0.0, %v844
        %v846 = vpop.f32.mrf.mxu0
        %v847 = vpop.f32.mrf.mxu0
        %v848 = vadd.f32 0.0, %v847
        %v849 = vpop.f32.mrf.mxu0
        %850 = vdwg.mxu0
        %851 = vrot.lane.b32.xlu0 %v491, 64
        %v852 = vpop.permute.xlu0 %851
        %v854 = vsel %vm803, %v491, 0
        %v857 = vsel %vm803, %v852, 0
        %859 = vmatprep.subr.bf16.mxu0 0
        %860 = vmatpush1.bf16.xpose.msra.mxu0 0
        %861 = vmatprep.subr.bf16.mxu0 0
        %862 = vmatpush1.bf16.xpose.msra.mxu0 0
        %863 = vmatprep.subr.bf16.mxu0 0
        %864 = vmatpush1.bf16.xpose.msra.mxu0 0
        %865 = vmatprep.subr.bf16.mxu0 0
        %866 = vmatpush1.bf16.xpose.msra.mxu0 0
        %867 = vmatprep.subr.bf16.mxu0 0
        %868 = vmatpush1.bf16.xpose.msra.mxu0 0
        %869 = vmatprep.subr.bf16.mxu0 0
        %870 = vmatpush1.bf16.xpose.msra.mxu0 0
        %871 = vmatprep.subr.bf16.mxu0 0
        %872 = vmatpush1.bf16.xpose.msra.mxu0 0
        %873 = vmatprep.subr.bf16.mxu0 0
        %874 = vmatpush1.bf16.xpose.msra.mxu0 %v857
        %875 = vmatprep.subr.bf16.mxu0 0
        %876 = vmatpush2.bf16.xpose.msra.mxu0 0
        %877 = vmatprep.subr.bf16.mxu0 0
        %878 = vmatpush2.bf16.xpose.msra.mxu0 0
        %879 = vmatprep.subr.bf16.mxu0 0
        %880 = vmatpush2.bf16.xpose.msra.mxu0 0
        %881 = vmatprep.subr.bf16.mxu0 0
        %882 = vmatpush2.bf16.xpose.msra.mxu0 0
        %883 = vmatprep.subr.bf16.mxu0 0
        %884 = vmatpush2.bf16.xpose.msra.mxu0 0
        %885 = vmatprep.subr.bf16.mxu0 0
        %886 = vmatpush2.bf16.xpose.msra.mxu0 0
        %887 = vmatprep.subr.bf16.mxu0 0
        %888 = vmatpush2.bf16.xpose.msra.mxu0 0
        %889 = vmatprep.subr.bf16.mxu0 0
        %890 = vmatpush2.bf16.xpose.msra.mxu0 0
        %891 = vmatprep.mubr.bf16.mxu0 0
        %892 = vmatmul.mubr.bf16.gmra.mxu0 %v854
        %v893 = vpop.f32.mrf.mxu0
        %v894 = vadd.f32 0.0, %v893
        %v895 = vpop.f32.mrf.mxu0
        %v896 = vpop.f32.mrf.mxu0
        %v897 = vadd.f32 0.0, %v896
        %v898 = vpop.f32.mrf.mxu0
        %899 = vdwg.mxu0
        %900 = vrot.lane.b32.xlu0 %v493, 64
        %v901 = vpop.permute.xlu0 %900
        %v903 = vsel %vm803, %v493, 0
        %v906 = vsel %vm803, %v901, 0
        %908 = vmatprep.subr.bf16.mxu0 0
        %909 = vmatpush1.bf16.xpose.msra.mxu0 0
        %910 = vmatprep.subr.bf16.mxu0 0
        %911 = vmatpush1.bf16.xpose.msra.mxu0 0
        %912 = vmatprep.subr.bf16.mxu0 0
        %913 = vmatpush1.bf16.xpose.msra.mxu0 0
        %914 = vmatprep.subr.bf16.mxu0 0
        %915 = vmatpush1.bf16.xpose.msra.mxu0 0
        %916 = vmatprep.subr.bf16.mxu0 0
        %917 = vmatpush1.bf16.xpose.msra.mxu0 0
        %918 = vmatprep.subr.bf16.mxu0 0
        %919 = vmatpush1.bf16.xpose.msra.mxu0 0
        %920 = vmatprep.subr.bf16.mxu0 0
        %921 = vmatpush1.bf16.xpose.msra.mxu0 0
        %922 = vmatprep.subr.bf16.mxu0 0
        %923 = vmatpush1.bf16.xpose.msra.mxu0 %v906
        %924 = vmatprep.subr.bf16.mxu0 0
        %925 = vmatpush2.bf16.xpose.msra.mxu0 0
        %926 = vmatprep.subr.bf16.mxu0 0
        %927 = vmatpush2.bf16.xpose.msra.mxu0 0
        %928 = vmatprep.subr.bf16.mxu0 0
        %929 = vmatpush2.bf16.xpose.msra.mxu0 0
        %930 = vmatprep.subr.bf16.mxu0 0
        %931 = vmatpush2.bf16.xpose.msra.mxu0 0
        %932 = vmatprep.subr.bf16.mxu0 0
        %933 = vmatpush2.bf16.xpose.msra.mxu0 0
        %934 = vmatprep.subr.bf16.mxu0 0
        %935 = vmatpush2.bf16.xpose.msra.mxu0 0
        %936 = vmatprep.subr.bf16.mxu0 0
        %937 = vmatpush2.bf16.xpose.msra.mxu0 0
        %938 = vmatprep.subr.bf16.mxu0 0
        %939 = vmatpush2.bf16.xpose.msra.mxu0 0
        %940 = vmatprep.mubr.bf16.mxu0 0
        %941 = vmatmul.mubr.bf16.gmra.mxu0 %v903
        %v942 = vpop.f32.mrf.mxu0
        %v943 = vadd.f32 0.0, %v942
        %v944 = vpop.f32.mrf.mxu0
        %v945 = vpop.f32.mrf.mxu0
        %v946 = vadd.f32 0.0, %v945
        %v947 = vpop.f32.mrf.mxu0
        %948 = vdwg.mxu0
        %949 = vrot.lane.b32.xlu0 %v495, 64
        %v950 = vpop.permute.xlu0 %949
        %v952 = vsel %vm803, %v495, 0
        %v955 = vsel %vm803, %v950, 0
        %957 = vmatprep.subr.bf16.mxu0 0
        %958 = vmatpush1.bf16.xpose.msra.mxu0 0
        %959 = vmatprep.subr.bf16.mxu0 0
        %960 = vmatpush1.bf16.xpose.msra.mxu0 0
        %961 = vmatprep.subr.bf16.mxu0 0
        %962 = vmatpush1.bf16.xpose.msra.mxu0 0
        %963 = vmatprep.subr.bf16.mxu0 0
        %964 = vmatpush1.bf16.xpose.msra.mxu0 0
        %965 = vmatprep.subr.bf16.mxu0 0
        %966 = vmatpush1.bf16.xpose.msra.mxu0 0
        %967 = vmatprep.subr.bf16.mxu0 0
        %968 = vmatpush1.bf16.xpose.msra.mxu0 0
        %969 = vmatprep.subr.bf16.mxu0 0
        %970 = vmatpush1.bf16.xpose.msra.mxu0 0
        %971 = vmatprep.subr.bf16.mxu0 0
        %972 = vmatpush1.bf16.xpose.msra.mxu0 %v955
        %973 = vmatprep.subr.bf16.mxu0 0
        %974 = vmatpush2.bf16.xpose.msra.mxu0 0
        %975 = vmatprep.subr.bf16.mxu0 0
        %976 = vmatpush2.bf16.xpose.msra.mxu0 0
        %977 = vmatprep.subr.bf16.mxu0 0
        %978 = vmatpush2.bf16.xpose.msra.mxu0 0
        %979 = vmatprep.subr.bf16.mxu0 0
        %980 = vmatpush2.bf16.xpose.msra.mxu0 0
        %981 = vmatprep.subr.bf16.mxu0 0
        %982 = vmatpush2.bf16.xpose.msra.mxu0 0
        %983 = vmatprep.subr.bf16.mxu0 0
        %984 = vmatpush2.bf16.xpose.msra.mxu0 0
        %985 = vmatprep.subr.bf16.mxu0 0
        %986 = vmatpush2.bf16.xpose.msra.mxu0 0
        %987 = vmatprep.subr.bf16.mxu0 0
        %988 = vmatpush2.bf16.xpose.msra.mxu0 0
        %989 = vmatprep.mubr.bf16.mxu0 0
        %990 = vmatmul.mubr.bf16.gmra.mxu0 %v952
        %v991 = vpop.f32.mrf.mxu0
        %v992 = vadd.f32 0.0, %v991
        %v993 = vpop.f32.mrf.mxu0
        %v994 = vpop.f32.mrf.mxu0
        %v995 = vadd.f32 0.0, %v994
        %v996 = vpop.f32.mrf.mxu0
        %997 = vdwg.mxu0
        %998 = vrot.lane.b32.xlu0 %v497, 64
        %v999 = vpop.permute.xlu0 %998
        %v1001 = vsel %vm803, %v497, 0
        %v1004 = vsel %vm803, %v999, 0
        %1006 = vmatprep.subr.bf16.mxu0 0
        %1007 = vmatpush1.bf16.xpose.msra.mxu0 0
        %1008 = vmatprep.subr.bf16.mxu0 0
        %1009 = vmatpush1.bf16.xpose.msra.mxu0 0
        %1010 = vmatprep.subr.bf16.mxu0 0
        %1011 = vmatpush1.bf16.xpose.msra.mxu0 0
        %1012 = vmatprep.subr.bf16.mxu0 0
        %1013 = vmatpush1.bf16.xpose.msra.mxu0 0
        %1014 = vmatprep.subr.bf16.mxu0 0
        %1015 = vmatpush1.bf16.xpose.msra.mxu0 0
        %1016 = vmatprep.subr.bf16.mxu0 0
        %1017 = vmatpush1.bf16.xpose.msra.mxu0 0
        %1018 = vmatprep.subr.bf16.mxu0 0
        %1019 = vmatpush1.bf16.xpose.msra.mxu0 0
        %1020 = vmatprep.subr.bf16.mxu0 0
        %1021 = vmatpush1.bf16.xpose.msra.mxu0 %v1004
        %1022 = vmatprep.subr.bf16.mxu0 0
        %1023 = vmatpush2.bf16.xpose.msra.mxu0 0
        %1024 = vmatprep.subr.bf16.mxu0 0
        %1025 = vmatpush2.bf16.xpose.msra.mxu0 0
        %1026 = vmatprep.subr.bf16.mxu0 0
        %1027 = vmatpush2.bf16.xpose.msra.mxu0 0
        %1028 = vmatprep.subr.bf16.mxu0 0
        %1029 = vmatpush2.bf16.xpose.msra.mxu0 0
        %1030 = vmatprep.subr.bf16.mxu0 0
        %1031 = vmatpush2.bf16.xpose.msra.mxu0 0
        %1032 = vmatprep.subr.bf16.mxu0 0
        %1033 = vmatpush2.bf16.xpose.msra.mxu0 0
        %1034 = vmatprep.subr.bf16.mxu0 0
        %1035 = vmatpush2.bf16.xpose.msra.mxu0 0
        %1036 = vmatprep.subr.bf16.mxu0 0
        %1037 = vmatpush2.bf16.xpose.msra.mxu0 0
        %1038 = vmatprep.mubr.bf16.mxu0 0
        %1039 = vmatmul.mubr.bf16.gmra.mxu0 %v1001
        %v1040 = vpop.f32.mrf.mxu0
        %v1041 = vadd.f32 0.0, %v1040
        %v1042 = vpop.f32.mrf.mxu0
        %v1043 = vpop.f32.mrf.mxu0
        %v1044 = vadd.f32 0.0, %v1043
        %v1045 = vpop.f32.mrf.mxu0
        %1046 = vdwg.mxu0
        %1047 = vrot.lane.b32.xlu0 %v499, 64
        %v1048 = vpop.permute.xlu0 %1047
        %v1050 = vsel %vm803, %v499, 0
        %v1053 = vsel %vm803, %v1048, 0
        %1055 = vmatprep.subr.bf16.mxu0 0
        %1056 = vmatpush1.bf16.xpose.msra.mxu0 0
        %1057 = vmatprep.subr.bf16.mxu0 0
        %1058 = vmatpush1.bf16.xpose.msra.mxu0 0
        %1059 = vmatprep.subr.bf16.mxu0 0
        %1060 = vmatpush1.bf16.xpose.msra.mxu0 0
        %1061 = vmatprep.subr.bf16.mxu0 0
        %1062 = vmatpush1.bf16.xpose.msra.mxu0 0
        %1063 = vmatprep.subr.bf16.mxu0 0
        %1064 = vmatpush1.bf16.xpose.msra.mxu0 0
        %1065 = vmatprep.subr.bf16.mxu0 0
        %1066 = vmatpush1.bf16.xpose.msra.mxu0 0
        %1067 = vmatprep.subr.bf16.mxu0 0
        %1068 = vmatpush1.bf16.xpose.msra.mxu0 0
        %1069 = vmatprep.subr.bf16.mxu0 0
        %1070 = vmatpush1.bf16.xpose.msra.mxu0 %v1053
        %1071 = vmatprep.subr.bf16.mxu0 0
        %1072 = vmatpush2.bf16.xpose.msra.mxu0 0
        %1073 = vmatprep.subr.bf16.mxu0 0
        %1074 = vmatpush2.bf16.xpose.msra.mxu0 0
        %1075 = vmatprep.subr.bf16.mxu0 0
        %1076 = vmatpush2.bf16.xpose.msra.mxu0 0
        %1077 = vmatprep.subr.bf16.mxu0 0
        %1078 = vmatpush2.bf16.xpose.msra.mxu0 0
        %1079 = vmatprep.subr.bf16.mxu0 0
        %1080 = vmatpush2.bf16.xpose.msra.mxu0 0
        %1081 = vmatprep.subr.bf16.mxu0 0
        %1082 = vmatpush2.bf16.xpose.msra.mxu0 0
        %1083 = vmatprep.subr.bf16.mxu0 0
        %1084 = vmatpush2.bf16.xpose.msra.mxu0 0
        %1085 = vmatprep.subr.bf16.mxu0 0
        %1086 = vmatpush2.bf16.xpose.msra.mxu0 0
        %1087 = vmatprep.mubr.bf16.mxu0 0
        %1088 = vmatmul.mubr.bf16.gmra.mxu0 %v1050
        %v1089 = vpop.f32.mrf.mxu0
        %v1090 = vadd.f32 0.0, %v1089
        %v1091 = vpop.f32.mrf.mxu0
        %v1092 = vpop.f32.mrf.mxu0
        %v1093 = vadd.f32 0.0, %v1092
        %v1094 = vpop.f32.mrf.mxu0
        %1095 = vdwg.mxu0
        %1096 = vrot.lane.b32.xlu0 %v501, 64
        %v1097 = vpop.permute.xlu0 %1096
        %v1099 = vsel %vm803, %v501, 0
        %v1102 = vsel %vm803, %v1097, 0
        %1104 = vmatprep.subr.bf16.mxu0 0
        %1105 = vmatpush1.bf16.xpose.msra.mxu0 0
        %1106 = vmatprep.subr.bf16.mxu0 0
        %1107 = vmatpush1.bf16.xpose.msra.mxu0 0
        %1108 = vmatprep.subr.bf16.mxu0 0
        %1109 = vmatpush1.bf16.xpose.msra.mxu0 0
        %1110 = vmatprep.subr.bf16.mxu0 0
        %1111 = vmatpush1.bf16.xpose.msra.mxu0 0
        %1112 = vmatprep.subr.bf16.mxu0 0
        %1113 = vmatpush1.bf16.xpose.msra.mxu0 0
        %1114 = vmatprep.subr.bf16.mxu0 0
        %1115 = vmatpush1.bf16.xpose.msra.mxu0 0
        %1116 = vmatprep.subr.bf16.mxu0 0
        %1117 = vmatpush1.bf16.xpose.msra.mxu0 0
        %1118 = vmatprep.subr.bf16.mxu0 0
        %1119 = vmatpush1.bf16.xpose.msra.mxu0 %v1102
        %1120 = vmatprep.subr.bf16.mxu0 0
        %1121 = vmatpush2.bf16.xpose.msra.mxu0 0
        %1122 = vmatprep.subr.bf16.mxu0 0
        %1123 = vmatpush2.bf16.xpose.msra.mxu0 0
        %1124 = vmatprep.subr.bf16.mxu0 0
        %1125 = vmatpush2.bf16.xpose.msra.mxu0 0
        %1126 = vmatprep.subr.bf16.mxu0 0
        %1127 = vmatpush2.bf16.xpose.msra.mxu0 0
        %1128 = vmatprep.subr.bf16.mxu0 0
        %1129 = vmatpush2.bf16.xpose.msra.mxu0 0
        %1130 = vmatprep.subr.bf16.mxu0 0
        %1131 = vmatpush2.bf16.xpose.msra.mxu0 0
        %1132 = vmatprep.subr.bf16.mxu0 0
        %1133 = vmatpush2.bf16.xpose.msra.mxu0 0
        %1134 = vmatprep.subr.bf16.mxu0 0
        %1135 = vmatpush2.bf16.xpose.msra.mxu0 0
        %1136 = vmatprep.mubr.bf16.mxu0 0
        %1137 = vmatmul.mubr.bf16.gmra.mxu0 %v1099
        %v1138 = vpop.f32.mrf.mxu0
        %v1139 = vadd.f32 0.0, %v1138
        %v1140 = vpop.f32.mrf.mxu0
        %v1141 = vpop.f32.mrf.mxu0
        %v1142 = vadd.f32 0.0, %v1141
        %v1143 = vpop.f32.mrf.mxu0
        %1144 = vdwg.mxu0
        %1145 = vrot.lane.b32.xlu0 %v503, 64
        %v1146 = vpop.permute.xlu0 %1145
        %v1148 = vsel %vm803, %v503, 0
        %v1151 = vsel %vm803, %v1146, 0
        %1153 = vmatprep.subr.bf16.mxu0 0
        %1154 = vmatpush1.bf16.xpose.msra.mxu0 0
        %1155 = vmatprep.subr.bf16.mxu0 0
        %1156 = vmatpush1.bf16.xpose.msra.mxu0 0
        %1157 = vmatprep.subr.bf16.mxu0 0
        %1158 = vmatpush1.bf16.xpose.msra.mxu0 0
        %1159 = vmatprep.subr.bf16.mxu0 0
        %1160 = vmatpush1.bf16.xpose.msra.mxu0 0
        %1161 = vmatprep.subr.bf16.mxu0 0
        %1162 = vmatpush1.bf16.xpose.msra.mxu0 0
        %1163 = vmatprep.subr.bf16.mxu0 0
        %1164 = vmatpush1.bf16.xpose.msra.mxu0 0
        %1165 = vmatprep.subr.bf16.mxu0 0
        %1166 = vmatpush1.bf16.xpose.msra.mxu0 0
        %1167 = vmatprep.subr.bf16.mxu0 0
        %1168 = vmatpush1.bf16.xpose.msra.mxu0 %v1151
        %1169 = vmatprep.subr.bf16.mxu0 0
        %1170 = vmatpush2.bf16.xpose.msra.mxu0 0
        %1171 = vmatprep.subr.bf16.mxu0 0
        %1172 = vmatpush2.bf16.xpose.msra.mxu0 0
        %1173 = vmatprep.subr.bf16.mxu0 0
        %1174 = vmatpush2.bf16.xpose.msra.mxu0 0
        %1175 = vmatprep.subr.bf16.mxu0 0
        %1176 = vmatpush2.bf16.xpose.msra.mxu0 0
        %1177 = vmatprep.subr.bf16.mxu0 0
        %1178 = vmatpush2.bf16.xpose.msra.mxu0 0
        %1179 = vmatprep.subr.bf16.mxu0 0
        %1180 = vmatpush2.bf16.xpose.msra.mxu0 0
        %1181 = vmatprep.subr.bf16.mxu0 0
        %1182 = vmatpush2.bf16.xpose.msra.mxu0 0
        %1183 = vmatprep.subr.bf16.mxu0 0
        %1184 = vmatpush2.bf16.xpose.msra.mxu0 0
        %1185 = vmatprep.mubr.bf16.mxu0 0
        %1186 = vmatmul.mubr.bf16.gmra.mxu0 %v1148
        %v1187 = vpop.f32.mrf.mxu0
        %v1188 = vadd.f32 0.0, %v1187
        %v1189 = vpop.f32.mrf.mxu0
        %v1190 = vpop.f32.mrf.mxu0
        %v1191 = vadd.f32 0.0, %v1190
        %v1192 = vpop.f32.mrf.mxu0
        %1193 = vdwg.mxu0
        %1194 = vrot.lane.b32.xlu0 %v514, 64
        %v1195 = vpop.permute.xlu0 %1194
        %v1197 = vsel %vm803, %v514, 0
        %v1200 = vsel %vm803, %v1195, 0
        %1202 = vmatprep.subr.bf16.mxu0 0
        %1203 = vmatpush1.bf16.xpose.msra.mxu0 0
        %1204 = vmatprep.subr.bf16.mxu0 0
        %1205 = vmatpush1.bf16.xpose.msra.mxu0 0
        %1206 = vmatprep.subr.bf16.mxu0 0
        %1207 = vmatpush1.bf16.xpose.msra.mxu0 0
        %1208 = vmatprep.subr.bf16.mxu0 0
        %1209 = vmatpush1.bf16.xpose.msra.mxu0 0
        %1210 = vmatprep.subr.bf16.mxu0 0
        %1211 = vmatpush1.bf16.xpose.msra.mxu0 0
        %1212 = vmatprep.subr.bf16.mxu0 0
        %1213 = vmatpush1.bf16.xpose.msra.mxu0 0
        %1214 = vmatprep.subr.bf16.mxu0 0
        %1215 = vmatpush1.bf16.xpose.msra.mxu0 0
        %1216 = vmatprep.subr.bf16.mxu0 0
        %1217 = vmatpush1.bf16.xpose.msra.mxu0 %v1200
        %1218 = vmatprep.subr.bf16.mxu0 0
        %1219 = vmatpush2.bf16.xpose.msra.mxu0 0
        %1220 = vmatprep.subr.bf16.mxu0 0
        %1221 = vmatpush2.bf16.xpose.msra.mxu0 0
        %1222 = vmatprep.subr.bf16.mxu0 0
        %1223 = vmatpush2.bf16.xpose.msra.mxu0 0
        %1224 = vmatprep.subr.bf16.mxu0 0
        %1225 = vmatpush2.bf16.xpose.msra.mxu0 0
        %1226 = vmatprep.subr.bf16.mxu0 0
        %1227 = vmatpush2.bf16.xpose.msra.mxu0 0
        %1228 = vmatprep.subr.bf16.mxu0 0
        %1229 = vmatpush2.bf16.xpose.msra.mxu0 0
        %1230 = vmatprep.subr.bf16.mxu0 0
        %1231 = vmatpush2.bf16.xpose.msra.mxu0 0
        %1232 = vmatprep.subr.bf16.mxu0 0
        %1233 = vmatpush2.bf16.xpose.msra.mxu0 0
        %1234 = vmatprep.mubr.bf16.mxu0 0
        %1235 = vmatmul.mubr.bf16.gmra.mxu0 %v1197
        %v1236 = vpop.f32.mrf.mxu0
        %v1237 = vadd.f32 0.0, %v1236
        %v1238 = vpop.f32.mrf.mxu0
        %v1239 = vpop.f32.mrf.mxu0
        %v1240 = vadd.f32 0.0, %v1239
        %v1241 = vpop.f32.mrf.mxu0
        %1242 = vdwg.mxu0
        %1243 = vrot.lane.b32.xlu0 %v516, 64
        %v1244 = vpop.permute.xlu0 %1243
        %v1246 = vsel %vm803, %v516, 0
        %v1249 = vsel %vm803, %v1244, 0
        %1251 = vmatprep.subr.bf16.mxu0 0
        %1252 = vmatpush1.bf16.xpose.msra.mxu0 0
        %1253 = vmatprep.subr.bf16.mxu0 0
        %1254 = vmatpush1.bf16.xpose.msra.mxu0 0
        %1255 = vmatprep.subr.bf16.mxu0 0
        %1256 = vmatpush1.bf16.xpose.msra.mxu0 0
        %1257 = vmatprep.subr.bf16.mxu0 0
        %1258 = vmatpush1.bf16.xpose.msra.mxu0 0
        %1259 = vmatprep.subr.bf16.mxu0 0
        %1260 = vmatpush1.bf16.xpose.msra.mxu0 0
        %1261 = vmatprep.subr.bf16.mxu0 0
        %1262 = vmatpush1.bf16.xpose.msra.mxu0 0
        %1263 = vmatprep.subr.bf16.mxu0 0
        %1264 = vmatpush1.bf16.xpose.msra.mxu0 0
        %1265 = vmatprep.subr.bf16.mxu0 0
        %1266 = vmatpush1.bf16.xpose.msra.mxu0 %v1249
        %1267 = vmatprep.subr.bf16.mxu0 0
        %1268 = vmatpush2.bf16.xpose.msra.mxu0 0
        %1269 = vmatprep.subr.bf16.mxu0 0
        %1270 = vmatpush2.bf16.xpose.msra.mxu0 0
        %1271 = vmatprep.subr.bf16.mxu0 0
        %1272 = vmatpush2.bf16.xpose.msra.mxu0 0
        %1273 = vmatprep.subr.bf16.mxu0 0
        %1274 = vmatpush2.bf16.xpose.msra.mxu0 0
        %1275 = vmatprep.subr.bf16.mxu0 0
        %1276 = vmatpush2.bf16.xpose.msra.mxu0 0
        %1277 = vmatprep.subr.bf16.mxu0 0
        %1278 = vmatpush2.bf16.xpose.msra.mxu0 0
        %1279 = vmatprep.subr.bf16.mxu0 0
        %1280 = vmatpush2.bf16.xpose.msra.mxu0 0
        %1281 = vmatprep.subr.bf16.mxu0 0
        %1282 = vmatpush2.bf16.xpose.msra.mxu0 0
        %1283 = vmatprep.mubr.bf16.mxu0 0
        %1284 = vmatmul.mubr.bf16.gmra.mxu0 %v1246
        %v1285 = vpop.f32.mrf.mxu0
        %v1286 = vadd.f32 0.0, %v1285
        %v1287 = vpop.f32.mrf.mxu0
        %v1288 = vpop.f32.mrf.mxu0
        %v1289 = vadd.f32 0.0, %v1288
        %v1290 = vpop.f32.mrf.mxu0
        %1291 = vdwg.mxu0
        %1292 = vrot.lane.b32.xlu0 %v518, 64
        %v1293 = vpop.permute.xlu0 %1292
        %v1295 = vsel %vm803, %v518, 0
        %v1298 = vsel %vm803, %v1293, 0
        %1300 = vmatprep.subr.bf16.mxu0 0
        %1301 = vmatpush1.bf16.xpose.msra.mxu0 0
        %1302 = vmatprep.subr.bf16.mxu0 0
        %1303 = vmatpush1.bf16.xpose.msra.mxu0 0
        %1304 = vmatprep.subr.bf16.mxu0 0
        %1305 = vmatpush1.bf16.xpose.msra.mxu0 0
        %1306 = vmatprep.subr.bf16.mxu0 0
        %1307 = vmatpush1.bf16.xpose.msra.mxu0 0
        %1308 = vmatprep.subr.bf16.mxu0 0
        %1309 = vmatpush1.bf16.xpose.msra.mxu0 0
        %1310 = vmatprep.subr.bf16.mxu0 0
        %1311 = vmatpush1.bf16.xpose.msra.mxu0 0
        %1312 = vmatprep.subr.bf16.mxu0 0
        %1313 = vmatpush1.bf16.xpose.msra.mxu0 0
        %1314 = vmatprep.subr.bf16.mxu0 0
        %1315 = vmatpush1.bf16.xpose.msra.mxu0 %v1298
        %1316 = vmatprep.subr.bf16.mxu0 0
        %1317 = vmatpush2.bf16.xpose.msra.mxu0 0
        %1318 = vmatprep.subr.bf16.mxu0 0
        %1319 = vmatpush2.bf16.xpose.msra.mxu0 0
        %1320 = vmatprep.subr.bf16.mxu0 0
        %1321 = vmatpush2.bf16.xpose.msra.mxu0 0
        %1322 = vmatprep.subr.bf16.mxu0 0
        %1323 = vmatpush2.bf16.xpose.msra.mxu0 0
        %1324 = vmatprep.subr.bf16.mxu0 0
        %1325 = vmatpush2.bf16.xpose.msra.mxu0 0
        %1326 = vmatprep.subr.bf16.mxu0 0
        %1327 = vmatpush2.bf16.xpose.msra.mxu0 0
        %1328 = vmatprep.subr.bf16.mxu0 0
        %1329 = vmatpush2.bf16.xpose.msra.mxu0 0
        %1330 = vmatprep.subr.bf16.mxu0 0
        %1331 = vmatpush2.bf16.xpose.msra.mxu0 0
        %1332 = vmatprep.mubr.bf16.mxu0 0
        %1333 = vmatmul.mubr.bf16.gmra.mxu0 %v1295
        %v1334 = vpop.f32.mrf.mxu0
        %v1335 = vadd.f32 0.0, %v1334
        %v1336 = vpop.f32.mrf.mxu0
        %v1337 = vpop.f32.mrf.mxu0
        %v1338 = vadd.f32 0.0, %v1337
        %v1339 = vpop.f32.mrf.mxu0
        %1340 = vdwg.mxu0
        %1341 = vrot.lane.b32.xlu0 %v520, 64
        %v1342 = vpop.permute.xlu0 %1341
        %v1344 = vsel %vm803, %v520, 0
        %v1347 = vsel %vm803, %v1342, 0
        %1349 = vmatprep.subr.bf16.mxu0 0
        %1350 = vmatpush1.bf16.xpose.msra.mxu0 0
        %1351 = vmatprep.subr.bf16.mxu0 0
        %1352 = vmatpush1.bf16.xpose.msra.mxu0 0
        %1353 = vmatprep.subr.bf16.mxu0 0
        %1354 = vmatpush1.bf16.xpose.msra.mxu0 0
        %1355 = vmatprep.subr.bf16.mxu0 0
        %1356 = vmatpush1.bf16.xpose.msra.mxu0 0
        %1357 = vmatprep.subr.bf16.mxu0 0
        %1358 = vmatpush1.bf16.xpose.msra.mxu0 0
        %1359 = vmatprep.subr.bf16.mxu0 0
        %1360 = vmatpush1.bf16.xpose.msra.mxu0 0
        %1361 = vmatprep.subr.bf16.mxu0 0
        %1362 = vmatpush1.bf16.xpose.msra.mxu0 0
        %1363 = vmatprep.subr.bf16.mxu0 0
        %1364 = vmatpush1.bf16.xpose.msra.mxu0 %v1347
        %1365 = vmatprep.subr.bf16.mxu0 0
        %1366 = vmatpush2.bf16.xpose.msra.mxu0 0
        %1367 = vmatprep.subr.bf16.mxu0 0
        %1368 = vmatpush2.bf16.xpose.msra.mxu0 0
        %1369 = vmatprep.subr.bf16.mxu0 0
        %1370 = vmatpush2.bf16.xpose.msra.mxu0 0
        %1371 = vmatprep.subr.bf16.mxu0 0
        %1372 = vmatpush2.bf16.xpose.msra.mxu0 0
        %1373 = vmatprep.subr.bf16.mxu0 0
        %1374 = vmatpush2.bf16.xpose.msra.mxu0 0
        %1375 = vmatprep.subr.bf16.mxu0 0
        %1376 = vmatpush2.bf16.xpose.msra.mxu0 0
        %1377 = vmatprep.subr.bf16.mxu0 0
        %1378 = vmatpush2.bf16.xpose.msra.mxu0 0
        %1379 = vmatprep.subr.bf16.mxu0 0
        %1380 = vmatpush2.bf16.xpose.msra.mxu0 0
        %1381 = vmatprep.mubr.bf16.mxu0 0
        %1382 = vmatmul.mubr.bf16.gmra.mxu0 %v1344
        %v1383 = vpop.f32.mrf.mxu0
        %v1384 = vadd.f32 0.0, %v1383
        %v1385 = vpop.f32.mrf.mxu0
        %v1386 = vpop.f32.mrf.mxu0
        %v1387 = vadd.f32 0.0, %v1386
        %v1388 = vpop.f32.mrf.mxu0
        %1389 = vdwg.mxu0
        %1390 = vrot.lane.b32.xlu0 %v522, 64
        %v1391 = vpop.permute.xlu0 %1390
        %v1393 = vsel %vm803, %v522, 0
        %v1396 = vsel %vm803, %v1391, 0
        %1398 = vmatprep.subr.bf16.mxu0 0
        %1399 = vmatpush1.bf16.xpose.msra.mxu0 0
        %1400 = vmatprep.subr.bf16.mxu0 0
        %1401 = vmatpush1.bf16.xpose.msra.mxu0 0
        %1402 = vmatprep.subr.bf16.mxu0 0
        %1403 = vmatpush1.bf16.xpose.msra.mxu0 0
        %1404 = vmatprep.subr.bf16.mxu0 0
        %1405 = vmatpush1.bf16.xpose.msra.mxu0 0
        %1406 = vmatprep.subr.bf16.mxu0 0
        %1407 = vmatpush1.bf16.xpose.msra.mxu0 0
        %1408 = vmatprep.subr.bf16.mxu0 0
        %1409 = vmatpush1.bf16.xpose.msra.mxu0 0
        %1410 = vmatprep.subr.bf16.mxu0 0
        %1411 = vmatpush1.bf16.xpose.msra.mxu0 0
        %1412 = vmatprep.subr.bf16.mxu0 0
        %1413 = vmatpush1.bf16.xpose.msra.mxu0 %v1396
        %1414 = vmatprep.subr.bf16.mxu0 0
        %1415 = vmatpush2.bf16.xpose.msra.mxu0 0
        %1416 = vmatprep.subr.bf16.mxu0 0
        %1417 = vmatpush2.bf16.xpose.msra.mxu0 0
        %1418 = vmatprep.subr.bf16.mxu0 0
        %1419 = vmatpush2.bf16.xpose.msra.mxu0 0
        %1420 = vmatprep.subr.bf16.mxu0 0
        %1421 = vmatpush2.bf16.xpose.msra.mxu0 0
        %1422 = vmatprep.subr.bf16.mxu0 0
        %1423 = vmatpush2.bf16.xpose.msra.mxu0 0
        %1424 = vmatprep.subr.bf16.mxu0 0
        %1425 = vmatpush2.bf16.xpose.msra.mxu0 0
        %1426 = vmatprep.subr.bf16.mxu0 0
        %1427 = vmatpush2.bf16.xpose.msra.mxu0 0
        %1428 = vmatprep.subr.bf16.mxu0 0
        %1429 = vmatpush2.bf16.xpose.msra.mxu0 0
        %1430 = vmatprep.mubr.bf16.mxu0 0
        %1431 = vmatmul.mubr.bf16.gmra.mxu0 %v1393
        %v1432 = vpop.f32.mrf.mxu0
        %v1433 = vadd.f32 0.0, %v1432
        %v1434 = vpop.f32.mrf.mxu0
        %v1435 = vpop.f32.mrf.mxu0
        %v1436 = vadd.f32 0.0, %v1435
        %v1437 = vpop.f32.mrf.mxu0
        %1438 = vdwg.mxu0
        %1439 = vrot.lane.b32.xlu0 %v524, 64
        %v1440 = vpop.permute.xlu0 %1439
        %v1442 = vsel %vm803, %v524, 0
        %v1445 = vsel %vm803, %v1440, 0
        %1447 = vmatprep.subr.bf16.mxu0 0
        %1448 = vmatpush1.bf16.xpose.msra.mxu0 0
        %1449 = vmatprep.subr.bf16.mxu0 0
        %1450 = vmatpush1.bf16.xpose.msra.mxu0 0
        %1451 = vmatprep.subr.bf16.mxu0 0
        %1452 = vmatpush1.bf16.xpose.msra.mxu0 0
        %1453 = vmatprep.subr.bf16.mxu0 0
        %1454 = vmatpush1.bf16.xpose.msra.mxu0 0
        %1455 = vmatprep.subr.bf16.mxu0 0
        %1456 = vmatpush1.bf16.xpose.msra.mxu0 0
        %1457 = vmatprep.subr.bf16.mxu0 0
        %1458 = vmatpush1.bf16.xpose.msra.mxu0 0
        %1459 = vmatprep.subr.bf16.mxu0 0
        %1460 = vmatpush1.bf16.xpose.msra.mxu0 0
        %1461 = vmatprep.subr.bf16.mxu0 0
        %1462 = vmatpush1.bf16.xpose.msra.mxu0 %v1445
        %1463 = vmatprep.subr.bf16.mxu0 0
        %1464 = vmatpush2.bf16.xpose.msra.mxu0 0
        %1465 = vmatprep.subr.bf16.mxu0 0
        %1466 = vmatpush2.bf16.xpose.msra.mxu0 0
        %1467 = vmatprep.subr.bf16.mxu0 0
        %1468 = vmatpush2.bf16.xpose.msra.mxu0 0
        %1469 = vmatprep.subr.bf16.mxu0 0
        %1470 = vmatpush2.bf16.xpose.msra.mxu0 0
        %1471 = vmatprep.subr.bf16.mxu0 0
        %1472 = vmatpush2.bf16.xpose.msra.mxu0 0
        %1473 = vmatprep.subr.bf16.mxu0 0
        %1474 = vmatpush2.bf16.xpose.msra.mxu0 0
        %1475 = vmatprep.subr.bf16.mxu0 0
        %1476 = vmatpush2.bf16.xpose.msra.mxu0 0
        %1477 = vmatprep.subr.bf16.mxu0 0
        %1478 = vmatpush2.bf16.xpose.msra.mxu0 0
        %1479 = vmatprep.mubr.bf16.mxu0 0
        %1480 = vmatmul.mubr.bf16.gmra.mxu0 %v1442
        %v1481 = vpop.f32.mrf.mxu0
        %v1482 = vadd.f32 0.0, %v1481
        %v1483 = vpop.f32.mrf.mxu0
        %v1484 = vpop.f32.mrf.mxu0
        %v1485 = vadd.f32 0.0, %v1484
        %v1486 = vpop.f32.mrf.mxu0
        %1487 = vdwg.mxu0
        %1488 = vrot.lane.b32.xlu0 %v526, 64
        %v1489 = vpop.permute.xlu0 %1488
        %v1491 = vsel %vm803, %v526, 0
        %v1494 = vsel %vm803, %v1489, 0
        %1496 = vmatprep.subr.bf16.mxu0 0
        %1497 = vmatpush1.bf16.xpose.msra.mxu0 0
        %1498 = vmatprep.subr.bf16.mxu0 0
        %1499 = vmatpush1.bf16.xpose.msra.mxu0 0
        %1500 = vmatprep.subr.bf16.mxu0 0
        %1501 = vmatpush1.bf16.xpose.msra.mxu0 0
        %1502 = vmatprep.subr.bf16.mxu0 0
        %1503 = vmatpush1.bf16.xpose.msra.mxu0 0
        %1504 = vmatprep.subr.bf16.mxu0 0
        %1505 = vmatpush1.bf16.xpose.msra.mxu0 0
        %1506 = vmatprep.subr.bf16.mxu0 0
        %1507 = vmatpush1.bf16.xpose.msra.mxu0 0
        %1508 = vmatprep.subr.bf16.mxu0 0
        %1509 = vmatpush1.bf16.xpose.msra.mxu0 0
        %1510 = vmatprep.subr.bf16.mxu0 0
        %1511 = vmatpush1.bf16.xpose.msra.mxu0 %v1494
        %1512 = vmatprep.subr.bf16.mxu0 0
        %1513 = vmatpush2.bf16.xpose.msra.mxu0 0
        %1514 = vmatprep.subr.bf16.mxu0 0
        %1515 = vmatpush2.bf16.xpose.msra.mxu0 0
        %1516 = vmatprep.subr.bf16.mxu0 0
        %1517 = vmatpush2.bf16.xpose.msra.mxu0 0
        %1518 = vmatprep.subr.bf16.mxu0 0
        %1519 = vmatpush2.bf16.xpose.msra.mxu0 0
        %1520 = vmatprep.subr.bf16.mxu0 0
        %1521 = vmatpush2.bf16.xpose.msra.mxu0 0
        %1522 = vmatprep.subr.bf16.mxu0 0
        %1523 = vmatpush2.bf16.xpose.msra.mxu0 0
        %1524 = vmatprep.subr.bf16.mxu0 0
        %1525 = vmatpush2.bf16.xpose.msra.mxu0 0
        %1526 = vmatprep.subr.bf16.mxu0 0
        %1527 = vmatpush2.bf16.xpose.msra.mxu0 0
        %1528 = vmatprep.mubr.bf16.mxu0 0
        %1529 = vmatmul.mubr.bf16.gmra.mxu0 %v1491
        %v1530 = vpop.f32.mrf.mxu0
        %v1531 = vadd.f32 0.0, %v1530
        %v1532 = vpop.f32.mrf.mxu0
        %v1533 = vpop.f32.mrf.mxu0
        %v1534 = vadd.f32 0.0, %v1533
        %v1535 = vpop.f32.mrf.mxu0
        %1536 = vdwg.mxu0
        %1537 = vrot.lane.b32.xlu0 %v528, 64
        %v1538 = vpop.permute.xlu0 %1537
        %v1540 = vsel %vm803, %v528, 0
        %v1543 = vsel %vm803, %v1538, 0
        %1545 = vmatprep.subr.bf16.mxu0 0
        %1546 = vmatpush1.bf16.xpose.msra.mxu0 0
        %1547 = vmatprep.subr.bf16.mxu0 0
        %1548 = vmatpush1.bf16.xpose.msra.mxu0 0
        %1549 = vmatprep.subr.bf16.mxu0 0
        %1550 = vmatpush1.bf16.xpose.msra.mxu0 0
        %1551 = vmatprep.subr.bf16.mxu0 0
        %1552 = vmatpush1.bf16.xpose.msra.mxu0 0
        %1553 = vmatprep.subr.bf16.mxu0 0
        %1554 = vmatpush1.bf16.xpose.msra.mxu0 0
        %1555 = vmatprep.subr.bf16.mxu0 0
        %1556 = vmatpush1.bf16.xpose.msra.mxu0 0
        %1557 = vmatprep.subr.bf16.mxu0 0
        %1558 = vmatpush1.bf16.xpose.msra.mxu0 0
        %1559 = vmatprep.subr.bf16.mxu0 0
        %1560 = vmatpush1.bf16.xpose.msra.mxu0 %v1543
        %1561 = vmatprep.subr.bf16.mxu0 0
        %1562 = vmatpush2.bf16.xpose.msra.mxu0 0
        %1563 = vmatprep.subr.bf16.mxu0 0
        %1564 = vmatpush2.bf16.xpose.msra.mxu0 0
        %1565 = vmatprep.subr.bf16.mxu0 0
        %1566 = vmatpush2.bf16.xpose.msra.mxu0 0
        %1567 = vmatprep.subr.bf16.mxu0 0
        %1568 = vmatpush2.bf16.xpose.msra.mxu0 0
        %1569 = vmatprep.subr.bf16.mxu0 0
        %1570 = vmatpush2.bf16.xpose.msra.mxu0 0
        %1571 = vmatprep.subr.bf16.mxu0 0
        %1572 = vmatpush2.bf16.xpose.msra.mxu0 0
        %1573 = vmatprep.subr.bf16.mxu0 0
        %1574 = vmatpush2.bf16.xpose.msra.mxu0 0
        %1575 = vmatprep.subr.bf16.mxu0 0
        %1576 = vmatpush2.bf16.xpose.msra.mxu0 0
        %1577 = vmatprep.mubr.bf16.mxu0 0
        %1578 = vmatmul.mubr.bf16.gmra.mxu0 %v1540
        %v1579 = vpop.f32.mrf.mxu0
        %v1580 = vadd.f32 0.0, %v1579
        %v1581 = vpop.f32.mrf.mxu0
        %v1582 = vpop.f32.mrf.mxu0
        %v1583 = vadd.f32 0.0, %v1582
        %v1584 = vpop.f32.mrf.mxu0
        %1585 = vdwg.mxu0
        %1586 = vrot.lane.b32.xlu0 %v530, 64
        %v1587 = vpop.permute.xlu0 %1586
        %v1589 = vsel %vm803, %v530, 0
        %v1592 = vsel %vm803, %v1587, 0
        %1594 = vmatprep.subr.bf16.mxu0 0
        %1595 = vmatpush1.bf16.xpose.msra.mxu0 0
        %1596 = vmatprep.subr.bf16.mxu0 0
        %1597 = vmatpush1.bf16.xpose.msra.mxu0 0
        %1598 = vmatprep.subr.bf16.mxu0 0
        %1599 = vmatpush1.bf16.xpose.msra.mxu0 0
        %1600 = vmatprep.subr.bf16.mxu0 0
        %1601 = vmatpush1.bf16.xpose.msra.mxu0 0
        %1602 = vmatprep.subr.bf16.mxu0 0
        %1603 = vmatpush1.bf16.xpose.msra.mxu0 0
        %1604 = vmatprep.subr.bf16.mxu0 0
        %1605 = vmatpush1.bf16.xpose.msra.mxu0 0
        %1606 = vmatprep.subr.bf16.mxu0 0
        %1607 = vmatpush1.bf16.xpose.msra.mxu0 0
        %1608 = vmatprep.subr.bf16.mxu0 0
        %1609 = vmatpush1.bf16.xpose.msra.mxu0 %v1592
        %1610 = vmatprep.subr.bf16.mxu0 0
        %1611 = vmatpush2.bf16.xpose.msra.mxu0 0
        %1612 = vmatprep.subr.bf16.mxu0 0
        %1613 = vmatpush2.bf16.xpose.msra.mxu0 0
        %1614 = vmatprep.subr.bf16.mxu0 0
        %1615 = vmatpush2.bf16.xpose.msra.mxu0 0
        %1616 = vmatprep.subr.bf16.mxu0 0
        %1617 = vmatpush2.bf16.xpose.msra.mxu0 0
        %1618 = vmatprep.subr.bf16.mxu0 0
        %1619 = vmatpush2.bf16.xpose.msra.mxu0 0
        %1620 = vmatprep.subr.bf16.mxu0 0
        %1621 = vmatpush2.bf16.xpose.msra.mxu0 0
        %1622 = vmatprep.subr.bf16.mxu0 0
        %1623 = vmatpush2.bf16.xpose.msra.mxu0 0
        %1624 = vmatprep.subr.bf16.mxu0 0
        %1625 = vmatpush2.bf16.xpose.msra.mxu0 0
        %1626 = vmatprep.mubr.bf16.mxu0 0
        %1627 = vmatmul.mubr.bf16.gmra.mxu0 %v1589
        %v1628 = vpop.f32.mrf.mxu0
        %v1629 = vadd.f32 0.0, %v1628
        %v1630 = vpop.f32.mrf.mxu0
        %v1631 = vpop.f32.mrf.mxu0
        %v1632 = vadd.f32 0.0, %v1631
        %v1633 = vpop.f32.mrf.mxu0
        %1634 = vdwg.mxu0
        %1635 = vrot.lane.b32.xlu0 %v532, 64
        %v1636 = vpop.permute.xlu0 %1635
        %v1638 = vsel %vm803, %v532, 0
        %v1641 = vsel %vm803, %v1636, 0
        %1643 = vmatprep.subr.bf16.mxu0 0
        %1644 = vmatpush1.bf16.xpose.msra.mxu0 0
        %1645 = vmatprep.subr.bf16.mxu0 0
        %1646 = vmatpush1.bf16.xpose.msra.mxu0 0
        %1647 = vmatprep.subr.bf16.mxu0 0
        %1648 = vmatpush1.bf16.xpose.msra.mxu0 0
        %1649 = vmatprep.subr.bf16.mxu0 0
        %1650 = vmatpush1.bf16.xpose.msra.mxu0 0
        %1651 = vmatprep.subr.bf16.mxu0 0
        %1652 = vmatpush1.bf16.xpose.msra.mxu0 0
        %1653 = vmatprep.subr.bf16.mxu0 0
        %1654 = vmatpush1.bf16.xpose.msra.mxu0 0
        %1655 = vmatprep.subr.bf16.mxu0 0
        %1656 = vmatpush1.bf16.xpose.msra.mxu0 0
        %1657 = vmatprep.subr.bf16.mxu0 0
        %1658 = vmatpush1.bf16.xpose.msra.mxu0 %v1641
        %1659 = vmatprep.subr.bf16.mxu0 0
        %1660 = vmatpush2.bf16.xpose.msra.mxu0 0
        %1661 = vmatprep.subr.bf16.mxu0 0
        %1662 = vmatpush2.bf16.xpose.msra.mxu0 0
        %1663 = vmatprep.subr.bf16.mxu0 0
        %1664 = vmatpush2.bf16.xpose.msra.mxu0 0
        %1665 = vmatprep.subr.bf16.mxu0 0
        %1666 = vmatpush2.bf16.xpose.msra.mxu0 0
        %1667 = vmatprep.subr.bf16.mxu0 0
        %1668 = vmatpush2.bf16.xpose.msra.mxu0 0
        %1669 = vmatprep.subr.bf16.mxu0 0
        %1670 = vmatpush2.bf16.xpose.msra.mxu0 0
        %1671 = vmatprep.subr.bf16.mxu0 0
        %1672 = vmatpush2.bf16.xpose.msra.mxu0 0
        %1673 = vmatprep.subr.bf16.mxu0 0
        %1674 = vmatpush2.bf16.xpose.msra.mxu0 0
        %1675 = vmatprep.mubr.bf16.mxu0 0
        %1676 = vmatmul.mubr.bf16.gmra.mxu0 %v1638
        %v1677 = vpop.f32.mrf.mxu0
        %v1678 = vadd.f32 0.0, %v1677
        %v1679 = vpop.f32.mrf.mxu0
        %v1680 = vpop.f32.mrf.mxu0
        %v1681 = vadd.f32 0.0, %v1680
        %v1682 = vpop.f32.mrf.mxu0
        %1683 = vdwg.mxu0
        %1684 = vrot.lane.b32.xlu0 %v534, 64
        %v1685 = vpop.permute.xlu0 %1684
        %v1687 = vsel %vm803, %v534, 0
        %v1690 = vsel %vm803, %v1685, 0
        %1692 = vmatprep.subr.bf16.mxu0 0
        %1693 = vmatpush1.bf16.xpose.msra.mxu0 0
        %1694 = vmatprep.subr.bf16.mxu0 0
        %1695 = vmatpush1.bf16.xpose.msra.mxu0 0
        %1696 = vmatprep.subr.bf16.mxu0 0
        %1697 = vmatpush1.bf16.xpose.msra.mxu0 0
        %1698 = vmatprep.subr.bf16.mxu0 0
        %1699 = vmatpush1.bf16.xpose.msra.mxu0 0
        %1700 = vmatprep.subr.bf16.mxu0 0
        %1701 = vmatpush1.bf16.xpose.msra.mxu0 0
        %1702 = vmatprep.subr.bf16.mxu0 0
        %1703 = vmatpush1.bf16.xpose.msra.mxu0 0
        %1704 = vmatprep.subr.bf16.mxu0 0
        %1705 = vmatpush1.bf16.xpose.msra.mxu0 0
        %1706 = vmatprep.subr.bf16.mxu0 0
        %1707 = vmatpush1.bf16.xpose.msra.mxu0 %v1690
        %1708 = vmatprep.subr.bf16.mxu0 0
        %1709 = vmatpush2.bf16.xpose.msra.mxu0 0
        %1710 = vmatprep.subr.bf16.mxu0 0
        %1711 = vmatpush2.bf16.xpose.msra.mxu0 0
        %1712 = vmatprep.subr.bf16.mxu0 0
        %1713 = vmatpush2.bf16.xpose.msra.mxu0 0
        %1714 = vmatprep.subr.bf16.mxu0 0
        %1715 = vmatpush2.bf16.xpose.msra.mxu0 0
        %1716 = vmatprep.subr.bf16.mxu0 0
        %1717 = vmatpush2.bf16.xpose.msra.mxu0 0
        %1718 = vmatprep.subr.bf16.mxu0 0
        %1719 = vmatpush2.bf16.xpose.msra.mxu0 0
        %1720 = vmatprep.subr.bf16.mxu0 0
        %1721 = vmatpush2.bf16.xpose.msra.mxu0 0
        %1722 = vmatprep.subr.bf16.mxu0 0
        %1723 = vmatpush2.bf16.xpose.msra.mxu0 0
        %1724 = vmatprep.mubr.bf16.mxu0 0
        %1725 = vmatmul.mubr.bf16.gmra.mxu0 %v1687
        %v1726 = vpop.f32.mrf.mxu0
        %v1727 = vadd.f32 0.0, %v1726
        %v1728 = vpop.f32.mrf.mxu0
        %v1729 = vpop.f32.mrf.mxu0
        %v1730 = vadd.f32 0.0, %v1729
        %v1731 = vpop.f32.mrf.mxu0
        %1732 = vdwg.mxu0
        %1733 = vrot.lane.b32.xlu0 %v536, 64
        %v1734 = vpop.permute.xlu0 %1733
        %v1736 = vsel %vm803, %v536, 0
        %v1739 = vsel %vm803, %v1734, 0
        %1741 = vmatprep.subr.bf16.mxu0 0
        %1742 = vmatpush1.bf16.xpose.msra.mxu0 0
        %1743 = vmatprep.subr.bf16.mxu0 0
        %1744 = vmatpush1.bf16.xpose.msra.mxu0 0
        %1745 = vmatprep.subr.bf16.mxu0 0
        %1746 = vmatpush1.bf16.xpose.msra.mxu0 0
        %1747 = vmatprep.subr.bf16.mxu0 0
        %1748 = vmatpush1.bf16.xpose.msra.mxu0 0
        %1749 = vmatprep.subr.bf16.mxu0 0
        %1750 = vmatpush1.bf16.xpose.msra.mxu0 0
        %1751 = vmatprep.subr.bf16.mxu0 0
        %1752 = vmatpush1.bf16.xpose.msra.mxu0 0
        %1753 = vmatprep.subr.bf16.mxu0 0
        %1754 = vmatpush1.bf16.xpose.msra.mxu0 0
        %1755 = vmatprep.subr.bf16.mxu0 0
        %1756 = vmatpush1.bf16.xpose.msra.mxu0 %v1739
        %1757 = vmatprep.subr.bf16.mxu0 0
        %1758 = vmatpush2.bf16.xpose.msra.mxu0 0
        %1759 = vmatprep.subr.bf16.mxu0 0
        %1760 = vmatpush2.bf16.xpose.msra.mxu0 0
        %1761 = vmatprep.subr.bf16.mxu0 0
        %1762 = vmatpush2.bf16.xpose.msra.mxu0 0
        %1763 = vmatprep.subr.bf16.mxu0 0
        %1764 = vmatpush2.bf16.xpose.msra.mxu0 0
        %1765 = vmatprep.subr.bf16.mxu0 0
        %1766 = vmatpush2.bf16.xpose.msra.mxu0 0
        %1767 = vmatprep.subr.bf16.mxu0 0
        %1768 = vmatpush2.bf16.xpose.msra.mxu0 0
        %1769 = vmatprep.subr.bf16.mxu0 0
        %1770 = vmatpush2.bf16.xpose.msra.mxu0 0
        %1771 = vmatprep.subr.bf16.mxu0 0
        %1772 = vmatpush2.bf16.xpose.msra.mxu0 0
        %1773 = vmatprep.mubr.bf16.mxu0 0
        %1774 = vmatmul.mubr.bf16.gmra.mxu0 %v1736
        %v1775 = vpop.f32.mrf.mxu0
        %v1776 = vadd.f32 0.0, %v1775
        %v1777 = vpop.f32.mrf.mxu0
        %v1778 = vpop.f32.mrf.mxu0
        %v1779 = vadd.f32 0.0, %v1778
        %v1780 = vpop.f32.mrf.mxu0
        %1781 = vdwg.mxu0
        %1782 = vrot.lane.b32.xlu0 %v538, 64
        %v1783 = vpop.permute.xlu0 %1782
        %v1785 = vsel %vm803, %v538, 0
        %v1788 = vsel %vm803, %v1783, 0
        %1790 = vmatprep.subr.bf16.mxu0 0
        %1791 = vmatpush1.bf16.xpose.msra.mxu0 0
        %1792 = vmatprep.subr.bf16.mxu0 0
        %1793 = vmatpush1.bf16.xpose.msra.mxu0 0
        %1794 = vmatprep.subr.bf16.mxu0 0
        %1795 = vmatpush1.bf16.xpose.msra.mxu0 0
        %1796 = vmatprep.subr.bf16.mxu0 0
        %1797 = vmatpush1.bf16.xpose.msra.mxu0 0
        %1798 = vmatprep.subr.bf16.mxu0 0
        %1799 = vmatpush1.bf16.xpose.msra.mxu0 0
        %1800 = vmatprep.subr.bf16.mxu0 0
        %1801 = vmatpush1.bf16.xpose.msra.mxu0 0
        %1802 = vmatprep.subr.bf16.mxu0 0
        %1803 = vmatpush1.bf16.xpose.msra.mxu0 0
        %1804 = vmatprep.subr.bf16.mxu0 0
        %1805 = vmatpush1.bf16.xpose.msra.mxu0 %v1788
        %1806 = vmatprep.subr.bf16.mxu0 0
        %1807 = vmatpush2.bf16.xpose.msra.mxu0 0
        %1808 = vmatprep.subr.bf16.mxu0 0
        %1809 = vmatpush2.bf16.xpose.msra.mxu0 0
        %1810 = vmatprep.subr.bf16.mxu0 0
        %1811 = vmatpush2.bf16.xpose.msra.mxu0 0
        %1812 = vmatprep.subr.bf16.mxu0 0
        %1813 = vmatpush2.bf16.xpose.msra.mxu0 0
        %1814 = vmatprep.subr.bf16.mxu0 0
        %1815 = vmatpush2.bf16.xpose.msra.mxu0 0
        %1816 = vmatprep.subr.bf16.mxu0 0
        %1817 = vmatpush2.bf16.xpose.msra.mxu0 0
        %1818 = vmatprep.subr.bf16.mxu0 0
        %1819 = vmatpush2.bf16.xpose.msra.mxu0 0
        %1820 = vmatprep.subr.bf16.mxu0 0
        %1821 = vmatpush2.bf16.xpose.msra.mxu0 0
        %1822 = vmatprep.mubr.bf16.mxu0 0
        %1823 = vmatmul.mubr.bf16.gmra.mxu0 %v1785
        %v1824 = vpop.f32.mrf.mxu0
        %v1825 = vadd.f32 0.0, %v1824
        %v1826 = vpop.f32.mrf.mxu0
        %v1827 = vpop.f32.mrf.mxu0
        %v1828 = vadd.f32 0.0, %v1827
        %v1829 = vpop.f32.mrf.mxu0
        %1830 = vdwg.mxu0
        %1831 = vrot.lane.b32.xlu0 %v540, 64
        %v1832 = vpop.permute.xlu0 %1831
        %v1834 = vsel %vm803, %v540, 0
        %v1837 = vsel %vm803, %v1832, 0
        %1839 = vmatprep.subr.bf16.mxu0 0
        %1840 = vmatpush1.bf16.xpose.msra.mxu0 0
        %1841 = vmatprep.subr.bf16.mxu0 0
        %1842 = vmatpush1.bf16.xpose.msra.mxu0 0
        %1843 = vmatprep.subr.bf16.mxu0 0
        %1844 = vmatpush1.bf16.xpose.msra.mxu0 0
        %1845 = vmatprep.subr.bf16.mxu0 0
        %1846 = vmatpush1.bf16.xpose.msra.mxu0 0
        %1847 = vmatprep.subr.bf16.mxu0 0
        %1848 = vmatpush1.bf16.xpose.msra.mxu0 0
        %1849 = vmatprep.subr.bf16.mxu0 0
        %1850 = vmatpush1.bf16.xpose.msra.mxu0 0
        %1851 = vmatprep.subr.bf16.mxu0 0
        %1852 = vmatpush1.bf16.xpose.msra.mxu0 0
        %1853 = vmatprep.subr.bf16.mxu0 0
        %1854 = vmatpush1.bf16.xpose.msra.mxu0 %v1837
        %1855 = vmatprep.subr.bf16.mxu0 0
        %1856 = vmatpush2.bf16.xpose.msra.mxu0 0
        %1857 = vmatprep.subr.bf16.mxu0 0
        %1858 = vmatpush2.bf16.xpose.msra.mxu0 0
        %1859 = vmatprep.subr.bf16.mxu0 0
        %1860 = vmatpush2.bf16.xpose.msra.mxu0 0
        %1861 = vmatprep.subr.bf16.mxu0 0
        %1862 = vmatpush2.bf16.xpose.msra.mxu0 0
        %1863 = vmatprep.subr.bf16.mxu0 0
        %1864 = vmatpush2.bf16.xpose.msra.mxu0 0
        %1865 = vmatprep.subr.bf16.mxu0 0
        %1866 = vmatpush2.bf16.xpose.msra.mxu0 0
        %1867 = vmatprep.subr.bf16.mxu0 0
        %1868 = vmatpush2.bf16.xpose.msra.mxu0 0
        %1869 = vmatprep.subr.bf16.mxu0 0
        %1870 = vmatpush2.bf16.xpose.msra.mxu0 0
        %1871 = vmatprep.mubr.bf16.mxu0 0
        %1872 = vmatmul.mubr.bf16.gmra.mxu0 %v1834
        %v1873 = vpop.f32.mrf.mxu0
        %v1874 = vadd.f32 0.0, %v1873
        %v1875 = vpop.f32.mrf.mxu0
        %v1876 = vpop.f32.mrf.mxu0
        %v1877 = vadd.f32 0.0, %v1876
        %v1878 = vpop.f32.mrf.mxu0
        %1879 = vdwg.mxu0
        %1880 = vrot.lane.b32.xlu0 %v542, 64
        %v1881 = vpop.permute.xlu0 %1880
        %v1883 = vsel %vm803, %v542, 0
        %v1886 = vsel %vm803, %v1881, 0
        %1888 = vmatprep.subr.bf16.mxu0 0
        %1889 = vmatpush1.bf16.xpose.msra.mxu0 0
        %1890 = vmatprep.subr.bf16.mxu0 0
        %1891 = vmatpush1.bf16.xpose.msra.mxu0 0
        %1892 = vmatprep.subr.bf16.mxu0 0
        %1893 = vmatpush1.bf16.xpose.msra.mxu0 0
        %1894 = vmatprep.subr.bf16.mxu0 0
        %1895 = vmatpush1.bf16.xpose.msra.mxu0 0
        %1896 = vmatprep.subr.bf16.mxu0 0
        %1897 = vmatpush1.bf16.xpose.msra.mxu0 0
        %1898 = vmatprep.subr.bf16.mxu0 0
        %1899 = vmatpush1.bf16.xpose.msra.mxu0 0
        %1900 = vmatprep.subr.bf16.mxu0 0
        %1901 = vmatpush1.bf16.xpose.msra.mxu0 0
        %1902 = vmatprep.subr.bf16.mxu0 0
        %1903 = vmatpush1.bf16.xpose.msra.mxu0 %v1886
        %1904 = vmatprep.subr.bf16.mxu0 0
        %1905 = vmatpush2.bf16.xpose.msra.mxu0 0
        %1906 = vmatprep.subr.bf16.mxu0 0
        %1907 = vmatpush2.bf16.xpose.msra.mxu0 0
        %1908 = vmatprep.subr.bf16.mxu0 0
        %1909 = vmatpush2.bf16.xpose.msra.mxu0 0
        %1910 = vmatprep.subr.bf16.mxu0 0
        %1911 = vmatpush2.bf16.xpose.msra.mxu0 0
        %1912 = vmatprep.subr.bf16.mxu0 0
        %1913 = vmatpush2.bf16.xpose.msra.mxu0 0
        %1914 = vmatprep.subr.bf16.mxu0 0
        %1915 = vmatpush2.bf16.xpose.msra.mxu0 0
        %1916 = vmatprep.subr.bf16.mxu0 0
        %1917 = vmatpush2.bf16.xpose.msra.mxu0 0
        %1918 = vmatprep.subr.bf16.mxu0 0
        %1919 = vmatpush2.bf16.xpose.msra.mxu0 0
        %1920 = vmatprep.mubr.bf16.mxu0 0
        %1921 = vmatmul.mubr.bf16.gmra.mxu0 %v1883
        %v1922 = vpop.f32.mrf.mxu0
        %v1923 = vadd.f32 0.0, %v1922
        %v1924 = vpop.f32.mrf.mxu0
        %v1925 = vpop.f32.mrf.mxu0
        %v1926 = vadd.f32 0.0, %v1925
        %v1927 = vpop.f32.mrf.mxu0
        %1928 = vdwg.mxu0
        %1929 = vrot.lane.b32.xlu0 %v544, 64
        %v1930 = vpop.permute.xlu0 %1929
        %v1932 = vsel %vm803, %v544, 0
        %v1935 = vsel %vm803, %v1930, 0
        %1937 = vmatprep.subr.bf16.mxu0 0
        %1938 = vmatpush1.bf16.xpose.msra.mxu0 0
        %1939 = vmatprep.subr.bf16.mxu0 0
        %1940 = vmatpush1.bf16.xpose.msra.mxu0 0
        %1941 = vmatprep.subr.bf16.mxu0 0
        %1942 = vmatpush1.bf16.xpose.msra.mxu0 0
        %1943 = vmatprep.subr.bf16.mxu0 0
        %1944 = vmatpush1.bf16.xpose.msra.mxu0 0
        %1945 = vmatprep.subr.bf16.mxu0 0
        %1946 = vmatpush1.bf16.xpose.msra.mxu0 0
        %1947 = vmatprep.subr.bf16.mxu0 0
        %1948 = vmatpush1.bf16.xpose.msra.mxu0 0
        %1949 = vmatprep.subr.bf16.mxu0 0
        %1950 = vmatpush1.bf16.xpose.msra.mxu0 0
        %1951 = vmatprep.subr.bf16.mxu0 0
        %1952 = vmatpush1.bf16.xpose.msra.mxu0 %v1935
        %1953 = vmatprep.subr.bf16.mxu0 0
        %1954 = vmatpush2.bf16.xpose.msra.mxu0 0
        %1955 = vmatprep.subr.bf16.mxu0 0
        %1956 = vmatpush2.bf16.xpose.msra.mxu0 0
        %1957 = vmatprep.subr.bf16.mxu0 0
        %1958 = vmatpush2.bf16.xpose.msra.mxu0 0
        %1959 = vmatprep.subr.bf16.mxu0 0
        %1960 = vmatpush2.bf16.xpose.msra.mxu0 0
        %1961 = vmatprep.subr.bf16.mxu0 0
        %1962 = vmatpush2.bf16.xpose.msra.mxu0 0
        %1963 = vmatprep.subr.bf16.mxu0 0
        %1964 = vmatpush2.bf16.xpose.msra.mxu0 0
        %1965 = vmatprep.subr.bf16.mxu0 0
        %1966 = vmatpush2.bf16.xpose.msra.mxu0 0
        %1967 = vmatprep.subr.bf16.mxu0 0
        %1968 = vmatpush2.bf16.xpose.msra.mxu0 0
        %1969 = vmatprep.mubr.bf16.mxu0 0
        %1970 = vmatmul.mubr.bf16.gmra.mxu0 %v1932
        %v1971 = vpop.f32.mrf.mxu0
        %v1972 = vadd.f32 0.0, %v1971
        %v1973 = vpop.f32.mrf.mxu0
        %v1974 = vpop.f32.mrf.mxu0
        %v1975 = vadd.f32 0.0, %v1974
        %v1976 = vpop.f32.mrf.mxu0
        %1977 = vdwg.mxu0
        %1978 = vrot.lane.b32.xlu0 %v546, 64
        %v1979 = vpop.permute.xlu0 %1978
        %v1981 = vsel %vm803, %v546, 0
        %v1984 = vsel %vm803, %v1979, 0
        %1986 = vmatprep.subr.bf16.mxu0 0
        %1987 = vmatpush1.bf16.xpose.msra.mxu0 0
        %1988 = vmatprep.subr.bf16.mxu0 0
        %1989 = vmatpush1.bf16.xpose.msra.mxu0 0
        %1990 = vmatprep.subr.bf16.mxu0 0
        %1991 = vmatpush1.bf16.xpose.msra.mxu0 0
        %1992 = vmatprep.subr.bf16.mxu0 0
        %1993 = vmatpush1.bf16.xpose.msra.mxu0 0
        %1994 = vmatprep.subr.bf16.mxu0 0
        %1995 = vmatpush1.bf16.xpose.msra.mxu0 0
        %1996 = vmatprep.subr.bf16.mxu0 0
        %1997 = vmatpush1.bf16.xpose.msra.mxu0 0
        %1998 = vmatprep.subr.bf16.mxu0 0
        %1999 = vmatpush1.bf16.xpose.msra.mxu0 0
        %2000 = vmatprep.subr.bf16.mxu0 0
        %2001 = vmatpush1.bf16.xpose.msra.mxu0 %v1984
        %2002 = vmatprep.subr.bf16.mxu0 0
        %2003 = vmatpush2.bf16.xpose.msra.mxu0 0
        %2004 = vmatprep.subr.bf16.mxu0 0
        %2005 = vmatpush2.bf16.xpose.msra.mxu0 0
        %2006 = vmatprep.subr.bf16.mxu0 0
        %2007 = vmatpush2.bf16.xpose.msra.mxu0 0
        %2008 = vmatprep.subr.bf16.mxu0 0
        %2009 = vmatpush2.bf16.xpose.msra.mxu0 0
        %2010 = vmatprep.subr.bf16.mxu0 0
        %2011 = vmatpush2.bf16.xpose.msra.mxu0 0
        %2012 = vmatprep.subr.bf16.mxu0 0
        %2013 = vmatpush2.bf16.xpose.msra.mxu0 0
        %2014 = vmatprep.subr.bf16.mxu0 0
        %2015 = vmatpush2.bf16.xpose.msra.mxu0 0
        %2016 = vmatprep.subr.bf16.mxu0 0
        %2017 = vmatpush2.bf16.xpose.msra.mxu0 0
        %2018 = vmatprep.mubr.bf16.mxu0 0
        %2019 = vmatmul.mubr.bf16.gmra.mxu0 %v1981
        %v2020 = vpop.f32.mrf.mxu0
        %v2021 = vadd.f32 0.0, %v2020
        %v2022 = vpop.f32.mrf.mxu0
        %v2023 = vpop.f32.mrf.mxu0
        %v2024 = vadd.f32 0.0, %v2023
        %v2025 = vpop.f32.mrf.mxu0
        %2026 = vdwg.mxu0
        %2027 = vrot.lane.b32.xlu0 %v548, 64
        %v2028 = vpop.permute.xlu0 %2027
        %v2030 = vsel %vm803, %v548, 0
        %v2033 = vsel %vm803, %v2028, 0
        %2035 = vmatprep.subr.bf16.mxu0 0
        %2036 = vmatpush1.bf16.xpose.msra.mxu0 0
        %2037 = vmatprep.subr.bf16.mxu0 0
        %2038 = vmatpush1.bf16.xpose.msra.mxu0 0
        %2039 = vmatprep.subr.bf16.mxu0 0
        %2040 = vmatpush1.bf16.xpose.msra.mxu0 0
        %2041 = vmatprep.subr.bf16.mxu0 0
        %2042 = vmatpush1.bf16.xpose.msra.mxu0 0
        %2043 = vmatprep.subr.bf16.mxu0 0
        %2044 = vmatpush1.bf16.xpose.msra.mxu0 0
        %2045 = vmatprep.subr.bf16.mxu0 0
        %2046 = vmatpush1.bf16.xpose.msra.mxu0 0
        %2047 = vmatprep.subr.bf16.mxu0 0
        %2048 = vmatpush1.bf16.xpose.msra.mxu0 0
        %2049 = vmatprep.subr.bf16.mxu0 0
        %2050 = vmatpush1.bf16.xpose.msra.mxu0 %v2033
        %2051 = vmatprep.subr.bf16.mxu0 0
        %2052 = vmatpush2.bf16.xpose.msra.mxu0 0
        %2053 = vmatprep.subr.bf16.mxu0 0
        %2054 = vmatpush2.bf16.xpose.msra.mxu0 0
        %2055 = vmatprep.subr.bf16.mxu0 0
        %2056 = vmatpush2.bf16.xpose.msra.mxu0 0
        %2057 = vmatprep.subr.bf16.mxu0 0
        %2058 = vmatpush2.bf16.xpose.msra.mxu0 0
        %2059 = vmatprep.subr.bf16.mxu0 0
        %2060 = vmatpush2.bf16.xpose.msra.mxu0 0
        %2061 = vmatprep.subr.bf16.mxu0 0
        %2062 = vmatpush2.bf16.xpose.msra.mxu0 0
        %2063 = vmatprep.subr.bf16.mxu0 0
        %2064 = vmatpush2.bf16.xpose.msra.mxu0 0
        %2065 = vmatprep.subr.bf16.mxu0 0
        %2066 = vmatpush2.bf16.xpose.msra.mxu0 0
        %2067 = vmatprep.mubr.bf16.mxu0 0
        %2068 = vmatmul.mubr.bf16.gmra.mxu0 %v2030
        %v2069 = vpop.f32.mrf.mxu0
        %v2070 = vadd.f32 0.0, %v2069
        %v2071 = vpop.f32.mrf.mxu0
        %v2072 = vpop.f32.mrf.mxu0
        %v2073 = vadd.f32 0.0, %v2072
        %v2074 = vpop.f32.mrf.mxu0
        %2075 = vdwg.mxu0
        %2076 = vrot.lane.b32.xlu0 %v550, 64
        %v2077 = vpop.permute.xlu0 %2076
        %v2079 = vsel %vm803, %v550, 0
        %v2082 = vsel %vm803, %v2077, 0
        %2084 = vmatprep.subr.bf16.mxu0 0
        %2085 = vmatpush1.bf16.xpose.msra.mxu0 0
        %2086 = vmatprep.subr.bf16.mxu0 0
        %2087 = vmatpush1.bf16.xpose.msra.mxu0 0
        %2088 = vmatprep.subr.bf16.mxu0 0
        %2089 = vmatpush1.bf16.xpose.msra.mxu0 0
        %2090 = vmatprep.subr.bf16.mxu0 0
        %2091 = vmatpush1.bf16.xpose.msra.mxu0 0
        %2092 = vmatprep.subr.bf16.mxu0 0
        %2093 = vmatpush1.bf16.xpose.msra.mxu0 0
        %2094 = vmatprep.subr.bf16.mxu0 0
        %2095 = vmatpush1.bf16.xpose.msra.mxu0 0
        %2096 = vmatprep.subr.bf16.mxu0 0
        %2097 = vmatpush1.bf16.xpose.msra.mxu0 0
        %2098 = vmatprep.subr.bf16.mxu0 0
        %2099 = vmatpush1.bf16.xpose.msra.mxu0 %v2082
        %2100 = vmatprep.subr.bf16.mxu0 0
        %2101 = vmatpush2.bf16.xpose.msra.mxu0 0
        %2102 = vmatprep.subr.bf16.mxu0 0
        %2103 = vmatpush2.bf16.xpose.msra.mxu0 0
        %2104 = vmatprep.subr.bf16.mxu0 0
        %2105 = vmatpush2.bf16.xpose.msra.mxu0 0
        %2106 = vmatprep.subr.bf16.mxu0 0
        %2107 = vmatpush2.bf16.xpose.msra.mxu0 0
        %2108 = vmatprep.subr.bf16.mxu0 0
        %2109 = vmatpush2.bf16.xpose.msra.mxu0 0
        %2110 = vmatprep.subr.bf16.mxu0 0
        %2111 = vmatpush2.bf16.xpose.msra.mxu0 0
        %2112 = vmatprep.subr.bf16.mxu0 0
        %2113 = vmatpush2.bf16.xpose.msra.mxu0 0
        %2114 = vmatprep.subr.bf16.mxu0 0
        %2115 = vmatpush2.bf16.xpose.msra.mxu0 0
        %2116 = vmatprep.mubr.bf16.mxu0 0
        %2117 = vmatmul.mubr.bf16.gmra.mxu0 %v2079
        %v2118 = vpop.f32.mrf.mxu0
        %v2119 = vadd.f32 0.0, %v2118
        %v2120 = vpop.f32.mrf.mxu0
        %v2121 = vpop.f32.mrf.mxu0
        %v2122 = vadd.f32 0.0, %v2121
        %v2123 = vpop.f32.mrf.mxu0
        %2124 = vdwg.mxu0
        %2125 = vrot.lane.b32.xlu0 %v552, 64
        %v2126 = vpop.permute.xlu0 %2125
        %v2128 = vsel %vm803, %v552, 0
        %v2131 = vsel %vm803, %v2126, 0
        %2133 = vmatprep.subr.bf16.mxu0 0
        %2134 = vmatpush1.bf16.xpose.msra.mxu0 0
        %2135 = vmatprep.subr.bf16.mxu0 0
        %2136 = vmatpush1.bf16.xpose.msra.mxu0 0
        %2137 = vmatprep.subr.bf16.mxu0 0
        %2138 = vmatpush1.bf16.xpose.msra.mxu0 0
        %2139 = vmatprep.subr.bf16.mxu0 0
        %2140 = vmatpush1.bf16.xpose.msra.mxu0 0
        %2141 = vmatprep.subr.bf16.mxu0 0
        %2142 = vmatpush1.bf16.xpose.msra.mxu0 0
        %2143 = vmatprep.subr.bf16.mxu0 0
        %2144 = vmatpush1.bf16.xpose.msra.mxu0 0
        %2145 = vmatprep.subr.bf16.mxu0 0
        %2146 = vmatpush1.bf16.xpose.msra.mxu0 0
        %2147 = vmatprep.subr.bf16.mxu0 0
        %2148 = vmatpush1.bf16.xpose.msra.mxu0 %v2131
        %2149 = vmatprep.subr.bf16.mxu0 0
        %2150 = vmatpush2.bf16.xpose.msra.mxu0 0
        %2151 = vmatprep.subr.bf16.mxu0 0
        %2152 = vmatpush2.bf16.xpose.msra.mxu0 0
        %2153 = vmatprep.subr.bf16.mxu0 0
        %2154 = vmatpush2.bf16.xpose.msra.mxu0 0
        %2155 = vmatprep.subr.bf16.mxu0 0
        %2156 = vmatpush2.bf16.xpose.msra.mxu0 0
        %2157 = vmatprep.subr.bf16.mxu0 0
        %2158 = vmatpush2.bf16.xpose.msra.mxu0 0
        %2159 = vmatprep.subr.bf16.mxu0 0
        %2160 = vmatpush2.bf16.xpose.msra.mxu0 0
        %2161 = vmatprep.subr.bf16.mxu0 0
        %2162 = vmatpush2.bf16.xpose.msra.mxu0 0
        %2163 = vmatprep.subr.bf16.mxu0 0
        %2164 = vmatpush2.bf16.xpose.msra.mxu0 0
        %2165 = vmatprep.mubr.bf16.mxu0 0
        %2166 = vmatmul.mubr.bf16.gmra.mxu0 %v2128
        %v2167 = vpop.f32.mrf.mxu0
        %v2168 = vadd.f32 0.0, %v2167
        %v2169 = vpop.f32.mrf.mxu0
        %v2170 = vpop.f32.mrf.mxu0
        %v2171 = vadd.f32 0.0, %v2170
        %v2172 = vpop.f32.mrf.mxu0
        %2173 = vdwg.mxu0
        %2174 = vrot.lane.b32.xlu0 %v554, 64
        %v2175 = vpop.permute.xlu0 %2174
        %v2177 = vsel %vm803, %v554, 0
        %v2180 = vsel %vm803, %v2175, 0
        %2182 = vmatprep.subr.bf16.mxu0 0
        %2183 = vmatpush1.bf16.xpose.msra.mxu0 0
        %2184 = vmatprep.subr.bf16.mxu0 0
        %2185 = vmatpush1.bf16.xpose.msra.mxu0 0
        %2186 = vmatprep.subr.bf16.mxu0 0
        %2187 = vmatpush1.bf16.xpose.msra.mxu0 0
        %2188 = vmatprep.subr.bf16.mxu0 0
        %2189 = vmatpush1.bf16.xpose.msra.mxu0 0
        %2190 = vmatprep.subr.bf16.mxu0 0
        %2191 = vmatpush1.bf16.xpose.msra.mxu0 0
        %2192 = vmatprep.subr.bf16.mxu0 0
        %2193 = vmatpush1.bf16.xpose.msra.mxu0 0
        %2194 = vmatprep.subr.bf16.mxu0 0
        %2195 = vmatpush1.bf16.xpose.msra.mxu0 0
        %2196 = vmatprep.subr.bf16.mxu0 0
        %2197 = vmatpush1.bf16.xpose.msra.mxu0 %v2180
        %2198 = vmatprep.subr.bf16.mxu0 0
        %2199 = vmatpush2.bf16.xpose.msra.mxu0 0
        %2200 = vmatprep.subr.bf16.mxu0 0
        %2201 = vmatpush2.bf16.xpose.msra.mxu0 0
        %2202 = vmatprep.subr.bf16.mxu0 0
        %2203 = vmatpush2.bf16.xpose.msra.mxu0 0
        %2204 = vmatprep.subr.bf16.mxu0 0
        %2205 = vmatpush2.bf16.xpose.msra.mxu0 0
        %2206 = vmatprep.subr.bf16.mxu0 0
        %2207 = vmatpush2.bf16.xpose.msra.mxu0 0
        %2208 = vmatprep.subr.bf16.mxu0 0
        %2209 = vmatpush2.bf16.xpose.msra.mxu0 0
        %2210 = vmatprep.subr.bf16.mxu0 0
        %2211 = vmatpush2.bf16.xpose.msra.mxu0 0
        %2212 = vmatprep.subr.bf16.mxu0 0
        %2213 = vmatpush2.bf16.xpose.msra.mxu0 0
        %2214 = vmatprep.mubr.bf16.mxu0 0
        %2215 = vmatmul.mubr.bf16.gmra.mxu0 %v2177
        %v2216 = vpop.f32.mrf.mxu0
        %v2217 = vadd.f32 0.0, %v2216
        %v2218 = vpop.f32.mrf.mxu0
        %v2219 = vpop.f32.mrf.mxu0
        %v2220 = vadd.f32 0.0, %v2219
        %v2221 = vpop.f32.mrf.mxu0
        %2222 = vdwg.mxu0
        %2223 = vrot.lane.b32.xlu0 %v556, 64
        %v2224 = vpop.permute.xlu0 %2223
        %v2226 = vsel %vm803, %v556, 0
        %v2229 = vsel %vm803, %v2224, 0
        %2231 = vmatprep.subr.bf16.mxu0 0
        %2232 = vmatpush1.bf16.xpose.msra.mxu0 0
        %2233 = vmatprep.subr.bf16.mxu0 0
        %2234 = vmatpush1.bf16.xpose.msra.mxu0 0
        %2235 = vmatprep.subr.bf16.mxu0 0
        %2236 = vmatpush1.bf16.xpose.msra.mxu0 0
        %2237 = vmatprep.subr.bf16.mxu0 0
        %2238 = vmatpush1.bf16.xpose.msra.mxu0 0
        %2239 = vmatprep.subr.bf16.mxu0 0
        %2240 = vmatpush1.bf16.xpose.msra.mxu0 0
        %2241 = vmatprep.subr.bf16.mxu0 0
        %2242 = vmatpush1.bf16.xpose.msra.mxu0 0
        %2243 = vmatprep.subr.bf16.mxu0 0
        %2244 = vmatpush1.bf16.xpose.msra.mxu0 0
        %2245 = vmatprep.subr.bf16.mxu0 0
        %2246 = vmatpush1.bf16.xpose.msra.mxu0 %v2229
        %2247 = vmatprep.subr.bf16.mxu0 0
        %2248 = vmatpush2.bf16.xpose.msra.mxu0 0
        %2249 = vmatprep.subr.bf16.mxu0 0
        %2250 = vmatpush2.bf16.xpose.msra.mxu0 0
        %2251 = vmatprep.subr.bf16.mxu0 0
        %2252 = vmatpush2.bf16.xpose.msra.mxu0 0
        %2253 = vmatprep.subr.bf16.mxu0 0
        %2254 = vmatpush2.bf16.xpose.msra.mxu0 0
        %2255 = vmatprep.subr.bf16.mxu0 0
        %2256 = vmatpush2.bf16.xpose.msra.mxu0 0
        %2257 = vmatprep.subr.bf16.mxu0 0
        %2258 = vmatpush2.bf16.xpose.msra.mxu0 0
        %2259 = vmatprep.subr.bf16.mxu0 0
        %2260 = vmatpush2.bf16.xpose.msra.mxu0 0
        %2261 = vmatprep.subr.bf16.mxu0 0
        %2262 = vmatpush2.bf16.xpose.msra.mxu0 0
        %2263 = vmatprep.mubr.bf16.mxu0 0
        %2264 = vmatmul.mubr.bf16.gmra.mxu0 %v2226
        %v2265 = vpop.f32.mrf.mxu0
        %v2266 = vadd.f32 0.0, %v2265
        %v2267 = vpop.f32.mrf.mxu0
        %v2268 = vpop.f32.mrf.mxu0
        %v2269 = vadd.f32 0.0, %v2268
        %v2270 = vpop.f32.mrf.mxu0
        %2271 = vdwg.mxu0
        %2272 = vrot.lane.b32.xlu0 %v558, 64
        %v2273 = vpop.permute.xlu0 %2272
        %v2275 = vsel %vm803, %v558, 0
        %v2278 = vsel %vm803, %v2273, 0
        %2280 = vmatprep.subr.bf16.mxu0 0
        %2281 = vmatpush1.bf16.xpose.msra.mxu0 0
        %2282 = vmatprep.subr.bf16.mxu0 0
        %2283 = vmatpush1.bf16.xpose.msra.mxu0 0
        %2284 = vmatprep.subr.bf16.mxu0 0
        %2285 = vmatpush1.bf16.xpose.msra.mxu0 0
        %2286 = vmatprep.subr.bf16.mxu0 0
        %2287 = vmatpush1.bf16.xpose.msra.mxu0 0
        %2288 = vmatprep.subr.bf16.mxu0 0
        %2289 = vmatpush1.bf16.xpose.msra.mxu0 0
        %2290 = vmatprep.subr.bf16.mxu0 0
        %2291 = vmatpush1.bf16.xpose.msra.mxu0 0
        %2292 = vmatprep.subr.bf16.mxu0 0
        %2293 = vmatpush1.bf16.xpose.msra.mxu0 0
        %2294 = vmatprep.subr.bf16.mxu0 0
        %2295 = vmatpush1.bf16.xpose.msra.mxu0 %v2278
        %2296 = vmatprep.subr.bf16.mxu0 0
        %2297 = vmatpush2.bf16.xpose.msra.mxu0 0
        %2298 = vmatprep.subr.bf16.mxu0 0
        %2299 = vmatpush2.bf16.xpose.msra.mxu0 0
        %2300 = vmatprep.subr.bf16.mxu0 0
        %2301 = vmatpush2.bf16.xpose.msra.mxu0 0
        %2302 = vmatprep.subr.bf16.mxu0 0
        %2303 = vmatpush2.bf16.xpose.msra.mxu0 0
        %2304 = vmatprep.subr.bf16.mxu0 0
        %2305 = vmatpush2.bf16.xpose.msra.mxu0 0
        %2306 = vmatprep.subr.bf16.mxu0 0
        %2307 = vmatpush2.bf16.xpose.msra.mxu0 0
        %2308 = vmatprep.subr.bf16.mxu0 0
        %2309 = vmatpush2.bf16.xpose.msra.mxu0 0
        %2310 = vmatprep.subr.bf16.mxu0 0
        %2311 = vmatpush2.bf16.xpose.msra.mxu0 0
        %2312 = vmatprep.mubr.bf16.mxu0 0
        %2313 = vmatmul.mubr.bf16.gmra.mxu0 %v2275
        %v2314 = vpop.f32.mrf.mxu0
        %v2315 = vadd.f32 0.0, %v2314
        %v2316 = vpop.f32.mrf.mxu0
        %v2317 = vpop.f32.mrf.mxu0
        %v2318 = vadd.f32 0.0, %v2317
        %v2319 = vpop.f32.mrf.mxu0
        %2320 = vdwg.mxu0
        %2321 = vrot.lane.b32.xlu0 %v560, 64
        %v2322 = vpop.permute.xlu0 %2321
        %v2324 = vsel %vm803, %v560, 0
        %v2327 = vsel %vm803, %v2322, 0
        %2329 = vmatprep.subr.bf16.mxu0 0
        %2330 = vmatpush1.bf16.xpose.msra.mxu0 0
        %2331 = vmatprep.subr.bf16.mxu0 0
        %2332 = vmatpush1.bf16.xpose.msra.mxu0 0
        %2333 = vmatprep.subr.bf16.mxu0 0
        %2334 = vmatpush1.bf16.xpose.msra.mxu0 0
        %2335 = vmatprep.subr.bf16.mxu0 0
        %2336 = vmatpush1.bf16.xpose.msra.mxu0 0
        %2337 = vmatprep.subr.bf16.mxu0 0
        %2338 = vmatpush1.bf16.xpose.msra.mxu0 0
        %2339 = vmatprep.subr.bf16.mxu0 0
        %2340 = vmatpush1.bf16.xpose.msra.mxu0 0
        %2341 = vmatprep.subr.bf16.mxu0 0
        %2342 = vmatpush1.bf16.xpose.msra.mxu0 0
        %2343 = vmatprep.subr.bf16.mxu0 0
        %2344 = vmatpush1.bf16.xpose.msra.mxu0 %v2327
        %2345 = vmatprep.subr.bf16.mxu0 0
        %2346 = vmatpush2.bf16.xpose.msra.mxu0 0
        %2347 = vmatprep.subr.bf16.mxu0 0
        %2348 = vmatpush2.bf16.xpose.msra.mxu0 0
        %2349 = vmatprep.subr.bf16.mxu0 0
        %2350 = vmatpush2.bf16.xpose.msra.mxu0 0
        %2351 = vmatprep.subr.bf16.mxu0 0
        %2352 = vmatpush2.bf16.xpose.msra.mxu0 0
        %2353 = vmatprep.subr.bf16.mxu0 0
        %2354 = vmatpush2.bf16.xpose.msra.mxu0 0
        %2355 = vmatprep.subr.bf16.mxu0 0
        %2356 = vmatpush2.bf16.xpose.msra.mxu0 0
        %2357 = vmatprep.subr.bf16.mxu0 0
        %2358 = vmatpush2.bf16.xpose.msra.mxu0 0
        %2359 = vmatprep.subr.bf16.mxu0 0
        %2360 = vmatpush2.bf16.xpose.msra.mxu0 0
        %2361 = vmatprep.mubr.bf16.mxu0 0
        %2362 = vmatmul.mubr.bf16.gmra.mxu0 %v2324
        %v2363 = vpop.f32.mrf.mxu0
        %v2364 = vadd.f32 0.0, %v2363
        %v2365 = vpop.f32.mrf.mxu0
        %v2366 = vpop.f32.mrf.mxu0
        %v2367 = vadd.f32 0.0, %v2366
        %v2368 = vpop.f32.mrf.mxu0
        %2369 = vdwg.mxu0
        %2370 = vrot.lane.b32.xlu0 %v562, 64
        %v2371 = vpop.permute.xlu0 %2370
        %v2373 = vsel %vm803, %v562, 0
        %v2376 = vsel %vm803, %v2371, 0
        %2378 = vmatprep.subr.bf16.mxu0 0
        %2379 = vmatpush1.bf16.xpose.msra.mxu0 0
        %2380 = vmatprep.subr.bf16.mxu0 0
        %2381 = vmatpush1.bf16.xpose.msra.mxu0 0
        %2382 = vmatprep.subr.bf16.mxu0 0
        %2383 = vmatpush1.bf16.xpose.msra.mxu0 0
        %2384 = vmatprep.subr.bf16.mxu0 0
        %2385 = vmatpush1.bf16.xpose.msra.mxu0 0
        %2386 = vmatprep.subr.bf16.mxu0 0
        %2387 = vmatpush1.bf16.xpose.msra.mxu0 0
        %2388 = vmatprep.subr.bf16.mxu0 0
        %2389 = vmatpush1.bf16.xpose.msra.mxu0 0
        %2390 = vmatprep.subr.bf16.mxu0 0
        %2391 = vmatpush1.bf16.xpose.msra.mxu0 0
        %2392 = vmatprep.subr.bf16.mxu0 0
        %2393 = vmatpush1.bf16.xpose.msra.mxu0 %v2376
        %2394 = vmatprep.subr.bf16.mxu0 0
        %2395 = vmatpush2.bf16.xpose.msra.mxu0 0
        %2396 = vmatprep.subr.bf16.mxu0 0
        %2397 = vmatpush2.bf16.xpose.msra.mxu0 0
        %2398 = vmatprep.subr.bf16.mxu0 0
        %2399 = vmatpush2.bf16.xpose.msra.mxu0 0
        %2400 = vmatprep.subr.bf16.mxu0 0
        %2401 = vmatpush2.bf16.xpose.msra.mxu0 0
        %2402 = vmatprep.subr.bf16.mxu0 0
        %2403 = vmatpush2.bf16.xpose.msra.mxu0 0
        %2404 = vmatprep.subr.bf16.mxu0 0
        %2405 = vmatpush2.bf16.xpose.msra.mxu0 0
        %2406 = vmatprep.subr.bf16.mxu0 0
        %2407 = vmatpush2.bf16.xpose.msra.mxu0 0
        %2408 = vmatprep.subr.bf16.mxu0 0
        %2409 = vmatpush2.bf16.xpose.msra.mxu0 0
        %2410 = vmatprep.mubr.bf16.mxu0 0
        %2411 = vmatmul.mubr.bf16.gmra.mxu0 %v2373
        %v2412 = vpop.f32.mrf.mxu0
        %v2413 = vadd.f32 0.0, %v2412
        %v2414 = vpop.f32.mrf.mxu0
        %v2415 = vpop.f32.mrf.mxu0
        %v2416 = vadd.f32 0.0, %v2415
        %v2417 = vpop.f32.mrf.mxu0
        %2418 = vdwg.mxu0
        %2419 = vrot.lane.b32.xlu0 %v564, 64
        %v2420 = vpop.permute.xlu0 %2419
        %v2422 = vsel %vm803, %v564, 0
        %v2425 = vsel %vm803, %v2420, 0
        %2427 = vmatprep.subr.bf16.mxu0 0
        %2428 = vmatpush1.bf16.xpose.msra.mxu0 0
        %2429 = vmatprep.subr.bf16.mxu0 0
        %2430 = vmatpush1.bf16.xpose.msra.mxu0 0
        %2431 = vmatprep.subr.bf16.mxu0 0
        %2432 = vmatpush1.bf16.xpose.msra.mxu0 0
        %2433 = vmatprep.subr.bf16.mxu0 0
        %2434 = vmatpush1.bf16.xpose.msra.mxu0 0
        %2435 = vmatprep.subr.bf16.mxu0 0
        %2436 = vmatpush1.bf16.xpose.msra.mxu0 0
        %2437 = vmatprep.subr.bf16.mxu0 0
        %2438 = vmatpush1.bf16.xpose.msra.mxu0 0
        %2439 = vmatprep.subr.bf16.mxu0 0
        %2440 = vmatpush1.bf16.xpose.msra.mxu0 0
        %2441 = vmatprep.subr.bf16.mxu0 0
        %2442 = vmatpush1.bf16.xpose.msra.mxu0 %v2425
        %2443 = vmatprep.subr.bf16.mxu0 0
        %2444 = vmatpush2.bf16.xpose.msra.mxu0 0
        %2445 = vmatprep.subr.bf16.mxu0 0
        %2446 = vmatpush2.bf16.xpose.msra.mxu0 0
        %2447 = vmatprep.subr.bf16.mxu0 0
        %2448 = vmatpush2.bf16.xpose.msra.mxu0 0
        %2449 = vmatprep.subr.bf16.mxu0 0
        %2450 = vmatpush2.bf16.xpose.msra.mxu0 0
        %2451 = vmatprep.subr.bf16.mxu0 0
        %2452 = vmatpush2.bf16.xpose.msra.mxu0 0
        %2453 = vmatprep.subr.bf16.mxu0 0
        %2454 = vmatpush2.bf16.xpose.msra.mxu0 0
        %2455 = vmatprep.subr.bf16.mxu0 0
        %2456 = vmatpush2.bf16.xpose.msra.mxu0 0
        %2457 = vmatprep.subr.bf16.mxu0 0
        %2458 = vmatpush2.bf16.xpose.msra.mxu0 0
        %2459 = vmatprep.mubr.bf16.mxu0 0
        %2460 = vmatmul.mubr.bf16.gmra.mxu0 %v2422
        %v2461 = vpop.f32.mrf.mxu0
        %v2462 = vadd.f32 0.0, %v2461
        %v2463 = vpop.f32.mrf.mxu0
        %v2464 = vpop.f32.mrf.mxu0
        %v2465 = vadd.f32 0.0, %v2464
        %v2466 = vpop.f32.mrf.mxu0
        %2467 = vdwg.mxu0
        %2468 = vrot.lane.b32.xlu0 %v566, 64
        %v2469 = vpop.permute.xlu0 %2468
        %v2471 = vsel %vm803, %v566, 0
        %v2474 = vsel %vm803, %v2469, 0
        %2476 = vmatprep.subr.bf16.mxu0 0
        %2477 = vmatpush1.bf16.xpose.msra.mxu0 0
        %2478 = vmatprep.subr.bf16.mxu0 0
        %2479 = vmatpush1.bf16.xpose.msra.mxu0 0
        %2480 = vmatprep.subr.bf16.mxu0 0
        %2481 = vmatpush1.bf16.xpose.msra.mxu0 0
        %2482 = vmatprep.subr.bf16.mxu0 0
        %2483 = vmatpush1.bf16.xpose.msra.mxu0 0
        %2484 = vmatprep.subr.bf16.mxu0 0
        %2485 = vmatpush1.bf16.xpose.msra.mxu0 0
        %2486 = vmatprep.subr.bf16.mxu0 0
        %2487 = vmatpush1.bf16.xpose.msra.mxu0 0
        %2488 = vmatprep.subr.bf16.mxu0 0
        %2489 = vmatpush1.bf16.xpose.msra.mxu0 0
        %2490 = vmatprep.subr.bf16.mxu0 0
        %2491 = vmatpush1.bf16.xpose.msra.mxu0 %v2474
        %2492 = vmatprep.subr.bf16.mxu0 0
        %2493 = vmatpush2.bf16.xpose.msra.mxu0 0
        %2494 = vmatprep.subr.bf16.mxu0 0
        %2495 = vmatpush2.bf16.xpose.msra.mxu0 0
        %2496 = vmatprep.subr.bf16.mxu0 0
        %2497 = vmatpush2.bf16.xpose.msra.mxu0 0
        %2498 = vmatprep.subr.bf16.mxu0 0
        %2499 = vmatpush2.bf16.xpose.msra.mxu0 0
        %2500 = vmatprep.subr.bf16.mxu0 0
        %2501 = vmatpush2.bf16.xpose.msra.mxu0 0
        %2502 = vmatprep.subr.bf16.mxu0 0
        %2503 = vmatpush2.bf16.xpose.msra.mxu0 0
        %2504 = vmatprep.subr.bf16.mxu0 0
        %2505 = vmatpush2.bf16.xpose.msra.mxu0 0
        %2506 = vmatprep.subr.bf16.mxu0 0
        %2507 = vmatpush2.bf16.xpose.msra.mxu0 0
        %2508 = vmatprep.mubr.bf16.mxu0 0
        %2509 = vmatmul.mubr.bf16.gmra.mxu0 %v2471
        %v2510 = vpop.f32.mrf.mxu0
        %v2511 = vadd.f32 0.0, %v2510
        %v2512 = vpop.f32.mrf.mxu0
        %v2513 = vpop.f32.mrf.mxu0
        %v2514 = vadd.f32 0.0, %v2513
        %v2515 = vpop.f32.mrf.mxu0
        %2516 = vdwg.mxu0
        %2517 = vrot.lane.b32.xlu0 %v568, 64
        %v2518 = vpop.permute.xlu0 %2517
        %v2520 = vsel %vm803, %v568, 0
        %v2523 = vsel %vm803, %v2518, 0
        %2525 = vmatprep.subr.bf16.mxu0 0
        %2526 = vmatpush1.bf16.xpose.msra.mxu0 0
        %2527 = vmatprep.subr.bf16.mxu0 0
        %2528 = vmatpush1.bf16.xpose.msra.mxu0 0
        %2529 = vmatprep.subr.bf16.mxu0 0
        %2530 = vmatpush1.bf16.xpose.msra.mxu0 0
        %2531 = vmatprep.subr.bf16.mxu0 0
        %2532 = vmatpush1.bf16.xpose.msra.mxu0 0
        %2533 = vmatprep.subr.bf16.mxu0 0
        %2534 = vmatpush1.bf16.xpose.msra.mxu0 0
        %2535 = vmatprep.subr.bf16.mxu0 0
        %2536 = vmatpush1.bf16.xpose.msra.mxu0 0
        %2537 = vmatprep.subr.bf16.mxu0 0
        %2538 = vmatpush1.bf16.xpose.msra.mxu0 0
        %2539 = vmatprep.subr.bf16.mxu0 0
        %2540 = vmatpush1.bf16.xpose.msra.mxu0 %v2523
        %2541 = vmatprep.subr.bf16.mxu0 0
        %2542 = vmatpush2.bf16.xpose.msra.mxu0 0
        %2543 = vmatprep.subr.bf16.mxu0 0
        %2544 = vmatpush2.bf16.xpose.msra.mxu0 0
        %2545 = vmatprep.subr.bf16.mxu0 0
        %2546 = vmatpush2.bf16.xpose.msra.mxu0 0
        %2547 = vmatprep.subr.bf16.mxu0 0
        %2548 = vmatpush2.bf16.xpose.msra.mxu0 0
        %2549 = vmatprep.subr.bf16.mxu0 0
        %2550 = vmatpush2.bf16.xpose.msra.mxu0 0
        %2551 = vmatprep.subr.bf16.mxu0 0
        %2552 = vmatpush2.bf16.xpose.msra.mxu0 0
        %2553 = vmatprep.subr.bf16.mxu0 0
        %2554 = vmatpush2.bf16.xpose.msra.mxu0 0
        %2555 = vmatprep.subr.bf16.mxu0 0
        %2556 = vmatpush2.bf16.xpose.msra.mxu0 0
        %2557 = vmatprep.mubr.bf16.mxu0 0
        %2558 = vmatmul.mubr.bf16.gmra.mxu0 %v2520
        %v2559 = vpop.f32.mrf.mxu0
        %v2560 = vadd.f32 0.0, %v2559
        %v2561 = vpop.f32.mrf.mxu0
        %v2562 = vpop.f32.mrf.mxu0
        %v2563 = vadd.f32 0.0, %v2562
        %v2564 = vpop.f32.mrf.mxu0
        %2565 = vdwg.mxu0
        %2566 = vrot.lane.b32.xlu0 %v570, 64
        %v2567 = vpop.permute.xlu0 %2566
        %v2569 = vsel %vm803, %v570, 0
        %v2572 = vsel %vm803, %v2567, 0
        %2574 = vmatprep.subr.bf16.mxu0 0
        %2575 = vmatpush1.bf16.xpose.msra.mxu0 0
        %2576 = vmatprep.subr.bf16.mxu0 0
        %2577 = vmatpush1.bf16.xpose.msra.mxu0 0
        %2578 = vmatprep.subr.bf16.mxu0 0
        %2579 = vmatpush1.bf16.xpose.msra.mxu0 0
        %2580 = vmatprep.subr.bf16.mxu0 0
        %2581 = vmatpush1.bf16.xpose.msra.mxu0 0
        %2582 = vmatprep.subr.bf16.mxu0 0
        %2583 = vmatpush1.bf16.xpose.msra.mxu0 0
        %2584 = vmatprep.subr.bf16.mxu0 0
        %2585 = vmatpush1.bf16.xpose.msra.mxu0 0
        %2586 = vmatprep.subr.bf16.mxu0 0
        %2587 = vmatpush1.bf16.xpose.msra.mxu0 0
        %2588 = vmatprep.subr.bf16.mxu0 0
        %2589 = vmatpush1.bf16.xpose.msra.mxu0 %v2572
        %2590 = vmatprep.subr.bf16.mxu0 0
        %2591 = vmatpush2.bf16.xpose.msra.mxu0 0
        %2592 = vmatprep.subr.bf16.mxu0 0
        %2593 = vmatpush2.bf16.xpose.msra.mxu0 0
        %2594 = vmatprep.subr.bf16.mxu0 0
        %2595 = vmatpush2.bf16.xpose.msra.mxu0 0
        %2596 = vmatprep.subr.bf16.mxu0 0
        %2597 = vmatpush2.bf16.xpose.msra.mxu0 0
        %2598 = vmatprep.subr.bf16.mxu0 0
        %2599 = vmatpush2.bf16.xpose.msra.mxu0 0
        %2600 = vmatprep.subr.bf16.mxu0 0
        %2601 = vmatpush2.bf16.xpose.msra.mxu0 0
        %2602 = vmatprep.subr.bf16.mxu0 0
        %2603 = vmatpush2.bf16.xpose.msra.mxu0 0
        %2604 = vmatprep.subr.bf16.mxu0 0
        %2605 = vmatpush2.bf16.xpose.msra.mxu0 0
        %2606 = vmatprep.mubr.bf16.mxu0 0
        %2607 = vmatmul.mubr.bf16.gmra.mxu0 %v2569
        %v2608 = vpop.f32.mrf.mxu0
        %v2609 = vadd.f32 0.0, %v2608
        %v2610 = vpop.f32.mrf.mxu0
        %v2611 = vpop.f32.mrf.mxu0
        %v2612 = vadd.f32 0.0, %v2611
        %v2613 = vpop.f32.mrf.mxu0
        %2614 = vdwg.mxu0
        %2615 = vrot.lane.b32.xlu0 %v572, 64
        %v2616 = vpop.permute.xlu0 %2615
        %v2618 = vsel %vm803, %v572, 0
        %v2621 = vsel %vm803, %v2616, 0
        %2623 = vmatprep.subr.bf16.mxu0 0
        %2624 = vmatpush1.bf16.xpose.msra.mxu0 0
        %2625 = vmatprep.subr.bf16.mxu0 0
        %2626 = vmatpush1.bf16.xpose.msra.mxu0 0
        %2627 = vmatprep.subr.bf16.mxu0 0
        %2628 = vmatpush1.bf16.xpose.msra.mxu0 0
        %2629 = vmatprep.subr.bf16.mxu0 0
        %2630 = vmatpush1.bf16.xpose.msra.mxu0 0
        %2631 = vmatprep.subr.bf16.mxu0 0
        %2632 = vmatpush1.bf16.xpose.msra.mxu0 0
        %2633 = vmatprep.subr.bf16.mxu0 0
        %2634 = vmatpush1.bf16.xpose.msra.mxu0 0
        %2635 = vmatprep.subr.bf16.mxu0 0
        %2636 = vmatpush1.bf16.xpose.msra.mxu0 0
        %2637 = vmatprep.subr.bf16.mxu0 0
        %2638 = vmatpush1.bf16.xpose.msra.mxu0 %v2621
        %2639 = vmatprep.subr.bf16.mxu0 0
        %2640 = vmatpush2.bf16.xpose.msra.mxu0 0
        %2641 = vmatprep.subr.bf16.mxu0 0
        %2642 = vmatpush2.bf16.xpose.msra.mxu0 0
        %2643 = vmatprep.subr.bf16.mxu0 0
        %2644 = vmatpush2.bf16.xpose.msra.mxu0 0
        %2645 = vmatprep.subr.bf16.mxu0 0
        %2646 = vmatpush2.bf16.xpose.msra.mxu0 0
        %2647 = vmatprep.subr.bf16.mxu0 0
        %2648 = vmatpush2.bf16.xpose.msra.mxu0 0
        %2649 = vmatprep.subr.bf16.mxu0 0
        %2650 = vmatpush2.bf16.xpose.msra.mxu0 0
        %2651 = vmatprep.subr.bf16.mxu0 0
        %2652 = vmatpush2.bf16.xpose.msra.mxu0 0
        %2653 = vmatprep.subr.bf16.mxu0 0
        %2654 = vmatpush2.bf16.xpose.msra.mxu0 0
        %2655 = vmatprep.mubr.bf16.mxu0 0
        %2656 = vmatmul.mubr.bf16.gmra.mxu0 %v2618
        %v2657 = vpop.f32.mrf.mxu0
        %v2658 = vadd.f32 0.0, %v2657
        %v2659 = vpop.f32.mrf.mxu0
        %v2660 = vpop.f32.mrf.mxu0
        %v2661 = vadd.f32 0.0, %v2660
        %v2662 = vpop.f32.mrf.mxu0
        %2663 = vdwg.mxu0
        %2664 = vrot.lane.b32.xlu0 %v574, 64
        %v2665 = vpop.permute.xlu0 %2664
        %v2667 = vsel %vm803, %v574, 0
        %v2670 = vsel %vm803, %v2665, 0
        %2672 = vmatprep.subr.bf16.mxu0 0
        %2673 = vmatpush1.bf16.xpose.msra.mxu0 0
        %2674 = vmatprep.subr.bf16.mxu0 0
        %2675 = vmatpush1.bf16.xpose.msra.mxu0 0
        %2676 = vmatprep.subr.bf16.mxu0 0
        %2677 = vmatpush1.bf16.xpose.msra.mxu0 0
        %2678 = vmatprep.subr.bf16.mxu0 0
        %2679 = vmatpush1.bf16.xpose.msra.mxu0 0
        %2680 = vmatprep.subr.bf16.mxu0 0
        %2681 = vmatpush1.bf16.xpose.msra.mxu0 0
        %2682 = vmatprep.subr.bf16.mxu0 0
        %2683 = vmatpush1.bf16.xpose.msra.mxu0 0
        %2684 = vmatprep.subr.bf16.mxu0 0
        %2685 = vmatpush1.bf16.xpose.msra.mxu0 0
        %2686 = vmatprep.subr.bf16.mxu0 0
        %2687 = vmatpush1.bf16.xpose.msra.mxu0 %v2670
        %2688 = vmatprep.subr.bf16.mxu0 0
        %2689 = vmatpush2.bf16.xpose.msra.mxu0 0
        %2690 = vmatprep.subr.bf16.mxu0 0
        %2691 = vmatpush2.bf16.xpose.msra.mxu0 0
        %2692 = vmatprep.subr.bf16.mxu0 0
        %2693 = vmatpush2.bf16.xpose.msra.mxu0 0
        %2694 = vmatprep.subr.bf16.mxu0 0
        %2695 = vmatpush2.bf16.xpose.msra.mxu0 0
        %2696 = vmatprep.subr.bf16.mxu0 0
        %2697 = vmatpush2.bf16.xpose.msra.mxu0 0
        %2698 = vmatprep.subr.bf16.mxu0 0
        %2699 = vmatpush2.bf16.xpose.msra.mxu0 0
        %2700 = vmatprep.subr.bf16.mxu0 0
        %2701 = vmatpush2.bf16.xpose.msra.mxu0 0
        %2702 = vmatprep.subr.bf16.mxu0 0
        %2703 = vmatpush2.bf16.xpose.msra.mxu0 0
        %2704 = vmatprep.mubr.bf16.mxu0 0
        %2705 = vmatmul.mubr.bf16.gmra.mxu0 %v2667
        %v2706 = vpop.f32.mrf.mxu0
        %v2707 = vadd.f32 0.0, %v2706
        %v2708 = vpop.f32.mrf.mxu0
        %v2709 = vpop.f32.mrf.mxu0
        %v2710 = vadd.f32 0.0, %v2709
        %v2711 = vpop.f32.mrf.mxu0
        %2712 = vdwg.mxu0
        %2713 = vrot.lane.b32.xlu0 %v576, 64
        %v2714 = vpop.permute.xlu0 %2713
        %v2716 = vsel %vm803, %v576, 0
        %v2719 = vsel %vm803, %v2714, 0
        %2721 = vmatprep.subr.bf16.mxu0 0
        %2722 = vmatpush1.bf16.xpose.msra.mxu0 0
        %2723 = vmatprep.subr.bf16.mxu0 0
        %2724 = vmatpush1.bf16.xpose.msra.mxu0 0
        %2725 = vmatprep.subr.bf16.mxu0 0
        %2726 = vmatpush1.bf16.xpose.msra.mxu0 0
        %2727 = vmatprep.subr.bf16.mxu0 0
        %2728 = vmatpush1.bf16.xpose.msra.mxu0 0
        %2729 = vmatprep.subr.bf16.mxu0 0
        %2730 = vmatpush1.bf16.xpose.msra.mxu0 0
        %2731 = vmatprep.subr.bf16.mxu0 0
        %2732 = vmatpush1.bf16.xpose.msra.mxu0 0
        %2733 = vmatprep.subr.bf16.mxu0 0
        %2734 = vmatpush1.bf16.xpose.msra.mxu0 0
        %2735 = vmatprep.subr.bf16.mxu0 0
        %2736 = vmatpush1.bf16.xpose.msra.mxu0 %v2719
        %2737 = vmatprep.subr.bf16.mxu0 0
        %2738 = vmatpush2.bf16.xpose.msra.mxu0 0
        %2739 = vmatprep.subr.bf16.mxu0 0
        %2740 = vmatpush2.bf16.xpose.msra.mxu0 0
        %2741 = vmatprep.subr.bf16.mxu0 0
        %2742 = vmatpush2.bf16.xpose.msra.mxu0 0
        %2743 = vmatprep.subr.bf16.mxu0 0
        %2744 = vmatpush2.bf16.xpose.msra.mxu0 0
        %2745 = vmatprep.subr.bf16.mxu0 0
        %2746 = vmatpush2.bf16.xpose.msra.mxu0 0
        %2747 = vmatprep.subr.bf16.mxu0 0
        %2748 = vmatpush2.bf16.xpose.msra.mxu0 0
        %2749 = vmatprep.subr.bf16.mxu0 0
        %2750 = vmatpush2.bf16.xpose.msra.mxu0 0
        %2751 = vmatprep.subr.bf16.mxu0 0
        %2752 = vmatpush2.bf16.xpose.msra.mxu0 0
        %2753 = vmatprep.mubr.bf16.mxu0 0
        %2754 = vmatmul.mubr.bf16.gmra.mxu0 %v2716
        %v2755 = vpop.f32.mrf.mxu0
        %v2756 = vadd.f32 0.0, %v2755
        %v2757 = vpop.f32.mrf.mxu0
        %v2758 = vpop.f32.mrf.mxu0
        %v2759 = vadd.f32 0.0, %v2758
        %v2760 = vpop.f32.mrf.mxu0
        %2761 = vdwg.mxu0
        %2762 = vrot.lane.b32.xlu0 %v578, 64
        %v2763 = vpop.permute.xlu0 %2762
        %v2765 = vsel %vm803, %v578, 0
        %v2768 = vsel %vm803, %v2763, 0
        %2770 = vmatprep.subr.bf16.mxu0 0
        %2771 = vmatpush1.bf16.xpose.msra.mxu0 0
        %2772 = vmatprep.subr.bf16.mxu0 0
        %2773 = vmatpush1.bf16.xpose.msra.mxu0 0
        %2774 = vmatprep.subr.bf16.mxu0 0
        %2775 = vmatpush1.bf16.xpose.msra.mxu0 0
        %2776 = vmatprep.subr.bf16.mxu0 0
        %2777 = vmatpush1.bf16.xpose.msra.mxu0 0
        %2778 = vmatprep.subr.bf16.mxu0 0
        %2779 = vmatpush1.bf16.xpose.msra.mxu0 0
        %2780 = vmatprep.subr.bf16.mxu0 0
        %2781 = vmatpush1.bf16.xpose.msra.mxu0 0
        %2782 = vmatprep.subr.bf16.mxu0 0
        %2783 = vmatpush1.bf16.xpose.msra.mxu0 0
        %2784 = vmatprep.subr.bf16.mxu0 0
        %2785 = vmatpush1.bf16.xpose.msra.mxu0 %v2768
        %2786 = vmatprep.subr.bf16.mxu0 0
        %2787 = vmatpush2.bf16.xpose.msra.mxu0 0
        %2788 = vmatprep.subr.bf16.mxu0 0
        %2789 = vmatpush2.bf16.xpose.msra.mxu0 0
        %2790 = vmatprep.subr.bf16.mxu0 0
        %2791 = vmatpush2.bf16.xpose.msra.mxu0 0
        %2792 = vmatprep.subr.bf16.mxu0 0
        %2793 = vmatpush2.bf16.xpose.msra.mxu0 0
        %2794 = vmatprep.subr.bf16.mxu0 0
        %2795 = vmatpush2.bf16.xpose.msra.mxu0 0
        %2796 = vmatprep.subr.bf16.mxu0 0
        %2797 = vmatpush2.bf16.xpose.msra.mxu0 0
        %2798 = vmatprep.subr.bf16.mxu0 0
        %2799 = vmatpush2.bf16.xpose.msra.mxu0 0
        %2800 = vmatprep.subr.bf16.mxu0 0
        %2801 = vmatpush2.bf16.xpose.msra.mxu0 0
        %2802 = vmatprep.mubr.bf16.mxu0 0
        %2803 = vmatmul.mubr.bf16.gmra.mxu0 %v2765
        %v2804 = vpop.f32.mrf.mxu0
        %v2805 = vadd.f32 0.0, %v2804
        %v2806 = vpop.f32.mrf.mxu0
        %v2807 = vpop.f32.mrf.mxu0
        %v2808 = vadd.f32 0.0, %v2807
        %v2809 = vpop.f32.mrf.mxu0
        %2810 = vdwg.mxu0
        %2811 = vrot.lane.b32.xlu0 %v580, 64
        %v2812 = vpop.permute.xlu0 %2811
        %v2814 = vsel %vm803, %v580, 0
        %v2817 = vsel %vm803, %v2812, 0
        %2819 = vmatprep.subr.bf16.mxu0 0
        %2820 = vmatpush1.bf16.xpose.msra.mxu0 0
        %2821 = vmatprep.subr.bf16.mxu0 0
        %2822 = vmatpush1.bf16.xpose.msra.mxu0 0
        %2823 = vmatprep.subr.bf16.mxu0 0
        %2824 = vmatpush1.bf16.xpose.msra.mxu0 0
        %2825 = vmatprep.subr.bf16.mxu0 0
        %2826 = vmatpush1.bf16.xpose.msra.mxu0 0
        %2827 = vmatprep.subr.bf16.mxu0 0
        %2828 = vmatpush1.bf16.xpose.msra.mxu0 0
        %2829 = vmatprep.subr.bf16.mxu0 0
        %2830 = vmatpush1.bf16.xpose.msra.mxu0 0
        %2831 = vmatprep.subr.bf16.mxu0 0
        %2832 = vmatpush1.bf16.xpose.msra.mxu0 0
        %2833 = vmatprep.subr.bf16.mxu0 0
        %2834 = vmatpush1.bf16.xpose.msra.mxu0 %v2817
        %2835 = vmatprep.subr.bf16.mxu0 0
        %2836 = vmatpush2.bf16.xpose.msra.mxu0 0
        %2837 = vmatprep.subr.bf16.mxu0 0
        %2838 = vmatpush2.bf16.xpose.msra.mxu0 0
        %2839 = vmatprep.subr.bf16.mxu0 0
        %2840 = vmatpush2.bf16.xpose.msra.mxu0 0
        %2841 = vmatprep.subr.bf16.mxu0 0
        %2842 = vmatpush2.bf16.xpose.msra.mxu0 0
        %2843 = vmatprep.subr.bf16.mxu0 0
        %2844 = vmatpush2.bf16.xpose.msra.mxu0 0
        %2845 = vmatprep.subr.bf16.mxu0 0
        %2846 = vmatpush2.bf16.xpose.msra.mxu0 0
        %2847 = vmatprep.subr.bf16.mxu0 0
        %2848 = vmatpush2.bf16.xpose.msra.mxu0 0
        %2849 = vmatprep.subr.bf16.mxu0 0
        %2850 = vmatpush2.bf16.xpose.msra.mxu0 0
        %2851 = vmatprep.mubr.bf16.mxu0 0
        %2852 = vmatmul.mubr.bf16.gmra.mxu0 %v2814
        %v2853 = vpop.f32.mrf.mxu0
        %v2854 = vadd.f32 0.0, %v2853
        %v2855 = vpop.f32.mrf.mxu0
        %v2856 = vpop.f32.mrf.mxu0
        %v2857 = vadd.f32 0.0, %v2856
        %v2858 = vpop.f32.mrf.mxu0
        %2859 = vdwg.mxu0
        %2860 = vrot.lane.b32.xlu0 %v582, 64
        %v2861 = vpop.permute.xlu0 %2860
        %v2863 = vsel %vm803, %v582, 0
        %v2866 = vsel %vm803, %v2861, 0
        %2868 = vmatprep.subr.bf16.mxu0 0
        %2869 = vmatpush1.bf16.xpose.msra.mxu0 0
        %2870 = vmatprep.subr.bf16.mxu0 0
        %2871 = vmatpush1.bf16.xpose.msra.mxu0 0
        %2872 = vmatprep.subr.bf16.mxu0 0
        %2873 = vmatpush1.bf16.xpose.msra.mxu0 0
        %2874 = vmatprep.subr.bf16.mxu0 0
        %2875 = vmatpush1.bf16.xpose.msra.mxu0 0
        %2876 = vmatprep.subr.bf16.mxu0 0
        %2877 = vmatpush1.bf16.xpose.msra.mxu0 0
        %2878 = vmatprep.subr.bf16.mxu0 0
        %2879 = vmatpush1.bf16.xpose.msra.mxu0 0
        %2880 = vmatprep.subr.bf16.mxu0 0
        %2881 = vmatpush1.bf16.xpose.msra.mxu0 0
        %2882 = vmatprep.subr.bf16.mxu0 0
        %2883 = vmatpush1.bf16.xpose.msra.mxu0 %v2866
        %2884 = vmatprep.subr.bf16.mxu0 0
        %2885 = vmatpush2.bf16.xpose.msra.mxu0 0
        %2886 = vmatprep.subr.bf16.mxu0 0
        %2887 = vmatpush2.bf16.xpose.msra.mxu0 0
        %2888 = vmatprep.subr.bf16.mxu0 0
        %2889 = vmatpush2.bf16.xpose.msra.mxu0 0
        %2890 = vmatprep.subr.bf16.mxu0 0
        %2891 = vmatpush2.bf16.xpose.msra.mxu0 0
        %2892 = vmatprep.subr.bf16.mxu0 0
        %2893 = vmatpush2.bf16.xpose.msra.mxu0 0
        %2894 = vmatprep.subr.bf16.mxu0 0
        %2895 = vmatpush2.bf16.xpose.msra.mxu0 0
        %2896 = vmatprep.subr.bf16.mxu0 0
        %2897 = vmatpush2.bf16.xpose.msra.mxu0 0
        %2898 = vmatprep.subr.bf16.mxu0 0
        %2899 = vmatpush2.bf16.xpose.msra.mxu0 0
        %2900 = vmatprep.mubr.bf16.mxu0 0
        %2901 = vmatmul.mubr.bf16.gmra.mxu0 %v2863
        %v2902 = vpop.f32.mrf.mxu0
        %v2903 = vadd.f32 0.0, %v2902
        %v2904 = vpop.f32.mrf.mxu0
        %v2905 = vpop.f32.mrf.mxu0
        %v2906 = vadd.f32 0.0, %v2905
        %v2907 = vpop.f32.mrf.mxu0
        %2908 = vdwg.mxu0
        %2909 = vrot.lane.b32.xlu0 %v584, 64
        %v2910 = vpop.permute.xlu0 %2909
        %v2912 = vsel %vm803, %v584, 0
        %v2915 = vsel %vm803, %v2910, 0
        %2917 = vmatprep.subr.bf16.mxu0 0
        %2918 = vmatpush1.bf16.xpose.msra.mxu0 0
        %2919 = vmatprep.subr.bf16.mxu0 0
        %2920 = vmatpush1.bf16.xpose.msra.mxu0 0
        %2921 = vmatprep.subr.bf16.mxu0 0
        %2922 = vmatpush1.bf16.xpose.msra.mxu0 0
        %2923 = vmatprep.subr.bf16.mxu0 0
        %2924 = vmatpush1.bf16.xpose.msra.mxu0 0
        %2925 = vmatprep.subr.bf16.mxu0 0
        %2926 = vmatpush1.bf16.xpose.msra.mxu0 0
        %2927 = vmatprep.subr.bf16.mxu0 0
        %2928 = vmatpush1.bf16.xpose.msra.mxu0 0
        %2929 = vmatprep.subr.bf16.mxu0 0
        %2930 = vmatpush1.bf16.xpose.msra.mxu0 0
        %2931 = vmatprep.subr.bf16.mxu0 0
        %2932 = vmatpush1.bf16.xpose.msra.mxu0 %v2915
        %2933 = vmatprep.subr.bf16.mxu0 0
        %2934 = vmatpush2.bf16.xpose.msra.mxu0 0
        %2935 = vmatprep.subr.bf16.mxu0 0
        %2936 = vmatpush2.bf16.xpose.msra.mxu0 0
        %2937 = vmatprep.subr.bf16.mxu0 0
        %2938 = vmatpush2.bf16.xpose.msra.mxu0 0
        %2939 = vmatprep.subr.bf16.mxu0 0
        %2940 = vmatpush2.bf16.xpose.msra.mxu0 0
        %2941 = vmatprep.subr.bf16.mxu0 0
        %2942 = vmatpush2.bf16.xpose.msra.mxu0 0
        %2943 = vmatprep.subr.bf16.mxu0 0
        %2944 = vmatpush2.bf16.xpose.msra.mxu0 0
        %2945 = vmatprep.subr.bf16.mxu0 0
        %2946 = vmatpush2.bf16.xpose.msra.mxu0 0
        %2947 = vmatprep.subr.bf16.mxu0 0
        %2948 = vmatpush2.bf16.xpose.msra.mxu0 0
        %2949 = vmatprep.mubr.bf16.mxu0 0
        %2950 = vmatmul.mubr.bf16.gmra.mxu0 %v2912
        %v2951 = vpop.f32.mrf.mxu0
        %v2952 = vadd.f32 0.0, %v2951
        %v2953 = vpop.f32.mrf.mxu0
        %v2954 = vpop.f32.mrf.mxu0
        %v2955 = vadd.f32 0.0, %v2954
        %v2956 = vpop.f32.mrf.mxu0
        %2957 = vdwg.mxu0
        %2958 = vrot.lane.b32.xlu0 %v586, 64
        %v2959 = vpop.permute.xlu0 %2958
        %v2961 = vsel %vm803, %v586, 0
        %v2964 = vsel %vm803, %v2959, 0
        %2966 = vmatprep.subr.bf16.mxu0 0
        %2967 = vmatpush1.bf16.xpose.msra.mxu0 0
        %2968 = vmatprep.subr.bf16.mxu0 0
        %2969 = vmatpush1.bf16.xpose.msra.mxu0 0
        %2970 = vmatprep.subr.bf16.mxu0 0
        %2971 = vmatpush1.bf16.xpose.msra.mxu0 0
        %2972 = vmatprep.subr.bf16.mxu0 0
        %2973 = vmatpush1.bf16.xpose.msra.mxu0 0
        %2974 = vmatprep.subr.bf16.mxu0 0
        %2975 = vmatpush1.bf16.xpose.msra.mxu0 0
        %2976 = vmatprep.subr.bf16.mxu0 0
        %2977 = vmatpush1.bf16.xpose.msra.mxu0 0
        %2978 = vmatprep.subr.bf16.mxu0 0
        %2979 = vmatpush1.bf16.xpose.msra.mxu0 0
        %2980 = vmatprep.subr.bf16.mxu0 0
        %2981 = vmatpush1.bf16.xpose.msra.mxu0 %v2964
        %2982 = vmatprep.subr.bf16.mxu0 0
        %2983 = vmatpush2.bf16.xpose.msra.mxu0 0
        %2984 = vmatprep.subr.bf16.mxu0 0
        %2985 = vmatpush2.bf16.xpose.msra.mxu0 0
        %2986 = vmatprep.subr.bf16.mxu0 0
        %2987 = vmatpush2.bf16.xpose.msra.mxu0 0
        %2988 = vmatprep.subr.bf16.mxu0 0
        %2989 = vmatpush2.bf16.xpose.msra.mxu0 0
        %2990 = vmatprep.subr.bf16.mxu0 0
        %2991 = vmatpush2.bf16.xpose.msra.mxu0 0
        %2992 = vmatprep.subr.bf16.mxu0 0
        %2993 = vmatpush2.bf16.xpose.msra.mxu0 0
        %2994 = vmatprep.subr.bf16.mxu0 0
        %2995 = vmatpush2.bf16.xpose.msra.mxu0 0
        %2996 = vmatprep.subr.bf16.mxu0 0
        %2997 = vmatpush2.bf16.xpose.msra.mxu0 0
        %2998 = vmatprep.mubr.bf16.mxu0 0
        %2999 = vmatmul.mubr.bf16.gmra.mxu0 %v2961
        %v3000 = vpop.f32.mrf.mxu0
        %v3001 = vadd.f32 0.0, %v3000
        %v3002 = vpop.f32.mrf.mxu0
        %v3003 = vpop.f32.mrf.mxu0
        %v3004 = vadd.f32 0.0, %v3003
        %v3005 = vpop.f32.mrf.mxu0
        %3006 = vdwg.mxu0
        %3007 = vrot.lane.b32.xlu0 %v588, 64
        %v3008 = vpop.permute.xlu0 %3007
        %v3010 = vsel %vm803, %v588, 0
        %v3013 = vsel %vm803, %v3008, 0
        %3015 = vmatprep.subr.bf16.mxu0 0
        %3016 = vmatpush1.bf16.xpose.msra.mxu0 0
        %3017 = vmatprep.subr.bf16.mxu0 0
        %3018 = vmatpush1.bf16.xpose.msra.mxu0 0
        %3019 = vmatprep.subr.bf16.mxu0 0
        %3020 = vmatpush1.bf16.xpose.msra.mxu0 0
        %3021 = vmatprep.subr.bf16.mxu0 0
        %3022 = vmatpush1.bf16.xpose.msra.mxu0 0
        %3023 = vmatprep.subr.bf16.mxu0 0
        %3024 = vmatpush1.bf16.xpose.msra.mxu0 0
        %3025 = vmatprep.subr.bf16.mxu0 0
        %3026 = vmatpush1.bf16.xpose.msra.mxu0 0
        %3027 = vmatprep.subr.bf16.mxu0 0
        %3028 = vmatpush1.bf16.xpose.msra.mxu0 0
        %3029 = vmatprep.subr.bf16.mxu0 0
        %3030 = vmatpush1.bf16.xpose.msra.mxu0 %v3013
        %3031 = vmatprep.subr.bf16.mxu0 0
        %3032 = vmatpush2.bf16.xpose.msra.mxu0 0
        %3033 = vmatprep.subr.bf16.mxu0 0
        %3034 = vmatpush2.bf16.xpose.msra.mxu0 0
        %3035 = vmatprep.subr.bf16.mxu0 0
        %3036 = vmatpush2.bf16.xpose.msra.mxu0 0
        %3037 = vmatprep.subr.bf16.mxu0 0
        %3038 = vmatpush2.bf16.xpose.msra.mxu0 0
        %3039 = vmatprep.subr.bf16.mxu0 0
        %3040 = vmatpush2.bf16.xpose.msra.mxu0 0
        %3041 = vmatprep.subr.bf16.mxu0 0
        %3042 = vmatpush2.bf16.xpose.msra.mxu0 0
        %3043 = vmatprep.subr.bf16.mxu0 0
        %3044 = vmatpush2.bf16.xpose.msra.mxu0 0
        %3045 = vmatprep.subr.bf16.mxu0 0
        %3046 = vmatpush2.bf16.xpose.msra.mxu0 0
        %3047 = vmatprep.mubr.bf16.mxu0 0
        %3048 = vmatmul.mubr.bf16.gmra.mxu0 %v3010
        %v3049 = vpop.f32.mrf.mxu0
        %v3050 = vadd.f32 0.0, %v3049
        %v3051 = vpop.f32.mrf.mxu0
        %v3052 = vpop.f32.mrf.mxu0
        %v3053 = vadd.f32 0.0, %v3052
        %v3054 = vpop.f32.mrf.mxu0
        %3055 = vdwg.mxu0
        %3056 = vrot.lane.b32.xlu0 %v590, 64
        %v3057 = vpop.permute.xlu0 %3056
        %v3059 = vsel %vm803, %v590, 0
        %v3062 = vsel %vm803, %v3057, 0
        %3064 = vmatprep.subr.bf16.mxu0 0
        %3065 = vmatpush1.bf16.xpose.msra.mxu0 0
        %3066 = vmatprep.subr.bf16.mxu0 0
        %3067 = vmatpush1.bf16.xpose.msra.mxu0 0
        %3068 = vmatprep.subr.bf16.mxu0 0
        %3069 = vmatpush1.bf16.xpose.msra.mxu0 0
        %3070 = vmatprep.subr.bf16.mxu0 0
        %3071 = vmatpush1.bf16.xpose.msra.mxu0 0
        %3072 = vmatprep.subr.bf16.mxu0 0
        %3073 = vmatpush1.bf16.xpose.msra.mxu0 0
        %3074 = vmatprep.subr.bf16.mxu0 0
        %3075 = vmatpush1.bf16.xpose.msra.mxu0 0
        %3076 = vmatprep.subr.bf16.mxu0 0
        %3077 = vmatpush1.bf16.xpose.msra.mxu0 0
        %3078 = vmatprep.subr.bf16.mxu0 0
        %3079 = vmatpush1.bf16.xpose.msra.mxu0 %v3062
        %3080 = vmatprep.subr.bf16.mxu0 0
        %3081 = vmatpush2.bf16.xpose.msra.mxu0 0
        %3082 = vmatprep.subr.bf16.mxu0 0
        %3083 = vmatpush2.bf16.xpose.msra.mxu0 0
        %3084 = vmatprep.subr.bf16.mxu0 0
        %3085 = vmatpush2.bf16.xpose.msra.mxu0 0
        %3086 = vmatprep.subr.bf16.mxu0 0
        %3087 = vmatpush2.bf16.xpose.msra.mxu0 0
        %3088 = vmatprep.subr.bf16.mxu0 0
        %3089 = vmatpush2.bf16.xpose.msra.mxu0 0
        %3090 = vmatprep.subr.bf16.mxu0 0
        %3091 = vmatpush2.bf16.xpose.msra.mxu0 0
        %3092 = vmatprep.subr.bf16.mxu0 0
        %3093 = vmatpush2.bf16.xpose.msra.mxu0 0
        %3094 = vmatprep.subr.bf16.mxu0 0
        %3095 = vmatpush2.bf16.xpose.msra.mxu0 0
        %3096 = vmatprep.mubr.bf16.mxu0 0
        %3097 = vmatmul.mubr.bf16.gmra.mxu0 %v3059
        %v3098 = vpop.f32.mrf.mxu0
        %v3099 = vadd.f32 0.0, %v3098
        %v3100 = vpop.f32.mrf.mxu0
        %v3101 = vpop.f32.mrf.mxu0
        %v3102 = vadd.f32 0.0, %v3101
        %v3103 = vpop.f32.mrf.mxu0
        %3104 = vdwg.mxu0
        %3105 = vrot.lane.b32.xlu0 %v592, 64
        %v3106 = vpop.permute.xlu0 %3105
        %v3108 = vsel %vm803, %v592, 0
        %v3111 = vsel %vm803, %v3106, 0
        %3113 = vmatprep.subr.bf16.mxu0 0
        %3114 = vmatpush1.bf16.xpose.msra.mxu0 0
        %3115 = vmatprep.subr.bf16.mxu0 0
        %3116 = vmatpush1.bf16.xpose.msra.mxu0 0
        %3117 = vmatprep.subr.bf16.mxu0 0
        %3118 = vmatpush1.bf16.xpose.msra.mxu0 0
        %3119 = vmatprep.subr.bf16.mxu0 0
        %3120 = vmatpush1.bf16.xpose.msra.mxu0 0
        %3121 = vmatprep.subr.bf16.mxu0 0
        %3122 = vmatpush1.bf16.xpose.msra.mxu0 0
        %3123 = vmatprep.subr.bf16.mxu0 0
        %3124 = vmatpush1.bf16.xpose.msra.mxu0 0
        %3125 = vmatprep.subr.bf16.mxu0 0
        %3126 = vmatpush1.bf16.xpose.msra.mxu0 0
        %3127 = vmatprep.subr.bf16.mxu0 0
        %3128 = vmatpush1.bf16.xpose.msra.mxu0 %v3111
        %3129 = vmatprep.subr.bf16.mxu0 0
        %3130 = vmatpush2.bf16.xpose.msra.mxu0 0
        %3131 = vmatprep.subr.bf16.mxu0 0
        %3132 = vmatpush2.bf16.xpose.msra.mxu0 0
        %3133 = vmatprep.subr.bf16.mxu0 0
        %3134 = vmatpush2.bf16.xpose.msra.mxu0 0
        %3135 = vmatprep.subr.bf16.mxu0 0
        %3136 = vmatpush2.bf16.xpose.msra.mxu0 0
        %3137 = vmatprep.subr.bf16.mxu0 0
        %3138 = vmatpush2.bf16.xpose.msra.mxu0 0
        %3139 = vmatprep.subr.bf16.mxu0 0
        %3140 = vmatpush2.bf16.xpose.msra.mxu0 0
        %3141 = vmatprep.subr.bf16.mxu0 0
        %3142 = vmatpush2.bf16.xpose.msra.mxu0 0
        %3143 = vmatprep.subr.bf16.mxu0 0
        %3144 = vmatpush2.bf16.xpose.msra.mxu0 0
        %3145 = vmatprep.mubr.bf16.mxu0 0
        %3146 = vmatmul.mubr.bf16.gmra.mxu0 %v3108
        %v3147 = vpop.f32.mrf.mxu0
        %v3148 = vadd.f32 0.0, %v3147
        %v3149 = vpop.f32.mrf.mxu0
        %v3150 = vpop.f32.mrf.mxu0
        %v3151 = vadd.f32 0.0, %v3150
        %v3152 = vpop.f32.mrf.mxu0
        %3153 = vdwg.mxu0
        %3154 = vrot.lane.b32.xlu0 %v594, 64
        %v3155 = vpop.permute.xlu0 %3154
        %v3157 = vsel %vm803, %v594, 0
        %v3160 = vsel %vm803, %v3155, 0
        %3162 = vmatprep.subr.bf16.mxu0 0
        %3163 = vmatpush1.bf16.xpose.msra.mxu0 0
        %3164 = vmatprep.subr.bf16.mxu0 0
        %3165 = vmatpush1.bf16.xpose.msra.mxu0 0
        %3166 = vmatprep.subr.bf16.mxu0 0
        %3167 = vmatpush1.bf16.xpose.msra.mxu0 0
        %3168 = vmatprep.subr.bf16.mxu0 0
        %3169 = vmatpush1.bf16.xpose.msra.mxu0 0
        %3170 = vmatprep.subr.bf16.mxu0 0
        %3171 = vmatpush1.bf16.xpose.msra.mxu0 0
        %3172 = vmatprep.subr.bf16.mxu0 0
        %3173 = vmatpush1.bf16.xpose.msra.mxu0 0
        %3174 = vmatprep.subr.bf16.mxu0 0
        %3175 = vmatpush1.bf16.xpose.msra.mxu0 0
        %3176 = vmatprep.subr.bf16.mxu0 0
        %3177 = vmatpush1.bf16.xpose.msra.mxu0 %v3160
        %3178 = vmatprep.subr.bf16.mxu0 0
        %3179 = vmatpush2.bf16.xpose.msra.mxu0 0
        %3180 = vmatprep.subr.bf16.mxu0 0
        %3181 = vmatpush2.bf16.xpose.msra.mxu0 0
        %3182 = vmatprep.subr.bf16.mxu0 0
        %3183 = vmatpush2.bf16.xpose.msra.mxu0 0
        %3184 = vmatprep.subr.bf16.mxu0 0
        %3185 = vmatpush2.bf16.xpose.msra.mxu0 0
        %3186 = vmatprep.subr.bf16.mxu0 0
        %3187 = vmatpush2.bf16.xpose.msra.mxu0 0
        %3188 = vmatprep.subr.bf16.mxu0 0
        %3189 = vmatpush2.bf16.xpose.msra.mxu0 0
        %3190 = vmatprep.subr.bf16.mxu0 0
        %3191 = vmatpush2.bf16.xpose.msra.mxu0 0
        %3192 = vmatprep.subr.bf16.mxu0 0
        %3193 = vmatpush2.bf16.xpose.msra.mxu0 0
        %3194 = vmatprep.mubr.bf16.mxu0 0
        %3195 = vmatmul.mubr.bf16.gmra.mxu0 %v3157
        %v3196 = vpop.f32.mrf.mxu0
        %v3197 = vadd.f32 0.0, %v3196
        %v3198 = vpop.f32.mrf.mxu0
        %v3199 = vpop.f32.mrf.mxu0
        %v3200 = vadd.f32 0.0, %v3199
        %v3201 = vpop.f32.mrf.mxu0
        %3202 = vdwg.mxu0
        %3203 = vrot.lane.b32.xlu0 %v596, 64
        %v3204 = vpop.permute.xlu0 %3203
        %v3206 = vsel %vm803, %v596, 0
        %v3209 = vsel %vm803, %v3204, 0
        %3211 = vmatprep.subr.bf16.mxu0 0
        %3212 = vmatpush1.bf16.xpose.msra.mxu0 0
        %3213 = vmatprep.subr.bf16.mxu0 0
        %3214 = vmatpush1.bf16.xpose.msra.mxu0 0
        %3215 = vmatprep.subr.bf16.mxu0 0
        %3216 = vmatpush1.bf16.xpose.msra.mxu0 0
        %3217 = vmatprep.subr.bf16.mxu0 0
        %3218 = vmatpush1.bf16.xpose.msra.mxu0 0
        %3219 = vmatprep.subr.bf16.mxu0 0
        %3220 = vmatpush1.bf16.xpose.msra.mxu0 0
        %3221 = vmatprep.subr.bf16.mxu0 0
        %3222 = vmatpush1.bf16.xpose.msra.mxu0 0
        %3223 = vmatprep.subr.bf16.mxu0 0
        %3224 = vmatpush1.bf16.xpose.msra.mxu0 0
        %3225 = vmatprep.subr.bf16.mxu0 0
        %3226 = vmatpush1.bf16.xpose.msra.mxu0 %v3209
        %3227 = vmatprep.subr.bf16.mxu0 0
        %3228 = vmatpush2.bf16.xpose.msra.mxu0 0
        %3229 = vmatprep.subr.bf16.mxu0 0
        %3230 = vmatpush2.bf16.xpose.msra.mxu0 0
        %3231 = vmatprep.subr.bf16.mxu0 0
        %3232 = vmatpush2.bf16.xpose.msra.mxu0 0
        %3233 = vmatprep.subr.bf16.mxu0 0
        %3234 = vmatpush2.bf16.xpose.msra.mxu0 0
        %3235 = vmatprep.subr.bf16.mxu0 0
        %3236 = vmatpush2.bf16.xpose.msra.mxu0 0
        %3237 = vmatprep.subr.bf16.mxu0 0
        %3238 = vmatpush2.bf16.xpose.msra.mxu0 0
        %3239 = vmatprep.subr.bf16.mxu0 0
        %3240 = vmatpush2.bf16.xpose.msra.mxu0 0
        %3241 = vmatprep.subr.bf16.mxu0 0
        %3242 = vmatpush2.bf16.xpose.msra.mxu0 0
        %3243 = vmatprep.mubr.bf16.mxu0 0
        %3244 = vmatmul.mubr.bf16.gmra.mxu0 %v3206
        %v3245 = vpop.f32.mrf.mxu0
        %v3246 = vadd.f32 0.0, %v3245
        %v3247 = vpop.f32.mrf.mxu0
        %v3248 = vpop.f32.mrf.mxu0
        %v3249 = vadd.f32 0.0, %v3248
        %v3250 = vpop.f32.mrf.mxu0
        %3251 = vdwg.mxu0
        %3252 = vrot.lane.b32.xlu0 %v598, 64
        %v3253 = vpop.permute.xlu0 %3252
        %v3255 = vsel %vm803, %v598, 0
        %v3258 = vsel %vm803, %v3253, 0
        %3260 = vmatprep.subr.bf16.mxu0 0
        %3261 = vmatpush1.bf16.xpose.msra.mxu0 0
        %3262 = vmatprep.subr.bf16.mxu0 0
        %3263 = vmatpush1.bf16.xpose.msra.mxu0 0
        %3264 = vmatprep.subr.bf16.mxu0 0
        %3265 = vmatpush1.bf16.xpose.msra.mxu0 0
        %3266 = vmatprep.subr.bf16.mxu0 0
        %3267 = vmatpush1.bf16.xpose.msra.mxu0 0
        %3268 = vmatprep.subr.bf16.mxu0 0
        %3269 = vmatpush1.bf16.xpose.msra.mxu0 0
        %3270 = vmatprep.subr.bf16.mxu0 0
        %3271 = vmatpush1.bf16.xpose.msra.mxu0 0
        %3272 = vmatprep.subr.bf16.mxu0 0
        %3273 = vmatpush1.bf16.xpose.msra.mxu0 0
        %3274 = vmatprep.subr.bf16.mxu0 0
        %3275 = vmatpush1.bf16.xpose.msra.mxu0 %v3258
        %3276 = vmatprep.subr.bf16.mxu0 0
        %3277 = vmatpush2.bf16.xpose.msra.mxu0 0
        %3278 = vmatprep.subr.bf16.mxu0 0
        %3279 = vmatpush2.bf16.xpose.msra.mxu0 0
        %3280 = vmatprep.subr.bf16.mxu0 0
        %3281 = vmatpush2.bf16.xpose.msra.mxu0 0
        %3282 = vmatprep.subr.bf16.mxu0 0
        %3283 = vmatpush2.bf16.xpose.msra.mxu0 0
        %3284 = vmatprep.subr.bf16.mxu0 0
        %3285 = vmatpush2.bf16.xpose.msra.mxu0 0
        %3286 = vmatprep.subr.bf16.mxu0 0
        %3287 = vmatpush2.bf16.xpose.msra.mxu0 0
        %3288 = vmatprep.subr.bf16.mxu0 0
        %3289 = vmatpush2.bf16.xpose.msra.mxu0 0
        %3290 = vmatprep.subr.bf16.mxu0 0
        %3291 = vmatpush2.bf16.xpose.msra.mxu0 0
        %3292 = vmatprep.mubr.bf16.mxu0 0
        %3293 = vmatmul.mubr.bf16.gmra.mxu0 %v3255
        %v3294 = vpop.f32.mrf.mxu0
        %v3295 = vadd.f32 0.0, %v3294
        %v3296 = vpop.f32.mrf.mxu0
        %v3297 = vpop.f32.mrf.mxu0
        %v3298 = vadd.f32 0.0, %v3297
        %v3299 = vpop.f32.mrf.mxu0
        %3300 = vdwg.mxu0
        %3301 = vrot.lane.b32.xlu0 %v600, 64
        %v3302 = vpop.permute.xlu0 %3301
        %v3304 = vsel %vm803, %v600, 0
        %v3307 = vsel %vm803, %v3302, 0
        %3309 = vmatprep.subr.bf16.mxu0 0
        %3310 = vmatpush1.bf16.xpose.msra.mxu0 0
        %3311 = vmatprep.subr.bf16.mxu0 0
        %3312 = vmatpush1.bf16.xpose.msra.mxu0 0
        %3313 = vmatprep.subr.bf16.mxu0 0
        %3314 = vmatpush1.bf16.xpose.msra.mxu0 0
        %3315 = vmatprep.subr.bf16.mxu0 0
        %3316 = vmatpush1.bf16.xpose.msra.mxu0 0
        %3317 = vmatprep.subr.bf16.mxu0 0
        %3318 = vmatpush1.bf16.xpose.msra.mxu0 0
        %3319 = vmatprep.subr.bf16.mxu0 0
        %3320 = vmatpush1.bf16.xpose.msra.mxu0 0
        %3321 = vmatprep.subr.bf16.mxu0 0
        %3322 = vmatpush1.bf16.xpose.msra.mxu0 0
        %3323 = vmatprep.subr.bf16.mxu0 0
        %3324 = vmatpush1.bf16.xpose.msra.mxu0 %v3307
        %3325 = vmatprep.subr.bf16.mxu0 0
        %3326 = vmatpush2.bf16.xpose.msra.mxu0 0
        %3327 = vmatprep.subr.bf16.mxu0 0
        %3328 = vmatpush2.bf16.xpose.msra.mxu0 0
        %3329 = vmatprep.subr.bf16.mxu0 0
        %3330 = vmatpush2.bf16.xpose.msra.mxu0 0
        %3331 = vmatprep.subr.bf16.mxu0 0
        %3332 = vmatpush2.bf16.xpose.msra.mxu0 0
        %3333 = vmatprep.subr.bf16.mxu0 0
        %3334 = vmatpush2.bf16.xpose.msra.mxu0 0
        %3335 = vmatprep.subr.bf16.mxu0 0
        %3336 = vmatpush2.bf16.xpose.msra.mxu0 0
        %3337 = vmatprep.subr.bf16.mxu0 0
        %3338 = vmatpush2.bf16.xpose.msra.mxu0 0
        %3339 = vmatprep.subr.bf16.mxu0 0
        %3340 = vmatpush2.bf16.xpose.msra.mxu0 0
        %3341 = vmatprep.mubr.bf16.mxu0 0
        %3342 = vmatmul.mubr.bf16.gmra.mxu0 %v3304
        %v3343 = vpop.f32.mrf.mxu0
        %v3344 = vadd.f32 0.0, %v3343
        %v3345 = vpop.f32.mrf.mxu0
        %v3346 = vpop.f32.mrf.mxu0
        %v3347 = vadd.f32 0.0, %v3346
        %v3348 = vpop.f32.mrf.mxu0
        %3349 = vdwg.mxu0
        %3350 = vrot.lane.b32.xlu0 %v602, 64
        %v3351 = vpop.permute.xlu0 %3350
        %v3353 = vsel %vm803, %v602, 0
        %v3356 = vsel %vm803, %v3351, 0
        %3358 = vmatprep.subr.bf16.mxu0 0
        %3359 = vmatpush1.bf16.xpose.msra.mxu0 0
        %3360 = vmatprep.subr.bf16.mxu0 0
        %3361 = vmatpush1.bf16.xpose.msra.mxu0 0
        %3362 = vmatprep.subr.bf16.mxu0 0
        %3363 = vmatpush1.bf16.xpose.msra.mxu0 0
        %3364 = vmatprep.subr.bf16.mxu0 0
        %3365 = vmatpush1.bf16.xpose.msra.mxu0 0
        %3366 = vmatprep.subr.bf16.mxu0 0
        %3367 = vmatpush1.bf16.xpose.msra.mxu0 0
        %3368 = vmatprep.subr.bf16.mxu0 0
        %3369 = vmatpush1.bf16.xpose.msra.mxu0 0
        %3370 = vmatprep.subr.bf16.mxu0 0
        %3371 = vmatpush1.bf16.xpose.msra.mxu0 0
        %3372 = vmatprep.subr.bf16.mxu0 0
        %3373 = vmatpush1.bf16.xpose.msra.mxu0 %v3356
        %3374 = vmatprep.subr.bf16.mxu0 0
        %3375 = vmatpush2.bf16.xpose.msra.mxu0 0
        %3376 = vmatprep.subr.bf16.mxu0 0
        %3377 = vmatpush2.bf16.xpose.msra.mxu0 0
        %3378 = vmatprep.subr.bf16.mxu0 0
        %3379 = vmatpush2.bf16.xpose.msra.mxu0 0
        %3380 = vmatprep.subr.bf16.mxu0 0
        %3381 = vmatpush2.bf16.xpose.msra.mxu0 0
        %3382 = vmatprep.subr.bf16.mxu0 0
        %3383 = vmatpush2.bf16.xpose.msra.mxu0 0
        %3384 = vmatprep.subr.bf16.mxu0 0
        %3385 = vmatpush2.bf16.xpose.msra.mxu0 0
        %3386 = vmatprep.subr.bf16.mxu0 0
        %3387 = vmatpush2.bf16.xpose.msra.mxu0 0
        %3388 = vmatprep.subr.bf16.mxu0 0
        %3389 = vmatpush2.bf16.xpose.msra.mxu0 0
        %3390 = vmatprep.mubr.bf16.mxu0 0
        %3391 = vmatmul.mubr.bf16.gmra.mxu0 %v3353
        %v3392 = vpop.f32.mrf.mxu0
        %v3393 = vadd.f32 0.0, %v3392
        %v3394 = vpop.f32.mrf.mxu0
        %v3395 = vpop.f32.mrf.mxu0
        %v3396 = vadd.f32 0.0, %v3395
        %v3397 = vpop.f32.mrf.mxu0
        %3398 = vdwg.mxu0
        %3399 = vrot.lane.b32.xlu0 %v604, 64
        %v3400 = vpop.permute.xlu0 %3399
        %v3402 = vsel %vm803, %v604, 0
        %v3405 = vsel %vm803, %v3400, 0
        %3407 = vmatprep.subr.bf16.mxu0 0
        %3408 = vmatpush1.bf16.xpose.msra.mxu0 0
        %3409 = vmatprep.subr.bf16.mxu0 0
        %3410 = vmatpush1.bf16.xpose.msra.mxu0 0
        %3411 = vmatprep.subr.bf16.mxu0 0
        %3412 = vmatpush1.bf16.xpose.msra.mxu0 0
        %3413 = vmatprep.subr.bf16.mxu0 0
        %3414 = vmatpush1.bf16.xpose.msra.mxu0 0
        %3415 = vmatprep.subr.bf16.mxu0 0
        %3416 = vmatpush1.bf16.xpose.msra.mxu0 0
        %3417 = vmatprep.subr.bf16.mxu0 0
        %3418 = vmatpush1.bf16.xpose.msra.mxu0 0
        %3419 = vmatprep.subr.bf16.mxu0 0
        %3420 = vmatpush1.bf16.xpose.msra.mxu0 0
        %3421 = vmatprep.subr.bf16.mxu0 0
        %3422 = vmatpush1.bf16.xpose.msra.mxu0 %v3405
        %3423 = vmatprep.subr.bf16.mxu0 0
        %3424 = vmatpush2.bf16.xpose.msra.mxu0 0
        %3425 = vmatprep.subr.bf16.mxu0 0
        %3426 = vmatpush2.bf16.xpose.msra.mxu0 0
        %3427 = vmatprep.subr.bf16.mxu0 0
        %3428 = vmatpush2.bf16.xpose.msra.mxu0 0
        %3429 = vmatprep.subr.bf16.mxu0 0
        %3430 = vmatpush2.bf16.xpose.msra.mxu0 0
        %3431 = vmatprep.subr.bf16.mxu0 0
        %3432 = vmatpush2.bf16.xpose.msra.mxu0 0
        %3433 = vmatprep.subr.bf16.mxu0 0
        %3434 = vmatpush2.bf16.xpose.msra.mxu0 0
        %3435 = vmatprep.subr.bf16.mxu0 0
        %3436 = vmatpush2.bf16.xpose.msra.mxu0 0
        %3437 = vmatprep.subr.bf16.mxu0 0
        %3438 = vmatpush2.bf16.xpose.msra.mxu0 0
        %3439 = vmatprep.mubr.bf16.mxu0 0
        %3440 = vmatmul.mubr.bf16.gmra.mxu0 %v3402
        %v3441 = vpop.f32.mrf.mxu0
        %v3442 = vadd.f32 0.0, %v3441
        %v3443 = vpop.f32.mrf.mxu0
        %v3444 = vpop.f32.mrf.mxu0
        %v3445 = vadd.f32 0.0, %v3444
        %v3446 = vpop.f32.mrf.mxu0
        %3447 = vdwg.mxu0
        %3448 = vrot.lane.b32.xlu0 %v606, 64
        %v3449 = vpop.permute.xlu0 %3448
        %v3451 = vsel %vm803, %v606, 0
        %v3454 = vsel %vm803, %v3449, 0
        %3456 = vmatprep.subr.bf16.mxu0 0
        %3457 = vmatpush1.bf16.xpose.msra.mxu0 0
        %3458 = vmatprep.subr.bf16.mxu0 0
        %3459 = vmatpush1.bf16.xpose.msra.mxu0 0
        %3460 = vmatprep.subr.bf16.mxu0 0
        %3461 = vmatpush1.bf16.xpose.msra.mxu0 0
        %3462 = vmatprep.subr.bf16.mxu0 0
        %3463 = vmatpush1.bf16.xpose.msra.mxu0 0
        %3464 = vmatprep.subr.bf16.mxu0 0
        %3465 = vmatpush1.bf16.xpose.msra.mxu0 0
        %3466 = vmatprep.subr.bf16.mxu0 0
        %3467 = vmatpush1.bf16.xpose.msra.mxu0 0
        %3468 = vmatprep.subr.bf16.mxu0 0
        %3469 = vmatpush1.bf16.xpose.msra.mxu0 0
        %3470 = vmatprep.subr.bf16.mxu0 0
        %3471 = vmatpush1.bf16.xpose.msra.mxu0 %v3454
        %3472 = vmatprep.subr.bf16.mxu0 0
        %3473 = vmatpush2.bf16.xpose.msra.mxu0 0
        %3474 = vmatprep.subr.bf16.mxu0 0
        %3475 = vmatpush2.bf16.xpose.msra.mxu0 0
        %3476 = vmatprep.subr.bf16.mxu0 0
        %3477 = vmatpush2.bf16.xpose.msra.mxu0 0
        %3478 = vmatprep.subr.bf16.mxu0 0
        %3479 = vmatpush2.bf16.xpose.msra.mxu0 0
        %3480 = vmatprep.subr.bf16.mxu0 0
        %3481 = vmatpush2.bf16.xpose.msra.mxu0 0
        %3482 = vmatprep.subr.bf16.mxu0 0
        %3483 = vmatpush2.bf16.xpose.msra.mxu0 0
        %3484 = vmatprep.subr.bf16.mxu0 0
        %3485 = vmatpush2.bf16.xpose.msra.mxu0 0
        %3486 = vmatprep.subr.bf16.mxu0 0
        %3487 = vmatpush2.bf16.xpose.msra.mxu0 0
        %3488 = vmatprep.mubr.bf16.mxu0 0
        %3489 = vmatmul.mubr.bf16.gmra.mxu0 %v3451
        %v3490 = vpop.f32.mrf.mxu0
        %v3491 = vadd.f32 0.0, %v3490
        %v3492 = vpop.f32.mrf.mxu0
        %v3493 = vpop.f32.mrf.mxu0
        %v3494 = vadd.f32 0.0, %v3493
        %v3495 = vpop.f32.mrf.mxu0
        %3496 = vdwg.mxu0
        %3497 = vrot.lane.b32.xlu0 %v608, 64
        %v3498 = vpop.permute.xlu0 %3497
        %v3500 = vsel %vm803, %v608, 0
        %v3503 = vsel %vm803, %v3498, 0
        %3505 = vmatprep.subr.bf16.mxu0 0
        %3506 = vmatpush1.bf16.xpose.msra.mxu0 0
        %3507 = vmatprep.subr.bf16.mxu0 0
        %3508 = vmatpush1.bf16.xpose.msra.mxu0 0
        %3509 = vmatprep.subr.bf16.mxu0 0
        %3510 = vmatpush1.bf16.xpose.msra.mxu0 0
        %3511 = vmatprep.subr.bf16.mxu0 0
        %3512 = vmatpush1.bf16.xpose.msra.mxu0 0
        %3513 = vmatprep.subr.bf16.mxu0 0
        %3514 = vmatpush1.bf16.xpose.msra.mxu0 0
        %3515 = vmatprep.subr.bf16.mxu0 0
        %3516 = vmatpush1.bf16.xpose.msra.mxu0 0
        %3517 = vmatprep.subr.bf16.mxu0 0
        %3518 = vmatpush1.bf16.xpose.msra.mxu0 0
        %3519 = vmatprep.subr.bf16.mxu0 0
        %3520 = vmatpush1.bf16.xpose.msra.mxu0 %v3503
        %3521 = vmatprep.subr.bf16.mxu0 0
        %3522 = vmatpush2.bf16.xpose.msra.mxu0 0
        %3523 = vmatprep.subr.bf16.mxu0 0
        %3524 = vmatpush2.bf16.xpose.msra.mxu0 0
        %3525 = vmatprep.subr.bf16.mxu0 0
        %3526 = vmatpush2.bf16.xpose.msra.mxu0 0
        %3527 = vmatprep.subr.bf16.mxu0 0
        %3528 = vmatpush2.bf16.xpose.msra.mxu0 0
        %3529 = vmatprep.subr.bf16.mxu0 0
        %3530 = vmatpush2.bf16.xpose.msra.mxu0 0
        %3531 = vmatprep.subr.bf16.mxu0 0
        %3532 = vmatpush2.bf16.xpose.msra.mxu0 0
        %3533 = vmatprep.subr.bf16.mxu0 0
        %3534 = vmatpush2.bf16.xpose.msra.mxu0 0
        %3535 = vmatprep.subr.bf16.mxu0 0
        %3536 = vmatpush2.bf16.xpose.msra.mxu0 0
        %3537 = vmatprep.mubr.bf16.mxu0 0
        %3538 = vmatmul.mubr.bf16.gmra.mxu0 %v3500
        %v3539 = vpop.f32.mrf.mxu0
        %v3540 = vadd.f32 0.0, %v3539
        %v3541 = vpop.f32.mrf.mxu0
        %v3542 = vpop.f32.mrf.mxu0
        %v3543 = vadd.f32 0.0, %v3542
        %v3544 = vpop.f32.mrf.mxu0
        %3545 = vdwg.mxu0
        %3546 = vrot.lane.b32.xlu0 %v610, 64
        %v3547 = vpop.permute.xlu0 %3546
        %v3549 = vsel %vm803, %v610, 0
        %v3552 = vsel %vm803, %v3547, 0
        %3554 = vmatprep.subr.bf16.mxu0 0
        %3555 = vmatpush1.bf16.xpose.msra.mxu0 0
        %3556 = vmatprep.subr.bf16.mxu0 0
        %3557 = vmatpush1.bf16.xpose.msra.mxu0 0
        %3558 = vmatprep.subr.bf16.mxu0 0
        %3559 = vmatpush1.bf16.xpose.msra.mxu0 0
        %3560 = vmatprep.subr.bf16.mxu0 0
        %3561 = vmatpush1.bf16.xpose.msra.mxu0 0
        %3562 = vmatprep.subr.bf16.mxu0 0
        %3563 = vmatpush1.bf16.xpose.msra.mxu0 0
        %3564 = vmatprep.subr.bf16.mxu0 0
        %3565 = vmatpush1.bf16.xpose.msra.mxu0 0
        %3566 = vmatprep.subr.bf16.mxu0 0
        %3567 = vmatpush1.bf16.xpose.msra.mxu0 0
        %3568 = vmatprep.subr.bf16.mxu0 0
        %3569 = vmatpush1.bf16.xpose.msra.mxu0 %v3552
        %3570 = vmatprep.subr.bf16.mxu0 0
        %3571 = vmatpush2.bf16.xpose.msra.mxu0 0
        %3572 = vmatprep.subr.bf16.mxu0 0
        %3573 = vmatpush2.bf16.xpose.msra.mxu0 0
        %3574 = vmatprep.subr.bf16.mxu0 0
        %3575 = vmatpush2.bf16.xpose.msra.mxu0 0
        %3576 = vmatprep.subr.bf16.mxu0 0
        %3577 = vmatpush2.bf16.xpose.msra.mxu0 0
        %3578 = vmatprep.subr.bf16.mxu0 0
        %3579 = vmatpush2.bf16.xpose.msra.mxu0 0
        %3580 = vmatprep.subr.bf16.mxu0 0
        %3581 = vmatpush2.bf16.xpose.msra.mxu0 0
        %3582 = vmatprep.subr.bf16.mxu0 0
        %3583 = vmatpush2.bf16.xpose.msra.mxu0 0
        %3584 = vmatprep.subr.bf16.mxu0 0
        %3585 = vmatpush2.bf16.xpose.msra.mxu0 0
        %3586 = vmatprep.mubr.bf16.mxu0 0
        %3587 = vmatmul.mubr.bf16.gmra.mxu0 %v3549
        %v3588 = vpop.f32.mrf.mxu0
        %v3589 = vadd.f32 0.0, %v3588
        %v3590 = vpop.f32.mrf.mxu0
        %v3591 = vpop.f32.mrf.mxu0
        %v3592 = vadd.f32 0.0, %v3591
        %v3593 = vpop.f32.mrf.mxu0
        %3594 = vdwg.mxu0
        %3595 = vrot.lane.b32.xlu0 %v612, 64
        %v3596 = vpop.permute.xlu0 %3595
        %v3598 = vsel %vm803, %v612, 0
        %v3601 = vsel %vm803, %v3596, 0
        %3603 = vmatprep.subr.bf16.mxu0 0
        %3604 = vmatpush1.bf16.xpose.msra.mxu0 0
        %3605 = vmatprep.subr.bf16.mxu0 0
        %3606 = vmatpush1.bf16.xpose.msra.mxu0 0
        %3607 = vmatprep.subr.bf16.mxu0 0
        %3608 = vmatpush1.bf16.xpose.msra.mxu0 0
        %3609 = vmatprep.subr.bf16.mxu0 0
        %3610 = vmatpush1.bf16.xpose.msra.mxu0 0
        %3611 = vmatprep.subr.bf16.mxu0 0
        %3612 = vmatpush1.bf16.xpose.msra.mxu0 0
        %3613 = vmatprep.subr.bf16.mxu0 0
        %3614 = vmatpush1.bf16.xpose.msra.mxu0 0
        %3615 = vmatprep.subr.bf16.mxu0 0
        %3616 = vmatpush1.bf16.xpose.msra.mxu0 0
        %3617 = vmatprep.subr.bf16.mxu0 0
        %3618 = vmatpush1.bf16.xpose.msra.mxu0 %v3601
        %3619 = vmatprep.subr.bf16.mxu0 0
        %3620 = vmatpush2.bf16.xpose.msra.mxu0 0
        %3621 = vmatprep.subr.bf16.mxu0 0
        %3622 = vmatpush2.bf16.xpose.msra.mxu0 0
        %3623 = vmatprep.subr.bf16.mxu0 0
        %3624 = vmatpush2.bf16.xpose.msra.mxu0 0
        %3625 = vmatprep.subr.bf16.mxu0 0
        %3626 = vmatpush2.bf16.xpose.msra.mxu0 0
        %3627 = vmatprep.subr.bf16.mxu0 0
        %3628 = vmatpush2.bf16.xpose.msra.mxu0 0
        %3629 = vmatprep.subr.bf16.mxu0 0
        %3630 = vmatpush2.bf16.xpose.msra.mxu0 0
        %3631 = vmatprep.subr.bf16.mxu0 0
        %3632 = vmatpush2.bf16.xpose.msra.mxu0 0
        %3633 = vmatprep.subr.bf16.mxu0 0
        %3634 = vmatpush2.bf16.xpose.msra.mxu0 0
        %3635 = vmatprep.mubr.bf16.mxu0 0
        %3636 = vmatmul.mubr.bf16.gmra.mxu0 %v3598
        %v3637 = vpop.f32.mrf.mxu0
        %v3638 = vadd.f32 0.0, %v3637
        %v3639 = vpop.f32.mrf.mxu0
        %v3640 = vpop.f32.mrf.mxu0
        %v3641 = vadd.f32 0.0, %v3640
        %v3642 = vpop.f32.mrf.mxu0
        %3643 = vdwg.mxu0
        %3644 = vrot.lane.b32.xlu0 %v614, 64
        %v3645 = vpop.permute.xlu0 %3644
        %v3647 = vsel %vm803, %v614, 0
        %v3650 = vsel %vm803, %v3645, 0
        %3652 = vmatprep.subr.bf16.mxu0 0
        %3653 = vmatpush1.bf16.xpose.msra.mxu0 0
        %3654 = vmatprep.subr.bf16.mxu0 0
        %3655 = vmatpush1.bf16.xpose.msra.mxu0 0
        %3656 = vmatprep.subr.bf16.mxu0 0
        %3657 = vmatpush1.bf16.xpose.msra.mxu0 0
        %3658 = vmatprep.subr.bf16.mxu0 0
        %3659 = vmatpush1.bf16.xpose.msra.mxu0 0
        %3660 = vmatprep.subr.bf16.mxu0 0
        %3661 = vmatpush1.bf16.xpose.msra.mxu0 0
        %3662 = vmatprep.subr.bf16.mxu0 0
        %3663 = vmatpush1.bf16.xpose.msra.mxu0 0
        %3664 = vmatprep.subr.bf16.mxu0 0
        %3665 = vmatpush1.bf16.xpose.msra.mxu0 0
        %3666 = vmatprep.subr.bf16.mxu0 0
        %3667 = vmatpush1.bf16.xpose.msra.mxu0 %v3650
        %3668 = vmatprep.subr.bf16.mxu0 0
        %3669 = vmatpush2.bf16.xpose.msra.mxu0 0
        %3670 = vmatprep.subr.bf16.mxu0 0
        %3671 = vmatpush2.bf16.xpose.msra.mxu0 0
        %3672 = vmatprep.subr.bf16.mxu0 0
        %3673 = vmatpush2.bf16.xpose.msra.mxu0 0
        %3674 = vmatprep.subr.bf16.mxu0 0
        %3675 = vmatpush2.bf16.xpose.msra.mxu0 0
        %3676 = vmatprep.subr.bf16.mxu0 0
        %3677 = vmatpush2.bf16.xpose.msra.mxu0 0
        %3678 = vmatprep.subr.bf16.mxu0 0
        %3679 = vmatpush2.bf16.xpose.msra.mxu0 0
        %3680 = vmatprep.subr.bf16.mxu0 0
        %3681 = vmatpush2.bf16.xpose.msra.mxu0 0
        %3682 = vmatprep.subr.bf16.mxu0 0
        %3683 = vmatpush2.bf16.xpose.msra.mxu0 0
        %3684 = vmatprep.mubr.bf16.mxu0 0
        %3685 = vmatmul.mubr.bf16.gmra.mxu0 %v3647
        %v3686 = vpop.f32.mrf.mxu0
        %v3687 = vadd.f32 0.0, %v3686
        %v3688 = vpop.f32.mrf.mxu0
        %v3689 = vpop.f32.mrf.mxu0
        %v3690 = vadd.f32 0.0, %v3689
        %v3691 = vpop.f32.mrf.mxu0
        %3692 = vdwg.mxu0
        %3693 = vrot.lane.b32.xlu0 %v616, 64
        %v3694 = vpop.permute.xlu0 %3693
        %v3696 = vsel %vm803, %v616, 0
        %v3699 = vsel %vm803, %v3694, 0
        %3701 = vmatprep.subr.bf16.mxu0 0
        %3702 = vmatpush1.bf16.xpose.msra.mxu0 0
        %3703 = vmatprep.subr.bf16.mxu0 0
        %3704 = vmatpush1.bf16.xpose.msra.mxu0 0
        %3705 = vmatprep.subr.bf16.mxu0 0
        %3706 = vmatpush1.bf16.xpose.msra.mxu0 0
        %3707 = vmatprep.subr.bf16.mxu0 0
        %3708 = vmatpush1.bf16.xpose.msra.mxu0 0
        %3709 = vmatprep.subr.bf16.mxu0 0
        %3710 = vmatpush1.bf16.xpose.msra.mxu0 0
        %3711 = vmatprep.subr.bf16.mxu0 0
        %3712 = vmatpush1.bf16.xpose.msra.mxu0 0
        %3713 = vmatprep.subr.bf16.mxu0 0
        %3714 = vmatpush1.bf16.xpose.msra.mxu0 0
        %3715 = vmatprep.subr.bf16.mxu0 0
        %3716 = vmatpush1.bf16.xpose.msra.mxu0 %v3699
        %3717 = vmatprep.subr.bf16.mxu0 0
        %3718 = vmatpush2.bf16.xpose.msra.mxu0 0
        %3719 = vmatprep.subr.bf16.mxu0 0
        %3720 = vmatpush2.bf16.xpose.msra.mxu0 0
        %3721 = vmatprep.subr.bf16.mxu0 0
        %3722 = vmatpush2.bf16.xpose.msra.mxu0 0
        %3723 = vmatprep.subr.bf16.mxu0 0
        %3724 = vmatpush2.bf16.xpose.msra.mxu0 0
        %3725 = vmatprep.subr.bf16.mxu0 0
        %3726 = vmatpush2.bf16.xpose.msra.mxu0 0
        %3727 = vmatprep.subr.bf16.mxu0 0
        %3728 = vmatpush2.bf16.xpose.msra.mxu0 0
        %3729 = vmatprep.subr.bf16.mxu0 0
        %3730 = vmatpush2.bf16.xpose.msra.mxu0 0
        %3731 = vmatprep.subr.bf16.mxu0 0
        %3732 = vmatpush2.bf16.xpose.msra.mxu0 0
        %3733 = vmatprep.mubr.bf16.mxu0 0
        %3734 = vmatmul.mubr.bf16.gmra.mxu0 %v3696
        %v3735 = vpop.f32.mrf.mxu0
        %v3736 = vadd.f32 0.0, %v3735
        %v3737 = vpop.f32.mrf.mxu0
        %v3738 = vpop.f32.mrf.mxu0
        %v3739 = vadd.f32 0.0, %v3738
        %v3740 = vpop.f32.mrf.mxu0
        %3741 = vdwg.mxu0
        %3742 = vrot.lane.b32.xlu0 %v618, 64
        %v3743 = vpop.permute.xlu0 %3742
        %v3745 = vsel %vm803, %v618, 0
        %v3748 = vsel %vm803, %v3743, 0
        %3750 = vmatprep.subr.bf16.mxu0 0
        %3751 = vmatpush1.bf16.xpose.msra.mxu0 0
        %3752 = vmatprep.subr.bf16.mxu0 0
        %3753 = vmatpush1.bf16.xpose.msra.mxu0 0
        %3754 = vmatprep.subr.bf16.mxu0 0
        %3755 = vmatpush1.bf16.xpose.msra.mxu0 0
        %3756 = vmatprep.subr.bf16.mxu0 0
        %3757 = vmatpush1.bf16.xpose.msra.mxu0 0
        %3758 = vmatprep.subr.bf16.mxu0 0
        %3759 = vmatpush1.bf16.xpose.msra.mxu0 0
        %3760 = vmatprep.subr.bf16.mxu0 0
        %3761 = vmatpush1.bf16.xpose.msra.mxu0 0
        %3762 = vmatprep.subr.bf16.mxu0 0
        %3763 = vmatpush1.bf16.xpose.msra.mxu0 0
        %3764 = vmatprep.subr.bf16.mxu0 0
        %3765 = vmatpush1.bf16.xpose.msra.mxu0 %v3748
        %3766 = vmatprep.subr.bf16.mxu0 0
        %3767 = vmatpush2.bf16.xpose.msra.mxu0 0
        %3768 = vmatprep.subr.bf16.mxu0 0
        %3769 = vmatpush2.bf16.xpose.msra.mxu0 0
        %3770 = vmatprep.subr.bf16.mxu0 0
        %3771 = vmatpush2.bf16.xpose.msra.mxu0 0
        %3772 = vmatprep.subr.bf16.mxu0 0
        %3773 = vmatpush2.bf16.xpose.msra.mxu0 0
        %3774 = vmatprep.subr.bf16.mxu0 0
        %3775 = vmatpush2.bf16.xpose.msra.mxu0 0
        %3776 = vmatprep.subr.bf16.mxu0 0
        %3777 = vmatpush2.bf16.xpose.msra.mxu0 0
        %3778 = vmatprep.subr.bf16.mxu0 0
        %3779 = vmatpush2.bf16.xpose.msra.mxu0 0
        %3780 = vmatprep.subr.bf16.mxu0 0
        %3781 = vmatpush2.bf16.xpose.msra.mxu0 0
        %3782 = vmatprep.mubr.bf16.mxu0 0
        %3783 = vmatmul.mubr.bf16.gmra.mxu0 %v3745
        %v3784 = vpop.f32.mrf.mxu0
        %v3785 = vadd.f32 0.0, %v3784
        %v3786 = vpop.f32.mrf.mxu0
        %v3787 = vpop.f32.mrf.mxu0
        %v3788 = vadd.f32 0.0, %v3787
        %v3789 = vpop.f32.mrf.mxu0
        %3790 = vdwg.mxu0
        %3791 = vrot.lane.b32.xlu0 %v620, 64
        %v3792 = vpop.permute.xlu0 %3791
        %v3794 = vsel %vm803, %v620, 0
        %v3797 = vsel %vm803, %v3792, 0
        %3799 = vmatprep.subr.bf16.mxu0 0
        %3800 = vmatpush1.bf16.xpose.msra.mxu0 0
        %3801 = vmatprep.subr.bf16.mxu0 0
        %3802 = vmatpush1.bf16.xpose.msra.mxu0 0
        %3803 = vmatprep.subr.bf16.mxu0 0
        %3804 = vmatpush1.bf16.xpose.msra.mxu0 0
        %3805 = vmatprep.subr.bf16.mxu0 0
        %3806 = vmatpush1.bf16.xpose.msra.mxu0 0
        %3807 = vmatprep.subr.bf16.mxu0 0
        %3808 = vmatpush1.bf16.xpose.msra.mxu0 0
        %3809 = vmatprep.subr.bf16.mxu0 0
        %3810 = vmatpush1.bf16.xpose.msra.mxu0 0
        %3811 = vmatprep.subr.bf16.mxu0 0
        %3812 = vmatpush1.bf16.xpose.msra.mxu0 0
        %3813 = vmatprep.subr.bf16.mxu0 0
        %3814 = vmatpush1.bf16.xpose.msra.mxu0 %v3797
        %3815 = vmatprep.subr.bf16.mxu0 0
        %3816 = vmatpush2.bf16.xpose.msra.mxu0 0
        %3817 = vmatprep.subr.bf16.mxu0 0
        %3818 = vmatpush2.bf16.xpose.msra.mxu0 0
        %3819 = vmatprep.subr.bf16.mxu0 0
        %3820 = vmatpush2.bf16.xpose.msra.mxu0 0
        %3821 = vmatprep.subr.bf16.mxu0 0
        %3822 = vmatpush2.bf16.xpose.msra.mxu0 0
        %3823 = vmatprep.subr.bf16.mxu0 0
        %3824 = vmatpush2.bf16.xpose.msra.mxu0 0
        %3825 = vmatprep.subr.bf16.mxu0 0
        %3826 = vmatpush2.bf16.xpose.msra.mxu0 0
        %3827 = vmatprep.subr.bf16.mxu0 0
        %3828 = vmatpush2.bf16.xpose.msra.mxu0 0
        %3829 = vmatprep.subr.bf16.mxu0 0
        %3830 = vmatpush2.bf16.xpose.msra.mxu0 0
        %3831 = vmatprep.mubr.bf16.mxu0 0
        %3832 = vmatmul.mubr.bf16.gmra.mxu0 %v3794
        %v3833 = vpop.f32.mrf.mxu0
        %v3834 = vadd.f32 0.0, %v3833
        %v3835 = vpop.f32.mrf.mxu0
        %v3836 = vpop.f32.mrf.mxu0
        %v3837 = vadd.f32 0.0, %v3836
        %v3838 = vpop.f32.mrf.mxu0
        %3839 = vdwg.mxu0
        %3840 = vrot.lane.b32.xlu0 %v622, 64
        %v3841 = vpop.permute.xlu0 %3840
        %v3843 = vsel %vm803, %v622, 0
        %v3846 = vsel %vm803, %v3841, 0
        %3848 = vmatprep.subr.bf16.mxu0 0
        %3849 = vmatpush1.bf16.xpose.msra.mxu0 0
        %3850 = vmatprep.subr.bf16.mxu0 0
        %3851 = vmatpush1.bf16.xpose.msra.mxu0 0
        %3852 = vmatprep.subr.bf16.mxu0 0
        %3853 = vmatpush1.bf16.xpose.msra.mxu0 0
        %3854 = vmatprep.subr.bf16.mxu0 0
        %3855 = vmatpush1.bf16.xpose.msra.mxu0 0
        %3856 = vmatprep.subr.bf16.mxu0 0
        %3857 = vmatpush1.bf16.xpose.msra.mxu0 0
        %3858 = vmatprep.subr.bf16.mxu0 0
        %3859 = vmatpush1.bf16.xpose.msra.mxu0 0
        %3860 = vmatprep.subr.bf16.mxu0 0
        %3861 = vmatpush1.bf16.xpose.msra.mxu0 0
        %3862 = vmatprep.subr.bf16.mxu0 0
        %3863 = vmatpush1.bf16.xpose.msra.mxu0 %v3846
        %3864 = vmatprep.subr.bf16.mxu0 0
        %3865 = vmatpush2.bf16.xpose.msra.mxu0 0
        %3866 = vmatprep.subr.bf16.mxu0 0
        %3867 = vmatpush2.bf16.xpose.msra.mxu0 0
        %3868 = vmatprep.subr.bf16.mxu0 0
        %3869 = vmatpush2.bf16.xpose.msra.mxu0 0
        %3870 = vmatprep.subr.bf16.mxu0 0
        %3871 = vmatpush2.bf16.xpose.msra.mxu0 0
        %3872 = vmatprep.subr.bf16.mxu0 0
        %3873 = vmatpush2.bf16.xpose.msra.mxu0 0
        %3874 = vmatprep.subr.bf16.mxu0 0
        %3875 = vmatpush2.bf16.xpose.msra.mxu0 0
        %3876 = vmatprep.subr.bf16.mxu0 0
        %3877 = vmatpush2.bf16.xpose.msra.mxu0 0
        %3878 = vmatprep.subr.bf16.mxu0 0
        %3879 = vmatpush2.bf16.xpose.msra.mxu0 0
        %3880 = vmatprep.mubr.bf16.mxu0 0
        %3881 = vmatmul.mubr.bf16.gmra.mxu0 %v3843
        %v3882 = vpop.f32.mrf.mxu0
        %v3883 = vadd.f32 0.0, %v3882
        %v3884 = vpop.f32.mrf.mxu0
        %v3885 = vpop.f32.mrf.mxu0
        %v3886 = vadd.f32 0.0, %v3885
        %v3887 = vpop.f32.mrf.mxu0
        %3888 = vdwg.mxu0
        %3889 = vrot.lane.b32.xlu0 %v624, 64
        %v3890 = vpop.permute.xlu0 %3889
        %v3892 = vsel %vm803, %v624, 0
        %v3895 = vsel %vm803, %v3890, 0
        %3897 = vmatprep.subr.bf16.mxu0 0
        %3898 = vmatpush1.bf16.xpose.msra.mxu0 0
        %3899 = vmatprep.subr.bf16.mxu0 0
        %3900 = vmatpush1.bf16.xpose.msra.mxu0 0
        %3901 = vmatprep.subr.bf16.mxu0 0
        %3902 = vmatpush1.bf16.xpose.msra.mxu0 0
        %3903 = vmatprep.subr.bf16.mxu0 0
        %3904 = vmatpush1.bf16.xpose.msra.mxu0 0
        %3905 = vmatprep.subr.bf16.mxu0 0
        %3906 = vmatpush1.bf16.xpose.msra.mxu0 0
        %3907 = vmatprep.subr.bf16.mxu0 0
        %3908 = vmatpush1.bf16.xpose.msra.mxu0 0
        %3909 = vmatprep.subr.bf16.mxu0 0
        %3910 = vmatpush1.bf16.xpose.msra.mxu0 0
        %3911 = vmatprep.subr.bf16.mxu0 0
        %3912 = vmatpush1.bf16.xpose.msra.mxu0 %v3895
        %3913 = vmatprep.subr.bf16.mxu0 0
        %3914 = vmatpush2.bf16.xpose.msra.mxu0 0
        %3915 = vmatprep.subr.bf16.mxu0 0
        %3916 = vmatpush2.bf16.xpose.msra.mxu0 0
        %3917 = vmatprep.subr.bf16.mxu0 0
        %3918 = vmatpush2.bf16.xpose.msra.mxu0 0
        %3919 = vmatprep.subr.bf16.mxu0 0
        %3920 = vmatpush2.bf16.xpose.msra.mxu0 0
        %3921 = vmatprep.subr.bf16.mxu0 0
        %3922 = vmatpush2.bf16.xpose.msra.mxu0 0
        %3923 = vmatprep.subr.bf16.mxu0 0
        %3924 = vmatpush2.bf16.xpose.msra.mxu0 0
        %3925 = vmatprep.subr.bf16.mxu0 0
        %3926 = vmatpush2.bf16.xpose.msra.mxu0 0
        %3927 = vmatprep.subr.bf16.mxu0 0
        %3928 = vmatpush2.bf16.xpose.msra.mxu0 0
        %3929 = vmatprep.mubr.bf16.mxu0 0
        %3930 = vmatmul.mubr.bf16.gmra.mxu0 %v3892
        %v3931 = vpop.f32.mrf.mxu0
        %v3932 = vadd.f32 0.0, %v3931
        %v3933 = vpop.f32.mrf.mxu0
        %v3934 = vpop.f32.mrf.mxu0
        %v3935 = vadd.f32 0.0, %v3934
        %v3936 = vpop.f32.mrf.mxu0
        %3937 = vdwg.mxu0
        %vm3938 = vcmask 130048
        %v3939 = vsel %vm3938, %v845, -inf
        %3940 = vmax.xlane.f32.xlu0 %v3939
        %v3941 = vpop.xlane.xlu0 %3940
        %v3942 = vsel %vm3938, %v848, -inf
        %3943 = vmax.xlane.f32.xlu0 %v3942
        %v3944 = vpop.xlane.xlu0 %3943
        %v3945 = vsel %vm3938, %v894, -inf
        %3946 = vmax.xlane.f32.xlu0 %v3945
        %v3947 = vpop.xlane.xlu0 %3946
        %v3948 = vsel %vm3938, %v897, -inf
        %3949 = vmax.xlane.f32.xlu0 %v3948
        %v3950 = vpop.xlane.xlu0 %3949
        %v3951 = vsel %vm3938, %v943, -inf
        %3952 = vmax.xlane.f32.xlu0 %v3951
        %v3953 = vpop.xlane.xlu0 %3952
        %v3954 = vsel %vm3938, %v946, -inf
        %3955 = vmax.xlane.f32.xlu0 %v3954
        %v3956 = vpop.xlane.xlu0 %3955
        %v3957 = vsel %vm3938, %v992, -inf
        %3958 = vmax.xlane.f32.xlu0 %v3957
        %v3959 = vpop.xlane.xlu0 %3958
        %v3960 = vsel %vm3938, %v995, -inf
        %3961 = vmax.xlane.f32.xlu0 %v3960
        %v3962 = vpop.xlane.xlu0 %3961
        %v3963 = vsel %vm3938, %v1041, -inf
        %3964 = vmax.xlane.f32.xlu0 %v3963
        %v3965 = vpop.xlane.xlu0 %3964
        %v3966 = vsel %vm3938, %v1044, -inf
        %3967 = vmax.xlane.f32.xlu0 %v3966
        %v3968 = vpop.xlane.xlu0 %3967
        %v3969 = vsel %vm3938, %v1090, -inf
        %3970 = vmax.xlane.f32.xlu0 %v3969
        %v3971 = vpop.xlane.xlu0 %3970
        %v3972 = vsel %vm3938, %v1093, -inf
        %3973 = vmax.xlane.f32.xlu0 %v3972
        %v3974 = vpop.xlane.xlu0 %3973
        %v3975 = vsel %vm3938, %v1139, -inf
        %3976 = vmax.xlane.f32.xlu0 %v3975
        %v3977 = vpop.xlane.xlu0 %3976
        %v3978 = vsel %vm3938, %v1142, -inf
        %3979 = vmax.xlane.f32.xlu0 %v3978
        %v3980 = vpop.xlane.xlu0 %3979
        %v3981 = vsel %vm3938, %v1188, -inf
        %3982 = vmax.xlane.f32.xlu0 %v3981
        %v3983 = vpop.xlane.xlu0 %3982
        %v3984 = vsel %vm3938, %v1191, -inf
        %3985 = vmax.xlane.f32.xlu0 %v3984
        %v3986 = vpop.xlane.xlu0 %3985
        %v3987 = vsel %vm3938, %v1237, -inf
        %3988 = vmax.xlane.f32.xlu0 %v3987
        %v3989 = vpop.xlane.xlu0 %3988
        %v3990 = vsel %vm3938, %v1240, -inf
        %3991 = vmax.xlane.f32.xlu0 %v3990
        %v3992 = vpop.xlane.xlu0 %3991
        %v3993 = vsel %vm3938, %v1286, -inf
        %3994 = vmax.xlane.f32.xlu0 %v3993
        %v3995 = vpop.xlane.xlu0 %3994
        %v3996 = vsel %vm3938, %v1289, -inf
        %3997 = vmax.xlane.f32.xlu0 %v3996
        %v3998 = vpop.xlane.xlu0 %3997
        %v3999 = vsel %vm3938, %v1335, -inf
        %4000 = vmax.xlane.f32.xlu0 %v3999
        %v4001 = vpop.xlane.xlu0 %4000
        %v4002 = vsel %vm3938, %v1338, -inf
        %4003 = vmax.xlane.f32.xlu0 %v4002
        %v4004 = vpop.xlane.xlu0 %4003
        %v4005 = vsel %vm3938, %v1384, -inf
        %4006 = vmax.xlane.f32.xlu0 %v4005
        %v4007 = vpop.xlane.xlu0 %4006
        %v4008 = vsel %vm3938, %v1387, -inf
        %4009 = vmax.xlane.f32.xlu0 %v4008
        %v4010 = vpop.xlane.xlu0 %4009
        %v4011 = vsel %vm3938, %v1433, -inf
        %4012 = vmax.xlane.f32.xlu0 %v4011
        %v4013 = vpop.xlane.xlu0 %4012
        %v4014 = vsel %vm3938, %v1436, -inf
        %4015 = vmax.xlane.f32.xlu0 %v4014
        %v4016 = vpop.xlane.xlu0 %4015
        %v4017 = vsel %vm3938, %v1482, -inf
        %4018 = vmax.xlane.f32.xlu0 %v4017
        %v4019 = vpop.xlane.xlu0 %4018
        %v4020 = vsel %vm3938, %v1485, -inf
        %4021 = vmax.xlane.f32.xlu0 %v4020
        %v4022 = vpop.xlane.xlu0 %4021
        %v4023 = vsel %vm3938, %v1531, -inf
        %4024 = vmax.xlane.f32.xlu0 %v4023
        %v4025 = vpop.xlane.xlu0 %4024
        %v4026 = vsel %vm3938, %v1534, -inf
        %4027 = vmax.xlane.f32.xlu0 %v4026
        %v4028 = vpop.xlane.xlu0 %4027
        %v4029 = vsel %vm3938, %v1580, -inf
        %4030 = vmax.xlane.f32.xlu0 %v4029
        %v4031 = vpop.xlane.xlu0 %4030
        %v4032 = vsel %vm3938, %v1583, -inf
        %4033 = vmax.xlane.f32.xlu0 %v4032
        %v4034 = vpop.xlane.xlu0 %4033
        %v4035 = vsel %vm3938, %v1629, -inf
        %4036 = vmax.xlane.f32.xlu0 %v4035
        %v4037 = vpop.xlane.xlu0 %4036
        %v4038 = vsel %vm3938, %v1632, -inf
        %4039 = vmax.xlane.f32.xlu0 %v4038
        %v4040 = vpop.xlane.xlu0 %4039
        %v4041 = vsel %vm3938, %v1678, -inf
        %4042 = vmax.xlane.f32.xlu0 %v4041
        %v4043 = vpop.xlane.xlu0 %4042
        %v4044 = vsel %vm3938, %v1681, -inf
        %4045 = vmax.xlane.f32.xlu0 %v4044
        %v4046 = vpop.xlane.xlu0 %4045
        %v4047 = vsel %vm3938, %v1727, -inf
        %4048 = vmax.xlane.f32.xlu0 %v4047
        %v4049 = vpop.xlane.xlu0 %4048
        %v4050 = vsel %vm3938, %v1730, -inf
        %4051 = vmax.xlane.f32.xlu0 %v4050
        %v4052 = vpop.xlane.xlu0 %4051
        %v4053 = vsel %vm3938, %v1776, -inf
        %4054 = vmax.xlane.f32.xlu0 %v4053
        %v4055 = vpop.xlane.xlu0 %4054
        %v4056 = vsel %vm3938, %v1779, -inf
        %4057 = vmax.xlane.f32.xlu0 %v4056
        %v4058 = vpop.xlane.xlu0 %4057
        %v4059 = vsel %vm3938, %v1825, -inf
        %4060 = vmax.xlane.f32.xlu0 %v4059
        %v4061 = vpop.xlane.xlu0 %4060
        %v4062 = vsel %vm3938, %v1828, -inf
        %4063 = vmax.xlane.f32.xlu0 %v4062
        %v4064 = vpop.xlane.xlu0 %4063
        %v4065 = vsel %vm3938, %v1874, -inf
        %4066 = vmax.xlane.f32.xlu0 %v4065
        %v4067 = vpop.xlane.xlu0 %4066
        %v4068 = vsel %vm3938, %v1877, -inf
        %4069 = vmax.xlane.f32.xlu0 %v4068
        %v4070 = vpop.xlane.xlu0 %4069
        %v4071 = vsel %vm3938, %v1923, -inf
        %4072 = vmax.xlane.f32.xlu0 %v4071
        %v4073 = vpop.xlane.xlu0 %4072
        %v4074 = vsel %vm3938, %v1926, -inf
        %4075 = vmax.xlane.f32.xlu0 %v4074
        %v4076 = vpop.xlane.xlu0 %4075
        %v4077 = vsel %vm3938, %v1972, -inf
        %4078 = vmax.xlane.f32.xlu0 %v4077
        %v4079 = vpop.xlane.xlu0 %4078
        %v4080 = vsel %vm3938, %v1975, -inf
        %4081 = vmax.xlane.f32.xlu0 %v4080
        %v4082 = vpop.xlane.xlu0 %4081
        %v4083 = vsel %vm3938, %v2021, -inf
        %4084 = vmax.xlane.f32.xlu0 %v4083
        %v4085 = vpop.xlane.xlu0 %4084
        %v4086 = vsel %vm3938, %v2024, -inf
        %4087 = vmax.xlane.f32.xlu0 %v4086
        %v4088 = vpop.xlane.xlu0 %4087
        %v4089 = vsel %vm3938, %v2070, -inf
        %4090 = vmax.xlane.f32.xlu0 %v4089
        %v4091 = vpop.xlane.xlu0 %4090
        %v4092 = vsel %vm3938, %v2073, -inf
        %4093 = vmax.xlane.f32.xlu0 %v4092
        %v4094 = vpop.xlane.xlu0 %4093
        %v4095 = vsel %vm3938, %v2119, -inf
        %4096 = vmax.xlane.f32.xlu0 %v4095
        %v4097 = vpop.xlane.xlu0 %4096
        %v4098 = vsel %vm3938, %v2122, -inf
        %4099 = vmax.xlane.f32.xlu0 %v4098
        %v4100 = vpop.xlane.xlu0 %4099
        %v4101 = vsel %vm3938, %v2168, -inf
        %4102 = vmax.xlane.f32.xlu0 %v4101
        %v4103 = vpop.xlane.xlu0 %4102
        %v4104 = vsel %vm3938, %v2171, -inf
        %4105 = vmax.xlane.f32.xlu0 %v4104
        %v4106 = vpop.xlane.xlu0 %4105
        %v4107 = vsel %vm3938, %v2217, -inf
        %4108 = vmax.xlane.f32.xlu0 %v4107
        %v4109 = vpop.xlane.xlu0 %4108
        %v4110 = vsel %vm3938, %v2220, -inf
        %4111 = vmax.xlane.f32.xlu0 %v4110
        %v4112 = vpop.xlane.xlu0 %4111
        %v4113 = vsel %vm3938, %v2266, -inf
        %4114 = vmax.xlane.f32.xlu0 %v4113
        %v4115 = vpop.xlane.xlu0 %4114
        %v4116 = vsel %vm3938, %v2269, -inf
        %4117 = vmax.xlane.f32.xlu0 %v4116
        %v4118 = vpop.xlane.xlu0 %4117
        %v4119 = vsel %vm3938, %v2315, -inf
        %4120 = vmax.xlane.f32.xlu0 %v4119
        %v4121 = vpop.xlane.xlu0 %4120
        %v4122 = vsel %vm3938, %v2318, -inf
        %4123 = vmax.xlane.f32.xlu0 %v4122
        %v4124 = vpop.xlane.xlu0 %4123
        %v4125 = vsel %vm3938, %v2364, -inf
        %4126 = vmax.xlane.f32.xlu0 %v4125
        %v4127 = vpop.xlane.xlu0 %4126
        %v4128 = vsel %vm3938, %v2367, -inf
        %4129 = vmax.xlane.f32.xlu0 %v4128
        %v4130 = vpop.xlane.xlu0 %4129
        %v4131 = vsel %vm3938, %v2413, -inf
        %4132 = vmax.xlane.f32.xlu0 %v4131
        %v4133 = vpop.xlane.xlu0 %4132
        %v4134 = vsel %vm3938, %v2416, -inf
        %4135 = vmax.xlane.f32.xlu0 %v4134
        %v4136 = vpop.xlane.xlu0 %4135
        %v4137 = vsel %vm3938, %v2462, -inf
        %4138 = vmax.xlane.f32.xlu0 %v4137
        %v4139 = vpop.xlane.xlu0 %4138
        %v4140 = vsel %vm3938, %v2465, -inf
        %4141 = vmax.xlane.f32.xlu0 %v4140
        %v4142 = vpop.xlane.xlu0 %4141
        %v4143 = vsel %vm3938, %v2511, -inf
        %4144 = vmax.xlane.f32.xlu0 %v4143
        %v4145 = vpop.xlane.xlu0 %4144
        %v4146 = vsel %vm3938, %v2514, -inf
        %4147 = vmax.xlane.f32.xlu0 %v4146
        %v4148 = vpop.xlane.xlu0 %4147
        %v4149 = vsel %vm3938, %v2560, -inf
        %4150 = vmax.xlane.f32.xlu0 %v4149
        %v4151 = vpop.xlane.xlu0 %4150
        %v4152 = vsel %vm3938, %v2563, -inf
        %4153 = vmax.xlane.f32.xlu0 %v4152
        %v4154 = vpop.xlane.xlu0 %4153
        %v4155 = vsel %vm3938, %v2609, -inf
        %4156 = vmax.xlane.f32.xlu0 %v4155
        %v4157 = vpop.xlane.xlu0 %4156
        %v4158 = vsel %vm3938, %v2612, -inf
        %4159 = vmax.xlane.f32.xlu0 %v4158
        %v4160 = vpop.xlane.xlu0 %4159
        %v4161 = vsel %vm3938, %v2658, -inf
        %4162 = vmax.xlane.f32.xlu0 %v4161
        %v4163 = vpop.xlane.xlu0 %4162
        %v4164 = vsel %vm3938, %v2661, -inf
        %4165 = vmax.xlane.f32.xlu0 %v4164
        %v4166 = vpop.xlane.xlu0 %4165
        %v4167 = vsel %vm3938, %v2707, -inf
        %4168 = vmax.xlane.f32.xlu0 %v4167
        %v4169 = vpop.xlane.xlu0 %4168
        %v4170 = vsel %vm3938, %v2710, -inf
        %4171 = vmax.xlane.f32.xlu0 %v4170
        %v4172 = vpop.xlane.xlu0 %4171
        %v4173 = vsel %vm3938, %v2756, -inf
        %4174 = vmax.xlane.f32.xlu0 %v4173
        %v4175 = vpop.xlane.xlu0 %4174
        %v4176 = vsel %vm3938, %v2759, -inf
        %4177 = vmax.xlane.f32.xlu0 %v4176
        %v4178 = vpop.xlane.xlu0 %4177
        %v4179 = vsel %vm3938, %v2805, -inf
        %4180 = vmax.xlane.f32.xlu0 %v4179
        %v4181 = vpop.xlane.xlu0 %4180
        %v4182 = vsel %vm3938, %v2808, -inf
        %4183 = vmax.xlane.f32.xlu0 %v4182
        %v4184 = vpop.xlane.xlu0 %4183
        %v4185 = vsel %vm3938, %v2854, -inf
        %4186 = vmax.xlane.f32.xlu0 %v4185
        %v4187 = vpop.xlane.xlu0 %4186
        %v4188 = vsel %vm3938, %v2857, -inf
        %4189 = vmax.xlane.f32.xlu0 %v4188
        %v4190 = vpop.xlane.xlu0 %4189
        %v4191 = vsel %vm3938, %v2903, -inf
        %4192 = vmax.xlane.f32.xlu0 %v4191
        %v4193 = vpop.xlane.xlu0 %4192
        %v4194 = vsel %vm3938, %v2906, -inf
        %4195 = vmax.xlane.f32.xlu0 %v4194
        %v4196 = vpop.xlane.xlu0 %4195
        %v4197 = vsel %vm3938, %v2952, -inf
        %4198 = vmax.xlane.f32.xlu0 %v4197
        %v4199 = vpop.xlane.xlu0 %4198
        %v4200 = vsel %vm3938, %v2955, -inf
        %4201 = vmax.xlane.f32.xlu0 %v4200
        %v4202 = vpop.xlane.xlu0 %4201
        %v4203 = vsel %vm3938, %v3001, -inf
        %4204 = vmax.xlane.f32.xlu0 %v4203
        %v4205 = vpop.xlane.xlu0 %4204
        %v4206 = vsel %vm3938, %v3004, -inf
        %4207 = vmax.xlane.f32.xlu0 %v4206
        %v4208 = vpop.xlane.xlu0 %4207
        %v4209 = vsel %vm3938, %v3050, -inf
        %4210 = vmax.xlane.f32.xlu0 %v4209
        %v4211 = vpop.xlane.xlu0 %4210
        %v4212 = vsel %vm3938, %v3053, -inf
        %4213 = vmax.xlane.f32.xlu0 %v4212
        %v4214 = vpop.xlane.xlu0 %4213
        %v4215 = vsel %vm3938, %v3099, -inf
        %4216 = vmax.xlane.f32.xlu0 %v4215
        %v4217 = vpop.xlane.xlu0 %4216
        %v4218 = vsel %vm3938, %v3102, -inf
        %4219 = vmax.xlane.f32.xlu0 %v4218
        %v4220 = vpop.xlane.xlu0 %4219
        %v4221 = vsel %vm3938, %v3148, -inf
        %4222 = vmax.xlane.f32.xlu0 %v4221
        %v4223 = vpop.xlane.xlu0 %4222
        %v4224 = vsel %vm3938, %v3151, -inf
        %4225 = vmax.xlane.f32.xlu0 %v4224
        %v4226 = vpop.xlane.xlu0 %4225
        %v4227 = vsel %vm3938, %v3197, -inf
        %4228 = vmax.xlane.f32.xlu0 %v4227
        %v4229 = vpop.xlane.xlu0 %4228
        %v4230 = vsel %vm3938, %v3200, -inf
        %4231 = vmax.xlane.f32.xlu0 %v4230
        %v4232 = vpop.xlane.xlu0 %4231
        %v4233 = vsel %vm3938, %v3246, -inf
        %4234 = vmax.xlane.f32.xlu0 %v4233
        %v4235 = vpop.xlane.xlu0 %4234
        %v4236 = vsel %vm3938, %v3249, -inf
        %4237 = vmax.xlane.f32.xlu0 %v4236
        %v4238 = vpop.xlane.xlu0 %4237
        %v4239 = vsel %vm3938, %v3295, -inf
        %4240 = vmax.xlane.f32.xlu0 %v4239
        %v4241 = vpop.xlane.xlu0 %4240
        %v4242 = vsel %vm3938, %v3298, -inf
        %4243 = vmax.xlane.f32.xlu0 %v4242
        %v4244 = vpop.xlane.xlu0 %4243
        %v4245 = vsel %vm3938, %v3344, -inf
        %4246 = vmax.xlane.f32.xlu0 %v4245
        %v4247 = vpop.xlane.xlu0 %4246
        %v4248 = vsel %vm3938, %v3347, -inf
        %4249 = vmax.xlane.f32.xlu0 %v4248
        %v4250 = vpop.xlane.xlu0 %4249
        %v4251 = vsel %vm3938, %v3393, -inf
        %4252 = vmax.xlane.f32.xlu0 %v4251
        %v4253 = vpop.xlane.xlu0 %4252
        %v4254 = vsel %vm3938, %v3396, -inf
        %4255 = vmax.xlane.f32.xlu0 %v4254
        %v4256 = vpop.xlane.xlu0 %4255
        %v4257 = vsel %vm3938, %v3442, -inf
        %4258 = vmax.xlane.f32.xlu0 %v4257
        %v4259 = vpop.xlane.xlu0 %4258
        %v4260 = vsel %vm3938, %v3445, -inf
        %4261 = vmax.xlane.f32.xlu0 %v4260
        %v4262 = vpop.xlane.xlu0 %4261
        %v4263 = vsel %vm3938, %v3491, -inf
        %4264 = vmax.xlane.f32.xlu0 %v4263
        %v4265 = vpop.xlane.xlu0 %4264
        %v4266 = vsel %vm3938, %v3494, -inf
        %4267 = vmax.xlane.f32.xlu0 %v4266
        %v4268 = vpop.xlane.xlu0 %4267
        %v4269 = vsel %vm3938, %v3540, -inf
        %4270 = vmax.xlane.f32.xlu0 %v4269
        %v4271 = vpop.xlane.xlu0 %4270
        %v4272 = vsel %vm3938, %v3543, -inf
        %4273 = vmax.xlane.f32.xlu0 %v4272
        %v4274 = vpop.xlane.xlu0 %4273
        %v4275 = vsel %vm3938, %v3589, -inf
        %4276 = vmax.xlane.f32.xlu0 %v4275
        %v4277 = vpop.xlane.xlu0 %4276
        %v4278 = vsel %vm3938, %v3592, -inf
        %4279 = vmax.xlane.f32.xlu0 %v4278
        %v4280 = vpop.xlane.xlu0 %4279
        %v4281 = vsel %vm3938, %v3638, -inf
        %4282 = vmax.xlane.f32.xlu0 %v4281
        %v4283 = vpop.xlane.xlu0 %4282
        %v4284 = vsel %vm3938, %v3641, -inf
        %4285 = vmax.xlane.f32.xlu0 %v4284
        %v4286 = vpop.xlane.xlu0 %4285
        %v4287 = vsel %vm3938, %v3687, -inf
        %4288 = vmax.xlane.f32.xlu0 %v4287
        %v4289 = vpop.xlane.xlu0 %4288
        %v4290 = vsel %vm3938, %v3690, -inf
        %4291 = vmax.xlane.f32.xlu0 %v4290
        %v4292 = vpop.xlane.xlu0 %4291
        %v4293 = vsel %vm3938, %v3736, -inf
        %4294 = vmax.xlane.f32.xlu0 %v4293
        %v4295 = vpop.xlane.xlu0 %4294
        %v4296 = vsel %vm3938, %v3739, -inf
        %4297 = vmax.xlane.f32.xlu0 %v4296
        %v4298 = vpop.xlane.xlu0 %4297
        %v4299 = vsel %vm3938, %v3785, -inf
        %4300 = vmax.xlane.f32.xlu0 %v4299
        %v4301 = vpop.xlane.xlu0 %4300
        %v4302 = vsel %vm3938, %v3788, -inf
        %4303 = vmax.xlane.f32.xlu0 %v4302
        %v4304 = vpop.xlane.xlu0 %4303
        %v4305 = vsel %vm3938, %v3834, -inf
        %4306 = vmax.xlane.f32.xlu0 %v4305
        %v4307 = vpop.xlane.xlu0 %4306
        %v4308 = vsel %vm3938, %v3837, -inf
        %4309 = vmax.xlane.f32.xlu0 %v4308
        %v4310 = vpop.xlane.xlu0 %4309
        %v4311 = vsel %vm3938, %v3883, -inf
        %4312 = vmax.xlane.f32.xlu0 %v4311
        %v4313 = vpop.xlane.xlu0 %4312
        %v4314 = vsel %vm3938, %v3886, -inf
        %4315 = vmax.xlane.f32.xlu0 %v4314
        %v4316 = vpop.xlane.xlu0 %4315
        %v4317 = vsel %vm3938, %v3932, -inf
        %4318 = vmax.xlane.f32.xlu0 %v4317
        %v4319 = vpop.xlane.xlu0 %4318
        %v4320 = vsel %vm3938, %v3935, -inf
        %4321 = vmax.xlane.f32.xlu0 %v4320
        %v4322 = vpop.xlane.xlu0 %4321
        %v4323 = vsub.f32 %v845, %v3941
        %v4324 = vsub.f32 %v848, %v3944
        %v4325 = vsub.f32 %v894, %v3947
        %v4326 = vsub.f32 %v897, %v3950
        %v4327 = vsub.f32 %v943, %v3953
        %v4328 = vsub.f32 %v946, %v3956
        %v4329 = vsub.f32 %v992, %v3959
        %v4330 = vsub.f32 %v995, %v3962
        %v4331 = vsub.f32 %v1041, %v3965
        %v4332 = vsub.f32 %v1044, %v3968
        %v4333 = vsub.f32 %v1090, %v3971
        %v4334 = vsub.f32 %v1093, %v3974
        %v4335 = vsub.f32 %v1139, %v3977
        %v4336 = vsub.f32 %v1142, %v3980
        %v4337 = vsub.f32 %v1188, %v3983
        %v4338 = vsub.f32 %v1191, %v3986
        %v4339 = vsub.f32 %v1237, %v3989
        %v4340 = vsub.f32 %v1240, %v3992
        %v4341 = vsub.f32 %v1286, %v3995
        %v4342 = vsub.f32 %v1289, %v3998
        %v4343 = vsub.f32 %v1335, %v4001
        %v4344 = vsub.f32 %v1338, %v4004
        %v4345 = vsub.f32 %v1384, %v4007
        %v4346 = vsub.f32 %v1387, %v4010
        %v4347 = vsub.f32 %v1433, %v4013
        %v4348 = vsub.f32 %v1436, %v4016
        %v4349 = vsub.f32 %v1482, %v4019
        %v4350 = vsub.f32 %v1485, %v4022
        %v4351 = vsub.f32 %v1531, %v4025
        %v4352 = vsub.f32 %v1534, %v4028
        %v4353 = vsub.f32 %v1580, %v4031
        %v4354 = vsub.f32 %v1583, %v4034
        %v4355 = vsub.f32 %v1629, %v4037
        %v4356 = vsub.f32 %v1632, %v4040
        %v4357 = vsub.f32 %v1678, %v4043
        %v4358 = vsub.f32 %v1681, %v4046
        %v4359 = vsub.f32 %v1727, %v4049
        %v4360 = vsub.f32 %v1730, %v4052
        %v4361 = vsub.f32 %v1776, %v4055
        %v4362 = vsub.f32 %v1779, %v4058
        %v4363 = vsub.f32 %v1825, %v4061
        %v4364 = vsub.f32 %v1828, %v4064
        %v4365 = vsub.f32 %v1874, %v4067
        %v4366 = vsub.f32 %v1877, %v4070
        %v4367 = vsub.f32 %v1923, %v4073
        %v4368 = vsub.f32 %v1926, %v4076
        %v4369 = vsub.f32 %v1972, %v4079
        %v4370 = vsub.f32 %v1975, %v4082
        %v4371 = vsub.f32 %v2021, %v4085
        %v4372 = vsub.f32 %v2024, %v4088
        %v4373 = vsub.f32 %v2070, %v4091
        %v4374 = vsub.f32 %v2073, %v4094
        %v4375 = vsub.f32 %v2119, %v4097
        %v4376 = vsub.f32 %v2122, %v4100
        %v4377 = vsub.f32 %v2168, %v4103
        %v4378 = vsub.f32 %v2171, %v4106
        %v4379 = vsub.f32 %v2217, %v4109
        %v4380 = vsub.f32 %v2220, %v4112
        %v4381 = vsub.f32 %v2266, %v4115
        %v4382 = vsub.f32 %v2269, %v4118
        %v4383 = vsub.f32 %v2315, %v4121
        %v4384 = vsub.f32 %v2318, %v4124
        %v4385 = vsub.f32 %v2364, %v4127
        %v4386 = vsub.f32 %v2367, %v4130
        %v4387 = vsub.f32 %v2413, %v4133
        %v4388 = vsub.f32 %v2416, %v4136
        %v4389 = vsub.f32 %v2462, %v4139
        %v4390 = vsub.f32 %v2465, %v4142
        %v4391 = vsub.f32 %v2511, %v4145
        %v4392 = vsub.f32 %v2514, %v4148
        %v4393 = vsub.f32 %v2560, %v4151
        %v4394 = vsub.f32 %v2563, %v4154
        %v4395 = vsub.f32 %v2609, %v4157
        %v4396 = vsub.f32 %v2612, %v4160
        %v4397 = vsub.f32 %v2658, %v4163
        %v4398 = vsub.f32 %v2661, %v4166
        %v4399 = vsub.f32 %v2707, %v4169
        %v4400 = vsub.f32 %v2710, %v4172
        %v4401 = vsub.f32 %v2756, %v4175
        %v4402 = vsub.f32 %v2759, %v4178
        %v4403 = vsub.f32 %v2805, %v4181
        %v4404 = vsub.f32 %v2808, %v4184
        %v4405 = vsub.f32 %v2854, %v4187
        %v4406 = vsub.f32 %v2857, %v4190
        %v4407 = vsub.f32 %v2903, %v4193
        %v4408 = vsub.f32 %v2906, %v4196
        %v4409 = vsub.f32 %v2952, %v4199
        %v4410 = vsub.f32 %v2955, %v4202
        %v4411 = vsub.f32 %v3001, %v4205
        %v4412 = vsub.f32 %v3004, %v4208
        %v4413 = vsub.f32 %v3050, %v4211
        %v4414 = vsub.f32 %v3053, %v4214
        %v4415 = vsub.f32 %v3099, %v4217
        %v4416 = vsub.f32 %v3102, %v4220
        %v4417 = vsub.f32 %v3148, %v4223
        %v4418 = vsub.f32 %v3151, %v4226
        %v4419 = vsub.f32 %v3197, %v4229
        %v4420 = vsub.f32 %v3200, %v4232
        %v4421 = vsub.f32 %v3246, %v4235
        %v4422 = vsub.f32 %v3249, %v4238
        %v4423 = vsub.f32 %v3295, %v4241
        %v4424 = vsub.f32 %v3298, %v4244
        %v4425 = vsub.f32 %v3344, %v4247
        %v4426 = vsub.f32 %v3347, %v4250
        %v4427 = vsub.f32 %v3393, %v4253
        %v4428 = vsub.f32 %v3396, %v4256
        %v4429 = vsub.f32 %v3442, %v4259
        %v4430 = vsub.f32 %v3445, %v4262
        %v4431 = vsub.f32 %v3491, %v4265
        %v4432 = vsub.f32 %v3494, %v4268
        %v4433 = vsub.f32 %v3540, %v4271
        %v4434 = vsub.f32 %v3543, %v4274
        %v4435 = vsub.f32 %v3589, %v4277
        %v4436 = vsub.f32 %v3592, %v4280
        %v4437 = vsub.f32 %v3638, %v4283
        %v4438 = vsub.f32 %v3641, %v4286
        %v4439 = vsub.f32 %v3687, %v4289
        %v4440 = vsub.f32 %v3690, %v4292
        %v4441 = vsub.f32 %v3736, %v4295
        %v4442 = vsub.f32 %v3739, %v4298
        %v4443 = vsub.f32 %v3785, %v4301
        %v4444 = vsub.f32 %v3788, %v4304
        %v4445 = vsub.f32 %v3834, %v4307
        %v4446 = vsub.f32 %v3837, %v4310
        %v4447 = vsub.f32 %v3883, %v4313
        %v4448 = vsub.f32 %v3886, %v4316
        %v4449 = vsub.f32 %v3932, %v4319
        %v4450 = vsub.f32 %v3935, %v4322
        %v4451 = vmul.f32 %v4323, 1.442695
        %v4452 = vpow.pop %v4451
        %v4453 = vmul.f32 %v4324, 1.442695
        %v4454 = vpow.pop %v4453
        %v4455 = vmul.f32 %v4325, 1.442695
        %v4456 = vpow.pop %v4455
        %v4457 = vmul.f32 %v4326, 1.442695
        %v4458 = vpow.pop %v4457
        %v4459 = vmul.f32 %v4327, 1.442695
        %v4460 = vpow.pop %v4459
        %v4461 = vmul.f32 %v4328, 1.442695
        %v4462 = vpow.pop %v4461
        %v4463 = vmul.f32 %v4329, 1.442695
        %v4464 = vpow.pop %v4463
        %v4465 = vmul.f32 %v4330, 1.442695
        %v4466 = vpow.pop %v4465
        %v4467 = vmul.f32 %v4331, 1.442695
        %v4468 = vpow.pop %v4467
        %v4469 = vmul.f32 %v4332, 1.442695
        %v4470 = vpow.pop %v4469
        %v4471 = vmul.f32 %v4333, 1.442695
        %v4472 = vpow.pop %v4471
        %v4473 = vmul.f32 %v4334, 1.442695
        %v4474 = vpow.pop %v4473
        %v4475 = vmul.f32 %v4335, 1.442695
        %v4476 = vpow.pop %v4475
        %v4477 = vmul.f32 %v4336, 1.442695
        %v4478 = vpow.pop %v4477
        %v4479 = vmul.f32 %v4337, 1.442695
        %v4480 = vpow.pop %v4479
        %v4481 = vmul.f32 %v4338, 1.442695
        %v4482 = vpow.pop %v4481
        %v4483 = vmul.f32 %v4339, 1.442695
        %v4484 = vpow.pop %v4483
        %v4485 = vmul.f32 %v4340, 1.442695
        %v4486 = vpow.pop %v4485
        %v4487 = vmul.f32 %v4341, 1.442695
        %v4488 = vpow.pop %v4487
        %v4489 = vmul.f32 %v4342, 1.442695
        %v4490 = vpow.pop %v4489
        %v4491 = vmul.f32 %v4343, 1.442695
        %v4492 = vpow.pop %v4491
        %v4493 = vmul.f32 %v4344, 1.442695
        %v4494 = vpow.pop %v4493
        %v4495 = vmul.f32 %v4345, 1.442695
        %v4496 = vpow.pop %v4495
        %v4497 = vmul.f32 %v4346, 1.442695
        %v4498 = vpow.pop %v4497
        %v4499 = vmul.f32 %v4347, 1.442695
        %v4500 = vpow.pop %v4499
        %v4501 = vmul.f32 %v4348, 1.442695
        %v4502 = vpow.pop %v4501
        %v4503 = vmul.f32 %v4349, 1.442695
        %v4504 = vpow.pop %v4503
        %v4505 = vmul.f32 %v4350, 1.442695
        %v4506 = vpow.pop %v4505
        %v4507 = vmul.f32 %v4351, 1.442695
        %v4508 = vpow.pop %v4507
        %v4509 = vmul.f32 %v4352, 1.442695
        %v4510 = vpow.pop %v4509
        %v4511 = vmul.f32 %v4353, 1.442695
        %v4512 = vpow.pop %v4511
        %v4513 = vmul.f32 %v4354, 1.442695
        %v4514 = vpow.pop %v4513
        %v4515 = vmul.f32 %v4355, 1.442695
        %v4516 = vpow.pop %v4515
        %v4517 = vmul.f32 %v4356, 1.442695
        %v4518 = vpow.pop %v4517
        %v4519 = vmul.f32 %v4357, 1.442695
        %v4520 = vpow.pop %v4519
        %v4521 = vmul.f32 %v4358, 1.442695
        %v4522 = vpow.pop %v4521
        %v4523 = vmul.f32 %v4359, 1.442695
        %v4524 = vpow.pop %v4523
        %v4525 = vmul.f32 %v4360, 1.442695
        %v4526 = vpow.pop %v4525
        %v4527 = vmul.f32 %v4361, 1.442695
        %v4528 = vpow.pop %v4527
        %v4529 = vmul.f32 %v4362, 1.442695
        %v4530 = vpow.pop %v4529
        %v4531 = vmul.f32 %v4363, 1.442695
        %v4532 = vpow.pop %v4531
        %v4533 = vmul.f32 %v4364, 1.442695
        %v4534 = vpow.pop %v4533
        %v4535 = vmul.f32 %v4365, 1.442695
        %v4536 = vpow.pop %v4535
        %v4537 = vmul.f32 %v4366, 1.442695
        %v4538 = vpow.pop %v4537
        %v4539 = vmul.f32 %v4367, 1.442695
        %v4540 = vpow.pop %v4539
        %v4541 = vmul.f32 %v4368, 1.442695
        %v4542 = vpow.pop %v4541
        %v4543 = vmul.f32 %v4369, 1.442695
        %v4544 = vpow.pop %v4543
        %v4545 = vmul.f32 %v4370, 1.442695
        %v4546 = vpow.pop %v4545
        %v4547 = vmul.f32 %v4371, 1.442695
        %v4548 = vpow.pop %v4547
        %v4549 = vmul.f32 %v4372, 1.442695
        %v4550 = vpow.pop %v4549
        %v4551 = vmul.f32 %v4373, 1.442695
        %v4552 = vpow.pop %v4551
        %v4553 = vmul.f32 %v4374, 1.442695
        %v4554 = vpow.pop %v4553
        %v4555 = vmul.f32 %v4375, 1.442695
        %v4556 = vpow.pop %v4555
        %v4557 = vmul.f32 %v4376, 1.442695
        %v4558 = vpow.pop %v4557
        %v4559 = vmul.f32 %v4377, 1.442695
        %v4560 = vpow.pop %v4559
        %v4561 = vmul.f32 %v4378, 1.442695
        %v4562 = vpow.pop %v4561
        %v4563 = vmul.f32 %v4379, 1.442695
        %v4564 = vpow.pop %v4563
        %v4565 = vmul.f32 %v4380, 1.442695
        %v4566 = vpow.pop %v4565
        %v4567 = vmul.f32 %v4381, 1.442695
        %v4568 = vpow.pop %v4567
        %v4569 = vmul.f32 %v4382, 1.442695
        %v4570 = vpow.pop %v4569
        %v4571 = vmul.f32 %v4383, 1.442695
        %v4572 = vpow.pop %v4571
        %v4573 = vmul.f32 %v4384, 1.442695
        %v4574 = vpow.pop %v4573
        %v4575 = vmul.f32 %v4385, 1.442695
        %v4576 = vpow.pop %v4575
        %v4577 = vmul.f32 %v4386, 1.442695
        %v4578 = vpow.pop %v4577
        %v4579 = vmul.f32 %v4387, 1.442695
        %v4580 = vpow.pop %v4579
        %v4581 = vmul.f32 %v4388, 1.442695
        %v4582 = vpow.pop %v4581
        %v4583 = vmul.f32 %v4389, 1.442695
        %v4584 = vpow.pop %v4583
        %v4585 = vmul.f32 %v4390, 1.442695
        %v4586 = vpow.pop %v4585
        %v4587 = vmul.f32 %v4391, 1.442695
        %v4588 = vpow.pop %v4587
        %v4589 = vmul.f32 %v4392, 1.442695
        %v4590 = vpow.pop %v4589
        %v4591 = vmul.f32 %v4393, 1.442695
        %v4592 = vpow.pop %v4591
        %v4593 = vmul.f32 %v4394, 1.442695
        %v4594 = vpow.pop %v4593
        %v4595 = vmul.f32 %v4395, 1.442695
        %v4596 = vpow.pop %v4595
        %v4597 = vmul.f32 %v4396, 1.442695
        %v4598 = vpow.pop %v4597
        %v4599 = vmul.f32 %v4397, 1.442695
        %v4600 = vpow.pop %v4599
        %v4601 = vmul.f32 %v4398, 1.442695
        %v4602 = vpow.pop %v4601
        %v4603 = vmul.f32 %v4399, 1.442695
        %v4604 = vpow.pop %v4603
        %v4605 = vmul.f32 %v4400, 1.442695
        %v4606 = vpow.pop %v4605
        %v4607 = vmul.f32 %v4401, 1.442695
        %v4608 = vpow.pop %v4607
        %v4609 = vmul.f32 %v4402, 1.442695
        %v4610 = vpow.pop %v4609
        %v4611 = vmul.f32 %v4403, 1.442695
        %v4612 = vpow.pop %v4611
        %v4613 = vmul.f32 %v4404, 1.442695
        %v4614 = vpow.pop %v4613
        %v4615 = vmul.f32 %v4405, 1.442695
        %v4616 = vpow.pop %v4615
        %v4617 = vmul.f32 %v4406, 1.442695
        %v4618 = vpow.pop %v4617
        %v4619 = vmul.f32 %v4407, 1.442695
        %v4620 = vpow.pop %v4619
        %v4621 = vmul.f32 %v4408, 1.442695
        %v4622 = vpow.pop %v4621
        %v4623 = vmul.f32 %v4409, 1.442695
        %v4624 = vpow.pop %v4623
        %v4625 = vmul.f32 %v4410, 1.442695
        %v4626 = vpow.pop %v4625
        %v4627 = vmul.f32 %v4411, 1.442695
        %v4628 = vpow.pop %v4627
        %v4629 = vmul.f32 %v4412, 1.442695
        %v4630 = vpow.pop %v4629
        %v4631 = vmul.f32 %v4413, 1.442695
        %v4632 = vpow.pop %v4631
        %v4633 = vmul.f32 %v4414, 1.442695
        %v4634 = vpow.pop %v4633
        %v4635 = vmul.f32 %v4415, 1.442695
        %v4636 = vpow.pop %v4635
        %v4637 = vmul.f32 %v4416, 1.442695
        %v4638 = vpow.pop %v4637
        %v4639 = vmul.f32 %v4417, 1.442695
        %v4640 = vpow.pop %v4639
        %v4641 = vmul.f32 %v4418, 1.442695
        %v4642 = vpow.pop %v4641
        %v4643 = vmul.f32 %v4419, 1.442695
        %v4644 = vpow.pop %v4643
        %v4645 = vmul.f32 %v4420, 1.442695
        %v4646 = vpow.pop %v4645
        %v4647 = vmul.f32 %v4421, 1.442695
        %v4648 = vpow.pop %v4647
        %v4649 = vmul.f32 %v4422, 1.442695
        %v4650 = vpow.pop %v4649
        %v4651 = vmul.f32 %v4423, 1.442695
        %v4652 = vpow.pop %v4651
        %v4653 = vmul.f32 %v4424, 1.442695
        %v4654 = vpow.pop %v4653
        %v4655 = vmul.f32 %v4425, 1.442695
        %v4656 = vpow.pop %v4655
        %v4657 = vmul.f32 %v4426, 1.442695
        %v4658 = vpow.pop %v4657
        %v4659 = vmul.f32 %v4427, 1.442695
        %v4660 = vpow.pop %v4659
        %v4661 = vmul.f32 %v4428, 1.442695
        %v4662 = vpow.pop %v4661
        %v4663 = vmul.f32 %v4429, 1.442695
        %v4664 = vpow.pop %v4663
        %v4665 = vmul.f32 %v4430, 1.442695
        %v4666 = vpow.pop %v4665
        %v4667 = vmul.f32 %v4431, 1.442695
        %v4668 = vpow.pop %v4667
        %v4669 = vmul.f32 %v4432, 1.442695
        %v4670 = vpow.pop %v4669
        %v4671 = vmul.f32 %v4433, 1.442695
        %v4672 = vpow.pop %v4671
        %v4673 = vmul.f32 %v4434, 1.442695
        %v4674 = vpow.pop %v4673
        %v4675 = vmul.f32 %v4435, 1.442695
        %v4676 = vpow.pop %v4675
        %v4677 = vmul.f32 %v4436, 1.442695
        %v4678 = vpow.pop %v4677
        %v4679 = vmul.f32 %v4437, 1.442695
        %v4680 = vpow.pop %v4679
        %v4681 = vmul.f32 %v4438, 1.442695
        %v4682 = vpow.pop %v4681
        %v4683 = vmul.f32 %v4439, 1.442695
        %v4684 = vpow.pop %v4683
        %v4685 = vmul.f32 %v4440, 1.442695
        %v4686 = vpow.pop %v4685
        %v4687 = vmul.f32 %v4441, 1.442695
        %v4688 = vpow.pop %v4687
        %v4689 = vmul.f32 %v4442, 1.442695
        %v4690 = vpow.pop %v4689
        %v4691 = vmul.f32 %v4443, 1.442695
        %v4692 = vpow.pop %v4691
        %v4693 = vmul.f32 %v4444, 1.442695
        %v4694 = vpow.pop %v4693
        %v4695 = vmul.f32 %v4445, 1.442695
        %v4696 = vpow.pop %v4695
        %v4697 = vmul.f32 %v4446, 1.442695
        %v4698 = vpow.pop %v4697
        %v4699 = vmul.f32 %v4447, 1.442695
        %v4700 = vpow.pop %v4699
        %v4701 = vmul.f32 %v4448, 1.442695
        %v4702 = vpow.pop %v4701
        %v4703 = vmul.f32 %v4449, 1.442695
        %v4704 = vpow.pop %v4703
        %v4705 = vmul.f32 %v4450, 1.442695
        %v4706 = vpow.pop %v4705
        %v4707 = vsel %vm3938, %v4452, 0.0
        %4708 = vadd.xlane.f32.xlu0 %v4707
        %v4709 = vpop.xlane.xlu0 %4708
        %v4710 = vsel %vm3938, %v4454, 0.0
        %4711 = vadd.xlane.f32.xlu0 %v4710
        %v4712 = vpop.xlane.xlu0 %4711
        %v4713 = vsel %vm3938, %v4456, 0.0
        %4714 = vadd.xlane.f32.xlu0 %v4713
        %v4715 = vpop.xlane.xlu0 %4714
        %v4716 = vsel %vm3938, %v4458, 0.0
        %4717 = vadd.xlane.f32.xlu0 %v4716
        %v4718 = vpop.xlane.xlu0 %4717
        %v4719 = vsel %vm3938, %v4460, 0.0
        %4720 = vadd.xlane.f32.xlu0 %v4719
        %v4721 = vpop.xlane.xlu0 %4720
        %v4722 = vsel %vm3938, %v4462, 0.0
        %4723 = vadd.xlane.f32.xlu0 %v4722
        %v4724 = vpop.xlane.xlu0 %4723
        %v4725 = vsel %vm3938, %v4464, 0.0
        %4726 = vadd.xlane.f32.xlu0 %v4725
        %v4727 = vpop.xlane.xlu0 %4726
        %v4728 = vsel %vm3938, %v4466, 0.0
        %4729 = vadd.xlane.f32.xlu0 %v4728
        %v4730 = vpop.xlane.xlu0 %4729
        %v4731 = vsel %vm3938, %v4468, 0.0
        %4732 = vadd.xlane.f32.xlu0 %v4731
        %v4733 = vpop.xlane.xlu0 %4732
        %v4734 = vsel %vm3938, %v4470, 0.0
        %4735 = vadd.xlane.f32.xlu0 %v4734
        %v4736 = vpop.xlane.xlu0 %4735
        %v4737 = vsel %vm3938, %v4472, 0.0
        %4738 = vadd.xlane.f32.xlu0 %v4737
        %v4739 = vpop.xlane.xlu0 %4738
        %v4740 = vsel %vm3938, %v4474, 0.0
        %4741 = vadd.xlane.f32.xlu0 %v4740
        %v4742 = vpop.xlane.xlu0 %4741
        %v4743 = vsel %vm3938, %v4476, 0.0
        %4744 = vadd.xlane.f32.xlu0 %v4743
        %v4745 = vpop.xlane.xlu0 %4744
        %v4746 = vsel %vm3938, %v4478, 0.0
        %4747 = vadd.xlane.f32.xlu0 %v4746
        %v4748 = vpop.xlane.xlu0 %4747
        %v4749 = vsel %vm3938, %v4480, 0.0
        %4750 = vadd.xlane.f32.xlu0 %v4749
        %v4751 = vpop.xlane.xlu0 %4750
        %v4752 = vsel %vm3938, %v4482, 0.0
        %4753 = vadd.xlane.f32.xlu0 %v4752
        %v4754 = vpop.xlane.xlu0 %4753
        %v4755 = vsel %vm3938, %v4484, 0.0
        %4756 = vadd.xlane.f32.xlu0 %v4755
        %v4757 = vpop.xlane.xlu0 %4756
        %v4758 = vsel %vm3938, %v4486, 0.0
        %4759 = vadd.xlane.f32.xlu0 %v4758
        %v4760 = vpop.xlane.xlu0 %4759
        %v4761 = vsel %vm3938, %v4488, 0.0
        %4762 = vadd.xlane.f32.xlu0 %v4761
        %v4763 = vpop.xlane.xlu0 %4762
        %v4764 = vsel %vm3938, %v4490, 0.0
        %4765 = vadd.xlane.f32.xlu0 %v4764
        %v4766 = vpop.xlane.xlu0 %4765
        %v4767 = vsel %vm3938, %v4492, 0.0
        %4768 = vadd.xlane.f32.xlu0 %v4767
        %v4769 = vpop.xlane.xlu0 %4768
        %v4770 = vsel %vm3938, %v4494, 0.0
        %4771 = vadd.xlane.f32.xlu0 %v4770
        %v4772 = vpop.xlane.xlu0 %4771
        %v4773 = vsel %vm3938, %v4496, 0.0
        %4774 = vadd.xlane.f32.xlu0 %v4773
        %v4775 = vpop.xlane.xlu0 %4774
        %v4776 = vsel %vm3938, %v4498, 0.0
        %4777 = vadd.xlane.f32.xlu0 %v4776
        %v4778 = vpop.xlane.xlu0 %4777
        %v4779 = vsel %vm3938, %v4500, 0.0
        %4780 = vadd.xlane.f32.xlu0 %v4779
        %v4781 = vpop.xlane.xlu0 %4780
        %v4782 = vsel %vm3938, %v4502, 0.0
        %4783 = vadd.xlane.f32.xlu0 %v4782
        %v4784 = vpop.xlane.xlu0 %4783
        %v4785 = vsel %vm3938, %v4504, 0.0
        %4786 = vadd.xlane.f32.xlu0 %v4785
        %v4787 = vpop.xlane.xlu0 %4786
        %v4788 = vsel %vm3938, %v4506, 0.0
        %4789 = vadd.xlane.f32.xlu0 %v4788
        %v4790 = vpop.xlane.xlu0 %4789
        %v4791 = vsel %vm3938, %v4508, 0.0
        %4792 = vadd.xlane.f32.xlu0 %v4791
        %v4793 = vpop.xlane.xlu0 %4792
        %v4794 = vsel %vm3938, %v4510, 0.0
        %4795 = vadd.xlane.f32.xlu0 %v4794
        %v4796 = vpop.xlane.xlu0 %4795
        %v4797 = vsel %vm3938, %v4512, 0.0
        %4798 = vadd.xlane.f32.xlu0 %v4797
        %v4799 = vpop.xlane.xlu0 %4798
        %v4800 = vsel %vm3938, %v4514, 0.0
        %4801 = vadd.xlane.f32.xlu0 %v4800
        %v4802 = vpop.xlane.xlu0 %4801
        %v4803 = vsel %vm3938, %v4516, 0.0
        %4804 = vadd.xlane.f32.xlu0 %v4803
        %v4805 = vpop.xlane.xlu0 %4804
        %v4806 = vsel %vm3938, %v4518, 0.0
        %4807 = vadd.xlane.f32.xlu0 %v4806
        %v4808 = vpop.xlane.xlu0 %4807
        %v4809 = vsel %vm3938, %v4520, 0.0
        %4810 = vadd.xlane.f32.xlu0 %v4809
        %v4811 = vpop.xlane.xlu0 %4810
        %v4812 = vsel %vm3938, %v4522, 0.0
        %4813 = vadd.xlane.f32.xlu0 %v4812
        %v4814 = vpop.xlane.xlu0 %4813
        %v4815 = vsel %vm3938, %v4524, 0.0
        %4816 = vadd.xlane.f32.xlu0 %v4815
        %v4817 = vpop.xlane.xlu0 %4816
        %v4818 = vsel %vm3938, %v4526, 0.0
        %4819 = vadd.xlane.f32.xlu0 %v4818
        %v4820 = vpop.xlane.xlu0 %4819
        %v4821 = vsel %vm3938, %v4528, 0.0
        %4822 = vadd.xlane.f32.xlu0 %v4821
        %v4823 = vpop.xlane.xlu0 %4822
        %v4824 = vsel %vm3938, %v4530, 0.0
        %4825 = vadd.xlane.f32.xlu0 %v4824
        %v4826 = vpop.xlane.xlu0 %4825
        %v4827 = vsel %vm3938, %v4532, 0.0
        %4828 = vadd.xlane.f32.xlu0 %v4827
        %v4829 = vpop.xlane.xlu0 %4828
        %v4830 = vsel %vm3938, %v4534, 0.0
        %4831 = vadd.xlane.f32.xlu0 %v4830
        %v4832 = vpop.xlane.xlu0 %4831
        %v4833 = vsel %vm3938, %v4536, 0.0
        %4834 = vadd.xlane.f32.xlu0 %v4833
        %v4835 = vpop.xlane.xlu0 %4834
        %v4836 = vsel %vm3938, %v4538, 0.0
        %4837 = vadd.xlane.f32.xlu0 %v4836
        %v4838 = vpop.xlane.xlu0 %4837
        %v4839 = vsel %vm3938, %v4540, 0.0
        %4840 = vadd.xlane.f32.xlu0 %v4839
        %v4841 = vpop.xlane.xlu0 %4840
        %v4842 = vsel %vm3938, %v4542, 0.0
        %4843 = vadd.xlane.f32.xlu0 %v4842
        %v4844 = vpop.xlane.xlu0 %4843
        %v4845 = vsel %vm3938, %v4544, 0.0
        %4846 = vadd.xlane.f32.xlu0 %v4845
        %v4847 = vpop.xlane.xlu0 %4846
        %v4848 = vsel %vm3938, %v4546, 0.0
        %4849 = vadd.xlane.f32.xlu0 %v4848
        %v4850 = vpop.xlane.xlu0 %4849
        %v4851 = vsel %vm3938, %v4548, 0.0
        %4852 = vadd.xlane.f32.xlu0 %v4851
        %v4853 = vpop.xlane.xlu0 %4852
        %v4854 = vsel %vm3938, %v4550, 0.0
        %4855 = vadd.xlane.f32.xlu0 %v4854
        %v4856 = vpop.xlane.xlu0 %4855
        %v4857 = vsel %vm3938, %v4552, 0.0
        %4858 = vadd.xlane.f32.xlu0 %v4857
        %v4859 = vpop.xlane.xlu0 %4858
        %v4860 = vsel %vm3938, %v4554, 0.0
        %4861 = vadd.xlane.f32.xlu0 %v4860
        %v4862 = vpop.xlane.xlu0 %4861
        %v4863 = vsel %vm3938, %v4556, 0.0
        %4864 = vadd.xlane.f32.xlu0 %v4863
        %v4865 = vpop.xlane.xlu0 %4864
        %v4866 = vsel %vm3938, %v4558, 0.0
        %4867 = vadd.xlane.f32.xlu0 %v4866
        %v4868 = vpop.xlane.xlu0 %4867
        %v4869 = vsel %vm3938, %v4560, 0.0
        %4870 = vadd.xlane.f32.xlu0 %v4869
        %v4871 = vpop.xlane.xlu0 %4870
        %v4872 = vsel %vm3938, %v4562, 0.0
        %4873 = vadd.xlane.f32.xlu0 %v4872
        %v4874 = vpop.xlane.xlu0 %4873
        %v4875 = vsel %vm3938, %v4564, 0.0
        %4876 = vadd.xlane.f32.xlu0 %v4875
        %v4877 = vpop.xlane.xlu0 %4876
        %v4878 = vsel %vm3938, %v4566, 0.0
        %4879 = vadd.xlane.f32.xlu0 %v4878
        %v4880 = vpop.xlane.xlu0 %4879
        %v4881 = vsel %vm3938, %v4568, 0.0
        %4882 = vadd.xlane.f32.xlu0 %v4881
        %v4883 = vpop.xlane.xlu0 %4882
        %v4884 = vsel %vm3938, %v4570, 0.0
        %4885 = vadd.xlane.f32.xlu0 %v4884
        %v4886 = vpop.xlane.xlu0 %4885
        %v4887 = vsel %vm3938, %v4572, 0.0
        %4888 = vadd.xlane.f32.xlu0 %v4887
        %v4889 = vpop.xlane.xlu0 %4888
        %v4890 = vsel %vm3938, %v4574, 0.0
        %4891 = vadd.xlane.f32.xlu0 %v4890
        %v4892 = vpop.xlane.xlu0 %4891
        %v4893 = vsel %vm3938, %v4576, 0.0
        %4894 = vadd.xlane.f32.xlu0 %v4893
        %v4895 = vpop.xlane.xlu0 %4894
        %v4896 = vsel %vm3938, %v4578, 0.0
        %4897 = vadd.xlane.f32.xlu0 %v4896
        %v4898 = vpop.xlane.xlu0 %4897
        %v4899 = vsel %vm3938, %v4580, 0.0
        %4900 = vadd.xlane.f32.xlu0 %v4899
        %v4901 = vpop.xlane.xlu0 %4900
        %v4902 = vsel %vm3938, %v4582, 0.0
        %4903 = vadd.xlane.f32.xlu0 %v4902
        %v4904 = vpop.xlane.xlu0 %4903
        %v4905 = vsel %vm3938, %v4584, 0.0
        %4906 = vadd.xlane.f32.xlu0 %v4905
        %v4907 = vpop.xlane.xlu0 %4906
        %v4908 = vsel %vm3938, %v4586, 0.0
        %4909 = vadd.xlane.f32.xlu0 %v4908
        %v4910 = vpop.xlane.xlu0 %4909
        %v4911 = vsel %vm3938, %v4588, 0.0
        %4912 = vadd.xlane.f32.xlu0 %v4911
        %v4913 = vpop.xlane.xlu0 %4912
        %v4914 = vsel %vm3938, %v4590, 0.0
        %4915 = vadd.xlane.f32.xlu0 %v4914
        %v4916 = vpop.xlane.xlu0 %4915
        %v4917 = vsel %vm3938, %v4592, 0.0
        %4918 = vadd.xlane.f32.xlu0 %v4917
        %v4919 = vpop.xlane.xlu0 %4918
        %v4920 = vsel %vm3938, %v4594, 0.0
        %4921 = vadd.xlane.f32.xlu0 %v4920
        %v4922 = vpop.xlane.xlu0 %4921
        %v4923 = vsel %vm3938, %v4596, 0.0
        %4924 = vadd.xlane.f32.xlu0 %v4923
        %v4925 = vpop.xlane.xlu0 %4924
        %v4926 = vsel %vm3938, %v4598, 0.0
        %4927 = vadd.xlane.f32.xlu0 %v4926
        %v4928 = vpop.xlane.xlu0 %4927
        %v4929 = vsel %vm3938, %v4600, 0.0
        %4930 = vadd.xlane.f32.xlu0 %v4929
        %v4931 = vpop.xlane.xlu0 %4930
        %v4932 = vsel %vm3938, %v4602, 0.0
        %4933 = vadd.xlane.f32.xlu0 %v4932
        %v4934 = vpop.xlane.xlu0 %4933
        %v4935 = vsel %vm3938, %v4604, 0.0
        %4936 = vadd.xlane.f32.xlu0 %v4935
        %v4937 = vpop.xlane.xlu0 %4936
        %v4938 = vsel %vm3938, %v4606, 0.0
        %4939 = vadd.xlane.f32.xlu0 %v4938
        %v4940 = vpop.xlane.xlu0 %4939
        %v4941 = vsel %vm3938, %v4608, 0.0
        %4942 = vadd.xlane.f32.xlu0 %v4941
        %v4943 = vpop.xlane.xlu0 %4942
        %v4944 = vsel %vm3938, %v4610, 0.0
        %4945 = vadd.xlane.f32.xlu0 %v4944
        %v4946 = vpop.xlane.xlu0 %4945
        %v4947 = vsel %vm3938, %v4612, 0.0
        %4948 = vadd.xlane.f32.xlu0 %v4947
        %v4949 = vpop.xlane.xlu0 %4948
        %v4950 = vsel %vm3938, %v4614, 0.0
        %4951 = vadd.xlane.f32.xlu0 %v4950
        %v4952 = vpop.xlane.xlu0 %4951
        %v4953 = vsel %vm3938, %v4616, 0.0
        %4954 = vadd.xlane.f32.xlu0 %v4953
        %v4955 = vpop.xlane.xlu0 %4954
        %v4956 = vsel %vm3938, %v4618, 0.0
        %4957 = vadd.xlane.f32.xlu0 %v4956
        %v4958 = vpop.xlane.xlu0 %4957
        %v4959 = vsel %vm3938, %v4620, 0.0
        %4960 = vadd.xlane.f32.xlu0 %v4959
        %v4961 = vpop.xlane.xlu0 %4960
        %v4962 = vsel %vm3938, %v4622, 0.0
        %4963 = vadd.xlane.f32.xlu0 %v4962
        %v4964 = vpop.xlane.xlu0 %4963
        %v4965 = vsel %vm3938, %v4624, 0.0
        %4966 = vadd.xlane.f32.xlu0 %v4965
        %v4967 = vpop.xlane.xlu0 %4966
        %v4968 = vsel %vm3938, %v4626, 0.0
        %4969 = vadd.xlane.f32.xlu0 %v4968
        %v4970 = vpop.xlane.xlu0 %4969
        %v4971 = vsel %vm3938, %v4628, 0.0
        %4972 = vadd.xlane.f32.xlu0 %v4971
        %v4973 = vpop.xlane.xlu0 %4972
        %v4974 = vsel %vm3938, %v4630, 0.0
        %4975 = vadd.xlane.f32.xlu0 %v4974
        %v4976 = vpop.xlane.xlu0 %4975
        %v4977 = vsel %vm3938, %v4632, 0.0
        %4978 = vadd.xlane.f32.xlu0 %v4977
        %v4979 = vpop.xlane.xlu0 %4978
        %v4980 = vsel %vm3938, %v4634, 0.0
        %4981 = vadd.xlane.f32.xlu0 %v4980
        %v4982 = vpop.xlane.xlu0 %4981
        %v4983 = vsel %vm3938, %v4636, 0.0
        %4984 = vadd.xlane.f32.xlu0 %v4983
        %v4985 = vpop.xlane.xlu0 %4984
        %v4986 = vsel %vm3938, %v4638, 0.0
        %4987 = vadd.xlane.f32.xlu0 %v4986
        %v4988 = vpop.xlane.xlu0 %4987
        %v4989 = vsel %vm3938, %v4640, 0.0
        %4990 = vadd.xlane.f32.xlu0 %v4989
        %v4991 = vpop.xlane.xlu0 %4990
        %v4992 = vsel %vm3938, %v4642, 0.0
        %4993 = vadd.xlane.f32.xlu0 %v4992
        %v4994 = vpop.xlane.xlu0 %4993
        %v4995 = vsel %vm3938, %v4644, 0.0
        %4996 = vadd.xlane.f32.xlu0 %v4995
        %v4997 = vpop.xlane.xlu0 %4996
        %v4998 = vsel %vm3938, %v4646, 0.0
        %4999 = vadd.xlane.f32.xlu0 %v4998
        %v5000 = vpop.xlane.xlu0 %4999
        %v5001 = vsel %vm3938, %v4648, 0.0
        %5002 = vadd.xlane.f32.xlu0 %v5001
        %v5003 = vpop.xlane.xlu0 %5002
        %v5004 = vsel %vm3938, %v4650, 0.0
        %5005 = vadd.xlane.f32.xlu0 %v5004
        %v5006 = vpop.xlane.xlu0 %5005
        %v5007 = vsel %vm3938, %v4652, 0.0
        %5008 = vadd.xlane.f32.xlu0 %v5007
        %v5009 = vpop.xlane.xlu0 %5008
        %v5010 = vsel %vm3938, %v4654, 0.0
        %5011 = vadd.xlane.f32.xlu0 %v5010
        %v5012 = vpop.xlane.xlu0 %5011
        %v5013 = vsel %vm3938, %v4656, 0.0
        %5014 = vadd.xlane.f32.xlu0 %v5013
        %v5015 = vpop.xlane.xlu0 %5014
        %v5016 = vsel %vm3938, %v4658, 0.0
        %5017 = vadd.xlane.f32.xlu0 %v5016
        %v5018 = vpop.xlane.xlu0 %5017
        %v5019 = vsel %vm3938, %v4660, 0.0
        %5020 = vadd.xlane.f32.xlu0 %v5019
        %v5021 = vpop.xlane.xlu0 %5020
        %v5022 = vsel %vm3938, %v4662, 0.0
        %5023 = vadd.xlane.f32.xlu0 %v5022
        %v5024 = vpop.xlane.xlu0 %5023
        %v5025 = vsel %vm3938, %v4664, 0.0
        %5026 = vadd.xlane.f32.xlu0 %v5025
        %v5027 = vpop.xlane.xlu0 %5026
        %v5028 = vsel %vm3938, %v4666, 0.0
        %5029 = vadd.xlane.f32.xlu0 %v5028
        %v5030 = vpop.xlane.xlu0 %5029
        %v5031 = vsel %vm3938, %v4668, 0.0
        %5032 = vadd.xlane.f32.xlu0 %v5031
        %v5033 = vpop.xlane.xlu0 %5032
        %v5034 = vsel %vm3938, %v4670, 0.0
        %5035 = vadd.xlane.f32.xlu0 %v5034
        %v5036 = vpop.xlane.xlu0 %5035
        %v5037 = vsel %vm3938, %v4672, 0.0
        %5038 = vadd.xlane.f32.xlu0 %v5037
        %v5039 = vpop.xlane.xlu0 %5038
        %v5040 = vsel %vm3938, %v4674, 0.0
        %5041 = vadd.xlane.f32.xlu0 %v5040
        %v5042 = vpop.xlane.xlu0 %5041
        %v5043 = vsel %vm3938, %v4676, 0.0
        %5044 = vadd.xlane.f32.xlu0 %v5043
        %v5045 = vpop.xlane.xlu0 %5044
        %v5046 = vsel %vm3938, %v4678, 0.0
        %5047 = vadd.xlane.f32.xlu0 %v5046
        %v5048 = vpop.xlane.xlu0 %5047
        %v5049 = vsel %vm3938, %v4680, 0.0
        %5050 = vadd.xlane.f32.xlu0 %v5049
        %v5051 = vpop.xlane.xlu0 %5050
        %v5052 = vsel %vm3938, %v4682, 0.0
        %5053 = vadd.xlane.f32.xlu0 %v5052
        %v5054 = vpop.xlane.xlu0 %5053
        %v5055 = vsel %vm3938, %v4684, 0.0
        %5056 = vadd.xlane.f32.xlu0 %v5055
        %v5057 = vpop.xlane.xlu0 %5056
        %v5058 = vsel %vm3938, %v4686, 0.0
        %5059 = vadd.xlane.f32.xlu0 %v5058
        %v5060 = vpop.xlane.xlu0 %5059
        %v5061 = vsel %vm3938, %v4688, 0.0
        %5062 = vadd.xlane.f32.xlu0 %v5061
        %v5063 = vpop.xlane.xlu0 %5062
        %v5064 = vsel %vm3938, %v4690, 0.0
        %5065 = vadd.xlane.f32.xlu0 %v5064
        %v5066 = vpop.xlane.xlu0 %5065
        %v5067 = vsel %vm3938, %v4692, 0.0
        %5068 = vadd.xlane.f32.xlu0 %v5067
        %v5069 = vpop.xlane.xlu0 %5068
        %v5070 = vsel %vm3938, %v4694, 0.0
        %5071 = vadd.xlane.f32.xlu0 %v5070
        %v5072 = vpop.xlane.xlu0 %5071
        %v5073 = vsel %vm3938, %v4696, 0.0
        %5074 = vadd.xlane.f32.xlu0 %v5073
        %v5075 = vpop.xlane.xlu0 %5074
        %v5076 = vsel %vm3938, %v4698, 0.0
        %5077 = vadd.xlane.f32.xlu0 %v5076
        %v5078 = vpop.xlane.xlu0 %5077
        %v5079 = vsel %vm3938, %v4700, 0.0
        %5080 = vadd.xlane.f32.xlu0 %v5079
        %v5081 = vpop.xlane.xlu0 %5080
        %v5082 = vsel %vm3938, %v4702, 0.0
        %5083 = vadd.xlane.f32.xlu0 %v5082
        %v5084 = vpop.xlane.xlu0 %5083
        %v5085 = vsel %vm3938, %v4704, 0.0
        %5086 = vadd.xlane.f32.xlu0 %v5085
        %v5087 = vpop.xlane.xlu0 %5086
        %v5088 = vsel %vm3938, %v4706, 0.0
        %5089 = vadd.xlane.f32.xlu0 %v5088
        %v5090 = vpop.xlane.xlu0 %5089
        %v5091 = vrcp.pop %v4709
        %v5092 = vrcp.pop %v4712
        %v5093 = vrcp.pop %v4715
        %v5094 = vrcp.pop %v4718
        %v5095 = vrcp.pop %v4721
        %v5096 = vrcp.pop %v4724
        %v5097 = vrcp.pop %v4727
        %v5098 = vrcp.pop %v4730
        %v5099 = vrcp.pop %v4733
        %v5100 = vrcp.pop %v4736
        %v5101 = vrcp.pop %v4739
        %v5102 = vrcp.pop %v4742
        %v5103 = vrcp.pop %v4745
        %v5104 = vrcp.pop %v4748
        %v5105 = vrcp.pop %v4751
        %v5106 = vrcp.pop %v4754
        %v5107 = vrcp.pop %v4757
        %v5108 = vrcp.pop %v4760
        %v5109 = vrcp.pop %v4763
        %v5110 = vrcp.pop %v4766
        %v5111 = vrcp.pop %v4769
        %v5112 = vrcp.pop %v4772
        %v5113 = vrcp.pop %v4775
        %v5114 = vrcp.pop %v4778
        %v5115 = vrcp.pop %v4781
        %v5116 = vrcp.pop %v4784
        %v5117 = vrcp.pop %v4787
        %v5118 = vrcp.pop %v4790
        %v5119 = vrcp.pop %v4793
        %v5120 = vrcp.pop %v4796
        %v5121 = vrcp.pop %v4799
        %v5122 = vrcp.pop %v4802
        %v5123 = vrcp.pop %v4805
        %v5124 = vrcp.pop %v4808
        %v5125 = vrcp.pop %v4811
        %v5126 = vrcp.pop %v4814
        %v5127 = vrcp.pop %v4817
        %v5128 = vrcp.pop %v4820
        %v5129 = vrcp.pop %v4823
        %v5130 = vrcp.pop %v4826
        %v5131 = vrcp.pop %v4829
        %v5132 = vrcp.pop %v4832
        %v5133 = vrcp.pop %v4835
        %v5134 = vrcp.pop %v4838
        %v5135 = vrcp.pop %v4841
        %v5136 = vrcp.pop %v4844
        %v5137 = vrcp.pop %v4847
        %v5138 = vrcp.pop %v4850
        %v5139 = vrcp.pop %v4853
        %v5140 = vrcp.pop %v4856
        %v5141 = vrcp.pop %v4859
        %v5142 = vrcp.pop %v4862
        %v5143 = vrcp.pop %v4865
        %v5144 = vrcp.pop %v4868
        %v5145 = vrcp.pop %v4871
        %v5146 = vrcp.pop %v4874
        %v5147 = vrcp.pop %v4877
        %v5148 = vrcp.pop %v4880
        %v5149 = vrcp.pop %v4883
        %v5150 = vrcp.pop %v4886
        %v5151 = vrcp.pop %v4889
        %v5152 = vrcp.pop %v4892
        %v5153 = vrcp.pop %v4895
        %v5154 = vrcp.pop %v4898
        %v5155 = vrcp.pop %v4901
        %v5156 = vrcp.pop %v4904
        %v5157 = vrcp.pop %v4907
        %v5158 = vrcp.pop %v4910
        %v5159 = vrcp.pop %v4913
        %v5160 = vrcp.pop %v4916
        %v5161 = vrcp.pop %v4919
        %v5162 = vrcp.pop %v4922
        %v5163 = vrcp.pop %v4925
        %v5164 = vrcp.pop %v4928
        %v5165 = vrcp.pop %v4931
        %v5166 = vrcp.pop %v4934
        %v5167 = vrcp.pop %v4937
        %v5168 = vrcp.pop %v4940
        %v5169 = vrcp.pop %v4943
        %v5170 = vrcp.pop %v4946
        %v5171 = vrcp.pop %v4949
        %v5172 = vrcp.pop %v4952
        %v5173 = vrcp.pop %v4955
        %v5174 = vrcp.pop %v4958
        %v5175 = vrcp.pop %v4961
        %v5176 = vrcp.pop %v4964
        %v5177 = vrcp.pop %v4967
        %v5178 = vrcp.pop %v4970
        %v5179 = vrcp.pop %v4973
        %v5180 = vrcp.pop %v4976
        %v5181 = vrcp.pop %v4979
        %v5182 = vrcp.pop %v4982
        %v5183 = vrcp.pop %v4985
        %v5184 = vrcp.pop %v4988
        %v5185 = vrcp.pop %v4991
        %v5186 = vrcp.pop %v4994
        %v5187 = vrcp.pop %v4997
        %v5188 = vrcp.pop %v5000
        %v5189 = vrcp.pop %v5003
        %v5190 = vrcp.pop %v5006
        %v5191 = vrcp.pop %v5009
        %v5192 = vrcp.pop %v5012
        %v5193 = vrcp.pop %v5015
        %v5194 = vrcp.pop %v5018
        %v5195 = vrcp.pop %v5021
        %v5196 = vrcp.pop %v5024
        %v5197 = vrcp.pop %v5027
        %v5198 = vrcp.pop %v5030
        %v5199 = vrcp.pop %v5033
        %v5200 = vrcp.pop %v5036
        %v5201 = vrcp.pop %v5039
        %v5202 = vrcp.pop %v5042
        %v5203 = vrcp.pop %v5045
        %v5204 = vrcp.pop %v5048
        %v5205 = vrcp.pop %v5051
        %v5206 = vrcp.pop %v5054
        %v5207 = vrcp.pop %v5057
        %v5208 = vrcp.pop %v5060
        %v5209 = vrcp.pop %v5063
        %v5210 = vrcp.pop %v5066
        %v5211 = vrcp.pop %v5069
        %v5212 = vrcp.pop %v5072
        %v5213 = vrcp.pop %v5075
        %v5214 = vrcp.pop %v5078
        %v5215 = vrcp.pop %v5081
        %v5216 = vrcp.pop %v5084
        %v5217 = vrcp.pop %v5087
        %v5218 = vrcp.pop %v5090
        %v5219 = vmul.f32 %v4452, %v5091
        %v5220 = vmul.f32 %v4454, %v5092
        %v5221 = vmul.f32 %v4456, %v5093
        %v5222 = vmul.f32 %v4458, %v5094
        %v5223 = vmul.f32 %v4460, %v5095
        %v5224 = vmul.f32 %v4462, %v5096
        %v5225 = vmul.f32 %v4464, %v5097
        %v5226 = vmul.f32 %v4466, %v5098
        %v5227 = vmul.f32 %v4468, %v5099
        %v5228 = vmul.f32 %v4470, %v5100
        %v5229 = vmul.f32 %v4472, %v5101
        %v5230 = vmul.f32 %v4474, %v5102
        %v5231 = vmul.f32 %v4476, %v5103
        %v5232 = vmul.f32 %v4478, %v5104
        %v5233 = vmul.f32 %v4480, %v5105
        %v5234 = vmul.f32 %v4482, %v5106
        %v5235 = vmul.f32 %v4484, %v5107
        %v5236 = vmul.f32 %v4486, %v5108
        %v5237 = vmul.f32 %v4488, %v5109
        %v5238 = vmul.f32 %v4490, %v5110
        %v5239 = vmul.f32 %v4492, %v5111
        %v5240 = vmul.f32 %v4494, %v5112
        %v5241 = vmul.f32 %v4496, %v5113
        %v5242 = vmul.f32 %v4498, %v5114
        %v5243 = vmul.f32 %v4500, %v5115
        %v5244 = vmul.f32 %v4502, %v5116
        %v5245 = vmul.f32 %v4504, %v5117
        %v5246 = vmul.f32 %v4506, %v5118
        %v5247 = vmul.f32 %v4508, %v5119
        %v5248 = vmul.f32 %v4510, %v5120
        %v5249 = vmul.f32 %v4512, %v5121
        %v5250 = vmul.f32 %v4514, %v5122
        %v5251 = vmul.f32 %v4516, %v5123
        %v5252 = vmul.f32 %v4518, %v5124
        %v5253 = vmul.f32 %v4520, %v5125
        %v5254 = vmul.f32 %v4522, %v5126
        %v5255 = vmul.f32 %v4524, %v5127
        %v5256 = vmul.f32 %v4526, %v5128
        %v5257 = vmul.f32 %v4528, %v5129
        %v5258 = vmul.f32 %v4530, %v5130
        %v5259 = vmul.f32 %v4532, %v5131
        %v5260 = vmul.f32 %v4534, %v5132
        %v5261 = vmul.f32 %v4536, %v5133
        %v5262 = vmul.f32 %v4538, %v5134
        %v5263 = vmul.f32 %v4540, %v5135
        %v5264 = vmul.f32 %v4542, %v5136
        %v5265 = vmul.f32 %v4544, %v5137
        %v5266 = vmul.f32 %v4546, %v5138
        %v5267 = vmul.f32 %v4548, %v5139
        %v5268 = vmul.f32 %v4550, %v5140
        %v5269 = vmul.f32 %v4552, %v5141
        %v5270 = vmul.f32 %v4554, %v5142
        %v5271 = vmul.f32 %v4556, %v5143
        %v5272 = vmul.f32 %v4558, %v5144
        %v5273 = vmul.f32 %v4560, %v5145
        %v5274 = vmul.f32 %v4562, %v5146
        %v5275 = vmul.f32 %v4564, %v5147
        %v5276 = vmul.f32 %v4566, %v5148
        %v5277 = vmul.f32 %v4568, %v5149
        %v5278 = vmul.f32 %v4570, %v5150
        %v5279 = vmul.f32 %v4572, %v5151
        %v5280 = vmul.f32 %v4574, %v5152
        %v5281 = vmul.f32 %v4576, %v5153
        %v5282 = vmul.f32 %v4578, %v5154
        %v5283 = vmul.f32 %v4580, %v5155
        %v5284 = vmul.f32 %v4582, %v5156
        %v5285 = vmul.f32 %v4584, %v5157
        %v5286 = vmul.f32 %v4586, %v5158
        %v5287 = vmul.f32 %v4588, %v5159
        %v5288 = vmul.f32 %v4590, %v5160
        %v5289 = vmul.f32 %v4592, %v5161
        %v5290 = vmul.f32 %v4594, %v5162
        %v5291 = vmul.f32 %v4596, %v5163
        %v5292 = vmul.f32 %v4598, %v5164
        %v5293 = vmul.f32 %v4600, %v5165
        %v5294 = vmul.f32 %v4602, %v5166
        %v5295 = vmul.f32 %v4604, %v5167
        %v5296 = vmul.f32 %v4606, %v5168
        %v5297 = vmul.f32 %v4608, %v5169
        %v5298 = vmul.f32 %v4610, %v5170
        %v5299 = vmul.f32 %v4612, %v5171
        %v5300 = vmul.f32 %v4614, %v5172
        %v5301 = vmul.f32 %v4616, %v5173
        %v5302 = vmul.f32 %v4618, %v5174
        %v5303 = vmul.f32 %v4620, %v5175
        %v5304 = vmul.f32 %v4622, %v5176
        %v5305 = vmul.f32 %v4624, %v5177
        %v5306 = vmul.f32 %v4626, %v5178
        %v5307 = vmul.f32 %v4628, %v5179
        %v5308 = vmul.f32 %v4630, %v5180
        %v5309 = vmul.f32 %v4632, %v5181
        %v5310 = vmul.f32 %v4634, %v5182
        %v5311 = vmul.f32 %v4636, %v5183
        %v5312 = vmul.f32 %v4638, %v5184
        %v5313 = vmul.f32 %v4640, %v5185
        %v5314 = vmul.f32 %v4642, %v5186
        %v5315 = vmul.f32 %v4644, %v5187
        %v5316 = vmul.f32 %v4646, %v5188
        %v5317 = vmul.f32 %v4648, %v5189
        %v5318 = vmul.f32 %v4650, %v5190
        %v5319 = vmul.f32 %v4652, %v5191
        %v5320 = vmul.f32 %v4654, %v5192
        %v5321 = vmul.f32 %v4656, %v5193
        %v5322 = vmul.f32 %v4658, %v5194
        %v5323 = vmul.f32 %v4660, %v5195
        %v5324 = vmul.f32 %v4662, %v5196
        %v5325 = vmul.f32 %v4664, %v5197
        %v5326 = vmul.f32 %v4666, %v5198
        %v5327 = vmul.f32 %v4668, %v5199
        %v5328 = vmul.f32 %v4670, %v5200
        %v5329 = vmul.f32 %v4672, %v5201
        %v5330 = vmul.f32 %v4674, %v5202
        %v5331 = vmul.f32 %v4676, %v5203
        %v5332 = vmul.f32 %v4678, %v5204
        %v5333 = vmul.f32 %v4680, %v5205
        %v5334 = vmul.f32 %v4682, %v5206
        %v5335 = vmul.f32 %v4684, %v5207
        %v5336 = vmul.f32 %v4686, %v5208
        %v5337 = vmul.f32 %v4688, %v5209
        %v5338 = vmul.f32 %v4690, %v5210
        %v5339 = vmul.f32 %v4692, %v5211
        %v5340 = vmul.f32 %v4694, %v5212
        %v5341 = vmul.f32 %v4696, %v5213
        %v5342 = vmul.f32 %v4698, %v5214
        %v5343 = vmul.f32 %v4700, %v5215
        %v5344 = vmul.f32 %v4702, %v5216
        %v5345 = vmul.f32 %v4704, %v5217
        %v5346 = vmul.f32 %v4706, %v5218
        %v5347 = vpack.c.bf16 %v5220, %v5219
        %v5348 = vpack.c.bf16 %v5222, %v5221
        %v5349 = vpack.c.bf16 %v5224, %v5223
        %v5350 = vpack.c.bf16 %v5226, %v5225
        %v5351 = vpack.c.bf16 %v5228, %v5227
        %v5352 = vpack.c.bf16 %v5230, %v5229
        %v5353 = vpack.c.bf16 %v5232, %v5231
        %v5354 = vpack.c.bf16 %v5234, %v5233
        %v5355 = vpack.c.bf16 %v5236, %v5235
        %v5356 = vpack.c.bf16 %v5238, %v5237
        %v5357 = vpack.c.bf16 %v5240, %v5239
        %v5358 = vpack.c.bf16 %v5242, %v5241
        %v5359 = vpack.c.bf16 %v5244, %v5243
        %v5360 = vpack.c.bf16 %v5246, %v5245
        %v5361 = vpack.c.bf16 %v5248, %v5247
        %v5362 = vpack.c.bf16 %v5250, %v5249
        %v5363 = vpack.c.bf16 %v5252, %v5251
        %v5364 = vpack.c.bf16 %v5254, %v5253
        %v5365 = vpack.c.bf16 %v5256, %v5255
        %v5366 = vpack.c.bf16 %v5258, %v5257
        %v5367 = vpack.c.bf16 %v5260, %v5259
        %v5368 = vpack.c.bf16 %v5262, %v5261
        %v5369 = vpack.c.bf16 %v5264, %v5263
        %v5370 = vpack.c.bf16 %v5266, %v5265
        %v5371 = vpack.c.bf16 %v5268, %v5267
        %v5372 = vpack.c.bf16 %v5270, %v5269
        %v5373 = vpack.c.bf16 %v5272, %v5271
        %v5374 = vpack.c.bf16 %v5274, %v5273
        %v5375 = vpack.c.bf16 %v5276, %v5275
        %v5376 = vpack.c.bf16 %v5278, %v5277
        %v5377 = vpack.c.bf16 %v5280, %v5279
        %v5378 = vpack.c.bf16 %v5282, %v5281
        %v5379 = vpack.c.bf16 %v5284, %v5283
        %v5380 = vpack.c.bf16 %v5286, %v5285
        %v5381 = vpack.c.bf16 %v5288, %v5287
        %v5382 = vpack.c.bf16 %v5290, %v5289
        %v5383 = vpack.c.bf16 %v5292, %v5291
        %v5384 = vpack.c.bf16 %v5294, %v5293
        %v5385 = vpack.c.bf16 %v5296, %v5295
        %v5386 = vpack.c.bf16 %v5298, %v5297
        %v5387 = vpack.c.bf16 %v5300, %v5299
        %v5388 = vpack.c.bf16 %v5302, %v5301
        %v5389 = vpack.c.bf16 %v5304, %v5303
        %v5390 = vpack.c.bf16 %v5306, %v5305
        %v5391 = vpack.c.bf16 %v5308, %v5307
        %v5392 = vpack.c.bf16 %v5310, %v5309
        %v5393 = vpack.c.bf16 %v5312, %v5311
        %v5394 = vpack.c.bf16 %v5314, %v5313
        %v5395 = vpack.c.bf16 %v5316, %v5315
        %v5396 = vpack.c.bf16 %v5318, %v5317
        %v5397 = vpack.c.bf16 %v5320, %v5319
        %v5398 = vpack.c.bf16 %v5322, %v5321
        %v5399 = vpack.c.bf16 %v5324, %v5323
        %v5400 = vpack.c.bf16 %v5326, %v5325
        %v5401 = vpack.c.bf16 %v5328, %v5327
        %v5402 = vpack.c.bf16 %v5330, %v5329
        %v5403 = vpack.c.bf16 %v5332, %v5331
        %v5404 = vpack.c.bf16 %v5334, %v5333
        %v5405 = vpack.c.bf16 %v5336, %v5335
        %v5406 = vpack.c.bf16 %v5338, %v5337
        %v5407 = vpack.c.bf16 %v5340, %v5339
        %v5408 = vpack.c.bf16 %v5342, %v5341
        %v5409 = vpack.c.bf16 %v5344, %v5343
        %v5410 = vpack.c.bf16 %v5346, %v5345
        %v5412 = vsel %vm3938, %v5347, 0
        %5414 = vmatprep.subr.bf16.mxu0 0
        %5415 = vmatpush1.bf16.msra.mxu0 0
        %5416 = vmatprep.subr.bf16.mxu0 0
        %5417 = vmatpush1.bf16.msra.mxu0 0
        %5418 = vmatprep.subr.bf16.mxu0 0
        %5419 = vmatpush1.bf16.msra.mxu0 0
        %5420 = vmatprep.subr.bf16.mxu0 0
        %5421 = vmatpush1.bf16.msra.mxu0 0
        %5422 = vmatprep.subr.bf16.mxu0 0
        %5423 = vmatpush1.bf16.msra.mxu0 0
        %5424 = vmatprep.subr.bf16.mxu0 0
        %5425 = vmatpush1.bf16.msra.mxu0 0
        %5426 = vmatprep.subr.bf16.mxu0 0
        %5427 = vmatpush1.bf16.msra.mxu0 0
        %5428 = vmatprep.subr.bf16.mxu0 0
        %5429 = vmatpush1.bf16.msra.mxu0 %v490
        %5430 = vmatprep.subr.bf16.mxu0 0
        %5431 = vmatpush2.bf16.msra.mxu0 0
        %5432 = vmatprep.subr.bf16.mxu0 0
        %5433 = vmatpush2.bf16.msra.mxu0 0
        %5434 = vmatprep.subr.bf16.mxu0 0
        %5435 = vmatpush2.bf16.msra.mxu0 0
        %5436 = vmatprep.subr.bf16.mxu0 0
        %5437 = vmatpush2.bf16.msra.mxu0 0
        %5438 = vmatprep.subr.bf16.mxu0 0
        %5439 = vmatpush2.bf16.msra.mxu0 0
        %5440 = vmatprep.subr.bf16.mxu0 0
        %5441 = vmatpush2.bf16.msra.mxu0 0
        %5442 = vmatprep.subr.bf16.mxu0 0
        %5443 = vmatpush2.bf16.msra.mxu0 0
        %5444 = vmatprep.subr.bf16.mxu0 0
        %5445 = vmatpush2.bf16.msra.mxu0 0
        %5446 = vmatprep.mubr.bf16.mxu0 0
        %5447 = vmatmul.mubr.bf16.gmra.mxu0 %v5412
        %v5448 = vpop.f32.mrf.mxu0
        %v5449 = vadd.f32 0.0, %v5448
        %v5450 = vpop.f32.mrf.mxu0
        %v5451 = vpop.f32.mrf.mxu0
        %v5452 = vadd.f32 0.0, %v5451
        %v5453 = vpop.f32.mrf.mxu0
        %5454 = vdwg.mxu0
        %v5456 = vsel %vm3938, %v5348, 0
        %5458 = vmatprep.subr.bf16.mxu0 0
        %5459 = vmatpush1.bf16.msra.mxu0 0
        %5460 = vmatprep.subr.bf16.mxu0 0
        %5461 = vmatpush1.bf16.msra.mxu0 0
        %5462 = vmatprep.subr.bf16.mxu0 0
        %5463 = vmatpush1.bf16.msra.mxu0 0
        %5464 = vmatprep.subr.bf16.mxu0 0
        %5465 = vmatpush1.bf16.msra.mxu0 0
        %5466 = vmatprep.subr.bf16.mxu0 0
        %5467 = vmatpush1.bf16.msra.mxu0 0
        %5468 = vmatprep.subr.bf16.mxu0 0
        %5469 = vmatpush1.bf16.msra.mxu0 0
        %5470 = vmatprep.subr.bf16.mxu0 0
        %5471 = vmatpush1.bf16.msra.mxu0 0
        %5472 = vmatprep.subr.bf16.mxu0 0
        %5473 = vmatpush1.bf16.msra.mxu0 %v492
        %5474 = vmatprep.subr.bf16.mxu0 0
        %5475 = vmatpush2.bf16.msra.mxu0 0
        %5476 = vmatprep.subr.bf16.mxu0 0
        %5477 = vmatpush2.bf16.msra.mxu0 0
        %5478 = vmatprep.subr.bf16.mxu0 0
        %5479 = vmatpush2.bf16.msra.mxu0 0
        %5480 = vmatprep.subr.bf16.mxu0 0
        %5481 = vmatpush2.bf16.msra.mxu0 0
        %5482 = vmatprep.subr.bf16.mxu0 0
        %5483 = vmatpush2.bf16.msra.mxu0 0
        %5484 = vmatprep.subr.bf16.mxu0 0
        %5485 = vmatpush2.bf16.msra.mxu0 0
        %5486 = vmatprep.subr.bf16.mxu0 0
        %5487 = vmatpush2.bf16.msra.mxu0 0
        %5488 = vmatprep.subr.bf16.mxu0 0
        %5489 = vmatpush2.bf16.msra.mxu0 0
        %5490 = vmatprep.mubr.bf16.mxu0 0
        %5491 = vmatmul.mubr.bf16.gmra.mxu0 %v5456
        %v5492 = vpop.f32.mrf.mxu0
        %v5493 = vadd.f32 0.0, %v5492
        %v5494 = vpop.f32.mrf.mxu0
        %v5495 = vpop.f32.mrf.mxu0
        %v5496 = vadd.f32 0.0, %v5495
        %v5497 = vpop.f32.mrf.mxu0
        %5498 = vdwg.mxu0
        %v5500 = vsel %vm3938, %v5349, 0
        %5502 = vmatprep.subr.bf16.mxu0 0
        %5503 = vmatpush1.bf16.msra.mxu0 0
        %5504 = vmatprep.subr.bf16.mxu0 0
        %5505 = vmatpush1.bf16.msra.mxu0 0
        %5506 = vmatprep.subr.bf16.mxu0 0
        %5507 = vmatpush1.bf16.msra.mxu0 0
        %5508 = vmatprep.subr.bf16.mxu0 0
        %5509 = vmatpush1.bf16.msra.mxu0 0
        %5510 = vmatprep.subr.bf16.mxu0 0
        %5511 = vmatpush1.bf16.msra.mxu0 0
        %5512 = vmatprep.subr.bf16.mxu0 0
        %5513 = vmatpush1.bf16.msra.mxu0 0
        %5514 = vmatprep.subr.bf16.mxu0 0
        %5515 = vmatpush1.bf16.msra.mxu0 0
        %5516 = vmatprep.subr.bf16.mxu0 0
        %5517 = vmatpush1.bf16.msra.mxu0 %v494
        %5518 = vmatprep.subr.bf16.mxu0 0
        %5519 = vmatpush2.bf16.msra.mxu0 0
        %5520 = vmatprep.subr.bf16.mxu0 0
        %5521 = vmatpush2.bf16.msra.mxu0 0
        %5522 = vmatprep.subr.bf16.mxu0 0
        %5523 = vmatpush2.bf16.msra.mxu0 0
        %5524 = vmatprep.subr.bf16.mxu0 0
        %5525 = vmatpush2.bf16.msra.mxu0 0
        %5526 = vmatprep.subr.bf16.mxu0 0
        %5527 = vmatpush2.bf16.msra.mxu0 0
        %5528 = vmatprep.subr.bf16.mxu0 0
        %5529 = vmatpush2.bf16.msra.mxu0 0
        %5530 = vmatprep.subr.bf16.mxu0 0
        %5531 = vmatpush2.bf16.msra.mxu0 0
        %5532 = vmatprep.subr.bf16.mxu0 0
        %5533 = vmatpush2.bf16.msra.mxu0 0
        %5534 = vmatprep.mubr.bf16.mxu0 0
        %5535 = vmatmul.mubr.bf16.gmra.mxu0 %v5500
        %v5536 = vpop.f32.mrf.mxu0
        %v5537 = vadd.f32 0.0, %v5536
        %v5538 = vpop.f32.mrf.mxu0
        %v5539 = vpop.f32.mrf.mxu0
        %v5540 = vadd.f32 0.0, %v5539
        %v5541 = vpop.f32.mrf.mxu0
        %5542 = vdwg.mxu0
        %v5544 = vsel %vm3938, %v5350, 0
        %5546 = vmatprep.subr.bf16.mxu0 0
        %5547 = vmatpush1.bf16.msra.mxu0 0
        %5548 = vmatprep.subr.bf16.mxu0 0
        %5549 = vmatpush1.bf16.msra.mxu0 0
        %5550 = vmatprep.subr.bf16.mxu0 0
        %5551 = vmatpush1.bf16.msra.mxu0 0
        %5552 = vmatprep.subr.bf16.mxu0 0
        %5553 = vmatpush1.bf16.msra.mxu0 0
        %5554 = vmatprep.subr.bf16.mxu0 0
        %5555 = vmatpush1.bf16.msra.mxu0 0
        %5556 = vmatprep.subr.bf16.mxu0 0
        %5557 = vmatpush1.bf16.msra.mxu0 0
        %5558 = vmatprep.subr.bf16.mxu0 0
        %5559 = vmatpush1.bf16.msra.mxu0 0
        %5560 = vmatprep.subr.bf16.mxu0 0
        %5561 = vmatpush1.bf16.msra.mxu0 %v496
        %5562 = vmatprep.subr.bf16.mxu0 0
        %5563 = vmatpush2.bf16.msra.mxu0 0
        %5564 = vmatprep.subr.bf16.mxu0 0
        %5565 = vmatpush2.bf16.msra.mxu0 0
        %5566 = vmatprep.subr.bf16.mxu0 0
        %5567 = vmatpush2.bf16.msra.mxu0 0
        %5568 = vmatprep.subr.bf16.mxu0 0
        %5569 = vmatpush2.bf16.msra.mxu0 0
        %5570 = vmatprep.subr.bf16.mxu0 0
        %5571 = vmatpush2.bf16.msra.mxu0 0
        %5572 = vmatprep.subr.bf16.mxu0 0
        %5573 = vmatpush2.bf16.msra.mxu0 0
        %5574 = vmatprep.subr.bf16.mxu0 0
        %5575 = vmatpush2.bf16.msra.mxu0 0
        %5576 = vmatprep.subr.bf16.mxu0 0
        %5577 = vmatpush2.bf16.msra.mxu0 0
        %5578 = vmatprep.mubr.bf16.mxu0 0
        %5579 = vmatmul.mubr.bf16.gmra.mxu0 %v5544
        %v5580 = vpop.f32.mrf.mxu0
        %v5581 = vadd.f32 0.0, %v5580
        %v5582 = vpop.f32.mrf.mxu0
        %v5583 = vpop.f32.mrf.mxu0
        %v5584 = vadd.f32 0.0, %v5583
        %v5585 = vpop.f32.mrf.mxu0
        %5586 = vdwg.mxu0
        %v5588 = vsel %vm3938, %v5351, 0
        %5590 = vmatprep.subr.bf16.mxu0 0
        %5591 = vmatpush1.bf16.msra.mxu0 0
        %5592 = vmatprep.subr.bf16.mxu0 0
        %5593 = vmatpush1.bf16.msra.mxu0 0
        %5594 = vmatprep.subr.bf16.mxu0 0
        %5595 = vmatpush1.bf16.msra.mxu0 0
        %5596 = vmatprep.subr.bf16.mxu0 0
        %5597 = vmatpush1.bf16.msra.mxu0 0
        %5598 = vmatprep.subr.bf16.mxu0 0
        %5599 = vmatpush1.bf16.msra.mxu0 0
        %5600 = vmatprep.subr.bf16.mxu0 0
        %5601 = vmatpush1.bf16.msra.mxu0 0
        %5602 = vmatprep.subr.bf16.mxu0 0
        %5603 = vmatpush1.bf16.msra.mxu0 0
        %5604 = vmatprep.subr.bf16.mxu0 0
        %5605 = vmatpush1.bf16.msra.mxu0 %v498
        %5606 = vmatprep.subr.bf16.mxu0 0
        %5607 = vmatpush2.bf16.msra.mxu0 0
        %5608 = vmatprep.subr.bf16.mxu0 0
        %5609 = vmatpush2.bf16.msra.mxu0 0
        %5610 = vmatprep.subr.bf16.mxu0 0
        %5611 = vmatpush2.bf16.msra.mxu0 0
        %5612 = vmatprep.subr.bf16.mxu0 0
        %5613 = vmatpush2.bf16.msra.mxu0 0
        %5614 = vmatprep.subr.bf16.mxu0 0
        %5615 = vmatpush2.bf16.msra.mxu0 0
        %5616 = vmatprep.subr.bf16.mxu0 0
        %5617 = vmatpush2.bf16.msra.mxu0 0
        %5618 = vmatprep.subr.bf16.mxu0 0
        %5619 = vmatpush2.bf16.msra.mxu0 0
        %5620 = vmatprep.subr.bf16.mxu0 0
        %5621 = vmatpush2.bf16.msra.mxu0 0
        %5622 = vmatprep.mubr.bf16.mxu0 0
        %5623 = vmatmul.mubr.bf16.gmra.mxu0 %v5588
        %v5624 = vpop.f32.mrf.mxu0
        %v5625 = vadd.f32 0.0, %v5624
        %v5626 = vpop.f32.mrf.mxu0
        %v5627 = vpop.f32.mrf.mxu0
        %v5628 = vadd.f32 0.0, %v5627
        %v5629 = vpop.f32.mrf.mxu0
        %5630 = vdwg.mxu0
        %v5632 = vsel %vm3938, %v5352, 0
        %5634 = vmatprep.subr.bf16.mxu0 0
        %5635 = vmatpush1.bf16.msra.mxu0 0
        %5636 = vmatprep.subr.bf16.mxu0 0
        %5637 = vmatpush1.bf16.msra.mxu0 0
        %5638 = vmatprep.subr.bf16.mxu0 0
        %5639 = vmatpush1.bf16.msra.mxu0 0
        %5640 = vmatprep.subr.bf16.mxu0 0
        %5641 = vmatpush1.bf16.msra.mxu0 0
        %5642 = vmatprep.subr.bf16.mxu0 0
        %5643 = vmatpush1.bf16.msra.mxu0 0
        %5644 = vmatprep.subr.bf16.mxu0 0
        %5645 = vmatpush1.bf16.msra.mxu0 0
        %5646 = vmatprep.subr.bf16.mxu0 0
        %5647 = vmatpush1.bf16.msra.mxu0 0
        %5648 = vmatprep.subr.bf16.mxu0 0
        %5649 = vmatpush1.bf16.msra.mxu0 %v500
        %5650 = vmatprep.subr.bf16.mxu0 0
        %5651 = vmatpush2.bf16.msra.mxu0 0
        %5652 = vmatprep.subr.bf16.mxu0 0
        %5653 = vmatpush2.bf16.msra.mxu0 0
        %5654 = vmatprep.subr.bf16.mxu0 0
        %5655 = vmatpush2.bf16.msra.mxu0 0
        %5656 = vmatprep.subr.bf16.mxu0 0
        %5657 = vmatpush2.bf16.msra.mxu0 0
        %5658 = vmatprep.subr.bf16.mxu0 0
        %5659 = vmatpush2.bf16.msra.mxu0 0
        %5660 = vmatprep.subr.bf16.mxu0 0
        %5661 = vmatpush2.bf16.msra.mxu0 0
        %5662 = vmatprep.subr.bf16.mxu0 0
        %5663 = vmatpush2.bf16.msra.mxu0 0
        %5664 = vmatprep.subr.bf16.mxu0 0
        %5665 = vmatpush2.bf16.msra.mxu0 0
        %5666 = vmatprep.mubr.bf16.mxu0 0
        %5667 = vmatmul.mubr.bf16.gmra.mxu0 %v5632
        %v5668 = vpop.f32.mrf.mxu0
        %v5669 = vadd.f32 0.0, %v5668
        %v5670 = vpop.f32.mrf.mxu0
        %v5671 = vpop.f32.mrf.mxu0
        %v5672 = vadd.f32 0.0, %v5671
        %v5673 = vpop.f32.mrf.mxu0
        %5674 = vdwg.mxu0
        %v5676 = vsel %vm3938, %v5353, 0
        %5678 = vmatprep.subr.bf16.mxu0 0
        %5679 = vmatpush1.bf16.msra.mxu0 0
        %5680 = vmatprep.subr.bf16.mxu0 0
        %5681 = vmatpush1.bf16.msra.mxu0 0
        %5682 = vmatprep.subr.bf16.mxu0 0
        %5683 = vmatpush1.bf16.msra.mxu0 0
        %5684 = vmatprep.subr.bf16.mxu0 0
        %5685 = vmatpush1.bf16.msra.mxu0 0
        %5686 = vmatprep.subr.bf16.mxu0 0
        %5687 = vmatpush1.bf16.msra.mxu0 0
        %5688 = vmatprep.subr.bf16.mxu0 0
        %5689 = vmatpush1.bf16.msra.mxu0 0
        %5690 = vmatprep.subr.bf16.mxu0 0
        %5691 = vmatpush1.bf16.msra.mxu0 0
        %5692 = vmatprep.subr.bf16.mxu0 0
        %5693 = vmatpush1.bf16.msra.mxu0 %v502
        %5694 = vmatprep.subr.bf16.mxu0 0
        %5695 = vmatpush2.bf16.msra.mxu0 0
        %5696 = vmatprep.subr.bf16.mxu0 0
        %5697 = vmatpush2.bf16.msra.mxu0 0
        %5698 = vmatprep.subr.bf16.mxu0 0
        %5699 = vmatpush2.bf16.msra.mxu0 0
        %5700 = vmatprep.subr.bf16.mxu0 0
        %5701 = vmatpush2.bf16.msra.mxu0 0
        %5702 = vmatprep.subr.bf16.mxu0 0
        %5703 = vmatpush2.bf16.msra.mxu0 0
        %5704 = vmatprep.subr.bf16.mxu0 0
        %5705 = vmatpush2.bf16.msra.mxu0 0
        %5706 = vmatprep.subr.bf16.mxu0 0
        %5707 = vmatpush2.bf16.msra.mxu0 0
        %5708 = vmatprep.subr.bf16.mxu0 0
        %5709 = vmatpush2.bf16.msra.mxu0 0
        %5710 = vmatprep.mubr.bf16.mxu0 0
        %5711 = vmatmul.mubr.bf16.gmra.mxu0 %v5676
        %v5712 = vpop.f32.mrf.mxu0
        %v5713 = vadd.f32 0.0, %v5712
        %v5714 = vpop.f32.mrf.mxu0
        %v5715 = vpop.f32.mrf.mxu0
        %v5716 = vadd.f32 0.0, %v5715
        %v5717 = vpop.f32.mrf.mxu0
        %5718 = vdwg.mxu0
        %v5720 = vsel %vm3938, %v5354, 0
        %5722 = vmatprep.subr.bf16.mxu0 0
        %5723 = vmatpush1.bf16.msra.mxu0 0
        %5724 = vmatprep.subr.bf16.mxu0 0
        %5725 = vmatpush1.bf16.msra.mxu0 0
        %5726 = vmatprep.subr.bf16.mxu0 0
        %5727 = vmatpush1.bf16.msra.mxu0 0
        %5728 = vmatprep.subr.bf16.mxu0 0
        %5729 = vmatpush1.bf16.msra.mxu0 0
        %5730 = vmatprep.subr.bf16.mxu0 0
        %5731 = vmatpush1.bf16.msra.mxu0 0
        %5732 = vmatprep.subr.bf16.mxu0 0
        %5733 = vmatpush1.bf16.msra.mxu0 0
        %5734 = vmatprep.subr.bf16.mxu0 0
        %5735 = vmatpush1.bf16.msra.mxu0 0
        %5736 = vmatprep.subr.bf16.mxu0 0
        %5737 = vmatpush1.bf16.msra.mxu0 %v504
        %5738 = vmatprep.subr.bf16.mxu0 0
        %5739 = vmatpush2.bf16.msra.mxu0 0
        %5740 = vmatprep.subr.bf16.mxu0 0
        %5741 = vmatpush2.bf16.msra.mxu0 0
        %5742 = vmatprep.subr.bf16.mxu0 0
        %5743 = vmatpush2.bf16.msra.mxu0 0
        %5744 = vmatprep.subr.bf16.mxu0 0
        %5745 = vmatpush2.bf16.msra.mxu0 0
        %5746 = vmatprep.subr.bf16.mxu0 0
        %5747 = vmatpush2.bf16.msra.mxu0 0
        %5748 = vmatprep.subr.bf16.mxu0 0
        %5749 = vmatpush2.bf16.msra.mxu0 0
        %5750 = vmatprep.subr.bf16.mxu0 0
        %5751 = vmatpush2.bf16.msra.mxu0 0
        %5752 = vmatprep.subr.bf16.mxu0 0
        %5753 = vmatpush2.bf16.msra.mxu0 0
        %5754 = vmatprep.mubr.bf16.mxu0 0
        %5755 = vmatmul.mubr.bf16.gmra.mxu0 %v5720
        %v5756 = vpop.f32.mrf.mxu0
        %v5757 = vadd.f32 0.0, %v5756
        %v5758 = vpop.f32.mrf.mxu0
        %v5759 = vpop.f32.mrf.mxu0
        %v5760 = vadd.f32 0.0, %v5759
        %v5761 = vpop.f32.mrf.mxu0
        %5762 = vdwg.mxu0
        %v5764 = vsel %vm3938, %v5355, 0
        %5766 = vmatprep.subr.bf16.mxu0 0
        %5767 = vmatpush1.bf16.msra.mxu0 0
        %5768 = vmatprep.subr.bf16.mxu0 0
        %5769 = vmatpush1.bf16.msra.mxu0 0
        %5770 = vmatprep.subr.bf16.mxu0 0
        %5771 = vmatpush1.bf16.msra.mxu0 0
        %5772 = vmatprep.subr.bf16.mxu0 0
        %5773 = vmatpush1.bf16.msra.mxu0 0
        %5774 = vmatprep.subr.bf16.mxu0 0
        %5775 = vmatpush1.bf16.msra.mxu0 0
        %5776 = vmatprep.subr.bf16.mxu0 0
        %5777 = vmatpush1.bf16.msra.mxu0 0
        %5778 = vmatprep.subr.bf16.mxu0 0
        %5779 = vmatpush1.bf16.msra.mxu0 0
        %5780 = vmatprep.subr.bf16.mxu0 0
        %5781 = vmatpush1.bf16.msra.mxu0 %v634
        %5782 = vmatprep.subr.bf16.mxu0 0
        %5783 = vmatpush2.bf16.msra.mxu0 0
        %5784 = vmatprep.subr.bf16.mxu0 0
        %5785 = vmatpush2.bf16.msra.mxu0 0
        %5786 = vmatprep.subr.bf16.mxu0 0
        %5787 = vmatpush2.bf16.msra.mxu0 0
        %5788 = vmatprep.subr.bf16.mxu0 0
        %5789 = vmatpush2.bf16.msra.mxu0 0
        %5790 = vmatprep.subr.bf16.mxu0 0
        %5791 = vmatpush2.bf16.msra.mxu0 0
        %5792 = vmatprep.subr.bf16.mxu0 0
        %5793 = vmatpush2.bf16.msra.mxu0 0
        %5794 = vmatprep.subr.bf16.mxu0 0
        %5795 = vmatpush2.bf16.msra.mxu0 0
        %5796 = vmatprep.subr.bf16.mxu0 0
        %5797 = vmatpush2.bf16.msra.mxu0 0
        %5798 = vmatprep.mubr.bf16.mxu0 0
        %5799 = vmatmul.mubr.bf16.gmra.mxu0 %v5764
        %v5800 = vpop.f32.mrf.mxu0
        %v5801 = vadd.f32 0.0, %v5800
        %v5802 = vpop.f32.mrf.mxu0
        %v5803 = vpop.f32.mrf.mxu0
        %v5804 = vadd.f32 0.0, %v5803
        %v5805 = vpop.f32.mrf.mxu0
        %5806 = vdwg.mxu0
        %v5808 = vsel %vm3938, %v5356, 0
        %5810 = vmatprep.subr.bf16.mxu0 0
        %5811 = vmatpush1.bf16.msra.mxu0 0
        %5812 = vmatprep.subr.bf16.mxu0 0
        %5813 = vmatpush1.bf16.msra.mxu0 0
        %5814 = vmatprep.subr.bf16.mxu0 0
        %5815 = vmatpush1.bf16.msra.mxu0 0
        %5816 = vmatprep.subr.bf16.mxu0 0
        %5817 = vmatpush1.bf16.msra.mxu0 0
        %5818 = vmatprep.subr.bf16.mxu0 0
        %5819 = vmatpush1.bf16.msra.mxu0 0
        %5820 = vmatprep.subr.bf16.mxu0 0
        %5821 = vmatpush1.bf16.msra.mxu0 0
        %5822 = vmatprep.subr.bf16.mxu0 0
        %5823 = vmatpush1.bf16.msra.mxu0 0
        %5824 = vmatprep.subr.bf16.mxu0 0
        %5825 = vmatpush1.bf16.msra.mxu0 %v636
        %5826 = vmatprep.subr.bf16.mxu0 0
        %5827 = vmatpush2.bf16.msra.mxu0 0
        %5828 = vmatprep.subr.bf16.mxu0 0
        %5829 = vmatpush2.bf16.msra.mxu0 0
        %5830 = vmatprep.subr.bf16.mxu0 0
        %5831 = vmatpush2.bf16.msra.mxu0 0
        %5832 = vmatprep.subr.bf16.mxu0 0
        %5833 = vmatpush2.bf16.msra.mxu0 0
        %5834 = vmatprep.subr.bf16.mxu0 0
        %5835 = vmatpush2.bf16.msra.mxu0 0
        %5836 = vmatprep.subr.bf16.mxu0 0
        %5837 = vmatpush2.bf16.msra.mxu0 0
        %5838 = vmatprep.subr.bf16.mxu0 0
        %5839 = vmatpush2.bf16.msra.mxu0 0
        %5840 = vmatprep.subr.bf16.mxu0 0
        %5841 = vmatpush2.bf16.msra.mxu0 0
        %5842 = vmatprep.mubr.bf16.mxu0 0
        %5843 = vmatmul.mubr.bf16.gmra.mxu0 %v5808
        %v5844 = vpop.f32.mrf.mxu0
        %v5845 = vadd.f32 0.0, %v5844
        %v5846 = vpop.f32.mrf.mxu0
        %v5847 = vpop.f32.mrf.mxu0
        %v5848 = vadd.f32 0.0, %v5847
        %v5849 = vpop.f32.mrf.mxu0
        %5850 = vdwg.mxu0
        %v5852 = vsel %vm3938, %v5357, 0
        %5854 = vmatprep.subr.bf16.mxu0 0
        %5855 = vmatpush1.bf16.msra.mxu0 0
        %5856 = vmatprep.subr.bf16.mxu0 0
        %5857 = vmatpush1.bf16.msra.mxu0 0
        %5858 = vmatprep.subr.bf16.mxu0 0
        %5859 = vmatpush1.bf16.msra.mxu0 0
        %5860 = vmatprep.subr.bf16.mxu0 0
        %5861 = vmatpush1.bf16.msra.mxu0 0
        %5862 = vmatprep.subr.bf16.mxu0 0
        %5863 = vmatpush1.bf16.msra.mxu0 0
        %5864 = vmatprep.subr.bf16.mxu0 0
        %5865 = vmatpush1.bf16.msra.mxu0 0
        %5866 = vmatprep.subr.bf16.mxu0 0
        %5867 = vmatpush1.bf16.msra.mxu0 0
        %5868 = vmatprep.subr.bf16.mxu0 0
        %5869 = vmatpush1.bf16.msra.mxu0 %v638
        %5870 = vmatprep.subr.bf16.mxu0 0
        %5871 = vmatpush2.bf16.msra.mxu0 0
        %5872 = vmatprep.subr.bf16.mxu0 0
        %5873 = vmatpush2.bf16.msra.mxu0 0
        %5874 = vmatprep.subr.bf16.mxu0 0
        %5875 = vmatpush2.bf16.msra.mxu0 0
        %5876 = vmatprep.subr.bf16.mxu0 0
        %5877 = vmatpush2.bf16.msra.mxu0 0
        %5878 = vmatprep.subr.bf16.mxu0 0
        %5879 = vmatpush2.bf16.msra.mxu0 0
        %5880 = vmatprep.subr.bf16.mxu0 0
        %5881 = vmatpush2.bf16.msra.mxu0 0
        %5882 = vmatprep.subr.bf16.mxu0 0
        %5883 = vmatpush2.bf16.msra.mxu0 0
        %5884 = vmatprep.subr.bf16.mxu0 0
        %5885 = vmatpush2.bf16.msra.mxu0 0
        %5886 = vmatprep.mubr.bf16.mxu0 0
        %5887 = vmatmul.mubr.bf16.gmra.mxu0 %v5852
        %v5888 = vpop.f32.mrf.mxu0
        %v5889 = vadd.f32 0.0, %v5888
        %v5890 = vpop.f32.mrf.mxu0
        %v5891 = vpop.f32.mrf.mxu0
        %v5892 = vadd.f32 0.0, %v5891
        %v5893 = vpop.f32.mrf.mxu0
        %5894 = vdwg.mxu0
        %v5896 = vsel %vm3938, %v5358, 0
        %5898 = vmatprep.subr.bf16.mxu0 0
        %5899 = vmatpush1.bf16.msra.mxu0 0
        %5900 = vmatprep.subr.bf16.mxu0 0
        %5901 = vmatpush1.bf16.msra.mxu0 0
        %5902 = vmatprep.subr.bf16.mxu0 0
        %5903 = vmatpush1.bf16.msra.mxu0 0
        %5904 = vmatprep.subr.bf16.mxu0 0
        %5905 = vmatpush1.bf16.msra.mxu0 0
        %5906 = vmatprep.subr.bf16.mxu0 0
        %5907 = vmatpush1.bf16.msra.mxu0 0
        %5908 = vmatprep.subr.bf16.mxu0 0
        %5909 = vmatpush1.bf16.msra.mxu0 0
        %5910 = vmatprep.subr.bf16.mxu0 0
        %5911 = vmatpush1.bf16.msra.mxu0 0
        %5912 = vmatprep.subr.bf16.mxu0 0
        %5913 = vmatpush1.bf16.msra.mxu0 %v640
        %5914 = vmatprep.subr.bf16.mxu0 0
        %5915 = vmatpush2.bf16.msra.mxu0 0
        %5916 = vmatprep.subr.bf16.mxu0 0
        %5917 = vmatpush2.bf16.msra.mxu0 0
        %5918 = vmatprep.subr.bf16.mxu0 0
        %5919 = vmatpush2.bf16.msra.mxu0 0
        %5920 = vmatprep.subr.bf16.mxu0 0
        %5921 = vmatpush2.bf16.msra.mxu0 0
        %5922 = vmatprep.subr.bf16.mxu0 0
        %5923 = vmatpush2.bf16.msra.mxu0 0
        %5924 = vmatprep.subr.bf16.mxu0 0
        %5925 = vmatpush2.bf16.msra.mxu0 0
        %5926 = vmatprep.subr.bf16.mxu0 0
        %5927 = vmatpush2.bf16.msra.mxu0 0
        %5928 = vmatprep.subr.bf16.mxu0 0
        %5929 = vmatpush2.bf16.msra.mxu0 0
        %5930 = vmatprep.mubr.bf16.mxu0 0
        %5931 = vmatmul.mubr.bf16.gmra.mxu0 %v5896
        %v5932 = vpop.f32.mrf.mxu0
        %v5933 = vadd.f32 0.0, %v5932
        %v5934 = vpop.f32.mrf.mxu0
        %v5935 = vpop.f32.mrf.mxu0
        %v5936 = vadd.f32 0.0, %v5935
        %v5937 = vpop.f32.mrf.mxu0
        %5938 = vdwg.mxu0
        %v5940 = vsel %vm3938, %v5359, 0
        %5942 = vmatprep.subr.bf16.mxu0 0
        %5943 = vmatpush1.bf16.msra.mxu0 0
        %5944 = vmatprep.subr.bf16.mxu0 0
        %5945 = vmatpush1.bf16.msra.mxu0 0
        %5946 = vmatprep.subr.bf16.mxu0 0
        %5947 = vmatpush1.bf16.msra.mxu0 0
        %5948 = vmatprep.subr.bf16.mxu0 0
        %5949 = vmatpush1.bf16.msra.mxu0 0
        %5950 = vmatprep.subr.bf16.mxu0 0
        %5951 = vmatpush1.bf16.msra.mxu0 0
        %5952 = vmatprep.subr.bf16.mxu0 0
        %5953 = vmatpush1.bf16.msra.mxu0 0
        %5954 = vmatprep.subr.bf16.mxu0 0
        %5955 = vmatpush1.bf16.msra.mxu0 0
        %5956 = vmatprep.subr.bf16.mxu0 0
        %5957 = vmatpush1.bf16.msra.mxu0 %v642
        %5958 = vmatprep.subr.bf16.mxu0 0
        %5959 = vmatpush2.bf16.msra.mxu0 0
        %5960 = vmatprep.subr.bf16.mxu0 0
        %5961 = vmatpush2.bf16.msra.mxu0 0
        %5962 = vmatprep.subr.bf16.mxu0 0
        %5963 = vmatpush2.bf16.msra.mxu0 0
        %5964 = vmatprep.subr.bf16.mxu0 0
        %5965 = vmatpush2.bf16.msra.mxu0 0
        %5966 = vmatprep.subr.bf16.mxu0 0
        %5967 = vmatpush2.bf16.msra.mxu0 0
        %5968 = vmatprep.subr.bf16.mxu0 0
        %5969 = vmatpush2.bf16.msra.mxu0 0
        %5970 = vmatprep.subr.bf16.mxu0 0
        %5971 = vmatpush2.bf16.msra.mxu0 0
        %5972 = vmatprep.subr.bf16.mxu0 0
        %5973 = vmatpush2.bf16.msra.mxu0 0
        %5974 = vmatprep.mubr.bf16.mxu0 0
        %5975 = vmatmul.mubr.bf16.gmra.mxu0 %v5940
        %v5976 = vpop.f32.mrf.mxu0
        %v5977 = vadd.f32 0.0, %v5976
        %v5978 = vpop.f32.mrf.mxu0
        %v5979 = vpop.f32.mrf.mxu0
        %v5980 = vadd.f32 0.0, %v5979
        %v5981 = vpop.f32.mrf.mxu0
        %5982 = vdwg.mxu0
        %v5984 = vsel %vm3938, %v5360, 0
        %5986 = vmatprep.subr.bf16.mxu0 0
        %5987 = vmatpush1.bf16.msra.mxu0 0
        %5988 = vmatprep.subr.bf16.mxu0 0
        %5989 = vmatpush1.bf16.msra.mxu0 0
        %5990 = vmatprep.subr.bf16.mxu0 0
        %5991 = vmatpush1.bf16.msra.mxu0 0
        %5992 = vmatprep.subr.bf16.mxu0 0
        %5993 = vmatpush1.bf16.msra.mxu0 0
        %5994 = vmatprep.subr.bf16.mxu0 0
        %5995 = vmatpush1.bf16.msra.mxu0 0
        %5996 = vmatprep.subr.bf16.mxu0 0
        %5997 = vmatpush1.bf16.msra.mxu0 0
        %5998 = vmatprep.subr.bf16.mxu0 0
        %5999 = vmatpush1.bf16.msra.mxu0 0
        %6000 = vmatprep.subr.bf16.mxu0 0
        %6001 = vmatpush1.bf16.msra.mxu0 %v644
        %6002 = vmatprep.subr.bf16.mxu0 0
        %6003 = vmatpush2.bf16.msra.mxu0 0
        %6004 = vmatprep.subr.bf16.mxu0 0
        %6005 = vmatpush2.bf16.msra.mxu0 0
        %6006 = vmatprep.subr.bf16.mxu0 0
        %6007 = vmatpush2.bf16.msra.mxu0 0
        %6008 = vmatprep.subr.bf16.mxu0 0
        %6009 = vmatpush2.bf16.msra.mxu0 0
        %6010 = vmatprep.subr.bf16.mxu0 0
        %6011 = vmatpush2.bf16.msra.mxu0 0
        %6012 = vmatprep.subr.bf16.mxu0 0
        %6013 = vmatpush2.bf16.msra.mxu0 0
        %6014 = vmatprep.subr.bf16.mxu0 0
        %6015 = vmatpush2.bf16.msra.mxu0 0
        %6016 = vmatprep.subr.bf16.mxu0 0
        %6017 = vmatpush2.bf16.msra.mxu0 0
        %6018 = vmatprep.mubr.bf16.mxu0 0
        %6019 = vmatmul.mubr.bf16.gmra.mxu0 %v5984
        %v6020 = vpop.f32.mrf.mxu0
        %v6021 = vadd.f32 0.0, %v6020
        %v6022 = vpop.f32.mrf.mxu0
        %v6023 = vpop.f32.mrf.mxu0
        %v6024 = vadd.f32 0.0, %v6023
        %v6025 = vpop.f32.mrf.mxu0
        %6026 = vdwg.mxu0
        %v6028 = vsel %vm3938, %v5361, 0
        %6030 = vmatprep.subr.bf16.mxu0 0
        %6031 = vmatpush1.bf16.msra.mxu0 0
        %6032 = vmatprep.subr.bf16.mxu0 0
        %6033 = vmatpush1.bf16.msra.mxu0 0
        %6034 = vmatprep.subr.bf16.mxu0 0
        %6035 = vmatpush1.bf16.msra.mxu0 0
        %6036 = vmatprep.subr.bf16.mxu0 0
        %6037 = vmatpush1.bf16.msra.mxu0 0
        %6038 = vmatprep.subr.bf16.mxu0 0
        %6039 = vmatpush1.bf16.msra.mxu0 0
        %6040 = vmatprep.subr.bf16.mxu0 0
        %6041 = vmatpush1.bf16.msra.mxu0 0
        %6042 = vmatprep.subr.bf16.mxu0 0
        %6043 = vmatpush1.bf16.msra.mxu0 0
        %6044 = vmatprep.subr.bf16.mxu0 0
        %6045 = vmatpush1.bf16.msra.mxu0 %v646
        %6046 = vmatprep.subr.bf16.mxu0 0
        %6047 = vmatpush2.bf16.msra.mxu0 0
        %6048 = vmatprep.subr.bf16.mxu0 0
        %6049 = vmatpush2.bf16.msra.mxu0 0
        %6050 = vmatprep.subr.bf16.mxu0 0
        %6051 = vmatpush2.bf16.msra.mxu0 0
        %6052 = vmatprep.subr.bf16.mxu0 0
        %6053 = vmatpush2.bf16.msra.mxu0 0
        %6054 = vmatprep.subr.bf16.mxu0 0
        %6055 = vmatpush2.bf16.msra.mxu0 0
        %6056 = vmatprep.subr.bf16.mxu0 0
        %6057 = vmatpush2.bf16.msra.mxu0 0
        %6058 = vmatprep.subr.bf16.mxu0 0
        %6059 = vmatpush2.bf16.msra.mxu0 0
        %6060 = vmatprep.subr.bf16.mxu0 0
        %6061 = vmatpush2.bf16.msra.mxu0 0
        %6062 = vmatprep.mubr.bf16.mxu0 0
        %6063 = vmatmul.mubr.bf16.gmra.mxu0 %v6028
        %v6064 = vpop.f32.mrf.mxu0
        %v6065 = vadd.f32 0.0, %v6064
        %v6066 = vpop.f32.mrf.mxu0
        %v6067 = vpop.f32.mrf.mxu0
        %v6068 = vadd.f32 0.0, %v6067
        %v6069 = vpop.f32.mrf.mxu0
        %6070 = vdwg.mxu0
        %v6072 = vsel %vm3938, %v5362, 0
        %6074 = vmatprep.subr.bf16.mxu0 0
        %6075 = vmatpush1.bf16.msra.mxu0 0
        %6076 = vmatprep.subr.bf16.mxu0 0
        %6077 = vmatpush1.bf16.msra.mxu0 0
        %6078 = vmatprep.subr.bf16.mxu0 0
        %6079 = vmatpush1.bf16.msra.mxu0 0
        %6080 = vmatprep.subr.bf16.mxu0 0
        %6081 = vmatpush1.bf16.msra.mxu0 0
        %6082 = vmatprep.subr.bf16.mxu0 0
        %6083 = vmatpush1.bf16.msra.mxu0 0
        %6084 = vmatprep.subr.bf16.mxu0 0
        %6085 = vmatpush1.bf16.msra.mxu0 0
        %6086 = vmatprep.subr.bf16.mxu0 0
        %6087 = vmatpush1.bf16.msra.mxu0 0
        %6088 = vmatprep.subr.bf16.mxu0 0
        %6089 = vmatpush1.bf16.msra.mxu0 %v648
        %6090 = vmatprep.subr.bf16.mxu0 0
        %6091 = vmatpush2.bf16.msra.mxu0 0
        %6092 = vmatprep.subr.bf16.mxu0 0
        %6093 = vmatpush2.bf16.msra.mxu0 0
        %6094 = vmatprep.subr.bf16.mxu0 0
        %6095 = vmatpush2.bf16.msra.mxu0 0
        %6096 = vmatprep.subr.bf16.mxu0 0
        %6097 = vmatpush2.bf16.msra.mxu0 0
        %6098 = vmatprep.subr.bf16.mxu0 0
        %6099 = vmatpush2.bf16.msra.mxu0 0
        %6100 = vmatprep.subr.bf16.mxu0 0
        %6101 = vmatpush2.bf16.msra.mxu0 0
        %6102 = vmatprep.subr.bf16.mxu0 0
        %6103 = vmatpush2.bf16.msra.mxu0 0
        %6104 = vmatprep.subr.bf16.mxu0 0
        %6105 = vmatpush2.bf16.msra.mxu0 0
        %6106 = vmatprep.mubr.bf16.mxu0 0
        %6107 = vmatmul.mubr.bf16.gmra.mxu0 %v6072
        %v6108 = vpop.f32.mrf.mxu0
        %v6109 = vadd.f32 0.0, %v6108
        %v6110 = vpop.f32.mrf.mxu0
        %v6111 = vpop.f32.mrf.mxu0
        %v6112 = vadd.f32 0.0, %v6111
        %v6113 = vpop.f32.mrf.mxu0
        %6114 = vdwg.mxu0
        %v6116 = vsel %vm3938, %v5363, 0
        %6118 = vmatprep.subr.bf16.mxu0 0
        %6119 = vmatpush1.bf16.msra.mxu0 0
        %6120 = vmatprep.subr.bf16.mxu0 0
        %6121 = vmatpush1.bf16.msra.mxu0 0
        %6122 = vmatprep.subr.bf16.mxu0 0
        %6123 = vmatpush1.bf16.msra.mxu0 0
        %6124 = vmatprep.subr.bf16.mxu0 0
        %6125 = vmatpush1.bf16.msra.mxu0 0
        %6126 = vmatprep.subr.bf16.mxu0 0
        %6127 = vmatpush1.bf16.msra.mxu0 0
        %6128 = vmatprep.subr.bf16.mxu0 0
        %6129 = vmatpush1.bf16.msra.mxu0 0
        %6130 = vmatprep.subr.bf16.mxu0 0
        %6131 = vmatpush1.bf16.msra.mxu0 0
        %6132 = vmatprep.subr.bf16.mxu0 0
        %6133 = vmatpush1.bf16.msra.mxu0 %v658
        %6134 = vmatprep.subr.bf16.mxu0 0
        %6135 = vmatpush2.bf16.msra.mxu0 0
        %6136 = vmatprep.subr.bf16.mxu0 0
        %6137 = vmatpush2.bf16.msra.mxu0 0
        %6138 = vmatprep.subr.bf16.mxu0 0
        %6139 = vmatpush2.bf16.msra.mxu0 0
        %6140 = vmatprep.subr.bf16.mxu0 0
        %6141 = vmatpush2.bf16.msra.mxu0 0
        %6142 = vmatprep.subr.bf16.mxu0 0
        %6143 = vmatpush2.bf16.msra.mxu0 0
        %6144 = vmatprep.subr.bf16.mxu0 0
        %6145 = vmatpush2.bf16.msra.mxu0 0
        %6146 = vmatprep.subr.bf16.mxu0 0
        %6147 = vmatpush2.bf16.msra.mxu0 0
        %6148 = vmatprep.subr.bf16.mxu0 0
        %6149 = vmatpush2.bf16.msra.mxu0 0
        %6150 = vmatprep.mubr.bf16.mxu0 0
        %6151 = vmatmul.mubr.bf16.gmra.mxu0 %v6116
        %v6152 = vpop.f32.mrf.mxu0
        %v6153 = vadd.f32 0.0, %v6152
        %v6154 = vpop.f32.mrf.mxu0
        %v6155 = vpop.f32.mrf.mxu0
        %v6156 = vadd.f32 0.0, %v6155
        %v6157 = vpop.f32.mrf.mxu0
        %6158 = vdwg.mxu0
        %v6160 = vsel %vm3938, %v5364, 0
        %6162 = vmatprep.subr.bf16.mxu0 0
        %6163 = vmatpush1.bf16.msra.mxu0 0
        %6164 = vmatprep.subr.bf16.mxu0 0
        %6165 = vmatpush1.bf16.msra.mxu0 0
        %6166 = vmatprep.subr.bf16.mxu0 0
        %6167 = vmatpush1.bf16.msra.mxu0 0
        %6168 = vmatprep.subr.bf16.mxu0 0
        %6169 = vmatpush1.bf16.msra.mxu0 0
        %6170 = vmatprep.subr.bf16.mxu0 0
        %6171 = vmatpush1.bf16.msra.mxu0 0
        %6172 = vmatprep.subr.bf16.mxu0 0
        %6173 = vmatpush1.bf16.msra.mxu0 0
        %6174 = vmatprep.subr.bf16.mxu0 0
        %6175 = vmatpush1.bf16.msra.mxu0 0
        %6176 = vmatprep.subr.bf16.mxu0 0
        %6177 = vmatpush1.bf16.msra.mxu0 %v660
        %6178 = vmatprep.subr.bf16.mxu0 0
        %6179 = vmatpush2.bf16.msra.mxu0 0
        %6180 = vmatprep.subr.bf16.mxu0 0
        %6181 = vmatpush2.bf16.msra.mxu0 0
        %6182 = vmatprep.subr.bf16.mxu0 0
        %6183 = vmatpush2.bf16.msra.mxu0 0
        %6184 = vmatprep.subr.bf16.mxu0 0
        %6185 = vmatpush2.bf16.msra.mxu0 0
        %6186 = vmatprep.subr.bf16.mxu0 0
        %6187 = vmatpush2.bf16.msra.mxu0 0
        %6188 = vmatprep.subr.bf16.mxu0 0
        %6189 = vmatpush2.bf16.msra.mxu0 0
        %6190 = vmatprep.subr.bf16.mxu0 0
        %6191 = vmatpush2.bf16.msra.mxu0 0
        %6192 = vmatprep.subr.bf16.mxu0 0
        %6193 = vmatpush2.bf16.msra.mxu0 0
        %6194 = vmatprep.mubr.bf16.mxu0 0
        %6195 = vmatmul.mubr.bf16.gmra.mxu0 %v6160
        %v6196 = vpop.f32.mrf.mxu0
        %v6197 = vadd.f32 0.0, %v6196
        %v6198 = vpop.f32.mrf.mxu0
        %v6199 = vpop.f32.mrf.mxu0
        %v6200 = vadd.f32 0.0, %v6199
        %v6201 = vpop.f32.mrf.mxu0
        %6202 = vdwg.mxu0
        %v6204 = vsel %vm3938, %v5365, 0
        %6206 = vmatprep.subr.bf16.mxu0 0
        %6207 = vmatpush1.bf16.msra.mxu0 0
        %6208 = vmatprep.subr.bf16.mxu0 0
        %6209 = vmatpush1.bf16.msra.mxu0 0
        %6210 = vmatprep.subr.bf16.mxu0 0
        %6211 = vmatpush1.bf16.msra.mxu0 0
        %6212 = vmatprep.subr.bf16.mxu0 0
        %6213 = vmatpush1.bf16.msra.mxu0 0
        %6214 = vmatprep.subr.bf16.mxu0 0
        %6215 = vmatpush1.bf16.msra.mxu0 0
        %6216 = vmatprep.subr.bf16.mxu0 0
        %6217 = vmatpush1.bf16.msra.mxu0 0
        %6218 = vmatprep.subr.bf16.mxu0 0
        %6219 = vmatpush1.bf16.msra.mxu0 0
        %6220 = vmatprep.subr.bf16.mxu0 0
        %6221 = vmatpush1.bf16.msra.mxu0 %v662
        %6222 = vmatprep.subr.bf16.mxu0 0
        %6223 = vmatpush2.bf16.msra.mxu0 0
        %6224 = vmatprep.subr.bf16.mxu0 0
        %6225 = vmatpush2.bf16.msra.mxu0 0
        %6226 = vmatprep.subr.bf16.mxu0 0
        %6227 = vmatpush2.bf16.msra.mxu0 0
        %6228 = vmatprep.subr.bf16.mxu0 0
        %6229 = vmatpush2.bf16.msra.mxu0 0
        %6230 = vmatprep.subr.bf16.mxu0 0
        %6231 = vmatpush2.bf16.msra.mxu0 0
        %6232 = vmatprep.subr.bf16.mxu0 0
        %6233 = vmatpush2.bf16.msra.mxu0 0
        %6234 = vmatprep.subr.bf16.mxu0 0
        %6235 = vmatpush2.bf16.msra.mxu0 0
        %6236 = vmatprep.subr.bf16.mxu0 0
        %6237 = vmatpush2.bf16.msra.mxu0 0
        %6238 = vmatprep.mubr.bf16.mxu0 0
        %6239 = vmatmul.mubr.bf16.gmra.mxu0 %v6204
        %v6240 = vpop.f32.mrf.mxu0
        %v6241 = vadd.f32 0.0, %v6240
        %v6242 = vpop.f32.mrf.mxu0
        %v6243 = vpop.f32.mrf.mxu0
        %v6244 = vadd.f32 0.0, %v6243
        %v6245 = vpop.f32.mrf.mxu0
        %6246 = vdwg.mxu0
        %v6248 = vsel %vm3938, %v5366, 0
        %6250 = vmatprep.subr.bf16.mxu0 0
        %6251 = vmatpush1.bf16.msra.mxu0 0
        %6252 = vmatprep.subr.bf16.mxu0 0
        %6253 = vmatpush1.bf16.msra.mxu0 0
        %6254 = vmatprep.subr.bf16.mxu0 0
        %6255 = vmatpush1.bf16.msra.mxu0 0
        %6256 = vmatprep.subr.bf16.mxu0 0
        %6257 = vmatpush1.bf16.msra.mxu0 0
        %6258 = vmatprep.subr.bf16.mxu0 0
        %6259 = vmatpush1.bf16.msra.mxu0 0
        %6260 = vmatprep.subr.bf16.mxu0 0
        %6261 = vmatpush1.bf16.msra.mxu0 0
        %6262 = vmatprep.subr.bf16.mxu0 0
        %6263 = vmatpush1.bf16.msra.mxu0 0
        %6264 = vmatprep.subr.bf16.mxu0 0
        %6265 = vmatpush1.bf16.msra.mxu0 %v664
        %6266 = vmatprep.subr.bf16.mxu0 0
        %6267 = vmatpush2.bf16.msra.mxu0 0
        %6268 = vmatprep.subr.bf16.mxu0 0
        %6269 = vmatpush2.bf16.msra.mxu0 0
        %6270 = vmatprep.subr.bf16.mxu0 0
        %6271 = vmatpush2.bf16.msra.mxu0 0
        %6272 = vmatprep.subr.bf16.mxu0 0
        %6273 = vmatpush2.bf16.msra.mxu0 0
        %6274 = vmatprep.subr.bf16.mxu0 0
        %6275 = vmatpush2.bf16.msra.mxu0 0
        %6276 = vmatprep.subr.bf16.mxu0 0
        %6277 = vmatpush2.bf16.msra.mxu0 0
        %6278 = vmatprep.subr.bf16.mxu0 0
        %6279 = vmatpush2.bf16.msra.mxu0 0
        %6280 = vmatprep.subr.bf16.mxu0 0
        %6281 = vmatpush2.bf16.msra.mxu0 0
        %6282 = vmatprep.mubr.bf16.mxu0 0
        %6283 = vmatmul.mubr.bf16.gmra.mxu0 %v6248
        %v6284 = vpop.f32.mrf.mxu0
        %v6285 = vadd.f32 0.0, %v6284
        %v6286 = vpop.f32.mrf.mxu0
        %v6287 = vpop.f32.mrf.mxu0
        %v6288 = vadd.f32 0.0, %v6287
        %v6289 = vpop.f32.mrf.mxu0
        %6290 = vdwg.mxu0
        %v6292 = vsel %vm3938, %v5367, 0
        %6294 = vmatprep.subr.bf16.mxu0 0
        %6295 = vmatpush1.bf16.msra.mxu0 0
        %6296 = vmatprep.subr.bf16.mxu0 0
        %6297 = vmatpush1.bf16.msra.mxu0 0
        %6298 = vmatprep.subr.bf16.mxu0 0
        %6299 = vmatpush1.bf16.msra.mxu0 0
        %6300 = vmatprep.subr.bf16.mxu0 0
        %6301 = vmatpush1.bf16.msra.mxu0 0
        %6302 = vmatprep.subr.bf16.mxu0 0
        %6303 = vmatpush1.bf16.msra.mxu0 0
        %6304 = vmatprep.subr.bf16.mxu0 0
        %6305 = vmatpush1.bf16.msra.mxu0 0
        %6306 = vmatprep.subr.bf16.mxu0 0
        %6307 = vmatpush1.bf16.msra.mxu0 0
        %6308 = vmatprep.subr.bf16.mxu0 0
        %6309 = vmatpush1.bf16.msra.mxu0 %v666
        %6310 = vmatprep.subr.bf16.mxu0 0
        %6311 = vmatpush2.bf16.msra.mxu0 0
        %6312 = vmatprep.subr.bf16.mxu0 0
        %6313 = vmatpush2.bf16.msra.mxu0 0
        %6314 = vmatprep.subr.bf16.mxu0 0
        %6315 = vmatpush2.bf16.msra.mxu0 0
        %6316 = vmatprep.subr.bf16.mxu0 0
        %6317 = vmatpush2.bf16.msra.mxu0 0
        %6318 = vmatprep.subr.bf16.mxu0 0
        %6319 = vmatpush2.bf16.msra.mxu0 0
        %6320 = vmatprep.subr.bf16.mxu0 0
        %6321 = vmatpush2.bf16.msra.mxu0 0
        %6322 = vmatprep.subr.bf16.mxu0 0
        %6323 = vmatpush2.bf16.msra.mxu0 0
        %6324 = vmatprep.subr.bf16.mxu0 0
        %6325 = vmatpush2.bf16.msra.mxu0 0
        %6326 = vmatprep.mubr.bf16.mxu0 0
        %6327 = vmatmul.mubr.bf16.gmra.mxu0 %v6292
        %v6328 = vpop.f32.mrf.mxu0
        %v6329 = vadd.f32 0.0, %v6328
        %v6330 = vpop.f32.mrf.mxu0
        %v6331 = vpop.f32.mrf.mxu0
        %v6332 = vadd.f32 0.0, %v6331
        %v6333 = vpop.f32.mrf.mxu0
        %6334 = vdwg.mxu0
        %v6336 = vsel %vm3938, %v5368, 0
        %6338 = vmatprep.subr.bf16.mxu0 0
        %6339 = vmatpush1.bf16.msra.mxu0 0
        %6340 = vmatprep.subr.bf16.mxu0 0
        %6341 = vmatpush1.bf16.msra.mxu0 0
        %6342 = vmatprep.subr.bf16.mxu0 0
        %6343 = vmatpush1.bf16.msra.mxu0 0
        %6344 = vmatprep.subr.bf16.mxu0 0
        %6345 = vmatpush1.bf16.msra.mxu0 0
        %6346 = vmatprep.subr.bf16.mxu0 0
        %6347 = vmatpush1.bf16.msra.mxu0 0
        %6348 = vmatprep.subr.bf16.mxu0 0
        %6349 = vmatpush1.bf16.msra.mxu0 0
        %6350 = vmatprep.subr.bf16.mxu0 0
        %6351 = vmatpush1.bf16.msra.mxu0 0
        %6352 = vmatprep.subr.bf16.mxu0 0
        %6353 = vmatpush1.bf16.msra.mxu0 %v668
        %6354 = vmatprep.subr.bf16.mxu0 0
        %6355 = vmatpush2.bf16.msra.mxu0 0
        %6356 = vmatprep.subr.bf16.mxu0 0
        %6357 = vmatpush2.bf16.msra.mxu0 0
        %6358 = vmatprep.subr.bf16.mxu0 0
        %6359 = vmatpush2.bf16.msra.mxu0 0
        %6360 = vmatprep.subr.bf16.mxu0 0
        %6361 = vmatpush2.bf16.msra.mxu0 0
        %6362 = vmatprep.subr.bf16.mxu0 0
        %6363 = vmatpush2.bf16.msra.mxu0 0
        %6364 = vmatprep.subr.bf16.mxu0 0
        %6365 = vmatpush2.bf16.msra.mxu0 0
        %6366 = vmatprep.subr.bf16.mxu0 0
        %6367 = vmatpush2.bf16.msra.mxu0 0
        %6368 = vmatprep.subr.bf16.mxu0 0
        %6369 = vmatpush2.bf16.msra.mxu0 0
        %6370 = vmatprep.mubr.bf16.mxu0 0
        %6371 = vmatmul.mubr.bf16.gmra.mxu0 %v6336
        %v6372 = vpop.f32.mrf.mxu0
        %v6373 = vadd.f32 0.0, %v6372
        %v6374 = vpop.f32.mrf.mxu0
        %v6375 = vpop.f32.mrf.mxu0
        %v6376 = vadd.f32 0.0, %v6375
        %v6377 = vpop.f32.mrf.mxu0
        %6378 = vdwg.mxu0
        %v6380 = vsel %vm3938, %v5369, 0
        %6382 = vmatprep.subr.bf16.mxu0 0
        %6383 = vmatpush1.bf16.msra.mxu0 0
        %6384 = vmatprep.subr.bf16.mxu0 0
        %6385 = vmatpush1.bf16.msra.mxu0 0
        %6386 = vmatprep.subr.bf16.mxu0 0
        %6387 = vmatpush1.bf16.msra.mxu0 0
        %6388 = vmatprep.subr.bf16.mxu0 0
        %6389 = vmatpush1.bf16.msra.mxu0 0
        %6390 = vmatprep.subr.bf16.mxu0 0
        %6391 = vmatpush1.bf16.msra.mxu0 0
        %6392 = vmatprep.subr.bf16.mxu0 0
        %6393 = vmatpush1.bf16.msra.mxu0 0
        %6394 = vmatprep.subr.bf16.mxu0 0
        %6395 = vmatpush1.bf16.msra.mxu0 0
        %6396 = vmatprep.subr.bf16.mxu0 0
        %6397 = vmatpush1.bf16.msra.mxu0 %v670
        %6398 = vmatprep.subr.bf16.mxu0 0
        %6399 = vmatpush2.bf16.msra.mxu0 0
        %6400 = vmatprep.subr.bf16.mxu0 0
        %6401 = vmatpush2.bf16.msra.mxu0 0
        %6402 = vmatprep.subr.bf16.mxu0 0
        %6403 = vmatpush2.bf16.msra.mxu0 0
        %6404 = vmatprep.subr.bf16.mxu0 0
        %6405 = vmatpush2.bf16.msra.mxu0 0
        %6406 = vmatprep.subr.bf16.mxu0 0
        %6407 = vmatpush2.bf16.msra.mxu0 0
        %6408 = vmatprep.subr.bf16.mxu0 0
        %6409 = vmatpush2.bf16.msra.mxu0 0
        %6410 = vmatprep.subr.bf16.mxu0 0
        %6411 = vmatpush2.bf16.msra.mxu0 0
        %6412 = vmatprep.subr.bf16.mxu0 0
        %6413 = vmatpush2.bf16.msra.mxu0 0
        %6414 = vmatprep.mubr.bf16.mxu0 0
        %6415 = vmatmul.mubr.bf16.gmra.mxu0 %v6380
        %v6416 = vpop.f32.mrf.mxu0
        %v6417 = vadd.f32 0.0, %v6416
        %v6418 = vpop.f32.mrf.mxu0
        %v6419 = vpop.f32.mrf.mxu0
        %v6420 = vadd.f32 0.0, %v6419
        %v6421 = vpop.f32.mrf.mxu0
        %6422 = vdwg.mxu0
        %v6424 = vsel %vm3938, %v5370, 0
        %6426 = vmatprep.subr.bf16.mxu0 0
        %6427 = vmatpush1.bf16.msra.mxu0 0
        %6428 = vmatprep.subr.bf16.mxu0 0
        %6429 = vmatpush1.bf16.msra.mxu0 0
        %6430 = vmatprep.subr.bf16.mxu0 0
        %6431 = vmatpush1.bf16.msra.mxu0 0
        %6432 = vmatprep.subr.bf16.mxu0 0
        %6433 = vmatpush1.bf16.msra.mxu0 0
        %6434 = vmatprep.subr.bf16.mxu0 0
        %6435 = vmatpush1.bf16.msra.mxu0 0
        %6436 = vmatprep.subr.bf16.mxu0 0
        %6437 = vmatpush1.bf16.msra.mxu0 0
        %6438 = vmatprep.subr.bf16.mxu0 0
        %6439 = vmatpush1.bf16.msra.mxu0 0
        %6440 = vmatprep.subr.bf16.mxu0 0
        %6441 = vmatpush1.bf16.msra.mxu0 %v672
        %6442 = vmatprep.subr.bf16.mxu0 0
        %6443 = vmatpush2.bf16.msra.mxu0 0
        %6444 = vmatprep.subr.bf16.mxu0 0
        %6445 = vmatpush2.bf16.msra.mxu0 0
        %6446 = vmatprep.subr.bf16.mxu0 0
        %6447 = vmatpush2.bf16.msra.mxu0 0
        %6448 = vmatprep.subr.bf16.mxu0 0
        %6449 = vmatpush2.bf16.msra.mxu0 0
        %6450 = vmatprep.subr.bf16.mxu0 0
        %6451 = vmatpush2.bf16.msra.mxu0 0
        %6452 = vmatprep.subr.bf16.mxu0 0
        %6453 = vmatpush2.bf16.msra.mxu0 0
        %6454 = vmatprep.subr.bf16.mxu0 0
        %6455 = vmatpush2.bf16.msra.mxu0 0
        %6456 = vmatprep.subr.bf16.mxu0 0
        %6457 = vmatpush2.bf16.msra.mxu0 0
        %6458 = vmatprep.mubr.bf16.mxu0 0
        %6459 = vmatmul.mubr.bf16.gmra.mxu0 %v6424
        %v6460 = vpop.f32.mrf.mxu0
        %v6461 = vadd.f32 0.0, %v6460
        %v6462 = vpop.f32.mrf.mxu0
        %v6463 = vpop.f32.mrf.mxu0
        %v6464 = vadd.f32 0.0, %v6463
        %v6465 = vpop.f32.mrf.mxu0
        %6466 = vdwg.mxu0
        %v6468 = vsel %vm3938, %v5371, 0
        %6470 = vmatprep.subr.bf16.mxu0 0
        %6471 = vmatpush1.bf16.msra.mxu0 0
        %6472 = vmatprep.subr.bf16.mxu0 0
        %6473 = vmatpush1.bf16.msra.mxu0 0
        %6474 = vmatprep.subr.bf16.mxu0 0
        %6475 = vmatpush1.bf16.msra.mxu0 0
        %6476 = vmatprep.subr.bf16.mxu0 0
        %6477 = vmatpush1.bf16.msra.mxu0 0
        %6478 = vmatprep.subr.bf16.mxu0 0
        %6479 = vmatpush1.bf16.msra.mxu0 0
        %6480 = vmatprep.subr.bf16.mxu0 0
        %6481 = vmatpush1.bf16.msra.mxu0 0
        %6482 = vmatprep.subr.bf16.mxu0 0
        %6483 = vmatpush1.bf16.msra.mxu0 0
        %6484 = vmatprep.subr.bf16.mxu0 0
        %6485 = vmatpush1.bf16.msra.mxu0 %v682
        %6486 = vmatprep.subr.bf16.mxu0 0
        %6487 = vmatpush2.bf16.msra.mxu0 0
        %6488 = vmatprep.subr.bf16.mxu0 0
        %6489 = vmatpush2.bf16.msra.mxu0 0
        %6490 = vmatprep.subr.bf16.mxu0 0
        %6491 = vmatpush2.bf16.msra.mxu0 0
        %6492 = vmatprep.subr.bf16.mxu0 0
        %6493 = vmatpush2.bf16.msra.mxu0 0
        %6494 = vmatprep.subr.bf16.mxu0 0
        %6495 = vmatpush2.bf16.msra.mxu0 0
        %6496 = vmatprep.subr.bf16.mxu0 0
        %6497 = vmatpush2.bf16.msra.mxu0 0
        %6498 = vmatprep.subr.bf16.mxu0 0
        %6499 = vmatpush2.bf16.msra.mxu0 0
        %6500 = vmatprep.subr.bf16.mxu0 0
        %6501 = vmatpush2.bf16.msra.mxu0 0
        %6502 = vmatprep.mubr.bf16.mxu0 0
        %6503 = vmatmul.mubr.bf16.gmra.mxu0 %v6468
        %v6504 = vpop.f32.mrf.mxu0
        %v6505 = vadd.f32 0.0, %v6504
        %v6506 = vpop.f32.mrf.mxu0
        %v6507 = vpop.f32.mrf.mxu0
        %v6508 = vadd.f32 0.0, %v6507
        %v6509 = vpop.f32.mrf.mxu0
        %6510 = vdwg.mxu0
        %v6512 = vsel %vm3938, %v5372, 0
        %6514 = vmatprep.subr.bf16.mxu0 0
        %6515 = vmatpush1.bf16.msra.mxu0 0
        %6516 = vmatprep.subr.bf16.mxu0 0
        %6517 = vmatpush1.bf16.msra.mxu0 0
        %6518 = vmatprep.subr.bf16.mxu0 0
        %6519 = vmatpush1.bf16.msra.mxu0 0
        %6520 = vmatprep.subr.bf16.mxu0 0
        %6521 = vmatpush1.bf16.msra.mxu0 0
        %6522 = vmatprep.subr.bf16.mxu0 0
        %6523 = vmatpush1.bf16.msra.mxu0 0
        %6524 = vmatprep.subr.bf16.mxu0 0
        %6525 = vmatpush1.bf16.msra.mxu0 0
        %6526 = vmatprep.subr.bf16.mxu0 0
        %6527 = vmatpush1.bf16.msra.mxu0 0
        %6528 = vmatprep.subr.bf16.mxu0 0
        %6529 = vmatpush1.bf16.msra.mxu0 %v684
        %6530 = vmatprep.subr.bf16.mxu0 0
        %6531 = vmatpush2.bf16.msra.mxu0 0
        %6532 = vmatprep.subr.bf16.mxu0 0
        %6533 = vmatpush2.bf16.msra.mxu0 0
        %6534 = vmatprep.subr.bf16.mxu0 0
        %6535 = vmatpush2.bf16.msra.mxu0 0
        %6536 = vmatprep.subr.bf16.mxu0 0
        %6537 = vmatpush2.bf16.msra.mxu0 0
        %6538 = vmatprep.subr.bf16.mxu0 0
        %6539 = vmatpush2.bf16.msra.mxu0 0
        %6540 = vmatprep.subr.bf16.mxu0 0
        %6541 = vmatpush2.bf16.msra.mxu0 0
        %6542 = vmatprep.subr.bf16.mxu0 0
        %6543 = vmatpush2.bf16.msra.mxu0 0
        %6544 = vmatprep.subr.bf16.mxu0 0
        %6545 = vmatpush2.bf16.msra.mxu0 0
        %6546 = vmatprep.mubr.bf16.mxu0 0
        %6547 = vmatmul.mubr.bf16.gmra.mxu0 %v6512
        %v6548 = vpop.f32.mrf.mxu0
        %v6549 = vadd.f32 0.0, %v6548
        %v6550 = vpop.f32.mrf.mxu0
        %v6551 = vpop.f32.mrf.mxu0
        %v6552 = vadd.f32 0.0, %v6551
        %v6553 = vpop.f32.mrf.mxu0
        %6554 = vdwg.mxu0
        %v6556 = vsel %vm3938, %v5373, 0
        %6558 = vmatprep.subr.bf16.mxu0 0
        %6559 = vmatpush1.bf16.msra.mxu0 0
        %6560 = vmatprep.subr.bf16.mxu0 0
        %6561 = vmatpush1.bf16.msra.mxu0 0
        %6562 = vmatprep.subr.bf16.mxu0 0
        %6563 = vmatpush1.bf16.msra.mxu0 0
        %6564 = vmatprep.subr.bf16.mxu0 0
        %6565 = vmatpush1.bf16.msra.mxu0 0
        %6566 = vmatprep.subr.bf16.mxu0 0
        %6567 = vmatpush1.bf16.msra.mxu0 0
        %6568 = vmatprep.subr.bf16.mxu0 0
        %6569 = vmatpush1.bf16.msra.mxu0 0
        %6570 = vmatprep.subr.bf16.mxu0 0
        %6571 = vmatpush1.bf16.msra.mxu0 0
        %6572 = vmatprep.subr.bf16.mxu0 0
        %6573 = vmatpush1.bf16.msra.mxu0 %v686
        %6574 = vmatprep.subr.bf16.mxu0 0
        %6575 = vmatpush2.bf16.msra.mxu0 0
        %6576 = vmatprep.subr.bf16.mxu0 0
        %6577 = vmatpush2.bf16.msra.mxu0 0
        %6578 = vmatprep.subr.bf16.mxu0 0
        %6579 = vmatpush2.bf16.msra.mxu0 0
        %6580 = vmatprep.subr.bf16.mxu0 0
        %6581 = vmatpush2.bf16.msra.mxu0 0
        %6582 = vmatprep.subr.bf16.mxu0 0
        %6583 = vmatpush2.bf16.msra.mxu0 0
        %6584 = vmatprep.subr.bf16.mxu0 0
        %6585 = vmatpush2.bf16.msra.mxu0 0
        %6586 = vmatprep.subr.bf16.mxu0 0
        %6587 = vmatpush2.bf16.msra.mxu0 0
        %6588 = vmatprep.subr.bf16.mxu0 0
        %6589 = vmatpush2.bf16.msra.mxu0 0
        %6590 = vmatprep.mubr.bf16.mxu0 0
        %6591 = vmatmul.mubr.bf16.gmra.mxu0 %v6556
        %v6592 = vpop.f32.mrf.mxu0
        %v6593 = vadd.f32 0.0, %v6592
        %v6594 = vpop.f32.mrf.mxu0
        %v6595 = vpop.f32.mrf.mxu0
        %v6596 = vadd.f32 0.0, %v6595
        %v6597 = vpop.f32.mrf.mxu0
        %6598 = vdwg.mxu0
        %v6600 = vsel %vm3938, %v5374, 0
        %6602 = vmatprep.subr.bf16.mxu0 0
        %6603 = vmatpush1.bf16.msra.mxu0 0
        %6604 = vmatprep.subr.bf16.mxu0 0
        %6605 = vmatpush1.bf16.msra.mxu0 0
        %6606 = vmatprep.subr.bf16.mxu0 0
        %6607 = vmatpush1.bf16.msra.mxu0 0
        %6608 = vmatprep.subr.bf16.mxu0 0
        %6609 = vmatpush1.bf16.msra.mxu0 0
        %6610 = vmatprep.subr.bf16.mxu0 0
        %6611 = vmatpush1.bf16.msra.mxu0 0
        %6612 = vmatprep.subr.bf16.mxu0 0
        %6613 = vmatpush1.bf16.msra.mxu0 0
        %6614 = vmatprep.subr.bf16.mxu0 0
        %6615 = vmatpush1.bf16.msra.mxu0 0
        %6616 = vmatprep.subr.bf16.mxu0 0
        %6617 = vmatpush1.bf16.msra.mxu0 %v688
        %6618 = vmatprep.subr.bf16.mxu0 0
        %6619 = vmatpush2.bf16.msra.mxu0 0
        %6620 = vmatprep.subr.bf16.mxu0 0
        %6621 = vmatpush2.bf16.msra.mxu0 0
        %6622 = vmatprep.subr.bf16.mxu0 0
        %6623 = vmatpush2.bf16.msra.mxu0 0
        %6624 = vmatprep.subr.bf16.mxu0 0
        %6625 = vmatpush2.bf16.msra.mxu0 0
        %6626 = vmatprep.subr.bf16.mxu0 0
        %6627 = vmatpush2.bf16.msra.mxu0 0
        %6628 = vmatprep.subr.bf16.mxu0 0
        %6629 = vmatpush2.bf16.msra.mxu0 0
        %6630 = vmatprep.subr.bf16.mxu0 0
        %6631 = vmatpush2.bf16.msra.mxu0 0
        %6632 = vmatprep.subr.bf16.mxu0 0
        %6633 = vmatpush2.bf16.msra.mxu0 0
        %6634 = vmatprep.mubr.bf16.mxu0 0
        %6635 = vmatmul.mubr.bf16.gmra.mxu0 %v6600
        %v6636 = vpop.f32.mrf.mxu0
        %v6637 = vadd.f32 0.0, %v6636
        %v6638 = vpop.f32.mrf.mxu0
        %v6639 = vpop.f32.mrf.mxu0
        %v6640 = vadd.f32 0.0, %v6639
        %v6641 = vpop.f32.mrf.mxu0
        %6642 = vdwg.mxu0
        %v6644 = vsel %vm3938, %v5375, 0
        %6646 = vmatprep.subr.bf16.mxu0 0
        %6647 = vmatpush1.bf16.msra.mxu0 0
        %6648 = vmatprep.subr.bf16.mxu0 0
        %6649 = vmatpush1.bf16.msra.mxu0 0
        %6650 = vmatprep.subr.bf16.mxu0 0
        %6651 = vmatpush1.bf16.msra.mxu0 0
        %6652 = vmatprep.subr.bf16.mxu0 0
        %6653 = vmatpush1.bf16.msra.mxu0 0
        %6654 = vmatprep.subr.bf16.mxu0 0
        %6655 = vmatpush1.bf16.msra.mxu0 0
        %6656 = vmatprep.subr.bf16.mxu0 0
        %6657 = vmatpush1.bf16.msra.mxu0 0
        %6658 = vmatprep.subr.bf16.mxu0 0
        %6659 = vmatpush1.bf16.msra.mxu0 0
        %6660 = vmatprep.subr.bf16.mxu0 0
        %6661 = vmatpush1.bf16.msra.mxu0 %v690
        %6662 = vmatprep.subr.bf16.mxu0 0
        %6663 = vmatpush2.bf16.msra.mxu0 0
        %6664 = vmatprep.subr.bf16.mxu0 0
        %6665 = vmatpush2.bf16.msra.mxu0 0
        %6666 = vmatprep.subr.bf16.mxu0 0
        %6667 = vmatpush2.bf16.msra.mxu0 0
        %6668 = vmatprep.subr.bf16.mxu0 0
        %6669 = vmatpush2.bf16.msra.mxu0 0
        %6670 = vmatprep.subr.bf16.mxu0 0
        %6671 = vmatpush2.bf16.msra.mxu0 0
        %6672 = vmatprep.subr.bf16.mxu0 0
        %6673 = vmatpush2.bf16.msra.mxu0 0
        %6674 = vmatprep.subr.bf16.mxu0 0
        %6675 = vmatpush2.bf16.msra.mxu0 0
        %6676 = vmatprep.subr.bf16.mxu0 0
        %6677 = vmatpush2.bf16.msra.mxu0 0
        %6678 = vmatprep.mubr.bf16.mxu0 0
        %6679 = vmatmul.mubr.bf16.gmra.mxu0 %v6644
        %v6680 = vpop.f32.mrf.mxu0
        %v6681 = vadd.f32 0.0, %v6680
        %v6682 = vpop.f32.mrf.mxu0
        %v6683 = vpop.f32.mrf.mxu0
        %v6684 = vadd.f32 0.0, %v6683
        %v6685 = vpop.f32.mrf.mxu0
        %6686 = vdwg.mxu0
        %v6688 = vsel %vm3938, %v5376, 0
        %6690 = vmatprep.subr.bf16.mxu0 0
        %6691 = vmatpush1.bf16.msra.mxu0 0
        %6692 = vmatprep.subr.bf16.mxu0 0
        %6693 = vmatpush1.bf16.msra.mxu0 0
        %6694 = vmatprep.subr.bf16.mxu0 0
        %6695 = vmatpush1.bf16.msra.mxu0 0
        %6696 = vmatprep.subr.bf16.mxu0 0
        %6697 = vmatpush1.bf16.msra.mxu0 0
        %6698 = vmatprep.subr.bf16.mxu0 0
        %6699 = vmatpush1.bf16.msra.mxu0 0
        %6700 = vmatprep.subr.bf16.mxu0 0
        %6701 = vmatpush1.bf16.msra.mxu0 0
        %6702 = vmatprep.subr.bf16.mxu0 0
        %6703 = vmatpush1.bf16.msra.mxu0 0
        %6704 = vmatprep.subr.bf16.mxu0 0
        %6705 = vmatpush1.bf16.msra.mxu0 %v692
        %6706 = vmatprep.subr.bf16.mxu0 0
        %6707 = vmatpush2.bf16.msra.mxu0 0
        %6708 = vmatprep.subr.bf16.mxu0 0
        %6709 = vmatpush2.bf16.msra.mxu0 0
        %6710 = vmatprep.subr.bf16.mxu0 0
        %6711 = vmatpush2.bf16.msra.mxu0 0
        %6712 = vmatprep.subr.bf16.mxu0 0
        %6713 = vmatpush2.bf16.msra.mxu0 0
        %6714 = vmatprep.subr.bf16.mxu0 0
        %6715 = vmatpush2.bf16.msra.mxu0 0
        %6716 = vmatprep.subr.bf16.mxu0 0
        %6717 = vmatpush2.bf16.msra.mxu0 0
        %6718 = vmatprep.subr.bf16.mxu0 0
        %6719 = vmatpush2.bf16.msra.mxu0 0
        %6720 = vmatprep.subr.bf16.mxu0 0
        %6721 = vmatpush2.bf16.msra.mxu0 0
        %6722 = vmatprep.mubr.bf16.mxu0 0
        %6723 = vmatmul.mubr.bf16.gmra.mxu0 %v6688
        %v6724 = vpop.f32.mrf.mxu0
        %v6725 = vadd.f32 0.0, %v6724
        %v6726 = vpop.f32.mrf.mxu0
        %v6727 = vpop.f32.mrf.mxu0
        %v6728 = vadd.f32 0.0, %v6727
        %v6729 = vpop.f32.mrf.mxu0
        %6730 = vdwg.mxu0
        %v6732 = vsel %vm3938, %v5377, 0
        %6734 = vmatprep.subr.bf16.mxu0 0
        %6735 = vmatpush1.bf16.msra.mxu0 0
        %6736 = vmatprep.subr.bf16.mxu0 0
        %6737 = vmatpush1.bf16.msra.mxu0 0
        %6738 = vmatprep.subr.bf16.mxu0 0
        %6739 = vmatpush1.bf16.msra.mxu0 0
        %6740 = vmatprep.subr.bf16.mxu0 0
        %6741 = vmatpush1.bf16.msra.mxu0 0
        %6742 = vmatprep.subr.bf16.mxu0 0
        %6743 = vmatpush1.bf16.msra.mxu0 0
        %6744 = vmatprep.subr.bf16.mxu0 0
        %6745 = vmatpush1.bf16.msra.mxu0 0
        %6746 = vmatprep.subr.bf16.mxu0 0
        %6747 = vmatpush1.bf16.msra.mxu0 0
        %6748 = vmatprep.subr.bf16.mxu0 0
        %6749 = vmatpush1.bf16.msra.mxu0 %v694
        %6750 = vmatprep.subr.bf16.mxu0 0
        %6751 = vmatpush2.bf16.msra.mxu0 0
        %6752 = vmatprep.subr.bf16.mxu0 0
        %6753 = vmatpush2.bf16.msra.mxu0 0
        %6754 = vmatprep.subr.bf16.mxu0 0
        %6755 = vmatpush2.bf16.msra.mxu0 0
        %6756 = vmatprep.subr.bf16.mxu0 0
        %6757 = vmatpush2.bf16.msra.mxu0 0
        %6758 = vmatprep.subr.bf16.mxu0 0
        %6759 = vmatpush2.bf16.msra.mxu0 0
        %6760 = vmatprep.subr.bf16.mxu0 0
        %6761 = vmatpush2.bf16.msra.mxu0 0
        %6762 = vmatprep.subr.bf16.mxu0 0
        %6763 = vmatpush2.bf16.msra.mxu0 0
        %6764 = vmatprep.subr.bf16.mxu0 0
        %6765 = vmatpush2.bf16.msra.mxu0 0
        %6766 = vmatprep.mubr.bf16.mxu0 0
        %6767 = vmatmul.mubr.bf16.gmra.mxu0 %v6732
        %v6768 = vpop.f32.mrf.mxu0
        %v6769 = vadd.f32 0.0, %v6768
        %v6770 = vpop.f32.mrf.mxu0
        %v6771 = vpop.f32.mrf.mxu0
        %v6772 = vadd.f32 0.0, %v6771
        %v6773 = vpop.f32.mrf.mxu0
        %6774 = vdwg.mxu0
        %v6776 = vsel %vm3938, %v5378, 0
        %6778 = vmatprep.subr.bf16.mxu0 0
        %6779 = vmatpush1.bf16.msra.mxu0 0
        %6780 = vmatprep.subr.bf16.mxu0 0
        %6781 = vmatpush1.bf16.msra.mxu0 0
        %6782 = vmatprep.subr.bf16.mxu0 0
        %6783 = vmatpush1.bf16.msra.mxu0 0
        %6784 = vmatprep.subr.bf16.mxu0 0
        %6785 = vmatpush1.bf16.msra.mxu0 0
        %6786 = vmatprep.subr.bf16.mxu0 0
        %6787 = vmatpush1.bf16.msra.mxu0 0
        %6788 = vmatprep.subr.bf16.mxu0 0
        %6789 = vmatpush1.bf16.msra.mxu0 0
        %6790 = vmatprep.subr.bf16.mxu0 0
        %6791 = vmatpush1.bf16.msra.mxu0 0
        %6792 = vmatprep.subr.bf16.mxu0 0
        %6793 = vmatpush1.bf16.msra.mxu0 %v696
        %6794 = vmatprep.subr.bf16.mxu0 0
        %6795 = vmatpush2.bf16.msra.mxu0 0
        %6796 = vmatprep.subr.bf16.mxu0 0
        %6797 = vmatpush2.bf16.msra.mxu0 0
        %6798 = vmatprep.subr.bf16.mxu0 0
        %6799 = vmatpush2.bf16.msra.mxu0 0
        %6800 = vmatprep.subr.bf16.mxu0 0
        %6801 = vmatpush2.bf16.msra.mxu0 0
        %6802 = vmatprep.subr.bf16.mxu0 0
        %6803 = vmatpush2.bf16.msra.mxu0 0
        %6804 = vmatprep.subr.bf16.mxu0 0
        %6805 = vmatpush2.bf16.msra.mxu0 0
        %6806 = vmatprep.subr.bf16.mxu0 0
        %6807 = vmatpush2.bf16.msra.mxu0 0
        %6808 = vmatprep.subr.bf16.mxu0 0
        %6809 = vmatpush2.bf16.msra.mxu0 0
        %6810 = vmatprep.mubr.bf16.mxu0 0
        %6811 = vmatmul.mubr.bf16.gmra.mxu0 %v6776
        %v6812 = vpop.f32.mrf.mxu0
        %v6813 = vadd.f32 0.0, %v6812
        %v6814 = vpop.f32.mrf.mxu0
        %v6815 = vpop.f32.mrf.mxu0
        %v6816 = vadd.f32 0.0, %v6815
        %v6817 = vpop.f32.mrf.mxu0
        %6818 = vdwg.mxu0
        %v6820 = vsel %vm3938, %v5379, 0
        %6822 = vmatprep.subr.bf16.mxu0 0
        %6823 = vmatpush1.bf16.msra.mxu0 0
        %6824 = vmatprep.subr.bf16.mxu0 0
        %6825 = vmatpush1.bf16.msra.mxu0 0
        %6826 = vmatprep.subr.bf16.mxu0 0
        %6827 = vmatpush1.bf16.msra.mxu0 0
        %6828 = vmatprep.subr.bf16.mxu0 0
        %6829 = vmatpush1.bf16.msra.mxu0 0
        %6830 = vmatprep.subr.bf16.mxu0 0
        %6831 = vmatpush1.bf16.msra.mxu0 0
        %6832 = vmatprep.subr.bf16.mxu0 0
        %6833 = vmatpush1.bf16.msra.mxu0 0
        %6834 = vmatprep.subr.bf16.mxu0 0
        %6835 = vmatpush1.bf16.msra.mxu0 0
        %6836 = vmatprep.subr.bf16.mxu0 0
        %6837 = vmatpush1.bf16.msra.mxu0 %v706
        %6838 = vmatprep.subr.bf16.mxu0 0
        %6839 = vmatpush2.bf16.msra.mxu0 0
        %6840 = vmatprep.subr.bf16.mxu0 0
        %6841 = vmatpush2.bf16.msra.mxu0 0
        %6842 = vmatprep.subr.bf16.mxu0 0
        %6843 = vmatpush2.bf16.msra.mxu0 0
        %6844 = vmatprep.subr.bf16.mxu0 0
        %6845 = vmatpush2.bf16.msra.mxu0 0
        %6846 = vmatprep.subr.bf16.mxu0 0
        %6847 = vmatpush2.bf16.msra.mxu0 0
        %6848 = vmatprep.subr.bf16.mxu0 0
        %6849 = vmatpush2.bf16.msra.mxu0 0
        %6850 = vmatprep.subr.bf16.mxu0 0
        %6851 = vmatpush2.bf16.msra.mxu0 0
        %6852 = vmatprep.subr.bf16.mxu0 0
        %6853 = vmatpush2.bf16.msra.mxu0 0
        %6854 = vmatprep.mubr.bf16.mxu0 0
        %6855 = vmatmul.mubr.bf16.gmra.mxu0 %v6820
        %v6856 = vpop.f32.mrf.mxu0
        %v6857 = vadd.f32 0.0, %v6856
        %v6858 = vpop.f32.mrf.mxu0
        %v6859 = vpop.f32.mrf.mxu0
        %v6860 = vadd.f32 0.0, %v6859
        %v6861 = vpop.f32.mrf.mxu0
        %6862 = vdwg.mxu0
        %v6864 = vsel %vm3938, %v5380, 0
        %6866 = vmatprep.subr.bf16.mxu0 0
        %6867 = vmatpush1.bf16.msra.mxu0 0
        %6868 = vmatprep.subr.bf16.mxu0 0
        %6869 = vmatpush1.bf16.msra.mxu0 0
        %6870 = vmatprep.subr.bf16.mxu0 0
        %6871 = vmatpush1.bf16.msra.mxu0 0
        %6872 = vmatprep.subr.bf16.mxu0 0
        %6873 = vmatpush1.bf16.msra.mxu0 0
        %6874 = vmatprep.subr.bf16.mxu0 0
        %6875 = vmatpush1.bf16.msra.mxu0 0
        %6876 = vmatprep.subr.bf16.mxu0 0
        %6877 = vmatpush1.bf16.msra.mxu0 0
        %6878 = vmatprep.subr.bf16.mxu0 0
        %6879 = vmatpush1.bf16.msra.mxu0 0
        %6880 = vmatprep.subr.bf16.mxu0 0
        %6881 = vmatpush1.bf16.msra.mxu0 %v708
        %6882 = vmatprep.subr.bf16.mxu0 0
        %6883 = vmatpush2.bf16.msra.mxu0 0
        %6884 = vmatprep.subr.bf16.mxu0 0
        %6885 = vmatpush2.bf16.msra.mxu0 0
        %6886 = vmatprep.subr.bf16.mxu0 0
        %6887 = vmatpush2.bf16.msra.mxu0 0
        %6888 = vmatprep.subr.bf16.mxu0 0
        %6889 = vmatpush2.bf16.msra.mxu0 0
        %6890 = vmatprep.subr.bf16.mxu0 0
        %6891 = vmatpush2.bf16.msra.mxu0 0
        %6892 = vmatprep.subr.bf16.mxu0 0
        %6893 = vmatpush2.bf16.msra.mxu0 0
        %6894 = vmatprep.subr.bf16.mxu0 0
        %6895 = vmatpush2.bf16.msra.mxu0 0
        %6896 = vmatprep.subr.bf16.mxu0 0
        %6897 = vmatpush2.bf16.msra.mxu0 0
        %6898 = vmatprep.mubr.bf16.mxu0 0
        %6899 = vmatmul.mubr.bf16.gmra.mxu0 %v6864
        %v6900 = vpop.f32.mrf.mxu0
        %v6901 = vadd.f32 0.0, %v6900
        %v6902 = vpop.f32.mrf.mxu0
        %v6903 = vpop.f32.mrf.mxu0
        %v6904 = vadd.f32 0.0, %v6903
        %v6905 = vpop.f32.mrf.mxu0
        %6906 = vdwg.mxu0
        %v6908 = vsel %vm3938, %v5381, 0
        %6910 = vmatprep.subr.bf16.mxu0 0
        %6911 = vmatpush1.bf16.msra.mxu0 0
        %6912 = vmatprep.subr.bf16.mxu0 0
        %6913 = vmatpush1.bf16.msra.mxu0 0
        %6914 = vmatprep.subr.bf16.mxu0 0
        %6915 = vmatpush1.bf16.msra.mxu0 0
        %6916 = vmatprep.subr.bf16.mxu0 0
        %6917 = vmatpush1.bf16.msra.mxu0 0
        %6918 = vmatprep.subr.bf16.mxu0 0
        %6919 = vmatpush1.bf16.msra.mxu0 0
        %6920 = vmatprep.subr.bf16.mxu0 0
        %6921 = vmatpush1.bf16.msra.mxu0 0
        %6922 = vmatprep.subr.bf16.mxu0 0
        %6923 = vmatpush1.bf16.msra.mxu0 0
        %6924 = vmatprep.subr.bf16.mxu0 0
        %6925 = vmatpush1.bf16.msra.mxu0 %v710
        %6926 = vmatprep.subr.bf16.mxu0 0
        %6927 = vmatpush2.bf16.msra.mxu0 0
        %6928 = vmatprep.subr.bf16.mxu0 0
        %6929 = vmatpush2.bf16.msra.mxu0 0
        %6930 = vmatprep.subr.bf16.mxu0 0
        %6931 = vmatpush2.bf16.msra.mxu0 0
        %6932 = vmatprep.subr.bf16.mxu0 0
        %6933 = vmatpush2.bf16.msra.mxu0 0
        %6934 = vmatprep.subr.bf16.mxu0 0
        %6935 = vmatpush2.bf16.msra.mxu0 0
        %6936 = vmatprep.subr.bf16.mxu0 0
        %6937 = vmatpush2.bf16.msra.mxu0 0
        %6938 = vmatprep.subr.bf16.mxu0 0
        %6939 = vmatpush2.bf16.msra.mxu0 0
        %6940 = vmatprep.subr.bf16.mxu0 0
        %6941 = vmatpush2.bf16.msra.mxu0 0
        %6942 = vmatprep.mubr.bf16.mxu0 0
        %6943 = vmatmul.mubr.bf16.gmra.mxu0 %v6908
        %v6944 = vpop.f32.mrf.mxu0
        %v6945 = vadd.f32 0.0, %v6944
        %v6946 = vpop.f32.mrf.mxu0
        %v6947 = vpop.f32.mrf.mxu0
        %v6948 = vadd.f32 0.0, %v6947
        %v6949 = vpop.f32.mrf.mxu0
        %6950 = vdwg.mxu0
        %v6952 = vsel %vm3938, %v5382, 0
        %6954 = vmatprep.subr.bf16.mxu0 0
        %6955 = vmatpush1.bf16.msra.mxu0 0
        %6956 = vmatprep.subr.bf16.mxu0 0
        %6957 = vmatpush1.bf16.msra.mxu0 0
        %6958 = vmatprep.subr.bf16.mxu0 0
        %6959 = vmatpush1.bf16.msra.mxu0 0
        %6960 = vmatprep.subr.bf16.mxu0 0
        %6961 = vmatpush1.bf16.msra.mxu0 0
        %6962 = vmatprep.subr.bf16.mxu0 0
        %6963 = vmatpush1.bf16.msra.mxu0 0
        %6964 = vmatprep.subr.bf16.mxu0 0
        %6965 = vmatpush1.bf16.msra.mxu0 0
        %6966 = vmatprep.subr.bf16.mxu0 0
        %6967 = vmatpush1.bf16.msra.mxu0 0
        %6968 = vmatprep.subr.bf16.mxu0 0
        %6969 = vmatpush1.bf16.msra.mxu0 %v712
        %6970 = vmatprep.subr.bf16.mxu0 0
        %6971 = vmatpush2.bf16.msra.mxu0 0
        %6972 = vmatprep.subr.bf16.mxu0 0
        %6973 = vmatpush2.bf16.msra.mxu0 0
        %6974 = vmatprep.subr.bf16.mxu0 0
        %6975 = vmatpush2.bf16.msra.mxu0 0
        %6976 = vmatprep.subr.bf16.mxu0 0
        %6977 = vmatpush2.bf16.msra.mxu0 0
        %6978 = vmatprep.subr.bf16.mxu0 0
        %6979 = vmatpush2.bf16.msra.mxu0 0
        %6980 = vmatprep.subr.bf16.mxu0 0
        %6981 = vmatpush2.bf16.msra.mxu0 0
        %6982 = vmatprep.subr.bf16.mxu0 0
        %6983 = vmatpush2.bf16.msra.mxu0 0
        %6984 = vmatprep.subr.bf16.mxu0 0
        %6985 = vmatpush2.bf16.msra.mxu0 0
        %6986 = vmatprep.mubr.bf16.mxu0 0
        %6987 = vmatmul.mubr.bf16.gmra.mxu0 %v6952
        %v6988 = vpop.f32.mrf.mxu0
        %v6989 = vadd.f32 0.0, %v6988
        %v6990 = vpop.f32.mrf.mxu0
        %v6991 = vpop.f32.mrf.mxu0
        %v6992 = vadd.f32 0.0, %v6991
        %v6993 = vpop.f32.mrf.mxu0
        %6994 = vdwg.mxu0
        %v6996 = vsel %vm3938, %v5383, 0
        %6998 = vmatprep.subr.bf16.mxu0 0
        %6999 = vmatpush1.bf16.msra.mxu0 0
        %7000 = vmatprep.subr.bf16.mxu0 0
        %7001 = vmatpush1.bf16.msra.mxu0 0
        %7002 = vmatprep.subr.bf16.mxu0 0
        %7003 = vmatpush1.bf16.msra.mxu0 0
        %7004 = vmatprep.subr.bf16.mxu0 0
        %7005 = vmatpush1.bf16.msra.mxu0 0
        %7006 = vmatprep.subr.bf16.mxu0 0
        %7007 = vmatpush1.bf16.msra.mxu0 0
        %7008 = vmatprep.subr.bf16.mxu0 0
        %7009 = vmatpush1.bf16.msra.mxu0 0
        %7010 = vmatprep.subr.bf16.mxu0 0
        %7011 = vmatpush1.bf16.msra.mxu0 0
        %7012 = vmatprep.subr.bf16.mxu0 0
        %7013 = vmatpush1.bf16.msra.mxu0 %v714
        %7014 = vmatprep.subr.bf16.mxu0 0
        %7015 = vmatpush2.bf16.msra.mxu0 0
        %7016 = vmatprep.subr.bf16.mxu0 0
        %7017 = vmatpush2.bf16.msra.mxu0 0
        %7018 = vmatprep.subr.bf16.mxu0 0
        %7019 = vmatpush2.bf16.msra.mxu0 0
        %7020 = vmatprep.subr.bf16.mxu0 0
        %7021 = vmatpush2.bf16.msra.mxu0 0
        %7022 = vmatprep.subr.bf16.mxu0 0
        %7023 = vmatpush2.bf16.msra.mxu0 0
        %7024 = vmatprep.subr.bf16.mxu0 0
        %7025 = vmatpush2.bf16.msra.mxu0 0
        %7026 = vmatprep.subr.bf16.mxu0 0
        %7027 = vmatpush2.bf16.msra.mxu0 0
        %7028 = vmatprep.subr.bf16.mxu0 0
        %7029 = vmatpush2.bf16.msra.mxu0 0
        %7030 = vmatprep.mubr.bf16.mxu0 0
        %7031 = vmatmul.mubr.bf16.gmra.mxu0 %v6996
        %v7032 = vpop.f32.mrf.mxu0
        %v7033 = vadd.f32 0.0, %v7032
        %v7034 = vpop.f32.mrf.mxu0
        %v7035 = vpop.f32.mrf.mxu0
        %v7036 = vadd.f32 0.0, %v7035
        %v7037 = vpop.f32.mrf.mxu0
        %7038 = vdwg.mxu0
        %v7040 = vsel %vm3938, %v5384, 0
        %7042 = vmatprep.subr.bf16.mxu0 0
        %7043 = vmatpush1.bf16.msra.mxu0 0
        %7044 = vmatprep.subr.bf16.mxu0 0
        %7045 = vmatpush1.bf16.msra.mxu0 0
        %7046 = vmatprep.subr.bf16.mxu0 0
        %7047 = vmatpush1.bf16.msra.mxu0 0
        %7048 = vmatprep.subr.bf16.mxu0 0
        %7049 = vmatpush1.bf16.msra.mxu0 0
        %7050 = vmatprep.subr.bf16.mxu0 0
        %7051 = vmatpush1.bf16.msra.mxu0 0
        %7052 = vmatprep.subr.bf16.mxu0 0
        %7053 = vmatpush1.bf16.msra.mxu0 0
        %7054 = vmatprep.subr.bf16.mxu0 0
        %7055 = vmatpush1.bf16.msra.mxu0 0
        %7056 = vmatprep.subr.bf16.mxu0 0
        %7057 = vmatpush1.bf16.msra.mxu0 %v716
        %7058 = vmatprep.subr.bf16.mxu0 0
        %7059 = vmatpush2.bf16.msra.mxu0 0
        %7060 = vmatprep.subr.bf16.mxu0 0
        %7061 = vmatpush2.bf16.msra.mxu0 0
        %7062 = vmatprep.subr.bf16.mxu0 0
        %7063 = vmatpush2.bf16.msra.mxu0 0
        %7064 = vmatprep.subr.bf16.mxu0 0
        %7065 = vmatpush2.bf16.msra.mxu0 0
        %7066 = vmatprep.subr.bf16.mxu0 0
        %7067 = vmatpush2.bf16.msra.mxu0 0
        %7068 = vmatprep.subr.bf16.mxu0 0
        %7069 = vmatpush2.bf16.msra.mxu0 0
        %7070 = vmatprep.subr.bf16.mxu0 0
        %7071 = vmatpush2.bf16.msra.mxu0 0
        %7072 = vmatprep.subr.bf16.mxu0 0
        %7073 = vmatpush2.bf16.msra.mxu0 0
        %7074 = vmatprep.mubr.bf16.mxu0 0
        %7075 = vmatmul.mubr.bf16.gmra.mxu0 %v7040
        %v7076 = vpop.f32.mrf.mxu0
        %v7077 = vadd.f32 0.0, %v7076
        %v7078 = vpop.f32.mrf.mxu0
        %v7079 = vpop.f32.mrf.mxu0
        %v7080 = vadd.f32 0.0, %v7079
        %v7081 = vpop.f32.mrf.mxu0
        %7082 = vdwg.mxu0
        %v7084 = vsel %vm3938, %v5385, 0
        %7086 = vmatprep.subr.bf16.mxu0 0
        %7087 = vmatpush1.bf16.msra.mxu0 0
        %7088 = vmatprep.subr.bf16.mxu0 0
        %7089 = vmatpush1.bf16.msra.mxu0 0
        %7090 = vmatprep.subr.bf16.mxu0 0
        %7091 = vmatpush1.bf16.msra.mxu0 0
        %7092 = vmatprep.subr.bf16.mxu0 0
        %7093 = vmatpush1.bf16.msra.mxu0 0
        %7094 = vmatprep.subr.bf16.mxu0 0
        %7095 = vmatpush1.bf16.msra.mxu0 0
        %7096 = vmatprep.subr.bf16.mxu0 0
        %7097 = vmatpush1.bf16.msra.mxu0 0
        %7098 = vmatprep.subr.bf16.mxu0 0
        %7099 = vmatpush1.bf16.msra.mxu0 0
        %7100 = vmatprep.subr.bf16.mxu0 0
        %7101 = vmatpush1.bf16.msra.mxu0 %v718
        %7102 = vmatprep.subr.bf16.mxu0 0
        %7103 = vmatpush2.bf16.msra.mxu0 0
        %7104 = vmatprep.subr.bf16.mxu0 0
        %7105 = vmatpush2.bf16.msra.mxu0 0
        %7106 = vmatprep.subr.bf16.mxu0 0
        %7107 = vmatpush2.bf16.msra.mxu0 0
        %7108 = vmatprep.subr.bf16.mxu0 0
        %7109 = vmatpush2.bf16.msra.mxu0 0
        %7110 = vmatprep.subr.bf16.mxu0 0
        %7111 = vmatpush2.bf16.msra.mxu0 0
        %7112 = vmatprep.subr.bf16.mxu0 0
        %7113 = vmatpush2.bf16.msra.mxu0 0
        %7114 = vmatprep.subr.bf16.mxu0 0
        %7115 = vmatpush2.bf16.msra.mxu0 0
        %7116 = vmatprep.subr.bf16.mxu0 0
        %7117 = vmatpush2.bf16.msra.mxu0 0
        %7118 = vmatprep.mubr.bf16.mxu0 0
        %7119 = vmatmul.mubr.bf16.gmra.mxu0 %v7084
        %v7120 = vpop.f32.mrf.mxu0
        %v7121 = vadd.f32 0.0, %v7120
        %v7122 = vpop.f32.mrf.mxu0
        %v7123 = vpop.f32.mrf.mxu0
        %v7124 = vadd.f32 0.0, %v7123
        %v7125 = vpop.f32.mrf.mxu0
        %7126 = vdwg.mxu0
        %v7128 = vsel %vm3938, %v5386, 0
        %7130 = vmatprep.subr.bf16.mxu0 0
        %7131 = vmatpush1.bf16.msra.mxu0 0
        %7132 = vmatprep.subr.bf16.mxu0 0
        %7133 = vmatpush1.bf16.msra.mxu0 0
        %7134 = vmatprep.subr.bf16.mxu0 0
        %7135 = vmatpush1.bf16.msra.mxu0 0
        %7136 = vmatprep.subr.bf16.mxu0 0
        %7137 = vmatpush1.bf16.msra.mxu0 0
        %7138 = vmatprep.subr.bf16.mxu0 0
        %7139 = vmatpush1.bf16.msra.mxu0 0
        %7140 = vmatprep.subr.bf16.mxu0 0
        %7141 = vmatpush1.bf16.msra.mxu0 0
        %7142 = vmatprep.subr.bf16.mxu0 0
        %7143 = vmatpush1.bf16.msra.mxu0 0
        %7144 = vmatprep.subr.bf16.mxu0 0
        %7145 = vmatpush1.bf16.msra.mxu0 %v720
        %7146 = vmatprep.subr.bf16.mxu0 0
        %7147 = vmatpush2.bf16.msra.mxu0 0
        %7148 = vmatprep.subr.bf16.mxu0 0
        %7149 = vmatpush2.bf16.msra.mxu0 0
        %7150 = vmatprep.subr.bf16.mxu0 0
        %7151 = vmatpush2.bf16.msra.mxu0 0
        %7152 = vmatprep.subr.bf16.mxu0 0
        %7153 = vmatpush2.bf16.msra.mxu0 0
        %7154 = vmatprep.subr.bf16.mxu0 0
        %7155 = vmatpush2.bf16.msra.mxu0 0
        %7156 = vmatprep.subr.bf16.mxu0 0
        %7157 = vmatpush2.bf16.msra.mxu0 0
        %7158 = vmatprep.subr.bf16.mxu0 0
        %7159 = vmatpush2.bf16.msra.mxu0 0
        %7160 = vmatprep.subr.bf16.mxu0 0
        %7161 = vmatpush2.bf16.msra.mxu0 0
        %7162 = vmatprep.mubr.bf16.mxu0 0
        %7163 = vmatmul.mubr.bf16.gmra.mxu0 %v7128
        %v7164 = vpop.f32.mrf.mxu0
        %v7165 = vadd.f32 0.0, %v7164
        %v7166 = vpop.f32.mrf.mxu0
        %v7167 = vpop.f32.mrf.mxu0
        %v7168 = vadd.f32 0.0, %v7167
        %v7169 = vpop.f32.mrf.mxu0
        %7170 = vdwg.mxu0
        %v7172 = vsel %vm3938, %v5387, 0
        %7174 = vmatprep.subr.bf16.mxu0 0
        %7175 = vmatpush1.bf16.msra.mxu0 0
        %7176 = vmatprep.subr.bf16.mxu0 0
        %7177 = vmatpush1.bf16.msra.mxu0 0
        %7178 = vmatprep.subr.bf16.mxu0 0
        %7179 = vmatpush1.bf16.msra.mxu0 0
        %7180 = vmatprep.subr.bf16.mxu0 0
        %7181 = vmatpush1.bf16.msra.mxu0 0
        %7182 = vmatprep.subr.bf16.mxu0 0
        %7183 = vmatpush1.bf16.msra.mxu0 0
        %7184 = vmatprep.subr.bf16.mxu0 0
        %7185 = vmatpush1.bf16.msra.mxu0 0
        %7186 = vmatprep.subr.bf16.mxu0 0
        %7187 = vmatpush1.bf16.msra.mxu0 0
        %7188 = vmatprep.subr.bf16.mxu0 0
        %7189 = vmatpush1.bf16.msra.mxu0 %v730
        %7190 = vmatprep.subr.bf16.mxu0 0
        %7191 = vmatpush2.bf16.msra.mxu0 0
        %7192 = vmatprep.subr.bf16.mxu0 0
        %7193 = vmatpush2.bf16.msra.mxu0 0
        %7194 = vmatprep.subr.bf16.mxu0 0
        %7195 = vmatpush2.bf16.msra.mxu0 0
        %7196 = vmatprep.subr.bf16.mxu0 0
        %7197 = vmatpush2.bf16.msra.mxu0 0
        %7198 = vmatprep.subr.bf16.mxu0 0
        %7199 = vmatpush2.bf16.msra.mxu0 0
        %7200 = vmatprep.subr.bf16.mxu0 0
        %7201 = vmatpush2.bf16.msra.mxu0 0
        %7202 = vmatprep.subr.bf16.mxu0 0
        %7203 = vmatpush2.bf16.msra.mxu0 0
        %7204 = vmatprep.subr.bf16.mxu0 0
        %7205 = vmatpush2.bf16.msra.mxu0 0
        %7206 = vmatprep.mubr.bf16.mxu0 0
        %7207 = vmatmul.mubr.bf16.gmra.mxu0 %v7172
        %v7208 = vpop.f32.mrf.mxu0
        %v7209 = vadd.f32 0.0, %v7208
        %v7210 = vpop.f32.mrf.mxu0
        %v7211 = vpop.f32.mrf.mxu0
        %v7212 = vadd.f32 0.0, %v7211
        %v7213 = vpop.f32.mrf.mxu0
        %7214 = vdwg.mxu0
        %v7216 = vsel %vm3938, %v5388, 0
        %7218 = vmatprep.subr.bf16.mxu0 0
        %7219 = vmatpush1.bf16.msra.mxu0 0
        %7220 = vmatprep.subr.bf16.mxu0 0
        %7221 = vmatpush1.bf16.msra.mxu0 0
        %7222 = vmatprep.subr.bf16.mxu0 0
        %7223 = vmatpush1.bf16.msra.mxu0 0
        %7224 = vmatprep.subr.bf16.mxu0 0
        %7225 = vmatpush1.bf16.msra.mxu0 0
        %7226 = vmatprep.subr.bf16.mxu0 0
        %7227 = vmatpush1.bf16.msra.mxu0 0
        %7228 = vmatprep.subr.bf16.mxu0 0
        %7229 = vmatpush1.bf16.msra.mxu0 0
        %7230 = vmatprep.subr.bf16.mxu0 0
        %7231 = vmatpush1.bf16.msra.mxu0 0
        %7232 = vmatprep.subr.bf16.mxu0 0
        %7233 = vmatpush1.bf16.msra.mxu0 %v732
        %7234 = vmatprep.subr.bf16.mxu0 0
        %7235 = vmatpush2.bf16.msra.mxu0 0
        %7236 = vmatprep.subr.bf16.mxu0 0
        %7237 = vmatpush2.bf16.msra.mxu0 0
        %7238 = vmatprep.subr.bf16.mxu0 0
        %7239 = vmatpush2.bf16.msra.mxu0 0
        %7240 = vmatprep.subr.bf16.mxu0 0
        %7241 = vmatpush2.bf16.msra.mxu0 0
        %7242 = vmatprep.subr.bf16.mxu0 0
        %7243 = vmatpush2.bf16.msra.mxu0 0
        %7244 = vmatprep.subr.bf16.mxu0 0
        %7245 = vmatpush2.bf16.msra.mxu0 0
        %7246 = vmatprep.subr.bf16.mxu0 0
        %7247 = vmatpush2.bf16.msra.mxu0 0
        %7248 = vmatprep.subr.bf16.mxu0 0
        %7249 = vmatpush2.bf16.msra.mxu0 0
        %7250 = vmatprep.mubr.bf16.mxu0 0
        %7251 = vmatmul.mubr.bf16.gmra.mxu0 %v7216
        %v7252 = vpop.f32.mrf.mxu0
        %v7253 = vadd.f32 0.0, %v7252
        %v7254 = vpop.f32.mrf.mxu0
        %v7255 = vpop.f32.mrf.mxu0
        %v7256 = vadd.f32 0.0, %v7255
        %v7257 = vpop.f32.mrf.mxu0
        %7258 = vdwg.mxu0
        %v7260 = vsel %vm3938, %v5389, 0
        %7262 = vmatprep.subr.bf16.mxu0 0
        %7263 = vmatpush1.bf16.msra.mxu0 0
        %7264 = vmatprep.subr.bf16.mxu0 0
        %7265 = vmatpush1.bf16.msra.mxu0 0
        %7266 = vmatprep.subr.bf16.mxu0 0
        %7267 = vmatpush1.bf16.msra.mxu0 0
        %7268 = vmatprep.subr.bf16.mxu0 0
        %7269 = vmatpush1.bf16.msra.mxu0 0
        %7270 = vmatprep.subr.bf16.mxu0 0
        %7271 = vmatpush1.bf16.msra.mxu0 0
        %7272 = vmatprep.subr.bf16.mxu0 0
        %7273 = vmatpush1.bf16.msra.mxu0 0
        %7274 = vmatprep.subr.bf16.mxu0 0
        %7275 = vmatpush1.bf16.msra.mxu0 0
        %7276 = vmatprep.subr.bf16.mxu0 0
        %7277 = vmatpush1.bf16.msra.mxu0 %v734
        %7278 = vmatprep.subr.bf16.mxu0 0
        %7279 = vmatpush2.bf16.msra.mxu0 0
        %7280 = vmatprep.subr.bf16.mxu0 0
        %7281 = vmatpush2.bf16.msra.mxu0 0
        %7282 = vmatprep.subr.bf16.mxu0 0
        %7283 = vmatpush2.bf16.msra.mxu0 0
        %7284 = vmatprep.subr.bf16.mxu0 0
        %7285 = vmatpush2.bf16.msra.mxu0 0
        %7286 = vmatprep.subr.bf16.mxu0 0
        %7287 = vmatpush2.bf16.msra.mxu0 0
        %7288 = vmatprep.subr.bf16.mxu0 0
        %7289 = vmatpush2.bf16.msra.mxu0 0
        %7290 = vmatprep.subr.bf16.mxu0 0
        %7291 = vmatpush2.bf16.msra.mxu0 0
        %7292 = vmatprep.subr.bf16.mxu0 0
        %7293 = vmatpush2.bf16.msra.mxu0 0
        %7294 = vmatprep.mubr.bf16.mxu0 0
        %7295 = vmatmul.mubr.bf16.gmra.mxu0 %v7260
        %v7296 = vpop.f32.mrf.mxu0
        %v7297 = vadd.f32 0.0, %v7296
        %v7298 = vpop.f32.mrf.mxu0
        %v7299 = vpop.f32.mrf.mxu0
        %v7300 = vadd.f32 0.0, %v7299
        %v7301 = vpop.f32.mrf.mxu0
        %7302 = vdwg.mxu0
        %v7304 = vsel %vm3938, %v5390, 0
        %7306 = vmatprep.subr.bf16.mxu0 0
        %7307 = vmatpush1.bf16.msra.mxu0 0
        %7308 = vmatprep.subr.bf16.mxu0 0
        %7309 = vmatpush1.bf16.msra.mxu0 0
        %7310 = vmatprep.subr.bf16.mxu0 0
        %7311 = vmatpush1.bf16.msra.mxu0 0
        %7312 = vmatprep.subr.bf16.mxu0 0
        %7313 = vmatpush1.bf16.msra.mxu0 0
        %7314 = vmatprep.subr.bf16.mxu0 0
        %7315 = vmatpush1.bf16.msra.mxu0 0
        %7316 = vmatprep.subr.bf16.mxu0 0
        %7317 = vmatpush1.bf16.msra.mxu0 0
        %7318 = vmatprep.subr.bf16.mxu0 0
        %7319 = vmatpush1.bf16.msra.mxu0 0
        %7320 = vmatprep.subr.bf16.mxu0 0
        %7321 = vmatpush1.bf16.msra.mxu0 %v736
        %7322 = vmatprep.subr.bf16.mxu0 0
        %7323 = vmatpush2.bf16.msra.mxu0 0
        %7324 = vmatprep.subr.bf16.mxu0 0
        %7325 = vmatpush2.bf16.msra.mxu0 0
        %7326 = vmatprep.subr.bf16.mxu0 0
        %7327 = vmatpush2.bf16.msra.mxu0 0
        %7328 = vmatprep.subr.bf16.mxu0 0
        %7329 = vmatpush2.bf16.msra.mxu0 0
        %7330 = vmatprep.subr.bf16.mxu0 0
        %7331 = vmatpush2.bf16.msra.mxu0 0
        %7332 = vmatprep.subr.bf16.mxu0 0
        %7333 = vmatpush2.bf16.msra.mxu0 0
        %7334 = vmatprep.subr.bf16.mxu0 0
        %7335 = vmatpush2.bf16.msra.mxu0 0
        %7336 = vmatprep.subr.bf16.mxu0 0
        %7337 = vmatpush2.bf16.msra.mxu0 0
        %7338 = vmatprep.mubr.bf16.mxu0 0
        %7339 = vmatmul.mubr.bf16.gmra.mxu0 %v7304
        %v7340 = vpop.f32.mrf.mxu0
        %v7341 = vadd.f32 0.0, %v7340
        %v7342 = vpop.f32.mrf.mxu0
        %v7343 = vpop.f32.mrf.mxu0
        %v7344 = vadd.f32 0.0, %v7343
        %v7345 = vpop.f32.mrf.mxu0
        %7346 = vdwg.mxu0
        %v7348 = vsel %vm3938, %v5391, 0
        %7350 = vmatprep.subr.bf16.mxu0 0
        %7351 = vmatpush1.bf16.msra.mxu0 0
        %7352 = vmatprep.subr.bf16.mxu0 0
        %7353 = vmatpush1.bf16.msra.mxu0 0
        %7354 = vmatprep.subr.bf16.mxu0 0
        %7355 = vmatpush1.bf16.msra.mxu0 0
        %7356 = vmatprep.subr.bf16.mxu0 0
        %7357 = vmatpush1.bf16.msra.mxu0 0
        %7358 = vmatprep.subr.bf16.mxu0 0
        %7359 = vmatpush1.bf16.msra.mxu0 0
        %7360 = vmatprep.subr.bf16.mxu0 0
        %7361 = vmatpush1.bf16.msra.mxu0 0
        %7362 = vmatprep.subr.bf16.mxu0 0
        %7363 = vmatpush1.bf16.msra.mxu0 0
        %7364 = vmatprep.subr.bf16.mxu0 0
        %7365 = vmatpush1.bf16.msra.mxu0 %v738
        %7366 = vmatprep.subr.bf16.mxu0 0
        %7367 = vmatpush2.bf16.msra.mxu0 0
        %7368 = vmatprep.subr.bf16.mxu0 0
        %7369 = vmatpush2.bf16.msra.mxu0 0
        %7370 = vmatprep.subr.bf16.mxu0 0
        %7371 = vmatpush2.bf16.msra.mxu0 0
        %7372 = vmatprep.subr.bf16.mxu0 0
        %7373 = vmatpush2.bf16.msra.mxu0 0
        %7374 = vmatprep.subr.bf16.mxu0 0
        %7375 = vmatpush2.bf16.msra.mxu0 0
        %7376 = vmatprep.subr.bf16.mxu0 0
        %7377 = vmatpush2.bf16.msra.mxu0 0
        %7378 = vmatprep.subr.bf16.mxu0 0
        %7379 = vmatpush2.bf16.msra.mxu0 0
        %7380 = vmatprep.subr.bf16.mxu0 0
        %7381 = vmatpush2.bf16.msra.mxu0 0
        %7382 = vmatprep.mubr.bf16.mxu0 0
        %7383 = vmatmul.mubr.bf16.gmra.mxu0 %v7348
        %v7384 = vpop.f32.mrf.mxu0
        %v7385 = vadd.f32 0.0, %v7384
        %v7386 = vpop.f32.mrf.mxu0
        %v7387 = vpop.f32.mrf.mxu0
        %v7388 = vadd.f32 0.0, %v7387
        %v7389 = vpop.f32.mrf.mxu0
        %7390 = vdwg.mxu0
        %v7392 = vsel %vm3938, %v5392, 0
        %7394 = vmatprep.subr.bf16.mxu0 0
        %7395 = vmatpush1.bf16.msra.mxu0 0
        %7396 = vmatprep.subr.bf16.mxu0 0
        %7397 = vmatpush1.bf16.msra.mxu0 0
        %7398 = vmatprep.subr.bf16.mxu0 0
        %7399 = vmatpush1.bf16.msra.mxu0 0
        %7400 = vmatprep.subr.bf16.mxu0 0
        %7401 = vmatpush1.bf16.msra.mxu0 0
        %7402 = vmatprep.subr.bf16.mxu0 0
        %7403 = vmatpush1.bf16.msra.mxu0 0
        %7404 = vmatprep.subr.bf16.mxu0 0
        %7405 = vmatpush1.bf16.msra.mxu0 0
        %7406 = vmatprep.subr.bf16.mxu0 0
        %7407 = vmatpush1.bf16.msra.mxu0 0
        %7408 = vmatprep.subr.bf16.mxu0 0
        %7409 = vmatpush1.bf16.msra.mxu0 %v740
        %7410 = vmatprep.subr.bf16.mxu0 0
        %7411 = vmatpush2.bf16.msra.mxu0 0
        %7412 = vmatprep.subr.bf16.mxu0 0
        %7413 = vmatpush2.bf16.msra.mxu0 0
        %7414 = vmatprep.subr.bf16.mxu0 0
        %7415 = vmatpush2.bf16.msra.mxu0 0
        %7416 = vmatprep.subr.bf16.mxu0 0
        %7417 = vmatpush2.bf16.msra.mxu0 0
        %7418 = vmatprep.subr.bf16.mxu0 0
        %7419 = vmatpush2.bf16.msra.mxu0 0
        %7420 = vmatprep.subr.bf16.mxu0 0
        %7421 = vmatpush2.bf16.msra.mxu0 0
        %7422 = vmatprep.subr.bf16.mxu0 0
        %7423 = vmatpush2.bf16.msra.mxu0 0
        %7424 = vmatprep.subr.bf16.mxu0 0
        %7425 = vmatpush2.bf16.msra.mxu0 0
        %7426 = vmatprep.mubr.bf16.mxu0 0
        %7427 = vmatmul.mubr.bf16.gmra.mxu0 %v7392
        %v7428 = vpop.f32.mrf.mxu0
        %v7429 = vadd.f32 0.0, %v7428
        %v7430 = vpop.f32.mrf.mxu0
        %v7431 = vpop.f32.mrf.mxu0
        %v7432 = vadd.f32 0.0, %v7431
        %v7433 = vpop.f32.mrf.mxu0
        %7434 = vdwg.mxu0
        %v7436 = vsel %vm3938, %v5393, 0
        %7438 = vmatprep.subr.bf16.mxu0 0
        %7439 = vmatpush1.bf16.msra.mxu0 0
        %7440 = vmatprep.subr.bf16.mxu0 0
        %7441 = vmatpush1.bf16.msra.mxu0 0
        %7442 = vmatprep.subr.bf16.mxu0 0
        %7443 = vmatpush1.bf16.msra.mxu0 0
        %7444 = vmatprep.subr.bf16.mxu0 0
        %7445 = vmatpush1.bf16.msra.mxu0 0
        %7446 = vmatprep.subr.bf16.mxu0 0
        %7447 = vmatpush1.bf16.msra.mxu0 0
        %7448 = vmatprep.subr.bf16.mxu0 0
        %7449 = vmatpush1.bf16.msra.mxu0 0
        %7450 = vmatprep.subr.bf16.mxu0 0
        %7451 = vmatpush1.bf16.msra.mxu0 0
        %7452 = vmatprep.subr.bf16.mxu0 0
        %7453 = vmatpush1.bf16.msra.mxu0 %v742
        %7454 = vmatprep.subr.bf16.mxu0 0
        %7455 = vmatpush2.bf16.msra.mxu0 0
        %7456 = vmatprep.subr.bf16.mxu0 0
        %7457 = vmatpush2.bf16.msra.mxu0 0
        %7458 = vmatprep.subr.bf16.mxu0 0
        %7459 = vmatpush2.bf16.msra.mxu0 0
        %7460 = vmatprep.subr.bf16.mxu0 0
        %7461 = vmatpush2.bf16.msra.mxu0 0
        %7462 = vmatprep.subr.bf16.mxu0 0
        %7463 = vmatpush2.bf16.msra.mxu0 0
        %7464 = vmatprep.subr.bf16.mxu0 0
        %7465 = vmatpush2.bf16.msra.mxu0 0
        %7466 = vmatprep.subr.bf16.mxu0 0
        %7467 = vmatpush2.bf16.msra.mxu0 0
        %7468 = vmatprep.subr.bf16.mxu0 0
        %7469 = vmatpush2.bf16.msra.mxu0 0
        %7470 = vmatprep.mubr.bf16.mxu0 0
        %7471 = vmatmul.mubr.bf16.gmra.mxu0 %v7436
        %v7472 = vpop.f32.mrf.mxu0
        %v7473 = vadd.f32 0.0, %v7472
        %v7474 = vpop.f32.mrf.mxu0
        %v7475 = vpop.f32.mrf.mxu0
        %v7476 = vadd.f32 0.0, %v7475
        %v7477 = vpop.f32.mrf.mxu0
        %7478 = vdwg.mxu0
        %v7480 = vsel %vm3938, %v5394, 0
        %7482 = vmatprep.subr.bf16.mxu0 0
        %7483 = vmatpush1.bf16.msra.mxu0 0
        %7484 = vmatprep.subr.bf16.mxu0 0
        %7485 = vmatpush1.bf16.msra.mxu0 0
        %7486 = vmatprep.subr.bf16.mxu0 0
        %7487 = vmatpush1.bf16.msra.mxu0 0
        %7488 = vmatprep.subr.bf16.mxu0 0
        %7489 = vmatpush1.bf16.msra.mxu0 0
        %7490 = vmatprep.subr.bf16.mxu0 0
        %7491 = vmatpush1.bf16.msra.mxu0 0
        %7492 = vmatprep.subr.bf16.mxu0 0
        %7493 = vmatpush1.bf16.msra.mxu0 0
        %7494 = vmatprep.subr.bf16.mxu0 0
        %7495 = vmatpush1.bf16.msra.mxu0 0
        %7496 = vmatprep.subr.bf16.mxu0 0
        %7497 = vmatpush1.bf16.msra.mxu0 %v744
        %7498 = vmatprep.subr.bf16.mxu0 0
        %7499 = vmatpush2.bf16.msra.mxu0 0
        %7500 = vmatprep.subr.bf16.mxu0 0
        %7501 = vmatpush2.bf16.msra.mxu0 0
        %7502 = vmatprep.subr.bf16.mxu0 0
        %7503 = vmatpush2.bf16.msra.mxu0 0
        %7504 = vmatprep.subr.bf16.mxu0 0
        %7505 = vmatpush2.bf16.msra.mxu0 0
        %7506 = vmatprep.subr.bf16.mxu0 0
        %7507 = vmatpush2.bf16.msra.mxu0 0
        %7508 = vmatprep.subr.bf16.mxu0 0
        %7509 = vmatpush2.bf16.msra.mxu0 0
        %7510 = vmatprep.subr.bf16.mxu0 0
        %7511 = vmatpush2.bf16.msra.mxu0 0
        %7512 = vmatprep.subr.bf16.mxu0 0
        %7513 = vmatpush2.bf16.msra.mxu0 0
        %7514 = vmatprep.mubr.bf16.mxu0 0
        %7515 = vmatmul.mubr.bf16.gmra.mxu0 %v7480
        %v7516 = vpop.f32.mrf.mxu0
        %v7517 = vadd.f32 0.0, %v7516
        %v7518 = vpop.f32.mrf.mxu0
        %v7519 = vpop.f32.mrf.mxu0
        %v7520 = vadd.f32 0.0, %v7519
        %v7521 = vpop.f32.mrf.mxu0
        %7522 = vdwg.mxu0
        %v7524 = vsel %vm3938, %v5395, 0
        %7526 = vmatprep.subr.bf16.mxu0 0
        %7527 = vmatpush1.bf16.msra.mxu0 0
        %7528 = vmatprep.subr.bf16.mxu0 0
        %7529 = vmatpush1.bf16.msra.mxu0 0
        %7530 = vmatprep.subr.bf16.mxu0 0
        %7531 = vmatpush1.bf16.msra.mxu0 0
        %7532 = vmatprep.subr.bf16.mxu0 0
        %7533 = vmatpush1.bf16.msra.mxu0 0
        %7534 = vmatprep.subr.bf16.mxu0 0
        %7535 = vmatpush1.bf16.msra.mxu0 0
        %7536 = vmatprep.subr.bf16.mxu0 0
        %7537 = vmatpush1.bf16.msra.mxu0 0
        %7538 = vmatprep.subr.bf16.mxu0 0
        %7539 = vmatpush1.bf16.msra.mxu0 0
        %7540 = vmatprep.subr.bf16.mxu0 0
        %7541 = vmatpush1.bf16.msra.mxu0 %v754
        %7542 = vmatprep.subr.bf16.mxu0 0
        %7543 = vmatpush2.bf16.msra.mxu0 0
        %7544 = vmatprep.subr.bf16.mxu0 0
        %7545 = vmatpush2.bf16.msra.mxu0 0
        %7546 = vmatprep.subr.bf16.mxu0 0
        %7547 = vmatpush2.bf16.msra.mxu0 0
        %7548 = vmatprep.subr.bf16.mxu0 0
        %7549 = vmatpush2.bf16.msra.mxu0 0
        %7550 = vmatprep.subr.bf16.mxu0 0
        %7551 = vmatpush2.bf16.msra.mxu0 0
        %7552 = vmatprep.subr.bf16.mxu0 0
        %7553 = vmatpush2.bf16.msra.mxu0 0
        %7554 = vmatprep.subr.bf16.mxu0 0
        %7555 = vmatpush2.bf16.msra.mxu0 0
        %7556 = vmatprep.subr.bf16.mxu0 0
        %7557 = vmatpush2.bf16.msra.mxu0 0
        %7558 = vmatprep.mubr.bf16.mxu0 0
        %7559 = vmatmul.mubr.bf16.gmra.mxu0 %v7524
        %v7560 = vpop.f32.mrf.mxu0
        %v7561 = vadd.f32 0.0, %v7560
        %v7562 = vpop.f32.mrf.mxu0
        %v7563 = vpop.f32.mrf.mxu0
        %v7564 = vadd.f32 0.0, %v7563
        %v7565 = vpop.f32.mrf.mxu0
        %7566 = vdwg.mxu0
        %v7568 = vsel %vm3938, %v5396, 0
        %7570 = vmatprep.subr.bf16.mxu0 0
        %7571 = vmatpush1.bf16.msra.mxu0 0
        %7572 = vmatprep.subr.bf16.mxu0 0
        %7573 = vmatpush1.bf16.msra.mxu0 0
        %7574 = vmatprep.subr.bf16.mxu0 0
        %7575 = vmatpush1.bf16.msra.mxu0 0
        %7576 = vmatprep.subr.bf16.mxu0 0
        %7577 = vmatpush1.bf16.msra.mxu0 0
        %7578 = vmatprep.subr.bf16.mxu0 0
        %7579 = vmatpush1.bf16.msra.mxu0 0
        %7580 = vmatprep.subr.bf16.mxu0 0
        %7581 = vmatpush1.bf16.msra.mxu0 0
        %7582 = vmatprep.subr.bf16.mxu0 0
        %7583 = vmatpush1.bf16.msra.mxu0 0
        %7584 = vmatprep.subr.bf16.mxu0 0
        %7585 = vmatpush1.bf16.msra.mxu0 %v756
        %7586 = vmatprep.subr.bf16.mxu0 0
        %7587 = vmatpush2.bf16.msra.mxu0 0
        %7588 = vmatprep.subr.bf16.mxu0 0
        %7589 = vmatpush2.bf16.msra.mxu0 0
        %7590 = vmatprep.subr.bf16.mxu0 0
        %7591 = vmatpush2.bf16.msra.mxu0 0
        %7592 = vmatprep.subr.bf16.mxu0 0
        %7593 = vmatpush2.bf16.msra.mxu0 0
        %7594 = vmatprep.subr.bf16.mxu0 0
        %7595 = vmatpush2.bf16.msra.mxu0 0
        %7596 = vmatprep.subr.bf16.mxu0 0
        %7597 = vmatpush2.bf16.msra.mxu0 0
        %7598 = vmatprep.subr.bf16.mxu0 0
        %7599 = vmatpush2.bf16.msra.mxu0 0
        %7600 = vmatprep.subr.bf16.mxu0 0
        %7601 = vmatpush2.bf16.msra.mxu0 0
        %7602 = vmatprep.mubr.bf16.mxu0 0
        %7603 = vmatmul.mubr.bf16.gmra.mxu0 %v7568
        %v7604 = vpop.f32.mrf.mxu0
        %v7605 = vadd.f32 0.0, %v7604
        %v7606 = vpop.f32.mrf.mxu0
        %v7607 = vpop.f32.mrf.mxu0
        %v7608 = vadd.f32 0.0, %v7607
        %v7609 = vpop.f32.mrf.mxu0
        %7610 = vdwg.mxu0
        %v7612 = vsel %vm3938, %v5397, 0
        %7614 = vmatprep.subr.bf16.mxu0 0
        %7615 = vmatpush1.bf16.msra.mxu0 0
        %7616 = vmatprep.subr.bf16.mxu0 0
        %7617 = vmatpush1.bf16.msra.mxu0 0
        %7618 = vmatprep.subr.bf16.mxu0 0
        %7619 = vmatpush1.bf16.msra.mxu0 0
        %7620 = vmatprep.subr.bf16.mxu0 0
        %7621 = vmatpush1.bf16.msra.mxu0 0
        %7622 = vmatprep.subr.bf16.mxu0 0
        %7623 = vmatpush1.bf16.msra.mxu0 0
        %7624 = vmatprep.subr.bf16.mxu0 0
        %7625 = vmatpush1.bf16.msra.mxu0 0
        %7626 = vmatprep.subr.bf16.mxu0 0
        %7627 = vmatpush1.bf16.msra.mxu0 0
        %7628 = vmatprep.subr.bf16.mxu0 0
        %7629 = vmatpush1.bf16.msra.mxu0 %v758
        %7630 = vmatprep.subr.bf16.mxu0 0
        %7631 = vmatpush2.bf16.msra.mxu0 0
        %7632 = vmatprep.subr.bf16.mxu0 0
        %7633 = vmatpush2.bf16.msra.mxu0 0
        %7634 = vmatprep.subr.bf16.mxu0 0
        %7635 = vmatpush2.bf16.msra.mxu0 0
        %7636 = vmatprep.subr.bf16.mxu0 0
        %7637 = vmatpush2.bf16.msra.mxu0 0
        %7638 = vmatprep.subr.bf16.mxu0 0
        %7639 = vmatpush2.bf16.msra.mxu0 0
        %7640 = vmatprep.subr.bf16.mxu0 0
        %7641 = vmatpush2.bf16.msra.mxu0 0
        %7642 = vmatprep.subr.bf16.mxu0 0
        %7643 = vmatpush2.bf16.msra.mxu0 0
        %7644 = vmatprep.subr.bf16.mxu0 0
        %7645 = vmatpush2.bf16.msra.mxu0 0
        %7646 = vmatprep.mubr.bf16.mxu0 0
        %7647 = vmatmul.mubr.bf16.gmra.mxu0 %v7612
        %v7648 = vpop.f32.mrf.mxu0
        %v7649 = vadd.f32 0.0, %v7648
        %v7650 = vpop.f32.mrf.mxu0
        %v7651 = vpop.f32.mrf.mxu0
        %v7652 = vadd.f32 0.0, %v7651
        %v7653 = vpop.f32.mrf.mxu0
        %7654 = vdwg.mxu0
        %v7656 = vsel %vm3938, %v5398, 0
        %7658 = vmatprep.subr.bf16.mxu0 0
        %7659 = vmatpush1.bf16.msra.mxu0 0
        %7660 = vmatprep.subr.bf16.mxu0 0
        %7661 = vmatpush1.bf16.msra.mxu0 0
        %7662 = vmatprep.subr.bf16.mxu0 0
        %7663 = vmatpush1.bf16.msra.mxu0 0
        %7664 = vmatprep.subr.bf16.mxu0 0
        %7665 = vmatpush1.bf16.msra.mxu0 0
        %7666 = vmatprep.subr.bf16.mxu0 0
        %7667 = vmatpush1.bf16.msra.mxu0 0
        %7668 = vmatprep.subr.bf16.mxu0 0
        %7669 = vmatpush1.bf16.msra.mxu0 0
        %7670 = vmatprep.subr.bf16.mxu0 0
        %7671 = vmatpush1.bf16.msra.mxu0 0
        %7672 = vmatprep.subr.bf16.mxu0 0
        %7673 = vmatpush1.bf16.msra.mxu0 %v760
        %7674 = vmatprep.subr.bf16.mxu0 0
        %7675 = vmatpush2.bf16.msra.mxu0 0
        %7676 = vmatprep.subr.bf16.mxu0 0
        %7677 = vmatpush2.bf16.msra.mxu0 0
        %7678 = vmatprep.subr.bf16.mxu0 0
        %7679 = vmatpush2.bf16.msra.mxu0 0
        %7680 = vmatprep.subr.bf16.mxu0 0
        %7681 = vmatpush2.bf16.msra.mxu0 0
        %7682 = vmatprep.subr.bf16.mxu0 0
        %7683 = vmatpush2.bf16.msra.mxu0 0
        %7684 = vmatprep.subr.bf16.mxu0 0
        %7685 = vmatpush2.bf16.msra.mxu0 0
        %7686 = vmatprep.subr.bf16.mxu0 0
        %7687 = vmatpush2.bf16.msra.mxu0 0
        %7688 = vmatprep.subr.bf16.mxu0 0
        %7689 = vmatpush2.bf16.msra.mxu0 0
        %7690 = vmatprep.mubr.bf16.mxu0 0
        %7691 = vmatmul.mubr.bf16.gmra.mxu0 %v7656
        %v7692 = vpop.f32.mrf.mxu0
        %v7693 = vadd.f32 0.0, %v7692
        %v7694 = vpop.f32.mrf.mxu0
        %v7695 = vpop.f32.mrf.mxu0
        %v7696 = vadd.f32 0.0, %v7695
        %v7697 = vpop.f32.mrf.mxu0
        %7698 = vdwg.mxu0
        %v7700 = vsel %vm3938, %v5399, 0
        %7702 = vmatprep.subr.bf16.mxu0 0
        %7703 = vmatpush1.bf16.msra.mxu0 0
        %7704 = vmatprep.subr.bf16.mxu0 0
        %7705 = vmatpush1.bf16.msra.mxu0 0
        %7706 = vmatprep.subr.bf16.mxu0 0
        %7707 = vmatpush1.bf16.msra.mxu0 0
        %7708 = vmatprep.subr.bf16.mxu0 0
        %7709 = vmatpush1.bf16.msra.mxu0 0
        %7710 = vmatprep.subr.bf16.mxu0 0
        %7711 = vmatpush1.bf16.msra.mxu0 0
        %7712 = vmatprep.subr.bf16.mxu0 0
        %7713 = vmatpush1.bf16.msra.mxu0 0
        %7714 = vmatprep.subr.bf16.mxu0 0
        %7715 = vmatpush1.bf16.msra.mxu0 0
        %7716 = vmatprep.subr.bf16.mxu0 0
        %7717 = vmatpush1.bf16.msra.mxu0 %v762
        %7718 = vmatprep.subr.bf16.mxu0 0
        %7719 = vmatpush2.bf16.msra.mxu0 0
        %7720 = vmatprep.subr.bf16.mxu0 0
        %7721 = vmatpush2.bf16.msra.mxu0 0
        %7722 = vmatprep.subr.bf16.mxu0 0
        %7723 = vmatpush2.bf16.msra.mxu0 0
        %7724 = vmatprep.subr.bf16.mxu0 0
        %7725 = vmatpush2.bf16.msra.mxu0 0
        %7726 = vmatprep.subr.bf16.mxu0 0
        %7727 = vmatpush2.bf16.msra.mxu0 0
        %7728 = vmatprep.subr.bf16.mxu0 0
        %7729 = vmatpush2.bf16.msra.mxu0 0
        %7730 = vmatprep.subr.bf16.mxu0 0
        %7731 = vmatpush2.bf16.msra.mxu0 0
        %7732 = vmatprep.subr.bf16.mxu0 0
        %7733 = vmatpush2.bf16.msra.mxu0 0
        %7734 = vmatprep.mubr.bf16.mxu0 0
        %7735 = vmatmul.mubr.bf16.gmra.mxu0 %v7700
        %v7736 = vpop.f32.mrf.mxu0
        %v7737 = vadd.f32 0.0, %v7736
        %v7738 = vpop.f32.mrf.mxu0
        %v7739 = vpop.f32.mrf.mxu0
        %v7740 = vadd.f32 0.0, %v7739
        %v7741 = vpop.f32.mrf.mxu0
        %7742 = vdwg.mxu0
        %v7744 = vsel %vm3938, %v5400, 0
        %7746 = vmatprep.subr.bf16.mxu0 0
        %7747 = vmatpush1.bf16.msra.mxu0 0
        %7748 = vmatprep.subr.bf16.mxu0 0
        %7749 = vmatpush1.bf16.msra.mxu0 0
        %7750 = vmatprep.subr.bf16.mxu0 0
        %7751 = vmatpush1.bf16.msra.mxu0 0
        %7752 = vmatprep.subr.bf16.mxu0 0
        %7753 = vmatpush1.bf16.msra.mxu0 0
        %7754 = vmatprep.subr.bf16.mxu0 0
        %7755 = vmatpush1.bf16.msra.mxu0 0
        %7756 = vmatprep.subr.bf16.mxu0 0
        %7757 = vmatpush1.bf16.msra.mxu0 0
        %7758 = vmatprep.subr.bf16.mxu0 0
        %7759 = vmatpush1.bf16.msra.mxu0 0
        %7760 = vmatprep.subr.bf16.mxu0 0
        %7761 = vmatpush1.bf16.msra.mxu0 %v764
        %7762 = vmatprep.subr.bf16.mxu0 0
        %7763 = vmatpush2.bf16.msra.mxu0 0
        %7764 = vmatprep.subr.bf16.mxu0 0
        %7765 = vmatpush2.bf16.msra.mxu0 0
        %7766 = vmatprep.subr.bf16.mxu0 0
        %7767 = vmatpush2.bf16.msra.mxu0 0
        %7768 = vmatprep.subr.bf16.mxu0 0
        %7769 = vmatpush2.bf16.msra.mxu0 0
        %7770 = vmatprep.subr.bf16.mxu0 0
        %7771 = vmatpush2.bf16.msra.mxu0 0
        %7772 = vmatprep.subr.bf16.mxu0 0
        %7773 = vmatpush2.bf16.msra.mxu0 0
        %7774 = vmatprep.subr.bf16.mxu0 0
        %7775 = vmatpush2.bf16.msra.mxu0 0
        %7776 = vmatprep.subr.bf16.mxu0 0
        %7777 = vmatpush2.bf16.msra.mxu0 0
        %7778 = vmatprep.mubr.bf16.mxu0 0
        %7779 = vmatmul.mubr.bf16.gmra.mxu0 %v7744
        %v7780 = vpop.f32.mrf.mxu0
        %v7781 = vadd.f32 0.0, %v7780
        %v7782 = vpop.f32.mrf.mxu0
        %v7783 = vpop.f32.mrf.mxu0
        %v7784 = vadd.f32 0.0, %v7783
        %v7785 = vpop.f32.mrf.mxu0
        %7786 = vdwg.mxu0
        %v7788 = vsel %vm3938, %v5401, 0
        %7790 = vmatprep.subr.bf16.mxu0 0
        %7791 = vmatpush1.bf16.msra.mxu0 0
        %7792 = vmatprep.subr.bf16.mxu0 0
        %7793 = vmatpush1.bf16.msra.mxu0 0
        %7794 = vmatprep.subr.bf16.mxu0 0
        %7795 = vmatpush1.bf16.msra.mxu0 0
        %7796 = vmatprep.subr.bf16.mxu0 0
        %7797 = vmatpush1.bf16.msra.mxu0 0
        %7798 = vmatprep.subr.bf16.mxu0 0
        %7799 = vmatpush1.bf16.msra.mxu0 0
        %7800 = vmatprep.subr.bf16.mxu0 0
        %7801 = vmatpush1.bf16.msra.mxu0 0
        %7802 = vmatprep.subr.bf16.mxu0 0
        %7803 = vmatpush1.bf16.msra.mxu0 0
        %7804 = vmatprep.subr.bf16.mxu0 0
        %7805 = vmatpush1.bf16.msra.mxu0 %v766
        %7806 = vmatprep.subr.bf16.mxu0 0
        %7807 = vmatpush2.bf16.msra.mxu0 0
        %7808 = vmatprep.subr.bf16.mxu0 0
        %7809 = vmatpush2.bf16.msra.mxu0 0
        %7810 = vmatprep.subr.bf16.mxu0 0
        %7811 = vmatpush2.bf16.msra.mxu0 0
        %7812 = vmatprep.subr.bf16.mxu0 0
        %7813 = vmatpush2.bf16.msra.mxu0 0
        %7814 = vmatprep.subr.bf16.mxu0 0
        %7815 = vmatpush2.bf16.msra.mxu0 0
        %7816 = vmatprep.subr.bf16.mxu0 0
        %7817 = vmatpush2.bf16.msra.mxu0 0
        %7818 = vmatprep.subr.bf16.mxu0 0
        %7819 = vmatpush2.bf16.msra.mxu0 0
        %7820 = vmatprep.subr.bf16.mxu0 0
        %7821 = vmatpush2.bf16.msra.mxu0 0
        %7822 = vmatprep.mubr.bf16.mxu0 0
        %7823 = vmatmul.mubr.bf16.gmra.mxu0 %v7788
        %v7824 = vpop.f32.mrf.mxu0
        %v7825 = vadd.f32 0.0, %v7824
        %v7826 = vpop.f32.mrf.mxu0
        %v7827 = vpop.f32.mrf.mxu0
        %v7828 = vadd.f32 0.0, %v7827
        %v7829 = vpop.f32.mrf.mxu0
        %7830 = vdwg.mxu0
        %v7832 = vsel %vm3938, %v5402, 0
        %7834 = vmatprep.subr.bf16.mxu0 0
        %7835 = vmatpush1.bf16.msra.mxu0 0
        %7836 = vmatprep.subr.bf16.mxu0 0
        %7837 = vmatpush1.bf16.msra.mxu0 0
        %7838 = vmatprep.subr.bf16.mxu0 0
        %7839 = vmatpush1.bf16.msra.mxu0 0
        %7840 = vmatprep.subr.bf16.mxu0 0
        %7841 = vmatpush1.bf16.msra.mxu0 0
        %7842 = vmatprep.subr.bf16.mxu0 0
        %7843 = vmatpush1.bf16.msra.mxu0 0
        %7844 = vmatprep.subr.bf16.mxu0 0
        %7845 = vmatpush1.bf16.msra.mxu0 0
        %7846 = vmatprep.subr.bf16.mxu0 0
        %7847 = vmatpush1.bf16.msra.mxu0 0
        %7848 = vmatprep.subr.bf16.mxu0 0
        %7849 = vmatpush1.bf16.msra.mxu0 %v768
        %7850 = vmatprep.subr.bf16.mxu0 0
        %7851 = vmatpush2.bf16.msra.mxu0 0
        %7852 = vmatprep.subr.bf16.mxu0 0
        %7853 = vmatpush2.bf16.msra.mxu0 0
        %7854 = vmatprep.subr.bf16.mxu0 0
        %7855 = vmatpush2.bf16.msra.mxu0 0
        %7856 = vmatprep.subr.bf16.mxu0 0
        %7857 = vmatpush2.bf16.msra.mxu0 0
        %7858 = vmatprep.subr.bf16.mxu0 0
        %7859 = vmatpush2.bf16.msra.mxu0 0
        %7860 = vmatprep.subr.bf16.mxu0 0
        %7861 = vmatpush2.bf16.msra.mxu0 0
        %7862 = vmatprep.subr.bf16.mxu0 0
        %7863 = vmatpush2.bf16.msra.mxu0 0
        %7864 = vmatprep.subr.bf16.mxu0 0
        %7865 = vmatpush2.bf16.msra.mxu0 0
        %7866 = vmatprep.mubr.bf16.mxu0 0
        %7867 = vmatmul.mubr.bf16.gmra.mxu0 %v7832
        %v7868 = vpop.f32.mrf.mxu0
        %v7869 = vadd.f32 0.0, %v7868
        %v7870 = vpop.f32.mrf.mxu0
        %v7871 = vpop.f32.mrf.mxu0
        %v7872 = vadd.f32 0.0, %v7871
        %v7873 = vpop.f32.mrf.mxu0
        %7874 = vdwg.mxu0
        %v7876 = vsel %vm3938, %v5403, 0
        %7878 = vmatprep.subr.bf16.mxu0 0
        %7879 = vmatpush1.bf16.msra.mxu0 0
        %7880 = vmatprep.subr.bf16.mxu0 0
        %7881 = vmatpush1.bf16.msra.mxu0 0
        %7882 = vmatprep.subr.bf16.mxu0 0
        %7883 = vmatpush1.bf16.msra.mxu0 0
        %7884 = vmatprep.subr.bf16.mxu0 0
        %7885 = vmatpush1.bf16.msra.mxu0 0
        %7886 = vmatprep.subr.bf16.mxu0 0
        %7887 = vmatpush1.bf16.msra.mxu0 0
        %7888 = vmatprep.subr.bf16.mxu0 0
        %7889 = vmatpush1.bf16.msra.mxu0 0
        %7890 = vmatprep.subr.bf16.mxu0 0
        %7891 = vmatpush1.bf16.msra.mxu0 0
        %7892 = vmatprep.subr.bf16.mxu0 0
        %7893 = vmatpush1.bf16.msra.mxu0 %v778
        %7894 = vmatprep.subr.bf16.mxu0 0
        %7895 = vmatpush2.bf16.msra.mxu0 0
        %7896 = vmatprep.subr.bf16.mxu0 0
        %7897 = vmatpush2.bf16.msra.mxu0 0
        %7898 = vmatprep.subr.bf16.mxu0 0
        %7899 = vmatpush2.bf16.msra.mxu0 0
        %7900 = vmatprep.subr.bf16.mxu0 0
        %7901 = vmatpush2.bf16.msra.mxu0 0
        %7902 = vmatprep.subr.bf16.mxu0 0
        %7903 = vmatpush2.bf16.msra.mxu0 0
        %7904 = vmatprep.subr.bf16.mxu0 0
        %7905 = vmatpush2.bf16.msra.mxu0 0
        %7906 = vmatprep.subr.bf16.mxu0 0
        %7907 = vmatpush2.bf16.msra.mxu0 0
        %7908 = vmatprep.subr.bf16.mxu0 0
        %7909 = vmatpush2.bf16.msra.mxu0 0
        %7910 = vmatprep.mubr.bf16.mxu0 0
        %7911 = vmatmul.mubr.bf16.gmra.mxu0 %v7876
        %v7912 = vpop.f32.mrf.mxu0
        %v7913 = vadd.f32 0.0, %v7912
        %v7914 = vpop.f32.mrf.mxu0
        %v7915 = vpop.f32.mrf.mxu0
        %v7916 = vadd.f32 0.0, %v7915
        %v7917 = vpop.f32.mrf.mxu0
        %7918 = vdwg.mxu0
        %v7920 = vsel %vm3938, %v5404, 0
        %7922 = vmatprep.subr.bf16.mxu0 0
        %7923 = vmatpush1.bf16.msra.mxu0 0
        %7924 = vmatprep.subr.bf16.mxu0 0
        %7925 = vmatpush1.bf16.msra.mxu0 0
        %7926 = vmatprep.subr.bf16.mxu0 0
        %7927 = vmatpush1.bf16.msra.mxu0 0
        %7928 = vmatprep.subr.bf16.mxu0 0
        %7929 = vmatpush1.bf16.msra.mxu0 0
        %7930 = vmatprep.subr.bf16.mxu0 0
        %7931 = vmatpush1.bf16.msra.mxu0 0
        %7932 = vmatprep.subr.bf16.mxu0 0
        %7933 = vmatpush1.bf16.msra.mxu0 0
        %7934 = vmatprep.subr.bf16.mxu0 0
        %7935 = vmatpush1.bf16.msra.mxu0 0
        %7936 = vmatprep.subr.bf16.mxu0 0
        %7937 = vmatpush1.bf16.msra.mxu0 %v780
        %7938 = vmatprep.subr.bf16.mxu0 0
        %7939 = vmatpush2.bf16.msra.mxu0 0
        %7940 = vmatprep.subr.bf16.mxu0 0
        %7941 = vmatpush2.bf16.msra.mxu0 0
        %7942 = vmatprep.subr.bf16.mxu0 0
        %7943 = vmatpush2.bf16.msra.mxu0 0
        %7944 = vmatprep.subr.bf16.mxu0 0
        %7945 = vmatpush2.bf16.msra.mxu0 0
        %7946 = vmatprep.subr.bf16.mxu0 0
        %7947 = vmatpush2.bf16.msra.mxu0 0
        %7948 = vmatprep.subr.bf16.mxu0 0
        %7949 = vmatpush2.bf16.msra.mxu0 0
        %7950 = vmatprep.subr.bf16.mxu0 0
        %7951 = vmatpush2.bf16.msra.mxu0 0
        %7952 = vmatprep.subr.bf16.mxu0 0
        %7953 = vmatpush2.bf16.msra.mxu0 0
        %7954 = vmatprep.mubr.bf16.mxu0 0
        %7955 = vmatmul.mubr.bf16.gmra.mxu0 %v7920
        %v7956 = vpop.f32.mrf.mxu0
        %v7957 = vadd.f32 0.0, %v7956
        %v7958 = vpop.f32.mrf.mxu0
        %v7959 = vpop.f32.mrf.mxu0
        %v7960 = vadd.f32 0.0, %v7959
        %v7961 = vpop.f32.mrf.mxu0
        %7962 = vdwg.mxu0
        %v7964 = vsel %vm3938, %v5405, 0
        %7966 = vmatprep.subr.bf16.mxu0 0
        %7967 = vmatpush1.bf16.msra.mxu0 0
        %7968 = vmatprep.subr.bf16.mxu0 0
        %7969 = vmatpush1.bf16.msra.mxu0 0
        %7970 = vmatprep.subr.bf16.mxu0 0
        %7971 = vmatpush1.bf16.msra.mxu0 0
        %7972 = vmatprep.subr.bf16.mxu0 0
        %7973 = vmatpush1.bf16.msra.mxu0 0
        %7974 = vmatprep.subr.bf16.mxu0 0
        %7975 = vmatpush1.bf16.msra.mxu0 0
        %7976 = vmatprep.subr.bf16.mxu0 0
        %7977 = vmatpush1.bf16.msra.mxu0 0
        %7978 = vmatprep.subr.bf16.mxu0 0
        %7979 = vmatpush1.bf16.msra.mxu0 0
        %7980 = vmatprep.subr.bf16.mxu0 0
        %7981 = vmatpush1.bf16.msra.mxu0 %v782
        %7982 = vmatprep.subr.bf16.mxu0 0
        %7983 = vmatpush2.bf16.msra.mxu0 0
        %7984 = vmatprep.subr.bf16.mxu0 0
        %7985 = vmatpush2.bf16.msra.mxu0 0
        %7986 = vmatprep.subr.bf16.mxu0 0
        %7987 = vmatpush2.bf16.msra.mxu0 0
        %7988 = vmatprep.subr.bf16.mxu0 0
        %7989 = vmatpush2.bf16.msra.mxu0 0
        %7990 = vmatprep.subr.bf16.mxu0 0
        %7991 = vmatpush2.bf16.msra.mxu0 0
        %7992 = vmatprep.subr.bf16.mxu0 0
        %7993 = vmatpush2.bf16.msra.mxu0 0
        %7994 = vmatprep.subr.bf16.mxu0 0
        %7995 = vmatpush2.bf16.msra.mxu0 0
        %7996 = vmatprep.subr.bf16.mxu0 0
        %7997 = vmatpush2.bf16.msra.mxu0 0
        %7998 = vmatprep.mubr.bf16.mxu0 0
        %7999 = vmatmul.mubr.bf16.gmra.mxu0 %v7964
        %v8000 = vpop.f32.mrf.mxu0
        %v8001 = vadd.f32 0.0, %v8000
        %v8002 = vpop.f32.mrf.mxu0
        %v8003 = vpop.f32.mrf.mxu0
        %v8004 = vadd.f32 0.0, %v8003
        %v8005 = vpop.f32.mrf.mxu0
        %8006 = vdwg.mxu0
        %v8008 = vsel %vm3938, %v5406, 0
        %8010 = vmatprep.subr.bf16.mxu0 0
        %8011 = vmatpush1.bf16.msra.mxu0 0
        %8012 = vmatprep.subr.bf16.mxu0 0
        %8013 = vmatpush1.bf16.msra.mxu0 0
        %8014 = vmatprep.subr.bf16.mxu0 0
        %8015 = vmatpush1.bf16.msra.mxu0 0
        %8016 = vmatprep.subr.bf16.mxu0 0
        %8017 = vmatpush1.bf16.msra.mxu0 0
        %8018 = vmatprep.subr.bf16.mxu0 0
        %8019 = vmatpush1.bf16.msra.mxu0 0
        %8020 = vmatprep.subr.bf16.mxu0 0
        %8021 = vmatpush1.bf16.msra.mxu0 0
        %8022 = vmatprep.subr.bf16.mxu0 0
        %8023 = vmatpush1.bf16.msra.mxu0 0
        %8024 = vmatprep.subr.bf16.mxu0 0
        %8025 = vmatpush1.bf16.msra.mxu0 %v784
        %8026 = vmatprep.subr.bf16.mxu0 0
        %8027 = vmatpush2.bf16.msra.mxu0 0
        %8028 = vmatprep.subr.bf16.mxu0 0
        %8029 = vmatpush2.bf16.msra.mxu0 0
        %8030 = vmatprep.subr.bf16.mxu0 0
        %8031 = vmatpush2.bf16.msra.mxu0 0
        %8032 = vmatprep.subr.bf16.mxu0 0
        %8033 = vmatpush2.bf16.msra.mxu0 0
        %8034 = vmatprep.subr.bf16.mxu0 0
        %8035 = vmatpush2.bf16.msra.mxu0 0
        %8036 = vmatprep.subr.bf16.mxu0 0
        %8037 = vmatpush2.bf16.msra.mxu0 0
        %8038 = vmatprep.subr.bf16.mxu0 0
        %8039 = vmatpush2.bf16.msra.mxu0 0
        %8040 = vmatprep.subr.bf16.mxu0 0
        %8041 = vmatpush2.bf16.msra.mxu0 0
        %8042 = vmatprep.mubr.bf16.mxu0 0
        %8043 = vmatmul.mubr.bf16.gmra.mxu0 %v8008
        %v8044 = vpop.f32.mrf.mxu0
        %v8045 = vadd.f32 0.0, %v8044
        %v8046 = vpop.f32.mrf.mxu0
        %v8047 = vpop.f32.mrf.mxu0
        %v8048 = vadd.f32 0.0, %v8047
        %v8049 = vpop.f32.mrf.mxu0
        %8050 = vdwg.mxu0
        %v8052 = vsel %vm3938, %v5407, 0
        %8054 = vmatprep.subr.bf16.mxu0 0
        %8055 = vmatpush1.bf16.msra.mxu0 0
        %8056 = vmatprep.subr.bf16.mxu0 0
        %8057 = vmatpush1.bf16.msra.mxu0 0
        %8058 = vmatprep.subr.bf16.mxu0 0
        %8059 = vmatpush1.bf16.msra.mxu0 0
        %8060 = vmatprep.subr.bf16.mxu0 0
        %8061 = vmatpush1.bf16.msra.mxu0 0
        %8062 = vmatprep.subr.bf16.mxu0 0
        %8063 = vmatpush1.bf16.msra.mxu0 0
        %8064 = vmatprep.subr.bf16.mxu0 0
        %8065 = vmatpush1.bf16.msra.mxu0 0
        %8066 = vmatprep.subr.bf16.mxu0 0
        %8067 = vmatpush1.bf16.msra.mxu0 0
        %8068 = vmatprep.subr.bf16.mxu0 0
        %8069 = vmatpush1.bf16.msra.mxu0 %v786
        %8070 = vmatprep.subr.bf16.mxu0 0
        %8071 = vmatpush2.bf16.msra.mxu0 0
        %8072 = vmatprep.subr.bf16.mxu0 0
        %8073 = vmatpush2.bf16.msra.mxu0 0
        %8074 = vmatprep.subr.bf16.mxu0 0
        %8075 = vmatpush2.bf16.msra.mxu0 0
        %8076 = vmatprep.subr.bf16.mxu0 0
        %8077 = vmatpush2.bf16.msra.mxu0 0
        %8078 = vmatprep.subr.bf16.mxu0 0
        %8079 = vmatpush2.bf16.msra.mxu0 0
        %8080 = vmatprep.subr.bf16.mxu0 0
        %8081 = vmatpush2.bf16.msra.mxu0 0
        %8082 = vmatprep.subr.bf16.mxu0 0
        %8083 = vmatpush2.bf16.msra.mxu0 0
        %8084 = vmatprep.subr.bf16.mxu0 0
        %8085 = vmatpush2.bf16.msra.mxu0 0
        %8086 = vmatprep.mubr.bf16.mxu0 0
        %8087 = vmatmul.mubr.bf16.gmra.mxu0 %v8052
        %v8088 = vpop.f32.mrf.mxu0
        %v8089 = vadd.f32 0.0, %v8088
        %v8090 = vpop.f32.mrf.mxu0
        %v8091 = vpop.f32.mrf.mxu0
        %v8092 = vadd.f32 0.0, %v8091
        %v8093 = vpop.f32.mrf.mxu0
        %8094 = vdwg.mxu0
        %v8096 = vsel %vm3938, %v5408, 0
        %8098 = vmatprep.subr.bf16.mxu0 0
        %8099 = vmatpush1.bf16.msra.mxu0 0
        %8100 = vmatprep.subr.bf16.mxu0 0
        %8101 = vmatpush1.bf16.msra.mxu0 0
        %8102 = vmatprep.subr.bf16.mxu0 0
        %8103 = vmatpush1.bf16.msra.mxu0 0
        %8104 = vmatprep.subr.bf16.mxu0 0
        %8105 = vmatpush1.bf16.msra.mxu0 0
        %8106 = vmatprep.subr.bf16.mxu0 0
        %8107 = vmatpush1.bf16.msra.mxu0 0
        %8108 = vmatprep.subr.bf16.mxu0 0
        %8109 = vmatpush1.bf16.msra.mxu0 0
        %8110 = vmatprep.subr.bf16.mxu0 0
        %8111 = vmatpush1.bf16.msra.mxu0 0
        %8112 = vmatprep.subr.bf16.mxu0 0
        %8113 = vmatpush1.bf16.msra.mxu0 %v788
        %8114 = vmatprep.subr.bf16.mxu0 0
        %8115 = vmatpush2.bf16.msra.mxu0 0
        %8116 = vmatprep.subr.bf16.mxu0 0
        %8117 = vmatpush2.bf16.msra.mxu0 0
        %8118 = vmatprep.subr.bf16.mxu0 0
        %8119 = vmatpush2.bf16.msra.mxu0 0
        %8120 = vmatprep.subr.bf16.mxu0 0
        %8121 = vmatpush2.bf16.msra.mxu0 0
        %8122 = vmatprep.subr.bf16.mxu0 0
        %8123 = vmatpush2.bf16.msra.mxu0 0
        %8124 = vmatprep.subr.bf16.mxu0 0
        %8125 = vmatpush2.bf16.msra.mxu0 0
        %8126 = vmatprep.subr.bf16.mxu0 0
        %8127 = vmatpush2.bf16.msra.mxu0 0
        %8128 = vmatprep.subr.bf16.mxu0 0
        %8129 = vmatpush2.bf16.msra.mxu0 0
        %8130 = vmatprep.mubr.bf16.mxu0 0
        %8131 = vmatmul.mubr.bf16.gmra.mxu0 %v8096
        %v8132 = vpop.f32.mrf.mxu0
        %v8133 = vadd.f32 0.0, %v8132
        %v8134 = vpop.f32.mrf.mxu0
        %v8135 = vpop.f32.mrf.mxu0
        %v8136 = vadd.f32 0.0, %v8135
        %v8137 = vpop.f32.mrf.mxu0
        %8138 = vdwg.mxu0
        %v8140 = vsel %vm3938, %v5409, 0
        %8142 = vmatprep.subr.bf16.mxu0 0
        %8143 = vmatpush1.bf16.msra.mxu0 0
        %8144 = vmatprep.subr.bf16.mxu0 0
        %8145 = vmatpush1.bf16.msra.mxu0 0
        %8146 = vmatprep.subr.bf16.mxu0 0
        %8147 = vmatpush1.bf16.msra.mxu0 0
        %8148 = vmatprep.subr.bf16.mxu0 0
        %8149 = vmatpush1.bf16.msra.mxu0 0
        %8150 = vmatprep.subr.bf16.mxu0 0
        %8151 = vmatpush1.bf16.msra.mxu0 0
        %8152 = vmatprep.subr.bf16.mxu0 0
        %8153 = vmatpush1.bf16.msra.mxu0 0
        %8154 = vmatprep.subr.bf16.mxu0 0
        %8155 = vmatpush1.bf16.msra.mxu0 0
        %8156 = vmatprep.subr.bf16.mxu0 0
        %8157 = vmatpush1.bf16.msra.mxu0 %v790
        %8158 = vmatprep.subr.bf16.mxu0 0
        %8159 = vmatpush2.bf16.msra.mxu0 0
        %8160 = vmatprep.subr.bf16.mxu0 0
        %8161 = vmatpush2.bf16.msra.mxu0 0
        %8162 = vmatprep.subr.bf16.mxu0 0
        %8163 = vmatpush2.bf16.msra.mxu0 0
        %8164 = vmatprep.subr.bf16.mxu0 0
        %8165 = vmatpush2.bf16.msra.mxu0 0
        %8166 = vmatprep.subr.bf16.mxu0 0
        %8167 = vmatpush2.bf16.msra.mxu0 0
        %8168 = vmatprep.subr.bf16.mxu0 0
        %8169 = vmatpush2.bf16.msra.mxu0 0
        %8170 = vmatprep.subr.bf16.mxu0 0
        %8171 = vmatpush2.bf16.msra.mxu0 0
        %8172 = vmatprep.subr.bf16.mxu0 0
        %8173 = vmatpush2.bf16.msra.mxu0 0
        %8174 = vmatprep.mubr.bf16.mxu0 0
        %8175 = vmatmul.mubr.bf16.gmra.mxu0 %v8140
        %v8176 = vpop.f32.mrf.mxu0
        %v8177 = vadd.f32 0.0, %v8176
        %v8178 = vpop.f32.mrf.mxu0
        %v8179 = vpop.f32.mrf.mxu0
        %v8180 = vadd.f32 0.0, %v8179
        %v8181 = vpop.f32.mrf.mxu0
        %8182 = vdwg.mxu0
        %v8184 = vsel %vm3938, %v5410, 0
        %8186 = vmatprep.subr.bf16.mxu0 0
        %8187 = vmatpush1.bf16.msra.mxu0 0
        %8188 = vmatprep.subr.bf16.mxu0 0
        %8189 = vmatpush1.bf16.msra.mxu0 0
        %8190 = vmatprep.subr.bf16.mxu0 0
        %8191 = vmatpush1.bf16.msra.mxu0 0
        %8192 = vmatprep.subr.bf16.mxu0 0
        %8193 = vmatpush1.bf16.msra.mxu0 0
        %8194 = vmatprep.subr.bf16.mxu0 0
        %8195 = vmatpush1.bf16.msra.mxu0 0
        %8196 = vmatprep.subr.bf16.mxu0 0
        %8197 = vmatpush1.bf16.msra.mxu0 0
        %8198 = vmatprep.subr.bf16.mxu0 0
        %8199 = vmatpush1.bf16.msra.mxu0 0
        %8200 = vmatprep.subr.bf16.mxu0 0
        %8201 = vmatpush1.bf16.msra.mxu0 %v792
        %8202 = vmatprep.subr.bf16.mxu0 0
        %8203 = vmatpush2.bf16.msra.mxu0 0
        %8204 = vmatprep.subr.bf16.mxu0 0
        %8205 = vmatpush2.bf16.msra.mxu0 0
        %8206 = vmatprep.subr.bf16.mxu0 0
        %8207 = vmatpush2.bf16.msra.mxu0 0
        %8208 = vmatprep.subr.bf16.mxu0 0
        %8209 = vmatpush2.bf16.msra.mxu0 0
        %8210 = vmatprep.subr.bf16.mxu0 0
        %8211 = vmatpush2.bf16.msra.mxu0 0
        %8212 = vmatprep.subr.bf16.mxu0 0
        %8213 = vmatpush2.bf16.msra.mxu0 0
        %8214 = vmatprep.subr.bf16.mxu0 0
        %8215 = vmatpush2.bf16.msra.mxu0 0
        %8216 = vmatprep.subr.bf16.mxu0 0
        %8217 = vmatpush2.bf16.msra.mxu0 0
        %8218 = vmatprep.mubr.bf16.mxu0 0
        %8219 = vmatmul.mubr.bf16.gmra.mxu0 %v8184
        %v8220 = vpop.f32.mrf.mxu0
        %v8221 = vadd.f32 0.0, %v8220
        %v8222 = vpop.f32.mrf.mxu0
        %v8223 = vpop.f32.mrf.mxu0
        %v8224 = vadd.f32 0.0, %v8223
        %v8225 = vpop.f32.mrf.mxu0
        %8226 = vdwg.mxu0
        %8243 = vrot.lane.b32.xlu0 %v5801, 8
        %v8244 = vpop.permute.xlu0 %8243
        %8245 = vrot.lane.b32.xlu0 %v5804, 8
        %v8246 = vpop.permute.xlu0 %8245
        %8247 = vrot.lane.b32.xlu0 %v5845, 8
        %v8248 = vpop.permute.xlu0 %8247
        %8249 = vrot.lane.b32.xlu0 %v5848, 8
        %v8250 = vpop.permute.xlu0 %8249
        %8251 = vrot.lane.b32.xlu0 %v5889, 8
        %v8252 = vpop.permute.xlu0 %8251
        %8253 = vrot.lane.b32.xlu0 %v5892, 8
        %v8254 = vpop.permute.xlu0 %8253
        %8255 = vrot.lane.b32.xlu0 %v5933, 8
        %v8256 = vpop.permute.xlu0 %8255
        %8257 = vrot.lane.b32.xlu0 %v5936, 8
        %v8258 = vpop.permute.xlu0 %8257
        %8259 = vrot.lane.b32.xlu0 %v5977, 8
        %v8260 = vpop.permute.xlu0 %8259
        %8261 = vrot.lane.b32.xlu0 %v5980, 8
        %v8262 = vpop.permute.xlu0 %8261
        %8263 = vrot.lane.b32.xlu0 %v6021, 8
        %v8264 = vpop.permute.xlu0 %8263
        %8265 = vrot.lane.b32.xlu0 %v6024, 8
        %v8266 = vpop.permute.xlu0 %8265
        %8267 = vrot.lane.b32.xlu0 %v6065, 8
        %v8268 = vpop.permute.xlu0 %8267
        %8269 = vrot.lane.b32.xlu0 %v6068, 8
        %v8270 = vpop.permute.xlu0 %8269
        %8271 = vrot.lane.b32.xlu0 %v6109, 8
        %v8272 = vpop.permute.xlu0 %8271
        %8273 = vrot.lane.b32.xlu0 %v6112, 8
        %v8274 = vpop.permute.xlu0 %8273
        %8307 = vrot.lane.b32.xlu0 %v6153, 16
        %v8308 = vpop.permute.xlu0 %8307
        %8309 = vrot.lane.b32.xlu0 %v6156, 16
        %v8310 = vpop.permute.xlu0 %8309
        %8311 = vrot.lane.b32.xlu0 %v6197, 16
        %v8312 = vpop.permute.xlu0 %8311
        %8313 = vrot.lane.b32.xlu0 %v6200, 16
        %v8314 = vpop.permute.xlu0 %8313
        %8315 = vrot.lane.b32.xlu0 %v6241, 16
        %v8316 = vpop.permute.xlu0 %8315
        %8317 = vrot.lane.b32.xlu0 %v6244, 16
        %v8318 = vpop.permute.xlu0 %8317
        %8319 = vrot.lane.b32.xlu0 %v6285, 16
        %v8320 = vpop.permute.xlu0 %8319
        %8321 = vrot.lane.b32.xlu0 %v6288, 16
        %v8322 = vpop.permute.xlu0 %8321
        %8323 = vrot.lane.b32.xlu0 %v6329, 16
        %v8324 = vpop.permute.xlu0 %8323
        %8325 = vrot.lane.b32.xlu0 %v6332, 16
        %v8326 = vpop.permute.xlu0 %8325
        %8327 = vrot.lane.b32.xlu0 %v6373, 16
        %v8328 = vpop.permute.xlu0 %8327
        %8329 = vrot.lane.b32.xlu0 %v6376, 16
        %v8330 = vpop.permute.xlu0 %8329
        %8331 = vrot.lane.b32.xlu0 %v6417, 16
        %v8332 = vpop.permute.xlu0 %8331
        %8333 = vrot.lane.b32.xlu0 %v6420, 16
        %v8334 = vpop.permute.xlu0 %8333
        %8335 = vrot.lane.b32.xlu0 %v6461, 16
        %v8336 = vpop.permute.xlu0 %8335
        %8337 = vrot.lane.b32.xlu0 %v6464, 16
        %v8338 = vpop.permute.xlu0 %8337
        %8371 = vrot.lane.b32.xlu0 %v6505, 24
        %v8372 = vpop.permute.xlu0 %8371
        %8373 = vrot.lane.b32.xlu0 %v6508, 24
        %v8374 = vpop.permute.xlu0 %8373
        %8375 = vrot.lane.b32.xlu0 %v6549, 24
        %v8376 = vpop.permute.xlu0 %8375
        %8377 = vrot.lane.b32.xlu0 %v6552, 24
        %v8378 = vpop.permute.xlu0 %8377
        %8379 = vrot.lane.b32.xlu0 %v6593, 24
        %v8380 = vpop.permute.xlu0 %8379
        %8381 = vrot.lane.b32.xlu0 %v6596, 24
        %v8382 = vpop.permute.xlu0 %8381
        %8383 = vrot.lane.b32.xlu0 %v6637, 24
        %v8384 = vpop.permute.xlu0 %8383
        %8385 = vrot.lane.b32.xlu0 %v6640, 24
        %v8386 = vpop.permute.xlu0 %8385
        %8387 = vrot.lane.b32.xlu0 %v6681, 24
        %v8388 = vpop.permute.xlu0 %8387
        %8389 = vrot.lane.b32.xlu0 %v6684, 24
        %v8390 = vpop.permute.xlu0 %8389
        %8391 = vrot.lane.b32.xlu0 %v6725, 24
        %v8392 = vpop.permute.xlu0 %8391
        %8393 = vrot.lane.b32.xlu0 %v6728, 24
        %v8394 = vpop.permute.xlu0 %8393
        %8395 = vrot.lane.b32.xlu0 %v6769, 24
        %v8396 = vpop.permute.xlu0 %8395
        %8397 = vrot.lane.b32.xlu0 %v6772, 24
        %v8398 = vpop.permute.xlu0 %8397
        %8399 = vrot.lane.b32.xlu0 %v6813, 24
        %v8400 = vpop.permute.xlu0 %8399
        %8401 = vrot.lane.b32.xlu0 %v6816, 24
        %v8402 = vpop.permute.xlu0 %8401
        %8435 = vrot.lane.b32.xlu0 %v6857, 32
        %v8436 = vpop.permute.xlu0 %8435
        %8437 = vrot.lane.b32.xlu0 %v6860, 32
        %v8438 = vpop.permute.xlu0 %8437
        %8439 = vrot.lane.b32.xlu0 %v6901, 32
        %v8440 = vpop.permute.xlu0 %8439
        %8441 = vrot.lane.b32.xlu0 %v6904, 32
        %v8442 = vpop.permute.xlu0 %8441
        %8443 = vrot.lane.b32.xlu0 %v6945, 32
        %v8444 = vpop.permute.xlu0 %8443
        %8445 = vrot.lane.b32.xlu0 %v6948, 32
        %v8446 = vpop.permute.xlu0 %8445
        %8447 = vrot.lane.b32.xlu0 %v6989, 32
        %v8448 = vpop.permute.xlu0 %8447
        %8449 = vrot.lane.b32.xlu0 %v6992, 32
        %v8450 = vpop.permute.xlu0 %8449
        %8451 = vrot.lane.b32.xlu0 %v7033, 32
        %v8452 = vpop.permute.xlu0 %8451
        %8453 = vrot.lane.b32.xlu0 %v7036, 32
        %v8454 = vpop.permute.xlu0 %8453
        %8455 = vrot.lane.b32.xlu0 %v7077, 32
        %v8456 = vpop.permute.xlu0 %8455
        %8457 = vrot.lane.b32.xlu0 %v7080, 32
        %v8458 = vpop.permute.xlu0 %8457
        %8459 = vrot.lane.b32.xlu0 %v7121, 32
        %v8460 = vpop.permute.xlu0 %8459
        %8461 = vrot.lane.b32.xlu0 %v7124, 32
        %v8462 = vpop.permute.xlu0 %8461
        %8463 = vrot.lane.b32.xlu0 %v7165, 32
        %v8464 = vpop.permute.xlu0 %8463
        %8465 = vrot.lane.b32.xlu0 %v7168, 32
        %v8466 = vpop.permute.xlu0 %8465
        %8499 = vrot.lane.b32.xlu0 %v7209, 40
        %v8500 = vpop.permute.xlu0 %8499
        %8501 = vrot.lane.b32.xlu0 %v7212, 40
        %v8502 = vpop.permute.xlu0 %8501
        %8503 = vrot.lane.b32.xlu0 %v7253, 40
        %v8504 = vpop.permute.xlu0 %8503
        %8505 = vrot.lane.b32.xlu0 %v7256, 40
        %v8506 = vpop.permute.xlu0 %8505
        %8507 = vrot.lane.b32.xlu0 %v7297, 40
        %v8508 = vpop.permute.xlu0 %8507
        %8509 = vrot.lane.b32.xlu0 %v7300, 40
        %v8510 = vpop.permute.xlu0 %8509
        %8511 = vrot.lane.b32.xlu0 %v7341, 40
        %v8512 = vpop.permute.xlu0 %8511
        %8513 = vrot.lane.b32.xlu0 %v7344, 40
        %v8514 = vpop.permute.xlu0 %8513
        %8515 = vrot.lane.b32.xlu0 %v7385, 40
        %v8516 = vpop.permute.xlu0 %8515
        %8517 = vrot.lane.b32.xlu0 %v7388, 40
        %v8518 = vpop.permute.xlu0 %8517
        %8519 = vrot.lane.b32.xlu0 %v7429, 40
        %v8520 = vpop.permute.xlu0 %8519
        %8521 = vrot.lane.b32.xlu0 %v7432, 40
        %v8522 = vpop.permute.xlu0 %8521
        %8523 = vrot.lane.b32.xlu0 %v7473, 40
        %v8524 = vpop.permute.xlu0 %8523
        %8525 = vrot.lane.b32.xlu0 %v7476, 40
        %v8526 = vpop.permute.xlu0 %8525
        %8527 = vrot.lane.b32.xlu0 %v7517, 40
        %v8528 = vpop.permute.xlu0 %8527
        %8529 = vrot.lane.b32.xlu0 %v7520, 40
        %v8530 = vpop.permute.xlu0 %8529
        %8563 = vrot.lane.b32.xlu0 %v7561, 48
        %v8564 = vpop.permute.xlu0 %8563
        %8565 = vrot.lane.b32.xlu0 %v7564, 48
        %v8566 = vpop.permute.xlu0 %8565
        %8567 = vrot.lane.b32.xlu0 %v7605, 48
        %v8568 = vpop.permute.xlu0 %8567
        %8569 = vrot.lane.b32.xlu0 %v7608, 48
        %v8570 = vpop.permute.xlu0 %8569
        %8571 = vrot.lane.b32.xlu0 %v7649, 48
        %v8572 = vpop.permute.xlu0 %8571
        %8573 = vrot.lane.b32.xlu0 %v7652, 48
        %v8574 = vpop.permute.xlu0 %8573
        %8575 = vrot.lane.b32.xlu0 %v7693, 48
        %v8576 = vpop.permute.xlu0 %8575
        %8577 = vrot.lane.b32.xlu0 %v7696, 48
        %v8578 = vpop.permute.xlu0 %8577
        %8579 = vrot.lane.b32.xlu0 %v7737, 48
        %v8580 = vpop.permute.xlu0 %8579
        %8581 = vrot.lane.b32.xlu0 %v7740, 48
        %v8582 = vpop.permute.xlu0 %8581
        %8583 = vrot.lane.b32.xlu0 %v7781, 48
        %v8584 = vpop.permute.xlu0 %8583
        %8585 = vrot.lane.b32.xlu0 %v7784, 48
        %v8586 = vpop.permute.xlu0 %8585
        %8587 = vrot.lane.b32.xlu0 %v7825, 48
        %v8588 = vpop.permute.xlu0 %8587
        %8589 = vrot.lane.b32.xlu0 %v7828, 48
        %v8590 = vpop.permute.xlu0 %8589
        %8591 = vrot.lane.b32.xlu0 %v7869, 48
        %v8592 = vpop.permute.xlu0 %8591
        %8593 = vrot.lane.b32.xlu0 %v7872, 48
        %v8594 = vpop.permute.xlu0 %8593
        %8627 = vrot.lane.b32.xlu0 %v7913, 56
        %v8628 = vpop.permute.xlu0 %8627
        %8629 = vrot.lane.b32.xlu0 %v7916, 56
        %v8630 = vpop.permute.xlu0 %8629
        %8631 = vrot.lane.b32.xlu0 %v7957, 56
        %v8632 = vpop.permute.xlu0 %8631
        %8633 = vrot.lane.b32.xlu0 %v7960, 56
        %v8634 = vpop.permute.xlu0 %8633
        %8635 = vrot.lane.b32.xlu0 %v8001, 56
        %v8636 = vpop.permute.xlu0 %8635
        %8637 = vrot.lane.b32.xlu0 %v8004, 56
        %v8638 = vpop.permute.xlu0 %8637
        %8639 = vrot.lane.b32.xlu0 %v8045, 56
        %v8640 = vpop.permute.xlu0 %8639
        %8641 = vrot.lane.b32.xlu0 %v8048, 56
        %v8642 = vpop.permute.xlu0 %8641
        %8643 = vrot.lane.b32.xlu0 %v8089, 56
        %v8644 = vpop.permute.xlu0 %8643
        %8645 = vrot.lane.b32.xlu0 %v8092, 56
        %v8646 = vpop.permute.xlu0 %8645
        %8647 = vrot.lane.b32.xlu0 %v8133, 56
        %v8648 = vpop.permute.xlu0 %8647
        %8649 = vrot.lane.b32.xlu0 %v8136, 56
        %v8650 = vpop.permute.xlu0 %8649
        %8651 = vrot.lane.b32.xlu0 %v8177, 56
        %v8652 = vpop.permute.xlu0 %8651
        %8653 = vrot.lane.b32.xlu0 %v8180, 56
        %v8654 = vpop.permute.xlu0 %8653
        %8655 = vrot.lane.b32.xlu0 %v8221, 56
        %v8656 = vpop.permute.xlu0 %8655
        %8657 = vrot.lane.b32.xlu0 %v8224, 56
        %v8658 = vpop.permute.xlu0 %8657
        %v8675 = vsel %vm803, %v5449, %v8244
        %v8676 = vsel %vm803, %v5452, %v8246
        %v8677 = vsel %vm803, %v5493, %v8248
        %v8678 = vsel %vm803, %v5496, %v8250
        %v8679 = vsel %vm803, %v5537, %v8252
        %v8680 = vsel %vm803, %v5540, %v8254
        %v8681 = vsel %vm803, %v5581, %v8256
        %v8682 = vsel %vm803, %v5584, %v8258
        %v8683 = vsel %vm803, %v5625, %v8260
        %v8684 = vsel %vm803, %v5628, %v8262
        %v8685 = vsel %vm803, %v5669, %v8264
        %v8686 = vsel %vm803, %v5672, %v8266
        %v8687 = vsel %vm803, %v5713, %v8268
        %v8688 = vsel %vm803, %v5716, %v8270
        %v8689 = vsel %vm803, %v5757, %v8272
        %v8690 = vsel %vm803, %v5760, %v8274
        %v8691 = vsel %vm3938, %v8675, %v8308
        %v8692 = vsel %vm3938, %v8676, %v8310
        %v8693 = vsel %vm3938, %v8677, %v8312
        %v8694 = vsel %vm3938, %v8678, %v8314
        %v8695 = vsel %vm3938, %v8679, %v8316
        %v8696 = vsel %vm3938, %v8680, %v8318
        %v8697 = vsel %vm3938, %v8681, %v8320
        %v8698 = vsel %vm3938, %v8682, %v8322
        %v8699 = vsel %vm3938, %v8683, %v8324
        %v8700 = vsel %vm3938, %v8684, %v8326
        %v8701 = vsel %vm3938, %v8685, %v8328
        %v8702 = vsel %vm3938, %v8686, %v8330
        %v8703 = vsel %vm3938, %v8687, %v8332
        %v8704 = vsel %vm3938, %v8688, %v8334
        %v8705 = vsel %vm3938, %v8689, %v8336
        %v8706 = vsel %vm3938, %v8690, %v8338
        %vm8707 = vcmask 195584
        %v8708 = vsel %vm8707, %v8691, %v8372
        %v8709 = vsel %vm8707, %v8692, %v8374
        %v8710 = vsel %vm8707, %v8693, %v8376
        %v8711 = vsel %vm8707, %v8694, %v8378
        %v8712 = vsel %vm8707, %v8695, %v8380
        %v8713 = vsel %vm8707, %v8696, %v8382
        %v8714 = vsel %vm8707, %v8697, %v8384
        %v8715 = vsel %vm8707, %v8698, %v8386
        %v8716 = vsel %vm8707, %v8699, %v8388
        %v8717 = vsel %vm8707, %v8700, %v8390
        %v8718 = vsel %vm8707, %v8701, %v8392
        %v8719 = vsel %vm8707, %v8702, %v8394
        %v8720 = vsel %vm8707, %v8703, %v8396
        %v8721 = vsel %vm8707, %v8704, %v8398
        %v8722 = vsel %vm8707, %v8705, %v8400
        %v8723 = vsel %vm8707, %v8706, %v8402
        %vm8724 = vcmask 261120
        %v8725 = vsel %vm8724, %v8708, %v8436
        %v8726 = vsel %vm8724, %v8709, %v8438
        %v8727 = vsel %vm8724, %v8710, %v8440
        %v8728 = vsel %vm8724, %v8711, %v8442
        %v8729 = vsel %vm8724, %v8712, %v8444
        %v8730 = vsel %vm8724, %v8713, %v8446
        %v8731 = vsel %vm8724, %v8714, %v8448
        %v8732 = vsel %vm8724, %v8715, %v8450
        %v8733 = vsel %vm8724, %v8716, %v8452
        %v8734 = vsel %vm8724, %v8717, %v8454
        %v8735 = vsel %vm8724, %v8718, %v8456
        %v8736 = vsel %vm8724, %v8719, %v8458
        %v8737 = vsel %vm8724, %v8720, %v8460
        %v8738 = vsel %vm8724, %v8721, %v8462
        %v8739 = vsel %vm8724, %v8722, %v8464
        %v8740 = vsel %vm8724, %v8723, %v8466
        %vm8741 = vcmask 326656
        %v8742 = vsel %vm8741, %v8725, %v8500
        %v8743 = vsel %vm8741, %v8726, %v8502
        %v8744 = vsel %vm8741, %v8727, %v8504
        %v8745 = vsel %vm8741, %v8728, %v8506
        %v8746 = vsel %vm8741, %v8729, %v8508
        %v8747 = vsel %vm8741, %v8730, %v8510
        %v8748 = vsel %vm8741, %v8731, %v8512
        %v8749 = vsel %vm8741, %v8732, %v8514
        %v8750 = vsel %vm8741, %v8733, %v8516
        %v8751 = vsel %vm8741, %v8734, %v8518
        %v8752 = vsel %vm8741, %v8735, %v8520
        %v8753 = vsel %vm8741, %v8736, %v8522
        %v8754 = vsel %vm8741, %v8737, %v8524
        %v8755 = vsel %vm8741, %v8738, %v8526
        %v8756 = vsel %vm8741, %v8739, %v8528
        %v8757 = vsel %vm8741, %v8740, %v8530
        %vm8758 = vcmask 392192
        %v8759 = vsel %vm8758, %v8742, %v8564
        %v8760 = vsel %vm8758, %v8743, %v8566
        %v8761 = vsel %vm8758, %v8744, %v8568
        %v8762 = vsel %vm8758, %v8745, %v8570
        %v8763 = vsel %vm8758, %v8746, %v8572
        %v8764 = vsel %vm8758, %v8747, %v8574
        %v8765 = vsel %vm8758, %v8748, %v8576
        %v8766 = vsel %vm8758, %v8749, %v8578
        %v8767 = vsel %vm8758, %v8750, %v8580
        %v8768 = vsel %vm8758, %v8751, %v8582
        %v8769 = vsel %vm8758, %v8752, %v8584
        %v8770 = vsel %vm8758, %v8753, %v8586
        %v8771 = vsel %vm8758, %v8754, %v8588
        %v8772 = vsel %vm8758, %v8755, %v8590
        %v8773 = vsel %vm8758, %v8756, %v8592
        %v8774 = vsel %vm8758, %v8757, %v8594
        %vm8775 = vcmask 457728
        %v8776 = vsel %vm8775, %v8759, %v8628
        %v8777 = vsel %vm8775, %v8760, %v8630
        %v8778 = vsel %vm8775, %v8761, %v8632
        %v8779 = vsel %vm8775, %v8762, %v8634
        %v8780 = vsel %vm8775, %v8763, %v8636
        %v8781 = vsel %vm8775, %v8764, %v8638
        %v8782 = vsel %vm8775, %v8765, %v8640
        %v8783 = vsel %vm8775, %v8766, %v8642
        %v8784 = vsel %vm8775, %v8767, %v8644
        %v8785 = vsel %vm8775, %v8768, %v8646
        %v8786 = vsel %vm8775, %v8769, %v8648
        %v8787 = vsel %vm8775, %v8770, %v8650
        %v8788 = vsel %vm8775, %v8771, %v8652
        %v8789 = vsel %vm8775, %v8772, %v8654
        %v8790 = vsel %vm8775, %v8773, %v8656
        %v8791 = vsel %vm8775, %v8774, %v8658
        %v8792 = vsel %vm351, %v8776, 0.0
        %v8793 = vsel %vm351, %v8777, 0.0
        %v8794 = vsel %vm351, %v8778, 0.0
        %v8795 = vsel %vm351, %v8779, 0.0
        %v8796 = vsel %vm351, %v8780, 0.0
        %v8797 = vsel %vm351, %v8781, 0.0
        %v8798 = vsel %vm351, %v8782, 0.0
        %v8799 = vsel %vm351, %v8783, 0.0
        %v8800 = vsel %vm351, %v8784, 0.0
        %v8801 = vsel %vm351, %v8785, 0.0
        %v8802 = vsel %vm351, %v8786, 0.0
        %v8803 = vsel %vm351, %v8787, 0.0
        %v8804 = vsel %vm351, %v8788, 0.0
        %v8805 = vsel %vm351, %v8789, 0.0
        %v8806 = vsel %vm351, %v8790, 0.0
        %v8807 = vsel %vm351, %v8791, 0.0
        %v8808 = vld [vmem:[%s3] sm:$0x1]
        %v8810 = vlaneseq
        %v8811 = vshrl.u32 %v8810, 7
        %v8812 = vsub.s32 0, %v8811
        %v8813 = vrot.slane %v8808, %v8812
        %v8815 = vadd.f32 %v8792, %v8813
        %v8816 = vadd.f32 %v8793, %v8813
        %v8817 = vadd.f32 %v8794, %v8813
        %v8818 = vadd.f32 %v8795, %v8813
        %v8819 = vadd.f32 %v8796, %v8813
        %v8820 = vadd.f32 %v8797, %v8813
        %v8821 = vadd.f32 %v8798, %v8813
        %v8822 = vadd.f32 %v8799, %v8813
        %v8823 = vadd.f32 %v8800, %v8813
        %v8824 = vadd.f32 %v8801, %v8813
        %v8825 = vadd.f32 %v8802, %v8813
        %v8826 = vadd.f32 %v8803, %v8813
        %v8827 = vadd.f32 %v8804, %v8813
        %v8828 = vadd.f32 %v8805, %v8813
        %v8829 = vadd.f32 %v8806, %v8813
        %v8830 = vadd.f32 %v8807, %v8813
        %8831 = vst [vmem:[%s231] sm:$0xff] %v8815
        %8832 = vst [vmem:[%s231 + $0x8] sm:$0xff] %v8816
        %8833 = vst [vmem:[%s231 + $0x10] sm:$0xff] %v8817
        %8834 = vst [vmem:[%s231 + $0x18] sm:$0xff] %v8818
        %8835 = vst [vmem:[%s231 + $0x20] sm:$0xff] %v8819
        %8836 = vst [vmem:[%s231 + $0x28] sm:$0xff] %v8820
        %8837 = vst [vmem:[%s231 + $0x30] sm:$0xff] %v8821
        %8838 = vst [vmem:[%s231 + $0x38] sm:$0xff] %v8822
        %8839 = vst [vmem:[%s231 + $0x40] sm:$0xff] %v8823
        %8840 = vst [vmem:[%s231 + $0x48] sm:$0xff] %v8824
        %8841 = vst [vmem:[%s231 + $0x50] sm:$0xff] %v8825
        %8842 = vst [vmem:[%s231 + $0x58] sm:$0xff] %v8826
        %8843 = vst [vmem:[%s231 + $0x60] sm:$0xff] %v8827
        %8844 = vst [vmem:[%s231 + $0x68] sm:$0xff] %v8828
        %8845 = vst [vmem:[%s231 + $0x70] sm:$0xff] %v8829
        %8846 = vst [vmem:[%s231 + $0x78] sm:$0xff] %v8830
        %s8847 = sand.u32 %s119, 1
        %s8848 = scalar_lea.sflag [#allocation4], %s8847
        %s8849 = sand.u32 %s119, 1
        %s8850 = smul.addr %s8849, 128
        %s8851 = scalar_lea.vmem [#allocation7], %s8850
        // Predicated region
        $region45: #{tpu_custom_call.1} parent=35 // pred_check
          %p8852 = pneg %p129
        $region46: #{tpu_custom_call.1} parent=35 // pred_check_branch
          %8854 = sbr.rel (%p8852) target = $region48
        $region47: #{tpu_custom_call.1} parent=35 // pred_region
          %s8855 = smul.u32 8, %s22
          %s8857 = ssub.s32 2048, 2048
          %8858 = vsyncadd %s8848, %s8857
          %s8859 = smul.addr %s8855, 2
          %s8860 = smul.addr %s8859, 128
          %s8861 = scalar_lea.hbm %s4, %s8860
          %s8862 = sshll.u32 %s8851, 4
          %s8863 = int_to_ptr.vmem [resolvable:$true] %s8862
          %8868 = dma.vmem_to_hbm [thread:$0]  %s8863, 2048, %s8861, %s8848, 128, 128, 8
        $region48: #{tpu_custom_call.1} parent=35 // pred_fallthru
          _
      $region36: #{tpu_custom_call.1} parent=5 // pred_fallthru
        _
      %p8869 = scmp.le.s32.totalorder 2, %s17
      // Predicated region
      $region49: #{tpu_custom_call.1} parent=5 // pred_check
        %p8870 = pneg %p8869
      $region50: #{tpu_custom_call.1} parent=5 // pred_check_branch
        %8872 = sbr.rel (%p8870) target = $region52
      $region51: #{tpu_custom_call.1} parent=5 // pred_region
        %s8873 = ssub.s32 %s17, 2
        // Predicated region
        $region53: #{tpu_custom_call.1} parent=51 // pred_check
          %p8874 = pneg %p135
        $region54: #{tpu_custom_call.1} parent=51 // pred_check_branch
          %8876 = sbr.rel (%p8874) target = $region56
        $region55: #{tpu_custom_call.1} parent=51 // pred_region
          %s8877 = sand.u32 %s120, 1
          %s8878 = scalar_lea.sflag [#allocation4], %s8877
          %s8879 = sand.u32 %s120, 1
          %s8880 = smul.addr %s8879, 128
          %s8881 = scalar_lea.vmem [#allocation7], %s8880
          %8882 = dma.done %s8878, 2048
        $region56: #{tpu_custom_call.1} parent=51 // pred_fallthru
          _
      $region52: #{tpu_custom_call.1} parent=5 // pred_fallthru
        _
    $region6: #{tpu_custom_call.1} parent=1 // loop_footer
      %s21 = sadd.s32 1, %s17
    $region7: #{tpu_custom_call.1} parent=1 // loop_footer_branch
      %16 = sbr.rel target = $region3
    $region8: #{tpu_custom_call.1} parent=1 // loop_exit
      _
    %8883 = vsyncpa [#allocation3], 1
    %s8884 = scalar_lea.sflag [#allocation3], 1
    %8885 = vsyncpa %s8884, 1
    %8886 = vsyncpa [#allocation6], 1
    %8887 = vsyncpa [#allocation4], 1
    %s8888 = scalar_lea.sflag [#allocation4], 1
    %8889 = vsyncpa %s8888, 1

</llo_original>
